<compile_context>
chip_gen: v7x
topology: tpu7x:2x2x1
jax: 0.10.0
libtpu: 0.0.40
codegen_flags: <defaults>
</compile_context>

<pallas_src>
import functools

import jax
import jax.numpy as jnp
from jax.experimental import pallas as pl
from jax.experimental.pallas import tpu as pltpu


# ---------------------------------------------------------------------------
# small helpers
# ---------------------------------------------------------------------------
def _round_up(v, m):
    return ((v + m - 1) // m) * m


def _pick_tile(m_total, cap):
    """Row tile: multiple of 8 covering m_total, capped at `cap` (also mult of 8)."""
    if m_total <= cap:
        return _round_up(max(m_total, 8), 8)
    return cap


def nearest_resize(x, Ho, Wo):
    """F.interpolate(..., mode='nearest') on NHWC (floor indexing)."""
    N, H, W, C = x.shape
    if Ho % H == 0 and Wo % W == 0:
        sh, sw = Ho // H, Wo // W
        y = jnp.broadcast_to(x[:, :, None, :, None, :], (N, H, sh, W, sw, C))
        return y.reshape(N, Ho, Wo, C)
    hi = (jnp.arange(Ho) * H) // Ho
    wi = (jnp.arange(Wo) * W) // Wo
    return x[:, hi][:, :, wi]


# ---------------------------------------------------------------------------
# Pallas kernels
# ---------------------------------------------------------------------------
def _conv1x1_kernel(x_ref, w_ref, b_ref, o_ref):
    o_ref[...] = (
        jnp.dot(x_ref[...], w_ref[...], preferred_element_type=jnp.float32)
        + b_ref[...]
    )


def _conv1x1_res_kernel(x_ref, w_ref, b_ref, r_ref, o_ref):
    # fused FPN top-down residual add (f32)
    o_ref[...] = (
        jnp.dot(x_ref[...], w_ref[...], preferred_element_type=jnp.float32)
        + b_ref[...]
        + r_ref[...]
    )


def _make_conv3x3_kernel(tm, wp, pre_relu):
    """3x3 stride-1 pad-1 conv on a flattened zero-padded image.

    x_ref : (1, Lin, C)  f32 flattened padded image (VMEM-resident per sample)
    w_ref : (9, C, Cp)   bf16 weight stack, tap order dh*3+dw
    b_ref : (1, Cp)      f32 bias
    o_ref : (1, tm, Cp)  f32 output rows (width still includes 2 pad columns)
    """

    def kernel(x_ref, w_ref, b_ref, o_ref):
        cp = o_ref.shape[-1]
        m0 = pl.multiple_of(pl.program_id(1) * tm, 8)
        acc = jnp.zeros((tm, cp), jnp.float32)
        for dh in range(3):
            for dw in range(3):
                xs = x_ref[0, pl.ds(m0 + dh * wp + dw, tm), :]
                if pre_relu:
                    xs = jnp.maximum(xs, 0.0)
                acc = acc + jnp.dot(
                    xs.astype(jnp.bfloat16),
                    w_ref[dh * 3 + dw],
                    preferred_element_type=jnp.float32,
                )
        o_ref[0] = acc + b_ref[...]

    return kernel


# ---------------------------------------------------------------------------
# conv wrappers (Pallas matmuls; XLA only for reshape / pad glue)
# ---------------------------------------------------------------------------
def conv1x1(x_nhwc, w_kc, b_1c, residual=None, m_cap=1024):
    """1x1 conv (stride 1) as a row-tiled MXU matmul with optional fused residual."""
    N, H, W, Cin = x_nhwc.shape
    Cp = w_kc.shape[1]
    M = N * H * W
    tm = _pick_tile(M, m_cap)
    Mp = _round_up(M, tm)

    x = x_nhwc.reshape(M, Cin).astype(jnp.bfloat16)
    if Mp > M:
        x = jnp.pad(x, ((0, Mp - M), (0, 0)))

    in_specs = [
        pl.BlockSpec((tm, Cin), lambda m: (m, 0)),
        pl.BlockSpec((Cin, Cp), lambda m: (0, 0)),
        pl.BlockSpec((1, Cp), lambda m: (0, 0)),
    ]
    args = [x, w_kc, b_1c]
    kernel = _conv1x1_kernel
    if residual is not None:
        r = residual.reshape(M, Cp)
        if Mp > M:
            r = jnp.pad(r, ((0, Mp - M), (0, 0)))
        in_specs.append(pl.BlockSpec((tm, Cp), lambda m: (m, 0)))
        args.append(r)
        kernel = _conv1x1_res_kernel

    out = pl.pallas_call(
        kernel,
        out_shape=jax.ShapeDtypeStruct((Mp, Cp), jnp.float32),
        grid=(Mp // tm,),
        in_specs=in_specs,
        out_specs=pl.BlockSpec((tm, Cp), lambda m: (m, 0)),
        compiler_params=pltpu.CompilerParams(dimension_semantics=("parallel",)),
    )(*args)
    return out[:M].reshape(N, H, W, Cp)


def conv3x3(x_nhwc, w9, b_1c, pre_relu=False, m_cap=1024):
    """3x3 conv, stride 1, padding 1, via 9 shifted dot-accumulates (no HBM im2col).

    x_nhwc : (N, H, W, Cp) f32 (channels already lane-padded to Cp)
    w9     : (9, Cp, Cp)   bf16
    b_1c   : (1, Cp)       f32
    """
    N, H, W, C = x_nhwc.shape
    Cp = w9.shape[2]
    Hp, Wp = H + 2, W + 2
    L = H * Wp                      # output rows per sample (padded width kept)
    tm = _pick_tile(L, m_cap)
    Lp = _round_up(L, tm)
    n_m = Lp // tm
    Lin = _round_up(Lp + 2 * Wp + 2, 8)   # room for the deepest tap offset

    xp = jnp.pad(x_nhwc, ((0, 0), (1, 1), (1, 1), (0, 0)))    # (N, Hp, Wp, C)
    xf = xp.reshape(N, Hp * Wp, C)
    xf = jnp.pad(xf, ((0, 0), (0, Lin - Hp * Wp), (0, 0)))    # (N, Lin, C) f32

    kernel = _make_conv3x3_kernel(tm, Wp, pre_relu)
    out = pl.pallas_call(
        kernel,
        out_shape=jax.ShapeDtypeStruct((N, Lp, Cp), jnp.float32),
        grid=(N, n_m),
        in_specs=[
            pl.BlockSpec((1, Lin, C), lambda n, m: (n, 0, 0)),
            pl.BlockSpec((9, C, Cp), lambda n, m: (0, 0, 0)),
            pl.BlockSpec((1, Cp), lambda n, m: (0, 0)),
        ],
        out_specs=pl.BlockSpec((1, tm, Cp), lambda n, m: (n, m, 0)),
        compiler_params=pltpu.CompilerParams(
            dimension_semantics=("parallel", "parallel")),
    )(xf, w9, b_1c)
    # drop tile padding rows and the two garbage columns from the padded width
    return out[:, :L, :].reshape(N, H, Wp, Cp)[:, :, :W, :]


# ---------------------------------------------------------------------------
# parameters
# ---------------------------------------------------------------------------
def init_fpn_params(key, c3_in, c4_in, c5_in, out_ch):
    def conv_params(k, cout, cin, kh, kw):
        kw_, kb_ = jax.random.split(k)
        w = jax.random.normal(kw_, (cout, cin, kh, kw), jnp.float32) * 0.05
        b = jax.random.normal(kb_, (cout,), jnp.float32) * 0.05
        return w, b

    keys = jax.random.split(key, 8)
    p = {}
    p["p3_1_w"], p["p3_1_b"] = conv_params(keys[0], out_ch, c3_in, 1, 1)
    p["p3_2_w"], p["p3_2_b"] = conv_params(keys[1], out_ch, out_ch, 3, 3)  # unused (as in ref)
    p["p4_1_w"], p["p4_1_b"] = conv_params(keys[2], out_ch, c4_in, 1, 1)
    p["p4_2_w"], p["p4_2_b"] = conv_params(keys[3], out_ch, out_ch, 3, 3)  # unused (as in ref)
    p["p5_1_w"], p["p5_1_b"] = conv_params(keys[4], out_ch, c5_in, 1, 1)
    p["p5_2_w"], p["p5_2_b"] = conv_params(keys[5], out_ch, out_ch, 3, 3)
    p["p6_w"], p["p6_b"] = conv_params(keys[6], out_ch, out_ch, 3, 3)
    p["p7_w"], p["p7_b"] = conv_params(keys[7], out_ch, out_ch, 3, 3)
    return p


def prepare_params(params, out_ch):
    """One-time weight reformat: transpose to (K, Cp), pad channels to a 128
    multiple (lane-dense stores), cast matmul operands to bf16, keep bias f32."""
    Cp = max(128, _round_up(out_ch, 128))

    def prep_bias(b):
        return jnp.pad(b, (0, Cp - out_ch)).reshape(1, Cp).astype(jnp.float32)

    def prep1x1(w, b):
        wk = jnp.transpose(w[:, :, 0, 0], (1, 0))                    # (Cin, Cout)
        wk = jnp.pad(wk, ((0, 0), (0, Cp - out_ch))).astype(jnp.bfloat16)
        return wk, prep_bias(b)

    def prep3x3(w, b):
        cin = w.shape[1]
        wt = jnp.transpose(w, (2, 3, 1, 0)).reshape(9, cin, out_ch)  # tap dh*3+dw
        wt = jnp.pad(wt, ((0, 0), (0, Cp - cin), (0, Cp - out_ch)))
        return wt.astype(jnp.bfloat16), prep_bias(b)

    prep = {
        "p3_1": prep1x1(params["p3_1_w"], params["p3_1_b"]),
        "p4_1": prep1x1(params["p4_1_w"], params["p4_1_b"]),
        "p5_1": prep1x1(params["p5_1_w"], params["p5_1_b"]),
        "p5_2": prep3x3(params["p5_2_w"], params["p5_2_b"]),
        "p6": prep3x3(params["p6_w"], params["p6_b"]),
        "p7": prep3x3(params["p7_w"], params["p7_b"]),
        # p3_2 / p4_2 exist in the reference module but are never used in forward().
    }
    return prep


# ---------------------------------------------------------------------------
# forward
# ---------------------------------------------------------------------------
@functools.partial(jax.jit, static_argnums=(1,))
def fpn_forward(prep, out_ch, c3, c4, c5):
    # NCHW -> NHWC
    c3 = jnp.transpose(c3, (0, 2, 3, 1))
    c4 = jnp.transpose(c4, (0, 2, 3, 1))
    c5 = jnp.transpose(c5, (0, 2, 3, 1))

    # lateral 1x1 convs; top-down nearest-upsample added as a fused residual
    p5 = conv1x1(c5, *prep["p5_1"])
    up5 = nearest_resize(p5, c4.shape[1], c4.shape[2])
    p4 = conv1x1(c4, *prep["p4_1"], residual=up5)
    up4 = nearest_resize(p4, c3.shape[1], c3.shape[2])
    p3 = conv1x1(c3, *prep["p3_1"], residual=up4)

    # extra levels: stride-2 (k=3, pad=1) conv == stride-1 conv + even subsample
    p6 = conv3x3(p5, *prep["p6"])[:, ::2, ::2, :]
    p7 = conv3x3(p6, *prep["p7"], pre_relu=True)[:, ::2, ::2, :]

    # smoothing convs: reference module applies p5_2 to p3, p4 AND p5 (quirk kept)
    p5o = conv3x3(p5, *prep["p5_2"])
    p4o = conv3x3(p4, *prep["p5_2"])
    p3o = conv3x3(p3, *prep["p5_2"])

    outs = [p3o, p4o, p5o, p6, p7]
    # strip channel padding, NHWC -> NCHW
    return [jnp.transpose(o[..., :out_ch], (0, 3, 1, 2)) for o in outs]


# ---------------------------------------------------------------------------
# pure-JAX reference (bf16 operands / f32 accumulation, same as the kernels)
# ---------------------------------------------------------------------------
def _ref_forward(params, c3, c4, c5):
    def conv(x, w, b, stride, pad):
        y = jax.lax.conv_general_dilated(
            x.astype(jnp.bfloat16),
            jnp.transpose(w, (2, 3, 1, 0)).astype(jnp.bfloat16),
            window_strides=(stride, stride),
            padding=[(pad, pad), (pad, pad)],
            dimension_numbers=("NHWC", "HWIO", "NHWC"),
            preferred_element_type=jnp.float32,
        )
        return y + b.reshape(1, 1, 1, -1)

    c3 = jnp.transpose(c3, (0, 2, 3, 1))
    c4 = jnp.transpose(c4, (0, 2, 3, 1))
    c5 = jnp.transpose(c5, (0, 2, 3, 1))
    p5 = conv(c5, params["p5_1_w"], params["p5_1_b"], 1, 0)
    p4 = conv(c4, params["p4_1_w"], params["p4_1_b"], 1, 0)
    p4 = p4 + nearest_resize(p5, p4.shape[1], p4.shape[2])
    p3 = conv(c3, params["p3_1_w"], params["p3_1_b"], 1, 0)
    p3 = p3 + nearest_resize(p4, p3.shape[1], p3.shape[2])
    p6 = conv(p5, params["p6_w"], params["p6_b"], 2, 1)
    p7 = conv(jnp.maximum(p6, 0.0), params["p7_w"], params["p7_b"], 2, 1)
    p5o = conv(p5, params["p5_2_w"], params["p5_2_b"], 1, 1)
    p4o = conv(p4, params["p5_2_w"], params["p5_2_b"], 1, 1)
    p3o = conv(p3, params["p5_2_w"], params["p5_2_b"], 1, 1)
    return [jnp.transpose(o, (0, 3, 1, 2)) for o in (p3o, p4o, p5o, p6, p7)]


# ---------------------------------------------------------------------------
if __name__ == "__main__":
    key = jax.random.PRNGKey(0)
    k_par, k3, k4, k5 = jax.random.split(key, 4)

    c3_in, c4_in, c5_in, out_ch = 8, 16, 32, 32
    c3 = jax.random.normal(k3, (2, c3_in, 16, 16), jnp.float32)
    c4 = jax.random.normal(k4, (2, c4_in, 8, 8), jnp.float32)
    c5 = jax.random.normal(k5, (2, c5_in, 4, 4), jnp.float32)

    params = init_fpn_params(k_par, c3_in, c4_in, c5_in, out_ch)
    prep = prepare_params(params, out_ch)

    outs = fpn_forward(prep, out_ch, c3, c4, c5)
    outs = jax.block_until_ready(outs)

    expected_shapes = [
        (2, out_ch, 16, 16),  # p3
        (2, out_ch, 8, 8),    # p4
        (2, out_ch, 4, 4),    # p5
        (2, out_ch, 2, 2),    # p6
        (2, out_ch, 1, 1),    # p7
    ]
    refs = _ref_forward(params, c3, c4, c5)
    for o, r, es in zip(outs, refs, expected_shapes):
        assert o.shape == es, (o.shape, es)
        assert o.dtype == jnp.float32
        err = float(jnp.max(jnp.abs(o - r)))
        assert err < 5e-2, ("numerical mismatch vs reference", err)

    print("KERNEL_OK")
</pallas_src>

<mosaic_0001>
module attributes {stable_mosaic.version = 11 : i64} {
  func.func @_conv1x1_res_kernel(%arg0: i32, %arg1: memref<128x16xbf16, #tpu.memory_space<vmem>>, %arg2: memref<16x128xbf16, #tpu.memory_space<vmem>>, %arg3: memref<1x128xf32, #tpu.memory_space<vmem>>, %arg4: memref<128x128xf32, #tpu.memory_space<vmem>>, %arg5: memref<128x128xf32, #tpu.memory_space<vmem>>) attributes {dimension_semantics = [#tpu.dimension_semantics<parallel>], iteration_bounds = array<i64: 1>, scalar_prefetch = 0 : i64, scratch_operands = 0 : i64, tpu.core_type = #tpu.core_type<tc>, window_params = [{transform_indices = @transform_0, window_bounds = array<i64: 128, 16>}, {pipeline_mode = #tpu.pipeline_mode<synchronous>, transform_indices = @transform_1, window_bounds = array<i64: 16, 128>}, {pipeline_mode = #tpu.pipeline_mode<synchronous>, transform_indices = @transform_2, window_bounds = array<i64: 1, 128>}, {transform_indices = @transform_3, window_bounds = array<i64: 128, 128>}, {transform_indices = @transform_4, window_bounds = array<i64: 128, 128>}]} {
    %c0 = arith.constant 0 : index
    %c0_0 = arith.constant 0 : index
    %0 = vector.load %arg1[%c0, %c0_0] : memref<128x16xbf16, #tpu.memory_space<vmem>>, vector<128x16xbf16>
    %c0_1 = arith.constant 0 : index
    %c0_2 = arith.constant 0 : index
    %1 = vector.load %arg2[%c0_1, %c0_2] : memref<16x128xbf16, #tpu.memory_space<vmem>>, vector<16x128xbf16>
    %cst = arith.constant dense<0.000000e+00> : vector<128x128xf32>
    %2 = tpu.matmul %0, %1, %cst {dimension_numbers = #tpu.dot_dimension_numbers<[1], [0], [0], [1], [0, 0, 1, 1], [], []>} : vector<128x16xbf16>, vector<16x128xbf16>, vector<128x128xf32> -> vector<128x128xf32>
    %c0_3 = arith.constant 0 : index
    %c0_4 = arith.constant 0 : index
    %3 = vector.load %arg3[%c0_3, %c0_4] : memref<1x128xf32, #tpu.memory_space<vmem>>, vector<1x128xf32>
    %4 = vector.broadcast %3 : vector<1x128xf32> to vector<128x128xf32>
    %5 = arith.addf %2, %4 : vector<128x128xf32>
    %c0_5 = arith.constant 0 : index
    %c0_6 = arith.constant 0 : index
    %6 = vector.load %arg4[%c0_5, %c0_6] : memref<128x128xf32, #tpu.memory_space<vmem>>, vector<128x128xf32>
    %7 = arith.addf %5, %6 : vector<128x128xf32>
    %c0_7 = arith.constant 0 : index
    %c0_8 = arith.constant 0 : index
    %8 = vector.load %arg5[%c0_7, %c0_8] : memref<128x128xf32, #tpu.memory_space<vmem>>, vector<128x128xf32>
    tpu.vector_store %arg5[%c0_7, %c0_8], %7 {strides = array<i32>} : memref<128x128xf32, #tpu.memory_space<vmem>>, vector<128x128xf32>,
    return
  }
  func.func @transform_0(%arg0: i32) -> (i32, i32) {
    %c0_i32 = arith.constant 0 : i32
    %c0_i32_0 = arith.constant 0 : i32
    return %arg0, %c0_i32 : i32, i32
  }
  func.func @transform_1(%arg0: i32) -> (i32, i32) {
    %c0_i32 = arith.constant 0 : i32
    %c0_i32_0 = arith.constant 0 : i32
    %c0_i32_1 = arith.constant 0 : i32
    return %c0_i32, %c0_i32_0 : i32, i32
  }
  func.func @transform_2(%arg0: i32) -> (i32, i32) {
    %c0_i32 = arith.constant 0 : i32
    %c0_i32_0 = arith.constant 0 : i32
    %c0_i32_1 = arith.constant 0 : i32
    return %c0_i32, %c0_i32_0 : i32, i32
  }
  func.func @transform_3(%arg0: i32) -> (i32, i32) {
    %c0_i32 = arith.constant 0 : i32
    %c0_i32_0 = arith.constant 0 : i32
    return %arg0, %c0_i32 : i32, i32
  }
  func.func @transform_4(%arg0: i32) -> (i32, i32) {
    %c0_i32 = arith.constant 0 : i32
    %c0_i32_0 = arith.constant 0 : i32
    return %arg0, %c0_i32 : i32, i32
  }
}

module attributes {stable_mosaic.version = 11 : i64} {
  func.func @_conv1x1_kernel(%arg0: i32, %arg1: memref<32x32xbf16, #tpu.memory_space<vmem>>, %arg2: memref<32x128xbf16, #tpu.memory_space<vmem>>, %arg3: memref<1x128xf32, #tpu.memory_space<vmem>>, %arg4: memref<32x128xf32, #tpu.memory_space<vmem>>) attributes {dimension_semantics = [#tpu.dimension_semantics<parallel>], iteration_bounds = array<i64: 1>, scalar_prefetch = 0 : i64, scratch_operands = 0 : i64, tpu.core_type = #tpu.core_type<tc>, window_params = [{transform_indices = @transform_0, window_bounds = array<i64: 32, 32>}, {pipeline_mode = #tpu.pipeline_mode<synchronous>, transform_indices = @transform_1, window_bounds = array<i64: 32, 128>}, {pipeline_mode = #tpu.pipeline_mode<synchronous>, transform_indices = @transform_2, window_bounds = array<i64: 1, 128>}, {transform_indices = @transform_3, window_bounds = array<i64: 32, 128>}]} {
    %c0 = arith.constant 0 : index
    %c0_0 = arith.constant 0 : index
    %0 = vector.load %arg1[%c0, %c0_0] : memref<32x32xbf16, #tpu.memory_space<vmem>>, vector<32x32xbf16>
    %c0_1 = arith.constant 0 : index
    %c0_2 = arith.constant 0 : index
    %1 = vector.load %arg2[%c0_1, %c0_2] : memref<32x128xbf16, #tpu.memory_space<vmem>>, vector<32x128xbf16>
    %cst = arith.constant dense<0.000000e+00> : vector<32x128xf32>
    %2 = tpu.matmul %0, %1, %cst {dimension_numbers = #tpu.dot_dimension_numbers<[1], [0], [0], [1], [0, 0, 1, 1], [], []>} : vector<32x32xbf16>, vector<32x128xbf16>, vector<32x128xf32> -> vector<32x128xf32>
    %c0_3 = arith.constant 0 : index
    %c0_4 = arith.constant 0 : index
    %3 = vector.load %arg3[%c0_3, %c0_4] : memref<1x128xf32, #tpu.memory_space<vmem>>, vector<1x128xf32>
    %4 = vector.broadcast %3 : vector<1x128xf32> to vector<32x128xf32>
    %5 = arith.addf %2, %4 : vector<32x128xf32>
    %c0_5 = arith.constant 0 : index
    %c0_6 = arith.constant 0 : index
    %6 = vector.load %arg4[%c0_5, %c0_6] : memref<32x128xf32, #tpu.memory_space<vmem>>, vector<32x128xf32>
    tpu.vector_store %arg4[%c0_5, %c0_6], %5 {strides = array<i32>} : memref<32x128xf32, #tpu.memory_space<vmem>>, vector<32x128xf32>,
    return
  }
  func.func @transform_0(%arg0: i32) -> (i32, i32) {
    %c0_i32 = arith.constant 0 : i32
    %c0_i32_0 = arith.constant 0 : i32
    return %arg0, %c0_i32 : i32, i32
  }
  func.func @transform_1(%arg0: i32) -> (i32, i32) {
    %c0_i32 = arith.constant 0 : i32
    %c0_i32_0 = arith.constant 0 : i32
    %c0_i32_1 = arith.constant 0 : i32
    return %c0_i32, %c0_i32_0 : i32, i32
  }
  func.func @transform_2(%arg0: i32) -> (i32, i32) {
    %c0_i32 = arith.constant 0 : i32
    %c0_i32_0 = arith.constant 0 : i32
    %c0_i32_1 = arith.constant 0 : i32
    return %c0_i32, %c0_i32_0 : i32, i32
  }
  func.func @transform_3(%arg0: i32) -> (i32, i32) {
    %c0_i32 = arith.constant 0 : i32
    %c0_i32_0 = arith.constant 0 : i32
    return %arg0, %c0_i32 : i32, i32
  }
}

module attributes {stable_mosaic.version = 11 : i64} {
  func.func @_conv1x1_res_kernel(%arg0: i32, %arg1: memref<512x8xbf16, #tpu.memory_space<vmem>>, %arg2: memref<8x128xbf16, #tpu.memory_space<vmem>>, %arg3: memref<1x128xf32, #tpu.memory_space<vmem>>, %arg4: memref<512x128xf32, #tpu.memory_space<vmem>>, %arg5: memref<512x128xf32, #tpu.memory_space<vmem>>) attributes {dimension_semantics = [#tpu.dimension_semantics<parallel>], iteration_bounds = array<i64: 1>, scalar_prefetch = 0 : i64, scratch_operands = 0 : i64, tpu.core_type = #tpu.core_type<tc>, window_params = [{transform_indices = @transform_0, window_bounds = array<i64: 512, 8>}, {pipeline_mode = #tpu.pipeline_mode<synchronous>, transform_indices = @transform_1, window_bounds = array<i64: 8, 128>}, {pipeline_mode = #tpu.pipeline_mode<synchronous>, transform_indices = @transform_2, window_bounds = array<i64: 1, 128>}, {transform_indices = @transform_3, window_bounds = array<i64: 512, 128>}, {transform_indices = @transform_4, window_bounds = array<i64: 512, 128>}]} {
    %c0 = arith.constant 0 : index
    %c0_0 = arith.constant 0 : index
    %0 = vector.load %arg1[%c0, %c0_0] : memref<512x8xbf16, #tpu.memory_space<vmem>>, vector<512x8xbf16>
    %c0_1 = arith.constant 0 : index
    %c0_2 = arith.constant 0 : index
    %1 = vector.load %arg2[%c0_1, %c0_2] : memref<8x128xbf16, #tpu.memory_space<vmem>>, vector<8x128xbf16>
    %cst = arith.constant dense<0.000000e+00> : vector<512x128xf32>
    %2 = tpu.matmul %0, %1, %cst {dimension_numbers = #tpu.dot_dimension_numbers<[1], [0], [0], [1], [0, 0, 1, 1], [], []>} : vector<512x8xbf16>, vector<8x128xbf16>, vector<512x128xf32> -> vector<512x128xf32>
    %c0_3 = arith.constant 0 : index
    %c0_4 = arith.constant 0 : index
    %3 = vector.load %arg3[%c0_3, %c0_4] : memref<1x128xf32, #tpu.memory_space<vmem>>, vector<1x128xf32>
    %4 = vector.broadcast %3 : vector<1x128xf32> to vector<512x128xf32>
    %5 = arith.addf %2, %4 : vector<512x128xf32>
    %c0_5 = arith.constant 0 : index
    %c0_6 = arith.constant 0 : index
    %6 = vector.load %arg4[%c0_5, %c0_6] : memref<512x128xf32, #tpu.memory_space<vmem>>, vector<512x128xf32>
    %7 = arith.addf %5, %6 : vector<512x128xf32>
    %c0_7 = arith.constant 0 : index
    %c0_8 = arith.constant 0 : index
    %8 = vector.load %arg5[%c0_7, %c0_8] : memref<512x128xf32, #tpu.memory_space<vmem>>, vector<512x128xf32>
    tpu.vector_store %arg5[%c0_7, %c0_8], %7 {strides = array<i32>} : memref<512x128xf32, #tpu.memory_space<vmem>>, vector<512x128xf32>,
    return
  }
  func.func @transform_0(%arg0: i32) -> (i32, i32) {
    %c0_i32 = arith.constant 0 : i32
    %c0_i32_0 = arith.constant 0 : i32
    return %arg0, %c0_i32 : i32, i32
  }
  func.func @transform_1(%arg0: i32) -> (i32, i32) {
    %c0_i32 = arith.constant 0 : i32
    %c0_i32_0 = arith.constant 0 : i32
    %c0_i32_1 = arith.constant 0 : i32
    return %c0_i32, %c0_i32_0 : i32, i32
  }
  func.func @transform_2(%arg0: i32) -> (i32, i32) {
    %c0_i32 = arith.constant 0 : i32
    %c0_i32_0 = arith.constant 0 : i32
    %c0_i32_1 = arith.constant 0 : i32
    return %c0_i32, %c0_i32_0 : i32, i32
  }
  func.func @transform_3(%arg0: i32) -> (i32, i32) {
    %c0_i32 = arith.constant 0 : i32
    %c0_i32_0 = arith.constant 0 : i32
    return %arg0, %c0_i32 : i32, i32
  }
  func.func @transform_4(%arg0: i32) -> (i32, i32) {
    %c0_i32 = arith.constant 0 : i32
    %c0_i32_0 = arith.constant 0 : i32
    return %arg0, %c0_i32 : i32, i32
  }
}

module attributes {stable_mosaic.version = 11 : i64} {
  func.func @kernel(%arg0: i32, %arg1: i32, %arg2: memref<1x328x128xf32, #tpu.memory_space<vmem>>, %arg3: memref<9x128x128xbf16, #tpu.memory_space<vmem>>, %arg4: memref<1x128xf32, #tpu.memory_space<vmem>>, %arg5: memref<1x288x128xf32, #tpu.memory_space<vmem>>) attributes {dimension_semantics = [#tpu.dimension_semantics<parallel>, #tpu.dimension_semantics<parallel>], iteration_bounds = array<i64: 2, 1>, scalar_prefetch = 0 : i64, scratch_operands = 0 : i64, tpu.core_type = #tpu.core_type<tc>, window_params = [{transform_indices = @transform_0, window_bounds = array<i64: 1, 328, 128>}, {pipeline_mode = #tpu.pipeline_mode<synchronous>, transform_indices = @transform_1, window_bounds = array<i64: 9, 128, 128>}, {pipeline_mode = #tpu.pipeline_mode<synchronous>, transform_indices = @transform_2, window_bounds = array<i64: 1, 128>}, {transform_indices = @transform_3, window_bounds = array<i64: 1, 288, 128>}]} {
    %c288_i32 = arith.constant 288 : i32
    %0 = arith.muli %arg1, %c288_i32 : i32
    %1 = tpu.assume_multiple %0, 8 : i32
    %cst = arith.constant 0.000000e+00 : f32
    %2 = vector.broadcast %cst : f32 to vector<288x128xf32>
    %c0_i32 = arith.constant 0 : i32
    %3 = arith.addi %1, %c0_i32 : i32
    %c0_i32_0 = arith.constant 0 : i32
    %4 = arith.addi %3, %c0_i32_0 : i32
    %c0 = arith.constant 0 : index
    %5 = arith.index_cast %4 : i32 to index
    %c0_1 = arith.constant 0 : index
    %6 = vector.load %arg2[%c0, %5, %c0_1] : memref<1x328x128xf32, #tpu.memory_space<vmem>>, vector<1x288x128xf32>
    %7 = vector.shape_cast %6 : vector<1x288x128xf32> to vector<288x128xf32>
    %8 = arith.truncf %7 : vector<288x128xf32> to vector<288x128xbf16>
    %c0_2 = arith.constant 0 : index
    %c0_3 = arith.constant 0 : index
    %c0_4 = arith.constant 0 : index
    %9 = vector.load %arg3[%c0_2, %c0_3, %c0_4] : memref<9x128x128xbf16, #tpu.memory_space<vmem>>, vector<1x128x128xbf16>
    %10 = vector.shape_cast %9 : vector<1x128x128xbf16> to vector<128x128xbf16>
    %cst_5 = arith.constant dense<0.000000e+00> : vector<288x128xf32>
    %11 = tpu.matmul %8, %10, %cst_5 {dimension_numbers = #tpu.dot_dimension_numbers<[1], [0], [0], [1], [0, 0, 1, 1], [], []>} : vector<288x128xbf16>, vector<128x128xbf16>, vector<288x128xf32> -> vector<288x128xf32>
    %12 = arith.addf %2, %11 : vector<288x128xf32>
    %c0_i32_6 = arith.constant 0 : i32
    %13 = arith.addi %1, %c0_i32_6 : i32
    %c1_i32 = arith.constant 1 : i32
    %14 = arith.addi %13, %c1_i32 : i32
    %c0_7 = arith.constant 0 : index
    %15 = arith.index_cast %14 : i32 to index
    %c0_8 = arith.constant 0 : index
    %16 = vector.load %arg2[%c0_7, %15, %c0_8] : memref<1x328x128xf32, #tpu.memory_space<vmem>>, vector<1x288x128xf32>
    %17 = vector.shape_cast %16 : vector<1x288x128xf32> to vector<288x128xf32>
    %18 = arith.truncf %17 : vector<288x128xf32> to vector<288x128xbf16>
    %c1 = arith.constant 1 : index
    %c0_9 = arith.constant 0 : index
    %c0_10 = arith.constant 0 : index
    %19 = vector.load %arg3[%c1, %c0_9, %c0_10] : memref<9x128x128xbf16, #tpu.memory_space<vmem>>, vector<1x128x128xbf16>
    %20 = vector.shape_cast %19 : vector<1x128x128xbf16> to vector<128x128xbf16>
    %cst_11 = arith.constant dense<0.000000e+00> : vector<288x128xf32>
    %21 = tpu.matmul %18, %20, %cst_11 {dimension_numbers = #tpu.dot_dimension_numbers<[1], [0], [0], [1], [0, 0, 1, 1], [], []>} : vector<288x128xbf16>, vector<128x128xbf16>, vector<288x128xf32> -> vector<288x128xf32>
    %22 = arith.addf %12, %21 : vector<288x128xf32>
    %c0_i32_12 = arith.constant 0 : i32
    %23 = arith.addi %1, %c0_i32_12 : i32
    %c2_i32 = arith.constant 2 : i32
    %24 = arith.addi %23, %c2_i32 : i32
    %c0_13 = arith.constant 0 : index
    %25 = arith.index_cast %24 : i32 to index
    %c0_14 = arith.constant 0 : index
    %26 = vector.load %arg2[%c0_13, %25, %c0_14] : memref<1x328x128xf32, #tpu.memory_space<vmem>>, vector<1x288x128xf32>
    %27 = vector.shape_cast %26 : vector<1x288x128xf32> to vector<288x128xf32>
    %28 = arith.truncf %27 : vector<288x128xf32> to vector<288x128xbf16>
    %c2 = arith.constant 2 : index
    %c0_15 = arith.constant 0 : index
    %c0_16 = arith.constant 0 : index
    %29 = vector.load %arg3[%c2, %c0_15, %c0_16] : memref<9x128x128xbf16, #tpu.memory_space<vmem>>, vector<1x128x128xbf16>
    %30 = vector.shape_cast %29 : vector<1x128x128xbf16> to vector<128x128xbf16>
    %cst_17 = arith.constant dense<0.000000e+00> : vector<288x128xf32>
    %31 = tpu.matmul %28, %30, %cst_17 {dimension_numbers = #tpu.dot_dimension_numbers<[1], [0], [0], [1], [0, 0, 1, 1], [], []>} : vector<288x128xbf16>, vector<128x128xbf16>, vector<288x128xf32> -> vector<288x128xf32>
    %32 = arith.addf %22, %31 : vector<288x128xf32>
    %c18_i32 = arith.constant 18 : i32
    %33 = arith.addi %1, %c18_i32 : i32
    %c0_i32_18 = arith.constant 0 : i32
    %34 = arith.addi %33, %c0_i32_18 : i32
    %c0_19 = arith.constant 0 : index
    %35 = arith.index_cast %34 : i32 to index
    %c0_20 = arith.constant 0 : index
    %36 = vector.load %arg2[%c0_19, %35, %c0_20] : memref<1x328x128xf32, #tpu.memory_space<vmem>>, vector<1x288x128xf32>
    %37 = vector.shape_cast %36 : vector<1x288x128xf32> to vector<288x128xf32>
    %38 = arith.truncf %37 : vector<288x128xf32> to vector<288x128xbf16>
    %c3 = arith.constant 3 : index
    %c0_21 = arith.constant 0 : index
    %c0_22 = arith.constant 0 : index
    %39 = vector.load %arg3[%c3, %c0_21, %c0_22] : memref<9x128x128xbf16, #tpu.memory_space<vmem>>, vector<1x128x128xbf16>
    %40 = vector.shape_cast %39 : vector<1x128x128xbf16> to vector<128x128xbf16>
    %cst_23 = arith.constant dense<0.000000e+00> : vector<288x128xf32>
    %41 = tpu.matmul %38, %40, %cst_23 {dimension_numbers = #tpu.dot_dimension_numbers<[1], [0], [0], [1], [0, 0, 1, 1], [], []>} : vector<288x128xbf16>, vector<128x128xbf16>, vector<288x128xf32> -> vector<288x128xf32>
    %42 = arith.addf %32, %41 : vector<288x128xf32>
    %c18_i32_24 = arith.constant 18 : i32
    %43 = arith.addi %1, %c18_i32_24 : i32
    %c1_i32_25 = arith.constant 1 : i32
    %44 = arith.addi %43, %c1_i32_25 : i32
    %c0_26 = arith.constant 0 : index
    %45 = arith.index_cast %44 : i32 to index
    %c0_27 = arith.constant 0 : index
    %46 = vector.load %arg2[%c0_26, %45, %c0_27] : memref<1x328x128xf32, #tpu.memory_space<vmem>>, vector<1x288x128xf32>
    %47 = vector.shape_cast %46 : vector<1x288x128xf32> to vector<288x128xf32>
    %48 = arith.truncf %47 : vector<288x128xf32> to vector<288x128xbf16>
    %c4 = arith.constant 4 : index
    %c0_28 = arith.constant 0 : index
    %c0_29 = arith.constant 0 : index
    %49 = vector.load %arg3[%c4, %c0_28, %c0_29] : memref<9x128x128xbf16, #tpu.memory_space<vmem>>, vector<1x128x128xbf16>
    %50 = vector.shape_cast %49 : vector<1x128x128xbf16> to vector<128x128xbf16>
    %cst_30 = arith.constant dense<0.000000e+00> : vector<288x128xf32>
    %51 = tpu.matmul %48, %50, %cst_30 {dimension_numbers = #tpu.dot_dimension_numbers<[1], [0], [0], [1], [0, 0, 1, 1], [], []>} : vector<288x128xbf16>, vector<128x128xbf16>, vector<288x128xf32> -> vector<288x128xf32>
    %52 = arith.addf %42, %51 : vector<288x128xf32>
    %c18_i32_31 = arith.constant 18 : i32
    %53 = arith.addi %1, %c18_i32_31 : i32
    %c2_i32_32 = arith.constant 2 : i32
    %54 = arith.addi %53, %c2_i32_32 : i32
    %c0_33 = arith.constant 0 : index
    %55 = arith.index_cast %54 : i32 to index
    %c0_34 = arith.constant 0 : index
    %56 = vector.load %arg2[%c0_33, %55, %c0_34] : memref<1x328x128xf32, #tpu.memory_space<vmem>>, vector<1x288x128xf32>
    %57 = vector.shape_cast %56 : vector<1x288x128xf32> to vector<288x128xf32>
    %58 = arith.truncf %57 : vector<288x128xf32> to vector<288x128xbf16>
    %c5 = arith.constant 5 : index
    %c0_35 = arith.constant 0 : index
    %c0_36 = arith.constant 0 : index
    %59 = vector.load %arg3[%c5, %c0_35, %c0_36] : memref<9x128x128xbf16, #tpu.memory_space<vmem>>, vector<1x128x128xbf16>
    %60 = vector.shape_cast %59 : vector<1x128x128xbf16> to vector<128x128xbf16>
    %cst_37 = arith.constant dense<0.000000e+00> : vector<288x128xf32>
    %61 = tpu.matmul %58, %60, %cst_37 {dimension_numbers = #tpu.dot_dimension_numbers<[1], [0], [0], [1], [0, 0, 1, 1], [], []>} : vector<288x128xbf16>, vector<128x128xbf16>, vector<288x128xf32> -> vector<288x128xf32>
    %62 = arith.addf %52, %61 : vector<288x128xf32>
    %c36_i32 = arith.constant 36 : i32
    %63 = arith.addi %1, %c36_i32 : i32
    %c0_i32_38 = arith.constant 0 : i32
    %64 = arith.addi %63, %c0_i32_38 : i32
    %c0_39 = arith.constant 0 : index
    %65 = arith.index_cast %64 : i32 to index
    %c0_40 = arith.constant 0 : index
    %66 = vector.load %arg2[%c0_39, %65, %c0_40] : memref<1x328x128xf32, #tpu.memory_space<vmem>>, vector<1x288x128xf32>
    %67 = vector.shape_cast %66 : vector<1x288x128xf32> to vector<288x128xf32>
    %68 = arith.truncf %67 : vector<288x128xf32> to vector<288x128xbf16>
    %c6 = arith.constant 6 : index
    %c0_41 = arith.constant 0 : index
    %c0_42 = arith.constant 0 : index
    %69 = vector.load %arg3[%c6, %c0_41, %c0_42] : memref<9x128x128xbf16, #tpu.memory_space<vmem>>, vector<1x128x128xbf16>
    %70 = vector.shape_cast %69 : vector<1x128x128xbf16> to vector<128x128xbf16>
    %cst_43 = arith.constant dense<0.000000e+00> : vector<288x128xf32>
    %71 = tpu.matmul %68, %70, %cst_43 {dimension_numbers = #tpu.dot_dimension_numbers<[1], [0], [0], [1], [0, 0, 1, 1], [], []>} : vector<288x128xbf16>, vector<128x128xbf16>, vector<288x128xf32> -> vector<288x128xf32>
    %72 = arith.addf %62, %71 : vector<288x128xf32>
    %c36_i32_44 = arith.constant 36 : i32
    %73 = arith.addi %1, %c36_i32_44 : i32
    %c1_i32_45 = arith.constant 1 : i32
    %74 = arith.addi %73, %c1_i32_45 : i32
    %c0_46 = arith.constant 0 : index
    %75 = arith.index_cast %74 : i32 to index
    %c0_47 = arith.constant 0 : index
    %76 = vector.load %arg2[%c0_46, %75, %c0_47] : memref<1x328x128xf32, #tpu.memory_space<vmem>>, vector<1x288x128xf32>
    %77 = vector.shape_cast %76 : vector<1x288x128xf32> to vector<288x128xf32>
    %78 = arith.truncf %77 : vector<288x128xf32> to vector<288x128xbf16>
    %c7 = arith.constant 7 : index
    %c0_48 = arith.constant 0 : index
    %c0_49 = arith.constant 0 : index
    %79 = vector.load %arg3[%c7, %c0_48, %c0_49] : memref<9x128x128xbf16, #tpu.memory_space<vmem>>, vector<1x128x128xbf16>
    %80 = vector.shape_cast %79 : vector<1x128x128xbf16> to vector<128x128xbf16>
    %cst_50 = arith.constant dense<0.000000e+00> : vector<288x128xf32>
    %81 = tpu.matmul %78, %80, %cst_50 {dimension_numbers = #tpu.dot_dimension_numbers<[1], [0], [0], [1], [0, 0, 1, 1], [], []>} : vector<288x128xbf16>, vector<128x128xbf16>, vector<288x128xf32> -> vector<288x128xf32>
    %82 = arith.addf %72, %81 : vector<288x128xf32>
    %c36_i32_51 = arith.constant 36 : i32
    %83 = arith.addi %1, %c36_i32_51 : i32
    %c2_i32_52 = arith.constant 2 : i32
    %84 = arith.addi %83, %c2_i32_52 : i32
    %c0_53 = arith.constant 0 : index
    %85 = arith.index_cast %84 : i32 to index
    %c0_54 = arith.constant 0 : index
    %86 = vector.load %arg2[%c0_53, %85, %c0_54] : memref<1x328x128xf32, #tpu.memory_space<vmem>>, vector<1x288x128xf32>
    %87 = vector.shape_cast %86 : vector<1x288x128xf32> to vector<288x128xf32>
    %88 = arith.truncf %87 : vector<288x128xf32> to vector<288x128xbf16>
    %c8 = arith.constant 8 : index
    %c0_55 = arith.constant 0 : index
    %c0_56 = arith.constant 0 : index
    %89 = vector.load %arg3[%c8, %c0_55, %c0_56] : memref<9x128x128xbf16, #tpu.memory_space<vmem>>, vector<1x128x128xbf16>
    %90 = vector.shape_cast %89 : vector<1x128x128xbf16> to vector<128x128xbf16>
    %cst_57 = arith.constant dense<0.000000e+00> : vector<288x128xf32>
    %91 = tpu.matmul %88, %90, %cst_57 {dimension_numbers = #tpu.dot_dimension_numbers<[1], [0], [0], [1], [0, 0, 1, 1], [], []>} : vector<288x128xbf16>, vector<128x128xbf16>, vector<288x128xf32> -> vector<288x128xf32>
    %92 = arith.addf %82, %91 : vector<288x128xf32>
    %c0_58 = arith.constant 0 : index
    %c0_59 = arith.constant 0 : index
    %93 = vector.load %arg4[%c0_58, %c0_59] : memref<1x128xf32, #tpu.memory_space<vmem>>, vector<1x128xf32>
    %94 = vector.broadcast %93 : vector<1x128xf32> to vector<288x128xf32>
    %95 = arith.addf %92, %94 : vector<288x128xf32>
    %c0_60 = arith.constant 0 : index
    %c0_61 = arith.constant 0 : index
    %c0_62 = arith.constant 0 : index
    %96 = vector.load %arg5[%c0_60, %c0_61, %c0_62] : memref<1x288x128xf32, #tpu.memory_space<vmem>>, vector<1x288x128xf32>
    %97 = vector.shape_cast %96 : vector<1x288x128xf32> to vector<288x128xf32>
    %98 = vector.shape_cast %95 : vector<288x128xf32> to vector<1x288x128xf32>
    tpu.vector_store %arg5[%c0_60, %c0_61, %c0_62], %98 {strides = array<i32>} : memref<1x288x128xf32, #tpu.memory_space<vmem>>, vector<1x288x128xf32>,
    return
  }
  func.func @transform_0(%arg0: i32, %arg1: i32) -> (i32, i32, i32) {
    %c0_i32 = arith.constant 0 : i32
    %c0_i32_0 = arith.constant 0 : i32
    %c0_i32_1 = arith.constant 0 : i32
    return %arg0, %c0_i32, %c0_i32_0 : i32, i32, i32
  }
  func.func @transform_1(%arg0: i32, %arg1: i32) -> (i32, i32, i32) {
    %c0_i32 = arith.constant 0 : i32
    %c0_i32_0 = arith.constant 0 : i32
    %c0_i32_1 = arith.constant 0 : i32
    %c0_i32_2 = arith.constant 0 : i32
    return %c0_i32, %c0_i32_0, %c0_i32_1 : i32, i32, i32
  }
  func.func @transform_2(%arg0: i32, %arg1: i32) -> (i32, i32) {
    %c0_i32 = arith.constant 0 : i32
    %c0_i32_0 = arith.constant 0 : i32
    %c0_i32_1 = arith.constant 0 : i32
    return %c0_i32, %c0_i32_0 : i32, i32
  }
  func.func @transform_3(%arg0: i32, %arg1: i32) -> (i32, i32, i32) {
    %c0_i32 = arith.constant 0 : i32
    %c0_i32_0 = arith.constant 0 : i32
    return %arg0, %arg1, %c0_i32 : i32, i32, i32
  }
}

module attributes {stable_mosaic.version = 11 : i64} {
  func.func @kernel(%arg0: i32, %arg1: i32, %arg2: memref<1x104x128xf32, #tpu.memory_space<vmem>>, %arg3: memref<9x128x128xbf16, #tpu.memory_space<vmem>>, %arg4: memref<1x128xf32, #tpu.memory_space<vmem>>, %arg5: memref<1x80x128xf32, #tpu.memory_space<vmem>>) attributes {dimension_semantics = [#tpu.dimension_semantics<parallel>, #tpu.dimension_semantics<parallel>], iteration_bounds = array<i64: 2, 1>, scalar_prefetch = 0 : i64, scratch_operands = 0 : i64, tpu.core_type = #tpu.core_type<tc>, window_params = [{transform_indices = @transform_0, window_bounds = array<i64: 1, 104, 128>}, {pipeline_mode = #tpu.pipeline_mode<synchronous>, transform_indices = @transform_1, window_bounds = array<i64: 9, 128, 128>}, {pipeline_mode = #tpu.pipeline_mode<synchronous>, transform_indices = @transform_2, window_bounds = array<i64: 1, 128>}, {transform_indices = @transform_3, window_bounds = array<i64: 1, 80, 128>}]} {
    %c80_i32 = arith.constant 80 : i32
    %0 = arith.muli %arg1, %c80_i32 : i32
    %1 = tpu.assume_multiple %0, 8 : i32
    %cst = arith.constant 0.000000e+00 : f32
    %2 = vector.broadcast %cst : f32 to vector<80x128xf32>
    %c0_i32 = arith.constant 0 : i32
    %3 = arith.addi %1, %c0_i32 : i32
    %c0_i32_0 = arith.constant 0 : i32
    %4 = arith.addi %3, %c0_i32_0 : i32
    %c0 = arith.constant 0 : index
    %5 = arith.index_cast %4 : i32 to index
    %c0_1 = arith.constant 0 : index
    %6 = vector.load %arg2[%c0, %5, %c0_1] : memref<1x104x128xf32, #tpu.memory_space<vmem>>, vector<1x80x128xf32>
    %7 = vector.shape_cast %6 : vector<1x80x128xf32> to vector<80x128xf32>
    %8 = arith.truncf %7 : vector<80x128xf32> to vector<80x128xbf16>
    %c0_2 = arith.constant 0 : index
    %c0_3 = arith.constant 0 : index
    %c0_4 = arith.constant 0 : index
    %9 = vector.load %arg3[%c0_2, %c0_3, %c0_4] : memref<9x128x128xbf16, #tpu.memory_space<vmem>>, vector<1x128x128xbf16>
    %10 = vector.shape_cast %9 : vector<1x128x128xbf16> to vector<128x128xbf16>
    %cst_5 = arith.constant dense<0.000000e+00> : vector<80x128xf32>
    %11 = tpu.matmul %8, %10, %cst_5 {dimension_numbers = #tpu.dot_dimension_numbers<[1], [0], [0], [1], [0, 0, 1, 1], [], []>} : vector<80x128xbf16>, vector<128x128xbf16>, vector<80x128xf32> -> vector<80x128xf32>
    %12 = arith.addf %2, %11 : vector<80x128xf32>
    %c0_i32_6 = arith.constant 0 : i32
    %13 = arith.addi %1, %c0_i32_6 : i32
    %c1_i32 = arith.constant 1 : i32
    %14 = arith.addi %13, %c1_i32 : i32
    %c0_7 = arith.constant 0 : index
    %15 = arith.index_cast %14 : i32 to index
    %c0_8 = arith.constant 0 : index
    %16 = vector.load %arg2[%c0_7, %15, %c0_8] : memref<1x104x128xf32, #tpu.memory_space<vmem>>, vector<1x80x128xf32>
    %17 = vector.shape_cast %16 : vector<1x80x128xf32> to vector<80x128xf32>
    %18 = arith.truncf %17 : vector<80x128xf32> to vector<80x128xbf16>
    %c1 = arith.constant 1 : index
    %c0_9 = arith.constant 0 : index
    %c0_10 = arith.constant 0 : index
    %19 = vector.load %arg3[%c1, %c0_9, %c0_10] : memref<9x128x128xbf16, #tpu.memory_space<vmem>>, vector<1x128x128xbf16>
    %20 = vector.shape_cast %19 : vector<1x128x128xbf16> to vector<128x128xbf16>
    %cst_11 = arith.constant dense<0.000000e+00> : vector<80x128xf32>
    %21 = tpu.matmul %18, %20, %cst_11 {dimension_numbers = #tpu.dot_dimension_numbers<[1], [0], [0], [1], [0, 0, 1, 1], [], []>} : vector<80x128xbf16>, vector<128x128xbf16>, vector<80x128xf32> -> vector<80x128xf32>
    %22 = arith.addf %12, %21 : vector<80x128xf32>
    %c0_i32_12 = arith.constant 0 : i32
    %23 = arith.addi %1, %c0_i32_12 : i32
    %c2_i32 = arith.constant 2 : i32
    %24 = arith.addi %23, %c2_i32 : i32
    %c0_13 = arith.constant 0 : index
    %25 = arith.index_cast %24 : i32 to index
    %c0_14 = arith.constant 0 : index
    %26 = vector.load %arg2[%c0_13, %25, %c0_14] : memref<1x104x128xf32, #tpu.memory_space<vmem>>, vector<1x80x128xf32>
    %27 = vector.shape_cast %26 : vector<1x80x128xf32> to vector<80x128xf32>
    %28 = arith.truncf %27 : vector<80x128xf32> to vector<80x128xbf16>
    %c2 = arith.constant 2 : index
    %c0_15 = arith.constant 0 : index
    %c0_16 = arith.constant 0 : index
    %29 = vector.load %arg3[%c2, %c0_15, %c0_16] : memref<9x128x128xbf16, #tpu.memory_space<vmem>>, vector<1x128x128xbf16>
    %30 = vector.shape_cast %29 : vector<1x128x128xbf16> to vector<128x128xbf16>
    %cst_17 = arith.constant dense<0.000000e+00> : vector<80x128xf32>
    %31 = tpu.matmul %28, %30, %cst_17 {dimension_numbers = #tpu.dot_dimension_numbers<[1], [0], [0], [1], [0, 0, 1, 1], [], []>} : vector<80x128xbf16>, vector<128x128xbf16>, vector<80x128xf32> -> vector<80x128xf32>
    %32 = arith.addf %22, %31 : vector<80x128xf32>
    %c10_i32 = arith.constant 10 : i32
    %33 = arith.addi %1, %c10_i32 : i32
    %c0_i32_18 = arith.constant 0 : i32
    %34 = arith.addi %33, %c0_i32_18 : i32
    %c0_19 = arith.constant 0 : index
    %35 = arith.index_cast %34 : i32 to index
    %c0_20 = arith.constant 0 : index
    %36 = vector.load %arg2[%c0_19, %35, %c0_20] : memref<1x104x128xf32, #tpu.memory_space<vmem>>, vector<1x80x128xf32>
    %37 = vector.shape_cast %36 : vector<1x80x128xf32> to vector<80x128xf32>
    %38 = arith.truncf %37 : vector<80x128xf32> to vector<80x128xbf16>
    %c3 = arith.constant 3 : index
    %c0_21 = arith.constant 0 : index
    %c0_22 = arith.constant 0 : index
    %39 = vector.load %arg3[%c3, %c0_21, %c0_22] : memref<9x128x128xbf16, #tpu.memory_space<vmem>>, vector<1x128x128xbf16>
    %40 = vector.shape_cast %39 : vector<1x128x128xbf16> to vector<128x128xbf16>
    %cst_23 = arith.constant dense<0.000000e+00> : vector<80x128xf32>
    %41 = tpu.matmul %38, %40, %cst_23 {dimension_numbers = #tpu.dot_dimension_numbers<[1], [0], [0], [1], [0, 0, 1, 1], [], []>} : vector<80x128xbf16>, vector<128x128xbf16>, vector<80x128xf32> -> vector<80x128xf32>
    %42 = arith.addf %32, %41 : vector<80x128xf32>
    %c10_i32_24 = arith.constant 10 : i32
    %43 = arith.addi %1, %c10_i32_24 : i32
    %c1_i32_25 = arith.constant 1 : i32
    %44 = arith.addi %43, %c1_i32_25 : i32
    %c0_26 = arith.constant 0 : index
    %45 = arith.index_cast %44 : i32 to index
    %c0_27 = arith.constant 0 : index
    %46 = vector.load %arg2[%c0_26, %45, %c0_27] : memref<1x104x128xf32, #tpu.memory_space<vmem>>, vector<1x80x128xf32>
    %47 = vector.shape_cast %46 : vector<1x80x128xf32> to vector<80x128xf32>
    %48 = arith.truncf %47 : vector<80x128xf32> to vector<80x128xbf16>
    %c4 = arith.constant 4 : index
    %c0_28 = arith.constant 0 : index
    %c0_29 = arith.constant 0 : index
    %49 = vector.load %arg3[%c4, %c0_28, %c0_29] : memref<9x128x128xbf16, #tpu.memory_space<vmem>>, vector<1x128x128xbf16>
    %50 = vector.shape_cast %49 : vector<1x128x128xbf16> to vector<128x128xbf16>
    %cst_30 = arith.constant dense<0.000000e+00> : vector<80x128xf32>
    %51 = tpu.matmul %48, %50, %cst_30 {dimension_numbers = #tpu.dot_dimension_numbers<[1], [0], [0], [1], [0, 0, 1, 1], [], []>} : vector<80x128xbf16>, vector<128x128xbf16>, vector<80x128xf32> -> vector<80x128xf32>
    %52 = arith.addf %42, %51 : vector<80x128xf32>
    %c10_i32_31 = arith.constant 10 : i32
    %53 = arith.addi %1, %c10_i32_31 : i32
    %c2_i32_32 = arith.constant 2 : i32
    %54 = arith.addi %53, %c2_i32_32 : i32
    %c0_33 = arith.constant 0 : index
    %55 = arith.index_cast %54 : i32 to index
    %c0_34 = arith.constant 0 : index
    %56 = vector.load %arg2[%c0_33, %55, %c0_34] : memref<1x104x128xf32, #tpu.memory_space<vmem>>, vector<1x80x128xf32>
    %57 = vector.shape_cast %56 : vector<1x80x128xf32> to vector<80x128xf32>
    %58 = arith.truncf %57 : vector<80x128xf32> to vector<80x128xbf16>
    %c5 = arith.constant 5 : index
    %c0_35 = arith.constant 0 : index
    %c0_36 = arith.constant 0 : index
    %59 = vector.load %arg3[%c5, %c0_35, %c0_36] : memref<9x128x128xbf16, #tpu.memory_space<vmem>>, vector<1x128x128xbf16>
    %60 = vector.shape_cast %59 : vector<1x128x128xbf16> to vector<128x128xbf16>
    %cst_37 = arith.constant dense<0.000000e+00> : vector<80x128xf32>
    %61 = tpu.matmul %58, %60, %cst_37 {dimension_numbers = #tpu.dot_dimension_numbers<[1], [0], [0], [1], [0, 0, 1, 1], [], []>} : vector<80x128xbf16>, vector<128x128xbf16>, vector<80x128xf32> -> vector<80x128xf32>
    %62 = arith.addf %52, %61 : vector<80x128xf32>
    %c20_i32 = arith.constant 20 : i32
    %63 = arith.addi %1, %c20_i32 : i32
    %c0_i32_38 = arith.constant 0 : i32
    %64 = arith.addi %63, %c0_i32_38 : i32
    %c0_39 = arith.constant 0 : index
    %65 = arith.index_cast %64 : i32 to index
    %c0_40 = arith.constant 0 : index
    %66 = vector.load %arg2[%c0_39, %65, %c0_40] : memref<1x104x128xf32, #tpu.memory_space<vmem>>, vector<1x80x128xf32>
    %67 = vector.shape_cast %66 : vector<1x80x128xf32> to vector<80x128xf32>
    %68 = arith.truncf %67 : vector<80x128xf32> to vector<80x128xbf16>
    %c6 = arith.constant 6 : index
    %c0_41 = arith.constant 0 : index
    %c0_42 = arith.constant 0 : index
    %69 = vector.load %arg3[%c6, %c0_41, %c0_42] : memref<9x128x128xbf16, #tpu.memory_space<vmem>>, vector<1x128x128xbf16>
    %70 = vector.shape_cast %69 : vector<1x128x128xbf16> to vector<128x128xbf16>
    %cst_43 = arith.constant dense<0.000000e+00> : vector<80x128xf32>
    %71 = tpu.matmul %68, %70, %cst_43 {dimension_numbers = #tpu.dot_dimension_numbers<[1], [0], [0], [1], [0, 0, 1, 1], [], []>} : vector<80x128xbf16>, vector<128x128xbf16>, vector<80x128xf32> -> vector<80x128xf32>
    %72 = arith.addf %62, %71 : vector<80x128xf32>
    %c20_i32_44 = arith.constant 20 : i32
    %73 = arith.addi %1, %c20_i32_44 : i32
    %c1_i32_45 = arith.constant 1 : i32
    %74 = arith.addi %73, %c1_i32_45 : i32
    %c0_46 = arith.constant 0 : index
    %75 = arith.index_cast %74 : i32 to index
    %c0_47 = arith.constant 0 : index
    %76 = vector.load %arg2[%c0_46, %75, %c0_47] : memref<1x104x128xf32, #tpu.memory_space<vmem>>, vector<1x80x128xf32>
    %77 = vector.shape_cast %76 : vector<1x80x128xf32> to vector<80x128xf32>
    %78 = arith.truncf %77 : vector<80x128xf32> to vector<80x128xbf16>
    %c7 = arith.constant 7 : index
    %c0_48 = arith.constant 0 : index
    %c0_49 = arith.constant 0 : index
    %79 = vector.load %arg3[%c7, %c0_48, %c0_49] : memref<9x128x128xbf16, #tpu.memory_space<vmem>>, vector<1x128x128xbf16>
    %80 = vector.shape_cast %79 : vector<1x128x128xbf16> to vector<128x128xbf16>
    %cst_50 = arith.constant dense<0.000000e+00> : vector<80x128xf32>
    %81 = tpu.matmul %78, %80, %cst_50 {dimension_numbers = #tpu.dot_dimension_numbers<[1], [0], [0], [1], [0, 0, 1, 1], [], []>} : vector<80x128xbf16>, vector<128x128xbf16>, vector<80x128xf32> -> vector<80x128xf32>
    %82 = arith.addf %72, %81 : vector<80x128xf32>
    %c20_i32_51 = arith.constant 20 : i32
    %83 = arith.addi %1, %c20_i32_51 : i32
    %c2_i32_52 = arith.constant 2 : i32
    %84 = arith.addi %83, %c2_i32_52 : i32
    %c0_53 = arith.constant 0 : index
    %85 = arith.index_cast %84 : i32 to index
    %c0_54 = arith.constant 0 : index
    %86 = vector.load %arg2[%c0_53, %85, %c0_54] : memref<1x104x128xf32, #tpu.memory_space<vmem>>, vector<1x80x128xf32>
    %87 = vector.shape_cast %86 : vector<1x80x128xf32> to vector<80x128xf32>
    %88 = arith.truncf %87 : vector<80x128xf32> to vector<80x128xbf16>
    %c8 = arith.constant 8 : index
    %c0_55 = arith.constant 0 : index
    %c0_56 = arith.constant 0 : index
    %89 = vector.load %arg3[%c8, %c0_55, %c0_56] : memref<9x128x128xbf16, #tpu.memory_space<vmem>>, vector<1x128x128xbf16>
    %90 = vector.shape_cast %89 : vector<1x128x128xbf16> to vector<128x128xbf16>
    %cst_57 = arith.constant dense<0.000000e+00> : vector<80x128xf32>
    %91 = tpu.matmul %88, %90, %cst_57 {dimension_numbers = #tpu.dot_dimension_numbers<[1], [0], [0], [1], [0, 0, 1, 1], [], []>} : vector<80x128xbf16>, vector<128x128xbf16>, vector<80x128xf32> -> vector<80x128xf32>
    %92 = arith.addf %82, %91 : vector<80x128xf32>
    %c0_58 = arith.constant 0 : index
    %c0_59 = arith.constant 0 : index
    %93 = vector.load %arg4[%c0_58, %c0_59] : memref<1x128xf32, #tpu.memory_space<vmem>>, vector<1x128xf32>
    %94 = vector.broadcast %93 : vector<1x128xf32> to vector<80x128xf32>
    %95 = arith.addf %92, %94 : vector<80x128xf32>
    %c0_60 = arith.constant 0 : index
    %c0_61 = arith.constant 0 : index
    %c0_62 = arith.constant 0 : index
    %96 = vector.load %arg5[%c0_60, %c0_61, %c0_62] : memref<1x80x128xf32, #tpu.memory_space<vmem>>, vector<1x80x128xf32>
    %97 = vector.shape_cast %96 : vector<1x80x128xf32> to vector<80x128xf32>
    %98 = vector.shape_cast %95 : vector<80x128xf32> to vector<1x80x128xf32>
    tpu.vector_store %arg5[%c0_60, %c0_61, %c0_62], %98 {strides = array<i32>} : memref<1x80x128xf32, #tpu.memory_space<vmem>>, vector<1x80x128xf32>,
    return
  }
  func.func @transform_0(%arg0: i32, %arg1: i32) -> (i32, i32, i32) {
    %c0_i32 = arith.constant 0 : i32
    %c0_i32_0 = arith.constant 0 : i32
    %c0_i32_1 = arith.constant 0 : i32
    return %arg0, %c0_i32, %c0_i32_0 : i32, i32, i32
  }
  func.func @transform_1(%arg0: i32, %arg1: i32) -> (i32, i32, i32) {
    %c0_i32 = arith.constant 0 : i32
    %c0_i32_0 = arith.constant 0 : i32
    %c0_i32_1 = arith.constant 0 : i32
    %c0_i32_2 = arith.constant 0 : i32
    return %c0_i32, %c0_i32_0, %c0_i32_1 : i32, i32, i32
  }
  func.func @transform_2(%arg0: i32, %arg1: i32) -> (i32, i32) {
    %c0_i32 = arith.constant 0 : i32
    %c0_i32_0 = arith.constant 0 : i32
    %c0_i32_1 = arith.constant 0 : i32
    return %c0_i32, %c0_i32_0 : i32, i32
  }
  func.func @transform_3(%arg0: i32, %arg1: i32) -> (i32, i32, i32) {
    %c0_i32 = arith.constant 0 : i32
    %c0_i32_0 = arith.constant 0 : i32
    return %arg0, %arg1, %c0_i32 : i32, i32, i32
  }
}

module attributes {stable_mosaic.version = 11 : i64} {
  func.func @kernel(%arg0: i32, %arg1: i32, %arg2: memref<1x40x128xf32, #tpu.memory_space<vmem>>, %arg3: memref<9x128x128xbf16, #tpu.memory_space<vmem>>, %arg4: memref<1x128xf32, #tpu.memory_space<vmem>>, %arg5: memref<1x24x128xf32, #tpu.memory_space<vmem>>) attributes {dimension_semantics = [#tpu.dimension_semantics<parallel>, #tpu.dimension_semantics<parallel>], iteration_bounds = array<i64: 2, 1>, scalar_prefetch = 0 : i64, scratch_operands = 0 : i64, tpu.core_type = #tpu.core_type<tc>, window_params = [{transform_indices = @transform_0, window_bounds = array<i64: 1, 40, 128>}, {pipeline_mode = #tpu.pipeline_mode<synchronous>, transform_indices = @transform_1, window_bounds = array<i64: 9, 128, 128>}, {pipeline_mode = #tpu.pipeline_mode<synchronous>, transform_indices = @transform_2, window_bounds = array<i64: 1, 128>}, {transform_indices = @transform_3, window_bounds = array<i64: 1, 24, 128>}]} {
    %c24_i32 = arith.constant 24 : i32
    %0 = arith.muli %arg1, %c24_i32 : i32
    %1 = tpu.assume_multiple %0, 8 : i32
    %cst = arith.constant 0.000000e+00 : f32
    %2 = vector.broadcast %cst : f32 to vector<24x128xf32>
    %c0_i32 = arith.constant 0 : i32
    %3 = arith.addi %1, %c0_i32 : i32
    %c0_i32_0 = arith.constant 0 : i32
    %4 = arith.addi %3, %c0_i32_0 : i32
    %c0 = arith.constant 0 : index
    %5 = arith.index_cast %4 : i32 to index
    %c0_1 = arith.constant 0 : index
    %6 = vector.load %arg2[%c0, %5, %c0_1] : memref<1x40x128xf32, #tpu.memory_space<vmem>>, vector<1x24x128xf32>
    %7 = vector.shape_cast %6 : vector<1x24x128xf32> to vector<24x128xf32>
    %8 = arith.truncf %7 : vector<24x128xf32> to vector<24x128xbf16>
    %c0_2 = arith.constant 0 : index
    %c0_3 = arith.constant 0 : index
    %c0_4 = arith.constant 0 : index
    %9 = vector.load %arg3[%c0_2, %c0_3, %c0_4] : memref<9x128x128xbf16, #tpu.memory_space<vmem>>, vector<1x128x128xbf16>
    %10 = vector.shape_cast %9 : vector<1x128x128xbf16> to vector<128x128xbf16>
    %cst_5 = arith.constant dense<0.000000e+00> : vector<24x128xf32>
    %11 = tpu.matmul %8, %10, %cst_5 {dimension_numbers = #tpu.dot_dimension_numbers<[1], [0], [0], [1], [0, 0, 1, 1], [], []>} : vector<24x128xbf16>, vector<128x128xbf16>, vector<24x128xf32> -> vector<24x128xf32>
    %12 = arith.addf %2, %11 : vector<24x128xf32>
    %c0_i32_6 = arith.constant 0 : i32
    %13 = arith.addi %1, %c0_i32_6 : i32
    %c1_i32 = arith.constant 1 : i32
    %14 = arith.addi %13, %c1_i32 : i32
    %c0_7 = arith.constant 0 : index
    %15 = arith.index_cast %14 : i32 to index
    %c0_8 = arith.constant 0 : index
    %16 = vector.load %arg2[%c0_7, %15, %c0_8] : memref<1x40x128xf32, #tpu.memory_space<vmem>>, vector<1x24x128xf32>
    %17 = vector.shape_cast %16 : vector<1x24x128xf32> to vector<24x128xf32>
    %18 = arith.truncf %17 : vector<24x128xf32> to vector<24x128xbf16>
    %c1 = arith.constant 1 : index
    %c0_9 = arith.constant 0 : index
    %c0_10 = arith.constant 0 : index
    %19 = vector.load %arg3[%c1, %c0_9, %c0_10] : memref<9x128x128xbf16, #tpu.memory_space<vmem>>, vector<1x128x128xbf16>
    %20 = vector.shape_cast %19 : vector<1x128x128xbf16> to vector<128x128xbf16>
    %cst_11 = arith.constant dense<0.000000e+00> : vector<24x128xf32>
    %21 = tpu.matmul %18, %20, %cst_11 {dimension_numbers = #tpu.dot_dimension_numbers<[1], [0], [0], [1], [0, 0, 1, 1], [], []>} : vector<24x128xbf16>, vector<128x128xbf16>, vector<24x128xf32> -> vector<24x128xf32>
    %22 = arith.addf %12, %21 : vector<24x128xf32>
    %c0_i32_12 = arith.constant 0 : i32
    %23 = arith.addi %1, %c0_i32_12 : i32
    %c2_i32 = arith.constant 2 : i32
    %24 = arith.addi %23, %c2_i32 : i32
    %c0_13 = arith.constant 0 : index
    %25 = arith.index_cast %24 : i32 to index
    %c0_14 = arith.constant 0 : index
    %26 = vector.load %arg2[%c0_13, %25, %c0_14] : memref<1x40x128xf32, #tpu.memory_space<vmem>>, vector<1x24x128xf32>
    %27 = vector.shape_cast %26 : vector<1x24x128xf32> to vector<24x128xf32>
    %28 = arith.truncf %27 : vector<24x128xf32> to vector<24x128xbf16>
    %c2 = arith.constant 2 : index
    %c0_15 = arith.constant 0 : index
    %c0_16 = arith.constant 0 : index
    %29 = vector.load %arg3[%c2, %c0_15, %c0_16] : memref<9x128x128xbf16, #tpu.memory_space<vmem>>, vector<1x128x128xbf16>
    %30 = vector.shape_cast %29 : vector<1x128x128xbf16> to vector<128x128xbf16>
    %cst_17 = arith.constant dense<0.000000e+00> : vector<24x128xf32>
    %31 = tpu.matmul %28, %30, %cst_17 {dimension_numbers = #tpu.dot_dimension_numbers<[1], [0], [0], [1], [0, 0, 1, 1], [], []>} : vector<24x128xbf16>, vector<128x128xbf16>, vector<24x128xf32> -> vector<24x128xf32>
    %32 = arith.addf %22, %31 : vector<24x128xf32>
    %c6_i32 = arith.constant 6 : i32
    %33 = arith.addi %1, %c6_i32 : i32
    %c0_i32_18 = arith.constant 0 : i32
    %34 = arith.addi %33, %c0_i32_18 : i32
    %c0_19 = arith.constant 0 : index
    %35 = arith.index_cast %34 : i32 to index
    %c0_20 = arith.constant 0 : index
    %36 = vector.load %arg2[%c0_19, %35, %c0_20] : memref<1x40x128xf32, #tpu.memory_space<vmem>>, vector<1x24x128xf32>
    %37 = vector.shape_cast %36 : vector<1x24x128xf32> to vector<24x128xf32>
    %38 = arith.truncf %37 : vector<24x128xf32> to vector<24x128xbf16>
    %c3 = arith.constant 3 : index
    %c0_21 = arith.constant 0 : index
    %c0_22 = arith.constant 0 : index
    %39 = vector.load %arg3[%c3, %c0_21, %c0_22] : memref<9x128x128xbf16, #tpu.memory_space<vmem>>, vector<1x128x128xbf16>
    %40 = vector.shape_cast %39 : vector<1x128x128xbf16> to vector<128x128xbf16>
    %cst_23 = arith.constant dense<0.000000e+00> : vector<24x128xf32>
    %41 = tpu.matmul %38, %40, %cst_23 {dimension_numbers = #tpu.dot_dimension_numbers<[1], [0], [0], [1], [0, 0, 1, 1], [], []>} : vector<24x128xbf16>, vector<128x128xbf16>, vector<24x128xf32> -> vector<24x128xf32>
    %42 = arith.addf %32, %41 : vector<24x128xf32>
    %c6_i32_24 = arith.constant 6 : i32
    %43 = arith.addi %1, %c6_i32_24 : i32
    %c1_i32_25 = arith.constant 1 : i32
    %44 = arith.addi %43, %c1_i32_25 : i32
    %c0_26 = arith.constant 0 : index
    %45 = arith.index_cast %44 : i32 to index
    %c0_27 = arith.constant 0 : index
    %46 = vector.load %arg2[%c0_26, %45, %c0_27] : memref<1x40x128xf32, #tpu.memory_space<vmem>>, vector<1x24x128xf32>
    %47 = vector.shape_cast %46 : vector<1x24x128xf32> to vector<24x128xf32>
    %48 = arith.truncf %47 : vector<24x128xf32> to vector<24x128xbf16>
    %c4 = arith.constant 4 : index
    %c0_28 = arith.constant 0 : index
    %c0_29 = arith.constant 0 : index
    %49 = vector.load %arg3[%c4, %c0_28, %c0_29] : memref<9x128x128xbf16, #tpu.memory_space<vmem>>, vector<1x128x128xbf16>
    %50 = vector.shape_cast %49 : vector<1x128x128xbf16> to vector<128x128xbf16>
    %cst_30 = arith.constant dense<0.000000e+00> : vector<24x128xf32>
    %51 = tpu.matmul %48, %50, %cst_30 {dimension_numbers = #tpu.dot_dimension_numbers<[1], [0], [0], [1], [0, 0, 1, 1], [], []>} : vector<24x128xbf16>, vector<128x128xbf16>, vector<24x128xf32> -> vector<24x128xf32>
    %52 = arith.addf %42, %51 : vector<24x128xf32>
    %c6_i32_31 = arith.constant 6 : i32
    %53 = arith.addi %1, %c6_i32_31 : i32
    %c2_i32_32 = arith.constant 2 : i32
    %54 = arith.addi %53, %c2_i32_32 : i32
    %c0_33 = arith.constant 0 : index
    %55 = arith.index_cast %54 : i32 to index
    %c0_34 = arith.constant 0 : index
    %56 = vector.load %arg2[%c0_33, %55, %c0_34] : memref<1x40x128xf32, #tpu.memory_space<vmem>>, vector<1x24x128xf32>
    %57 = vector.shape_cast %56 : vector<1x24x128xf32> to vector<24x128xf32>
    %58 = arith.truncf %57 : vector<24x128xf32> to vector<24x128xbf16>
    %c5 = arith.constant 5 : index
    %c0_35 = arith.constant 0 : index
    %c0_36 = arith.constant 0 : index
    %59 = vector.load %arg3[%c5, %c0_35, %c0_36] : memref<9x128x128xbf16, #tpu.memory_space<vmem>>, vector<1x128x128xbf16>
    %60 = vector.shape_cast %59 : vector<1x128x128xbf16> to vector<128x128xbf16>
    %cst_37 = arith.constant dense<0.000000e+00> : vector<24x128xf32>
    %61 = tpu.matmul %58, %60, %cst_37 {dimension_numbers = #tpu.dot_dimension_numbers<[1], [0], [0], [1], [0, 0, 1, 1], [], []>} : vector<24x128xbf16>, vector<128x128xbf16>, vector<24x128xf32> -> vector<24x128xf32>
    %62 = arith.addf %52, %61 : vector<24x128xf32>
    %c12_i32 = arith.constant 12 : i32
    %63 = arith.addi %1, %c12_i32 : i32
    %c0_i32_38 = arith.constant 0 : i32
    %64 = arith.addi %63, %c0_i32_38 : i32
    %c0_39 = arith.constant 0 : index
    %65 = arith.index_cast %64 : i32 to index
    %c0_40 = arith.constant 0 : index
    %66 = vector.load %arg2[%c0_39, %65, %c0_40] : memref<1x40x128xf32, #tpu.memory_space<vmem>>, vector<1x24x128xf32>
    %67 = vector.shape_cast %66 : vector<1x24x128xf32> to vector<24x128xf32>
    %68 = arith.truncf %67 : vector<24x128xf32> to vector<24x128xbf16>
    %c6 = arith.constant 6 : index
    %c0_41 = arith.constant 0 : index
    %c0_42 = arith.constant 0 : index
    %69 = vector.load %arg3[%c6, %c0_41, %c0_42] : memref<9x128x128xbf16, #tpu.memory_space<vmem>>, vector<1x128x128xbf16>
    %70 = vector.shape_cast %69 : vector<1x128x128xbf16> to vector<128x128xbf16>
    %cst_43 = arith.constant dense<0.000000e+00> : vector<24x128xf32>
    %71 = tpu.matmul %68, %70, %cst_43 {dimension_numbers = #tpu.dot_dimension_numbers<[1], [0], [0], [1], [0, 0, 1, 1], [], []>} : vector<24x128xbf16>, vector<128x128xbf16>, vector<24x128xf32> -> vector<24x128xf32>
    %72 = arith.addf %62, %71 : vector<24x128xf32>
    %c12_i32_44 = arith.constant 12 : i32
    %73 = arith.addi %1, %c12_i32_44 : i32
    %c1_i32_45 = arith.constant 1 : i32
    %74 = arith.addi %73, %c1_i32_45 : i32
    %c0_46 = arith.constant 0 : index
    %75 = arith.index_cast %74 : i32 to index
    %c0_47 = arith.constant 0 : index
    %76 = vector.load %arg2[%c0_46, %75, %c0_47] : memref<1x40x128xf32, #tpu.memory_space<vmem>>, vector<1x24x128xf32>
    %77 = vector.shape_cast %76 : vector<1x24x128xf32> to vector<24x128xf32>
    %78 = arith.truncf %77 : vector<24x128xf32> to vector<24x128xbf16>
    %c7 = arith.constant 7 : index
    %c0_48 = arith.constant 0 : index
    %c0_49 = arith.constant 0 : index
    %79 = vector.load %arg3[%c7, %c0_48, %c0_49] : memref<9x128x128xbf16, #tpu.memory_space<vmem>>, vector<1x128x128xbf16>
    %80 = vector.shape_cast %79 : vector<1x128x128xbf16> to vector<128x128xbf16>
    %cst_50 = arith.constant dense<0.000000e+00> : vector<24x128xf32>
    %81 = tpu.matmul %78, %80, %cst_50 {dimension_numbers = #tpu.dot_dimension_numbers<[1], [0], [0], [1], [0, 0, 1, 1], [], []>} : vector<24x128xbf16>, vector<128x128xbf16>, vector<24x128xf32> -> vector<24x128xf32>
    %82 = arith.addf %72, %81 : vector<24x128xf32>
    %c12_i32_51 = arith.constant 12 : i32
    %83 = arith.addi %1, %c12_i32_51 : i32
    %c2_i32_52 = arith.constant 2 : i32
    %84 = arith.addi %83, %c2_i32_52 : i32
    %c0_53 = arith.constant 0 : index
    %85 = arith.index_cast %84 : i32 to index
    %c0_54 = arith.constant 0 : index
    %86 = vector.load %arg2[%c0_53, %85, %c0_54] : memref<1x40x128xf32, #tpu.memory_space<vmem>>, vector<1x24x128xf32>
    %87 = vector.shape_cast %86 : vector<1x24x128xf32> to vector<24x128xf32>
    %88 = arith.truncf %87 : vector<24x128xf32> to vector<24x128xbf16>
    %c8 = arith.constant 8 : index
    %c0_55 = arith.constant 0 : index
    %c0_56 = arith.constant 0 : index
    %89 = vector.load %arg3[%c8, %c0_55, %c0_56] : memref<9x128x128xbf16, #tpu.memory_space<vmem>>, vector<1x128x128xbf16>
    %90 = vector.shape_cast %89 : vector<1x128x128xbf16> to vector<128x128xbf16>
    %cst_57 = arith.constant dense<0.000000e+00> : vector<24x128xf32>
    %91 = tpu.matmul %88, %90, %cst_57 {dimension_numbers = #tpu.dot_dimension_numbers<[1], [0], [0], [1], [0, 0, 1, 1], [], []>} : vector<24x128xbf16>, vector<128x128xbf16>, vector<24x128xf32> -> vector<24x128xf32>
    %92 = arith.addf %82, %91 : vector<24x128xf32>
    %c0_58 = arith.constant 0 : index
    %c0_59 = arith.constant 0 : index
    %93 = vector.load %arg4[%c0_58, %c0_59] : memref<1x128xf32, #tpu.memory_space<vmem>>, vector<1x128xf32>
    %94 = vector.broadcast %93 : vector<1x128xf32> to vector<24x128xf32>
    %95 = arith.addf %92, %94 : vector<24x128xf32>
    %c0_60 = arith.constant 0 : index
    %c0_61 = arith.constant 0 : index
    %c0_62 = arith.constant 0 : index
    %96 = vector.load %arg5[%c0_60, %c0_61, %c0_62] : memref<1x24x128xf32, #tpu.memory_space<vmem>>, vector<1x24x128xf32>
    %97 = vector.shape_cast %96 : vector<1x24x128xf32> to vector<24x128xf32>
    %98 = vector.shape_cast %95 : vector<24x128xf32> to vector<1x24x128xf32>
    tpu.vector_store %arg5[%c0_60, %c0_61, %c0_62], %98 {strides = array<i32>} : memref<1x24x128xf32, #tpu.memory_space<vmem>>, vector<1x24x128xf32>,
    return
  }
  func.func @transform_0(%arg0: i32, %arg1: i32) -> (i32, i32, i32) {
    %c0_i32 = arith.constant 0 : i32
    %c0_i32_0 = arith.constant 0 : i32
    %c0_i32_1 = arith.constant 0 : i32
    return %arg0, %c0_i32, %c0_i32_0 : i32, i32, i32
  }
  func.func @transform_1(%arg0: i32, %arg1: i32) -> (i32, i32, i32) {
    %c0_i32 = arith.constant 0 : i32
    %c0_i32_0 = arith.constant 0 : i32
    %c0_i32_1 = arith.constant 0 : i32
    %c0_i32_2 = arith.constant 0 : i32
    return %c0_i32, %c0_i32_0, %c0_i32_1 : i32, i32, i32
  }
  func.func @transform_2(%arg0: i32, %arg1: i32) -> (i32, i32) {
    %c0_i32 = arith.constant 0 : i32
    %c0_i32_0 = arith.constant 0 : i32
    %c0_i32_1 = arith.constant 0 : i32
    return %c0_i32, %c0_i32_0 : i32, i32
  }
  func.func @transform_3(%arg0: i32, %arg1: i32) -> (i32, i32, i32) {
    %c0_i32 = arith.constant 0 : i32
    %c0_i32_0 = arith.constant 0 : i32
    return %arg0, %arg1, %c0_i32 : i32, i32, i32
  }
}

module attributes {stable_mosaic.version = 11 : i64} {
  func.func @kernel(%arg0: i32, %arg1: i32, %arg2: memref<1x24x128xf32, #tpu.memory_space<vmem>>, %arg3: memref<9x128x128xbf16, #tpu.memory_space<vmem>>, %arg4: memref<1x128xf32, #tpu.memory_space<vmem>>, %arg5: memref<1x8x128xf32, #tpu.memory_space<vmem>>) attributes {dimension_semantics = [#tpu.dimension_semantics<parallel>, #tpu.dimension_semantics<parallel>], iteration_bounds = array<i64: 2, 1>, scalar_prefetch = 0 : i64, scratch_operands = 0 : i64, tpu.core_type = #tpu.core_type<tc>, window_params = [{transform_indices = @transform_0, window_bounds = array<i64: 1, 24, 128>}, {pipeline_mode = #tpu.pipeline_mode<synchronous>, transform_indices = @transform_1, window_bounds = array<i64: 9, 128, 128>}, {pipeline_mode = #tpu.pipeline_mode<synchronous>, transform_indices = @transform_2, window_bounds = array<i64: 1, 128>}, {transform_indices = @transform_3, window_bounds = array<i64: 1, 8, 128>}]} {
    %c8_i32 = arith.constant 8 : i32
    %0 = arith.muli %arg1, %c8_i32 : i32
    %1 = tpu.assume_multiple %0, 8 : i32
    %cst = arith.constant 0.000000e+00 : f32
    %2 = vector.broadcast %cst : f32 to vector<8x128xf32>
    %c0_i32 = arith.constant 0 : i32
    %3 = arith.addi %1, %c0_i32 : i32
    %c0_i32_0 = arith.constant 0 : i32
    %4 = arith.addi %3, %c0_i32_0 : i32
    %c0 = arith.constant 0 : index
    %5 = arith.index_cast %4 : i32 to index
    %c0_1 = arith.constant 0 : index
    %6 = vector.load %arg2[%c0, %5, %c0_1] : memref<1x24x128xf32, #tpu.memory_space<vmem>>, vector<1x8x128xf32>
    %7 = vector.shape_cast %6 : vector<1x8x128xf32> to vector<8x128xf32>
    %cst_2 = arith.constant 0.000000e+00 : f32
    %8 = vector.broadcast %cst_2 : f32 to vector<8x128xf32>
    %9 = arith.maximumf %7, %8 : vector<8x128xf32>
    %10 = arith.truncf %9 : vector<8x128xf32> to vector<8x128xbf16>
    %c0_3 = arith.constant 0 : index
    %c0_4 = arith.constant 0 : index
    %c0_5 = arith.constant 0 : index
    %11 = vector.load %arg3[%c0_3, %c0_4, %c0_5] : memref<9x128x128xbf16, #tpu.memory_space<vmem>>, vector<1x128x128xbf16>
    %12 = vector.shape_cast %11 : vector<1x128x128xbf16> to vector<128x128xbf16>
    %cst_6 = arith.constant dense<0.000000e+00> : vector<8x128xf32>
    %13 = tpu.matmul %10, %12, %cst_6 {dimension_numbers = #tpu.dot_dimension_numbers<[1], [0], [0], [1], [0, 0, 1, 1], [], []>} : vector<8x128xbf16>, vector<128x128xbf16>, vector<8x128xf32> -> vector<8x128xf32>
    %14 = arith.addf %2, %13 : vector<8x128xf32>
    %c0_i32_7 = arith.constant 0 : i32
    %15 = arith.addi %1, %c0_i32_7 : i32
    %c1_i32 = arith.constant 1 : i32
    %16 = arith.addi %15, %c1_i32 : i32
    %c0_8 = arith.constant 0 : index
    %17 = arith.index_cast %16 : i32 to index
    %c0_9 = arith.constant 0 : index
    %18 = vector.load %arg2[%c0_8, %17, %c0_9] : memref<1x24x128xf32, #tpu.memory_space<vmem>>, vector<1x8x128xf32>
    %19 = vector.shape_cast %18 : vector<1x8x128xf32> to vector<8x128xf32>
    %cst_10 = arith.constant 0.000000e+00 : f32
    %20 = vector.broadcast %cst_10 : f32 to vector<8x128xf32>
    %21 = arith.maximumf %19, %20 : vector<8x128xf32>
    %22 = arith.truncf %21 : vector<8x128xf32> to vector<8x128xbf16>
    %c1 = arith.constant 1 : index
    %c0_11 = arith.constant 0 : index
    %c0_12 = arith.constant 0 : index
    %23 = vector.load %arg3[%c1, %c0_11, %c0_12] : memref<9x128x128xbf16, #tpu.memory_space<vmem>>, vector<1x128x128xbf16>
    %24 = vector.shape_cast %23 : vector<1x128x128xbf16> to vector<128x128xbf16>
    %cst_13 = arith.constant dense<0.000000e+00> : vector<8x128xf32>
    %25 = tpu.matmul %22, %24, %cst_13 {dimension_numbers = #tpu.dot_dimension_numbers<[1], [0], [0], [1], [0, 0, 1, 1], [], []>} : vector<8x128xbf16>, vector<128x128xbf16>, vector<8x128xf32> -> vector<8x128xf32>
    %26 = arith.addf %14, %25 : vector<8x128xf32>
    %c0_i32_14 = arith.constant 0 : i32
    %27 = arith.addi %1, %c0_i32_14 : i32
    %c2_i32 = arith.constant 2 : i32
    %28 = arith.addi %27, %c2_i32 : i32
    %c0_15 = arith.constant 0 : index
    %29 = arith.index_cast %28 : i32 to index
    %c0_16 = arith.constant 0 : index
    %30 = vector.load %arg2[%c0_15, %29, %c0_16] : memref<1x24x128xf32, #tpu.memory_space<vmem>>, vector<1x8x128xf32>
    %31 = vector.shape_cast %30 : vector<1x8x128xf32> to vector<8x128xf32>
    %cst_17 = arith.constant 0.000000e+00 : f32
    %32 = vector.broadcast %cst_17 : f32 to vector<8x128xf32>
    %33 = arith.maximumf %31, %32 : vector<8x128xf32>
    %34 = arith.truncf %33 : vector<8x128xf32> to vector<8x128xbf16>
    %c2 = arith.constant 2 : index
    %c0_18 = arith.constant 0 : index
    %c0_19 = arith.constant 0 : index
    %35 = vector.load %arg3[%c2, %c0_18, %c0_19] : memref<9x128x128xbf16, #tpu.memory_space<vmem>>, vector<1x128x128xbf16>
    %36 = vector.shape_cast %35 : vector<1x128x128xbf16> to vector<128x128xbf16>
    %cst_20 = arith.constant dense<0.000000e+00> : vector<8x128xf32>
    %37 = tpu.matmul %34, %36, %cst_20 {dimension_numbers = #tpu.dot_dimension_numbers<[1], [0], [0], [1], [0, 0, 1, 1], [], []>} : vector<8x128xbf16>, vector<128x128xbf16>, vector<8x128xf32> -> vector<8x128xf32>
    %38 = arith.addf %26, %37 : vector<8x128xf32>
    %c4_i32 = arith.constant 4 : i32
    %39 = arith.addi %1, %c4_i32 : i32
    %c0_i32_21 = arith.constant 0 : i32
    %40 = arith.addi %39, %c0_i32_21 : i32
    %c0_22 = arith.constant 0 : index
    %41 = arith.index_cast %40 : i32 to index
    %c0_23 = arith.constant 0 : index
    %42 = vector.load %arg2[%c0_22, %41, %c0_23] : memref<1x24x128xf32, #tpu.memory_space<vmem>>, vector<1x8x128xf32>
    %43 = vector.shape_cast %42 : vector<1x8x128xf32> to vector<8x128xf32>
    %cst_24 = arith.constant 0.000000e+00 : f32
    %44 = vector.broadcast %cst_24 : f32 to vector<8x128xf32>
    %45 = arith.maximumf %43, %44 : vector<8x128xf32>
    %46 = arith.truncf %45 : vector<8x128xf32> to vector<8x128xbf16>
    %c3 = arith.constant 3 : index
    %c0_25 = arith.constant 0 : index
    %c0_26 = arith.constant 0 : index
    %47 = vector.load %arg3[%c3, %c0_25, %c0_26] : memref<9x128x128xbf16, #tpu.memory_space<vmem>>, vector<1x128x128xbf16>
    %48 = vector.shape_cast %47 : vector<1x128x128xbf16> to vector<128x128xbf16>
    %cst_27 = arith.constant dense<0.000000e+00> : vector<8x128xf32>
    %49 = tpu.matmul %46, %48, %cst_27 {dimension_numbers = #tpu.dot_dimension_numbers<[1], [0], [0], [1], [0, 0, 1, 1], [], []>} : vector<8x128xbf16>, vector<128x128xbf16>, vector<8x128xf32> -> vector<8x128xf32>
    %50 = arith.addf %38, %49 : vector<8x128xf32>
    %c4_i32_28 = arith.constant 4 : i32
    %51 = arith.addi %1, %c4_i32_28 : i32
    %c1_i32_29 = arith.constant 1 : i32
    %52 = arith.addi %51, %c1_i32_29 : i32
    %c0_30 = arith.constant 0 : index
    %53 = arith.index_cast %52 : i32 to index
    %c0_31 = arith.constant 0 : index
    %54 = vector.load %arg2[%c0_30, %53, %c0_31] : memref<1x24x128xf32, #tpu.memory_space<vmem>>, vector<1x8x128xf32>
    %55 = vector.shape_cast %54 : vector<1x8x128xf32> to vector<8x128xf32>
    %cst_32 = arith.constant 0.000000e+00 : f32
    %56 = vector.broadcast %cst_32 : f32 to vector<8x128xf32>
    %57 = arith.maximumf %55, %56 : vector<8x128xf32>
    %58 = arith.truncf %57 : vector<8x128xf32> to vector<8x128xbf16>
    %c4 = arith.constant 4 : index
    %c0_33 = arith.constant 0 : index
    %c0_34 = arith.constant 0 : index
    %59 = vector.load %arg3[%c4, %c0_33, %c0_34] : memref<9x128x128xbf16, #tpu.memory_space<vmem>>, vector<1x128x128xbf16>
    %60 = vector.shape_cast %59 : vector<1x128x128xbf16> to vector<128x128xbf16>
    %cst_35 = arith.constant dense<0.000000e+00> : vector<8x128xf32>
    %61 = tpu.matmul %58, %60, %cst_35 {dimension_numbers = #tpu.dot_dimension_numbers<[1], [0], [0], [1], [0, 0, 1, 1], [], []>} : vector<8x128xbf16>, vector<128x128xbf16>, vector<8x128xf32> -> vector<8x128xf32>
    %62 = arith.addf %50, %61 : vector<8x128xf32>
    %c4_i32_36 = arith.constant 4 : i32
    %63 = arith.addi %1, %c4_i32_36 : i32
    %c2_i32_37 = arith.constant 2 : i32
    %64 = arith.addi %63, %c2_i32_37 : i32
    %c0_38 = arith.constant 0 : index
    %65 = arith.index_cast %64 : i32 to index
    %c0_39 = arith.constant 0 : index
    %66 = vector.load %arg2[%c0_38, %65, %c0_39] : memref<1x24x128xf32, #tpu.memory_space<vmem>>, vector<1x8x128xf32>
    %67 = vector.shape_cast %66 : vector<1x8x128xf32> to vector<8x128xf32>
    %cst_40 = arith.constant 0.000000e+00 : f32
    %68 = vector.broadcast %cst_40 : f32 to vector<8x128xf32>
    %69 = arith.maximumf %67, %68 : vector<8x128xf32>
    %70 = arith.truncf %69 : vector<8x128xf32> to vector<8x128xbf16>
    %c5 = arith.constant 5 : index
    %c0_41 = arith.constant 0 : index
    %c0_42 = arith.constant 0 : index
    %71 = vector.load %arg3[%c5, %c0_41, %c0_42] : memref<9x128x128xbf16, #tpu.memory_space<vmem>>, vector<1x128x128xbf16>
    %72 = vector.shape_cast %71 : vector<1x128x128xbf16> to vector<128x128xbf16>
    %cst_43 = arith.constant dense<0.000000e+00> : vector<8x128xf32>
    %73 = tpu.matmul %70, %72, %cst_43 {dimension_numbers = #tpu.dot_dimension_numbers<[1], [0], [0], [1], [0, 0, 1, 1], [], []>} : vector<8x128xbf16>, vector<128x128xbf16>, vector<8x128xf32> -> vector<8x128xf32>
    %74 = arith.addf %62, %73 : vector<8x128xf32>
    %c8_i32_44 = arith.constant 8 : i32
    %75 = arith.addi %1, %c8_i32_44 : i32
    %c0_i32_45 = arith.constant 0 : i32
    %76 = arith.addi %75, %c0_i32_45 : i32
    %c0_46 = arith.constant 0 : index
    %77 = arith.index_cast %76 : i32 to index
    %c0_47 = arith.constant 0 : index
    %78 = vector.load %arg2[%c0_46, %77, %c0_47] : memref<1x24x128xf32, #tpu.memory_space<vmem>>, vector<1x8x128xf32>
    %79 = vector.shape_cast %78 : vector<1x8x128xf32> to vector<8x128xf32>
    %cst_48 = arith.constant 0.000000e+00 : f32
    %80 = vector.broadcast %cst_48 : f32 to vector<8x128xf32>
    %81 = arith.maximumf %79, %80 : vector<8x128xf32>
    %82 = arith.truncf %81 : vector<8x128xf32> to vector<8x128xbf16>
    %c6 = arith.constant 6 : index
    %c0_49 = arith.constant 0 : index
    %c0_50 = arith.constant 0 : index
    %83 = vector.load %arg3[%c6, %c0_49, %c0_50] : memref<9x128x128xbf16, #tpu.memory_space<vmem>>, vector<1x128x128xbf16>
    %84 = vector.shape_cast %83 : vector<1x128x128xbf16> to vector<128x128xbf16>
    %cst_51 = arith.constant dense<0.000000e+00> : vector<8x128xf32>
    %85 = tpu.matmul %82, %84, %cst_51 {dimension_numbers = #tpu.dot_dimension_numbers<[1], [0], [0], [1], [0, 0, 1, 1], [], []>} : vector<8x128xbf16>, vector<128x128xbf16>, vector<8x128xf32> -> vector<8x128xf32>
    %86 = arith.addf %74, %85 : vector<8x128xf32>
    %c8_i32_52 = arith.constant 8 : i32
    %87 = arith.addi %1, %c8_i32_52 : i32
    %c1_i32_53 = arith.constant 1 : i32
    %88 = arith.addi %87, %c1_i32_53 : i32
    %c0_54 = arith.constant 0 : index
    %89 = arith.index_cast %88 : i32 to index
    %c0_55 = arith.constant 0 : index
    %90 = vector.load %arg2[%c0_54, %89, %c0_55] : memref<1x24x128xf32, #tpu.memory_space<vmem>>, vector<1x8x128xf32>
    %91 = vector.shape_cast %90 : vector<1x8x128xf32> to vector<8x128xf32>
    %cst_56 = arith.constant 0.000000e+00 : f32
    %92 = vector.broadcast %cst_56 : f32 to vector<8x128xf32>
    %93 = arith.maximumf %91, %92 : vector<8x128xf32>
    %94 = arith.truncf %93 : vector<8x128xf32> to vector<8x128xbf16>
    %c7 = arith.constant 7 : index
    %c0_57 = arith.constant 0 : index
    %c0_58 = arith.constant 0 : index
    %95 = vector.load %arg3[%c7, %c0_57, %c0_58] : memref<9x128x128xbf16, #tpu.memory_space<vmem>>, vector<1x128x128xbf16>
    %96 = vector.shape_cast %95 : vector<1x128x128xbf16> to vector<128x128xbf16>
    %cst_59 = arith.constant dense<0.000000e+00> : vector<8x128xf32>
    %97 = tpu.matmul %94, %96, %cst_59 {dimension_numbers = #tpu.dot_dimension_numbers<[1], [0], [0], [1], [0, 0, 1, 1], [], []>} : vector<8x128xbf16>, vector<128x128xbf16>, vector<8x128xf32> -> vector<8x128xf32>
    %98 = arith.addf %86, %97 : vector<8x128xf32>
    %c8_i32_60 = arith.constant 8 : i32
    %99 = arith.addi %1, %c8_i32_60 : i32
    %c2_i32_61 = arith.constant 2 : i32
    %100 = arith.addi %99, %c2_i32_61 : i32
    %c0_62 = arith.constant 0 : index
    %101 = arith.index_cast %100 : i32 to index
    %c0_63 = arith.constant 0 : index
    %102 = vector.load %arg2[%c0_62, %101, %c0_63] : memref<1x24x128xf32, #tpu.memory_space<vmem>>, vector<1x8x128xf32>
    %103 = vector.shape_cast %102 : vector<1x8x128xf32> to vector<8x128xf32>
    %cst_64 = arith.constant 0.000000e+00 : f32
    %104 = vector.broadcast %cst_64 : f32 to vector<8x128xf32>
    %105 = arith.maximumf %103, %104 : vector<8x128xf32>
    %106 = arith.truncf %105 : vector<8x128xf32> to vector<8x128xbf16>
    %c8 = arith.constant 8 : index
    %c0_65 = arith.constant 0 : index
    %c0_66 = arith.constant 0 : index
    %107 = vector.load %arg3[%c8, %c0_65, %c0_66] : memref<9x128x128xbf16, #tpu.memory_space<vmem>>, vector<1x128x128xbf16>
    %108 = vector.shape_cast %107 : vector<1x128x128xbf16> to vector<128x128xbf16>
    %cst_67 = arith.constant dense<0.000000e+00> : vector<8x128xf32>
    %109 = tpu.matmul %106, %108, %cst_67 {dimension_numbers = #tpu.dot_dimension_numbers<[1], [0], [0], [1], [0, 0, 1, 1], [], []>} : vector<8x128xbf16>, vector<128x128xbf16>, vector<8x128xf32> -> vector<8x128xf32>
    %110 = arith.addf %98, %109 : vector<8x128xf32>
    %c0_68 = arith.constant 0 : index
    %c0_69 = arith.constant 0 : index
    %111 = vector.load %arg4[%c0_68, %c0_69] : memref<1x128xf32, #tpu.memory_space<vmem>>, vector<1x128xf32>
    %112 = vector.broadcast %111 : vector<1x128xf32> to vector<8x128xf32>
    %113 = arith.addf %110, %112 : vector<8x128xf32>
    %c0_70 = arith.constant 0 : index
    %c0_71 = arith.constant 0 : index
    %c0_72 = arith.constant 0 : index
    %114 = vector.load %arg5[%c0_70, %c0_71, %c0_72] : memref<1x8x128xf32, #tpu.memory_space<vmem>>, vector<1x8x128xf32>
    %115 = vector.shape_cast %114 : vector<1x8x128xf32> to vector<8x128xf32>
    %116 = vector.shape_cast %113 : vector<8x128xf32> to vector<1x8x128xf32>
    tpu.vector_store %arg5[%c0_70, %c0_71, %c0_72], %116 {strides = array<i32>} : memref<1x8x128xf32, #tpu.memory_space<vmem>>, vector<1x8x128xf32>,
    return
  }
  func.func @transform_0(%arg0: i32, %arg1: i32) -> (i32, i32, i32) {
    %c0_i32 = arith.constant 0 : i32
    %c0_i32_0 = arith.constant 0 : i32
    %c0_i32_1 = arith.constant 0 : i32
    return %arg0, %c0_i32, %c0_i32_0 : i32, i32, i32
  }
  func.func @transform_1(%arg0: i32, %arg1: i32) -> (i32, i32, i32) {
    %c0_i32 = arith.constant 0 : i32
    %c0_i32_0 = arith.constant 0 : i32
    %c0_i32_1 = arith.constant 0 : i32
    %c0_i32_2 = arith.constant 0 : i32
    return %c0_i32, %c0_i32_0, %c0_i32_1 : i32, i32, i32
  }
  func.func @transform_2(%arg0: i32, %arg1: i32) -> (i32, i32) {
    %c0_i32 = arith.constant 0 : i32
    %c0_i32_0 = arith.constant 0 : i32
    %c0_i32_1 = arith.constant 0 : i32
    return %c0_i32, %c0_i32_0 : i32, i32
  }
  func.func @transform_3(%arg0: i32, %arg1: i32) -> (i32, i32, i32) {
    %c0_i32 = arith.constant 0 : i32
    %c0_i32_0 = arith.constant 0 : i32
    return %arg0, %arg1, %c0_i32 : i32, i32, i32
  }
}

</mosaic_0001>

<llo_original>
// kernel: fpn_forward.9
$region0: #{fpn_forward.9}
  #allocation0 [shape = 'u32[]', space=smem, size = 0x4, offset = 0x4, fixed_abs, tag = 'smem constant byte address 0x4 - core index']
  #allocation1 [shape = 'u32[144,128]{1,0:T(1,128)}', space=vmem, size = 0x12000, scoped, tag = 'internal scratch']
  %s0 = inlined_call_operand.vmem [shape: bf16[128,16], index: 0, kind: input, shape index: {}]
  %s1 = inlined_call_operand.vmem [shape: bf16[16,128], index: 1, kind: input, shape index: {}]
  %s2 = inlined_call_operand.vmem [shape: f32[1,128], index: 2, kind: input, shape index: {}]
  %s3 = inlined_call_operand.vmem [shape: f32[128,128], index: 3, kind: input, shape index: {}]
  %s4 = inlined_call_operand.vmem [shape: f32[128,128], index: 4, kind: output, shape index: {}]
  %s5 = sld [smem:[#allocation0]]
  $region26: #{fpn_forward.9} parent=0
    _
  %s7 = ssub.s32 1, %s5
  %s8 = scalar_select 0, %s7, %s5
  // Predicated region
  $region2: #{fpn_forward.9} parent=0 // pred_check
    _
  $region3: #{fpn_forward.9} parent=0 // pred_check_branch
    %10 = sbr.rel (0) target = $region5
  $region4: #{fpn_forward.9} parent=0 // pred_region
    _
  $region5: #{fpn_forward.9} parent=0 // pred_fallthru
    _
  // Predicated region
  $region6: #{fpn_forward.9} parent=0 // pred_check
    _
  $region7: #{fpn_forward.9} parent=0 // pred_check_branch
    %12 = sbr.rel (0) target = $region9
  $region8: #{fpn_forward.9} parent=0 // pred_region
    _
  $region9: #{fpn_forward.9} parent=0 // pred_fallthru
    _
  // Predicated region
  $region10: #{fpn_forward.9} parent=0 // pred_check
    _
  $region11: #{fpn_forward.9} parent=0 // pred_check_branch
    %14 = sbr.rel (0) target = $region13
  $region12: #{fpn_forward.9} parent=0 // pred_region
    _
  $region13: #{fpn_forward.9} parent=0 // pred_fallthru
    _
  // Predicated region
  $region14: #{fpn_forward.9} parent=0 // pred_check
    _
  $region15: #{fpn_forward.9} parent=0 // pred_check_branch
    %16 = sbr.rel (0) target = $region17
  $region16: #{fpn_forward.9} parent=0 // pred_region
    _
  $region17: #{fpn_forward.9} parent=0 // pred_fallthru
    _
  %v18 = vld [vmem:[%s0] sm:$0xf]
  %v19 = vld [vmem:[%s0 + $0x4] sm:$0xf]
  %v20 = vld [vmem:[%s0 + $0x8] sm:$0xf]
  %v21 = vld [vmem:[%s0 + $0xc] sm:$0xf]
  %v22 = vld [vmem:[%s0 + $0x10] sm:$0xf]
  %v23 = vld [vmem:[%s0 + $0x14] sm:$0xf]
  %v24 = vld [vmem:[%s0 + $0x18] sm:$0xf]
  %v25 = vld [vmem:[%s0 + $0x1c] sm:$0xf]
  %v26 = vld [vmem:[%s0 + $0x20] sm:$0xf]
  %v27 = vld [vmem:[%s0 + $0x24] sm:$0xf]
  %v28 = vld [vmem:[%s0 + $0x28] sm:$0xf]
  %v29 = vld [vmem:[%s0 + $0x2c] sm:$0xf]
  %v30 = vld [vmem:[%s0 + $0x30] sm:$0xf]
  %v31 = vld [vmem:[%s0 + $0x34] sm:$0xf]
  %v32 = vld [vmem:[%s0 + $0x38] sm:$0xf]
  %v33 = vld [vmem:[%s0 + $0x3c] sm:$0xf]
  %v34 = vld [vmem:[%s1] sm:$0xf]
  %v35 = vld [vmem:[%s1 + $0x4] sm:$0xf]
  %v36 = vld [vmem:[%s2] sm:$0x1]
  %v38 = vlaneseq
  %v39 = vshrl.u32 %v38, 7
  %v40 = vsub.s32 0, %v39
  %v41 = vrot.slane %v36, %v40
  %v59 = vunpack.c.l.b16 %v18
  %v60 = vunpack.c.l.b16 %v19
  %v61 = vunpack.c.l.b16 %v20
  %v62 = vunpack.c.l.b16 %v21
  %v63 = vunpack.c.l.b16 %v22
  %v64 = vunpack.c.l.b16 %v23
  %v65 = vunpack.c.l.b16 %v24
  %v66 = vunpack.c.l.b16 %v25
  %v67 = vunpack.c.l.b16 %v26
  %v68 = vunpack.c.l.b16 %v27
  %v69 = vunpack.c.l.b16 %v28
  %v70 = vunpack.c.l.b16 %v29
  %v71 = vunpack.c.l.b16 %v30
  %v72 = vunpack.c.l.b16 %v31
  %v73 = vunpack.c.l.b16 %v32
  %v74 = vunpack.c.l.b16 %v33
  %v75 = vpack.c.b16 %v60, %v59
  %v76 = vpack.c.b16 %v62, %v61
  %v77 = vpack.c.b16 %v64, %v63
  %v78 = vpack.c.b16 %v66, %v65
  %v79 = vpack.c.b16 %v68, %v67
  %v80 = vpack.c.b16 %v70, %v69
  %v81 = vpack.c.b16 %v72, %v71
  %v82 = vpack.c.b16 %v74, %v73
  %v85 = vunpack.c.l.b16 %v34
  %v86 = vunpack.c.l.b16 %v35
  %v87 = vpack.c.b16 %v86, %v85
  %vm89 = vcmask 130048
  %v91 = vsel %vm89, %v75, 0
  %v94 = vsel %vm89, %v76, 0
  %v97 = vsel %vm89, %v77, 0
  %v100 = vsel %vm89, %v78, 0
  %v103 = vsel %vm89, %v79, 0
  %v106 = vsel %vm89, %v80, 0
  %v109 = vsel %vm89, %v81, 0
  %v112 = vsel %vm89, %v82, 0
  %114 = vmatprep.subr.bf16.mxu0 0
  %115 = vmatpush1.bf16.msra.mxu0 %v87
  %116 = vmatprep.subr.bf16.mxu0 0
  %117 = vmatpush1.bf16.msra.mxu0 0
  %118 = vmatprep.subr.bf16.mxu0 0
  %119 = vmatpush1.bf16.msra.mxu0 0
  %120 = vmatprep.subr.bf16.mxu0 0
  %121 = vmatpush1.bf16.msra.mxu0 0
  %122 = vmatprep.subr.bf16.mxu0 0
  %123 = vmatpush1.bf16.msra.mxu0 0
  %124 = vmatprep.subr.bf16.mxu0 0
  %125 = vmatpush1.bf16.msra.mxu0 0
  %126 = vmatprep.subr.bf16.mxu0 0
  %127 = vmatpush1.bf16.msra.mxu0 0
  %128 = vmatprep.subr.bf16.mxu0 0
  %129 = vmatpush1.bf16.msra.mxu0 0
  %130 = vmatprep.subr.bf16.mxu0 0
  %131 = vmatpush1.bf16.msra.mxu0 0
  %132 = vmatprep.subr.bf16.mxu0 0
  %133 = vmatpush1.bf16.msra.mxu0 0
  %134 = vmatprep.subr.bf16.mxu0 0
  %135 = vmatpush1.bf16.msra.mxu0 0
  %136 = vmatprep.subr.bf16.mxu0 0
  %137 = vmatpush1.bf16.msra.mxu0 0
  %138 = vmatprep.subr.bf16.mxu0 0
  %139 = vmatpush1.bf16.msra.mxu0 0
  %140 = vmatprep.subr.bf16.mxu0 0
  %141 = vmatpush1.bf16.msra.mxu0 0
  %142 = vmatprep.subr.bf16.mxu0 0
  %143 = vmatpush1.bf16.msra.mxu0 0
  %144 = vmatprep.subr.bf16.mxu0 0
  %145 = vmatpush1.bf16.msra.mxu0 0
  %146 = vmatprep.mubr.bf16.mxu0 0
  %147 = vmatmul.mubr.bf16.gmra.mrb[0].mxu0 %v91
  %v148 = vpop.f32.mrb[0].mxu0
  %v149 = vadd.f32 %v41, %v148
  %v150 = vpop.f32.mrb[0].mxu0
  %v151 = vpop.f32.mrb[0].mxu0
  %v152 = vadd.f32 %v41, %v151
  %v153 = vpop.f32.mrb[0].mxu0
  %154 = vmatprep.mubr.bf16.mxu0 0
  %155 = vmatmul.mubr.bf16.gmra.mrb[0].mxu0 %v94
  %v156 = vpop.f32.mrb[0].mxu0
  %v157 = vadd.f32 %v41, %v156
  %v158 = vpop.f32.mrb[0].mxu0
  %v159 = vpop.f32.mrb[0].mxu0
  %v160 = vadd.f32 %v41, %v159
  %v161 = vpop.f32.mrb[0].mxu0
  %162 = vmatprep.mubr.bf16.mxu0 0
  %163 = vmatmul.mubr.bf16.gmra.mrb[0].mxu0 %v97
  %v164 = vpop.f32.mrb[0].mxu0
  %v165 = vadd.f32 %v41, %v164
  %v166 = vpop.f32.mrb[0].mxu0
  %v167 = vpop.f32.mrb[0].mxu0
  %v168 = vadd.f32 %v41, %v167
  %v169 = vpop.f32.mrb[0].mxu0
  %170 = vmatprep.mubr.bf16.mxu0 0
  %171 = vmatmul.mubr.bf16.gmra.mrb[0].mxu0 %v100
  %v172 = vpop.f32.mrb[0].mxu0
  %v173 = vadd.f32 %v41, %v172
  %v174 = vpop.f32.mrb[0].mxu0
  %v175 = vpop.f32.mrb[0].mxu0
  %v176 = vadd.f32 %v41, %v175
  %v177 = vpop.f32.mrb[0].mxu0
  %178 = vmatprep.mubr.bf16.mxu0 0
  %179 = vmatmul.mubr.bf16.gmra.mrb[0].mxu0 %v103
  %v180 = vpop.f32.mrb[0].mxu0
  %v181 = vadd.f32 %v41, %v180
  %v182 = vpop.f32.mrb[0].mxu0
  %v183 = vpop.f32.mrb[0].mxu0
  %v184 = vadd.f32 %v41, %v183
  %v185 = vpop.f32.mrb[0].mxu0
  %186 = vmatprep.mubr.bf16.mxu0 0
  %187 = vmatmul.mubr.bf16.gmra.mrb[0].mxu0 %v106
  %v188 = vpop.f32.mrb[0].mxu0
  %v189 = vadd.f32 %v41, %v188
  %v190 = vpop.f32.mrb[0].mxu0
  %v191 = vpop.f32.mrb[0].mxu0
  %v192 = vadd.f32 %v41, %v191
  %v193 = vpop.f32.mrb[0].mxu0
  %194 = vmatprep.mubr.bf16.mxu0 0
  %195 = vmatmul.mubr.bf16.gmra.mrb[0].mxu0 %v109
  %v196 = vpop.f32.mrb[0].mxu0
  %v197 = vadd.f32 %v41, %v196
  %v198 = vpop.f32.mrb[0].mxu0
  %v199 = vpop.f32.mrb[0].mxu0
  %v200 = vadd.f32 %v41, %v199
  %v201 = vpop.f32.mrb[0].mxu0
  %202 = vmatprep.mubr.bf16.mxu0 0
  %203 = vmatmul.mubr.bf16.gmra.mrb[0].mxu0 %v112
  %v204 = vpop.f32.mrb[0].mxu0
  %v205 = vadd.f32 %v41, %v204
  %v206 = vpop.f32.mrb[0].mxu0
  %v207 = vpop.f32.mrb[0].mxu0
  %v208 = vadd.f32 %v41, %v207
  %v209 = vpop.f32.mrb[0].mxu0
  %210 = vdwg.mxu0
  %v211 = vld [vmem:[%s3] sm:$0xff]
  %v212 = vld [vmem:[%s3 + $0x8] sm:$0xff]
  %v213 = vld [vmem:[%s3 + $0x10] sm:$0xff]
  %v214 = vld [vmem:[%s3 + $0x18] sm:$0xff]
  %v215 = vld [vmem:[%s3 + $0x20] sm:$0xff]
  %v216 = vld [vmem:[%s3 + $0x28] sm:$0xff]
  %v217 = vld [vmem:[%s3 + $0x30] sm:$0xff]
  %v218 = vld [vmem:[%s3 + $0x38] sm:$0xff]
  %v219 = vld [vmem:[%s3 + $0x40] sm:$0xff]
  %v220 = vld [vmem:[%s3 + $0x48] sm:$0xff]
  %v221 = vld [vmem:[%s3 + $0x50] sm:$0xff]
  %v222 = vld [vmem:[%s3 + $0x58] sm:$0xff]
  %v223 = vld [vmem:[%s3 + $0x60] sm:$0xff]
  %v224 = vld [vmem:[%s3 + $0x68] sm:$0xff]
  %v225 = vld [vmem:[%s3 + $0x70] sm:$0xff]
  %v226 = vld [vmem:[%s3 + $0x78] sm:$0xff]
  %v227 = vadd.f32 %v149, %v211
  %v228 = vadd.f32 %v152, %v212
  %v229 = vadd.f32 %v157, %v213
  %v230 = vadd.f32 %v160, %v214
  %v231 = vadd.f32 %v165, %v215
  %v232 = vadd.f32 %v168, %v216
  %v233 = vadd.f32 %v173, %v217
  %v234 = vadd.f32 %v176, %v218
  %v235 = vadd.f32 %v181, %v219
  %v236 = vadd.f32 %v184, %v220
  %v237 = vadd.f32 %v189, %v221
  %v238 = vadd.f32 %v192, %v222
  %v239 = vadd.f32 %v197, %v223
  %v240 = vadd.f32 %v200, %v224
  %v241 = vadd.f32 %v205, %v225
  %v242 = vadd.f32 %v208, %v226
  %243 = vst [vmem:[%s4] sm:$0xff] %v227
  %244 = vst [vmem:[%s4 + $0x8] sm:$0xff] %v228
  %245 = vst [vmem:[%s4 + $0x10] sm:$0xff] %v229
  %246 = vst [vmem:[%s4 + $0x18] sm:$0xff] %v230
  %247 = vst [vmem:[%s4 + $0x20] sm:$0xff] %v231
  %248 = vst [vmem:[%s4 + $0x28] sm:$0xff] %v232
  %249 = vst [vmem:[%s4 + $0x30] sm:$0xff] %v233
  %250 = vst [vmem:[%s4 + $0x38] sm:$0xff] %v234
  %251 = vst [vmem:[%s4 + $0x40] sm:$0xff] %v235
  %252 = vst [vmem:[%s4 + $0x48] sm:$0xff] %v236
  %253 = vst [vmem:[%s4 + $0x50] sm:$0xff] %v237
  %254 = vst [vmem:[%s4 + $0x58] sm:$0xff] %v238
  %255 = vst [vmem:[%s4 + $0x60] sm:$0xff] %v239
  %256 = vst [vmem:[%s4 + $0x68] sm:$0xff] %v240
  %257 = vst [vmem:[%s4 + $0x70] sm:$0xff] %v241
  %258 = vst [vmem:[%s4 + $0x78] sm:$0xff] %v242
  // Predicated region
  $region18: #{fpn_forward.9} parent=0 // pred_check
    _
  $region19: #{fpn_forward.9} parent=0 // pred_check_branch
    %260 = sbr.rel (0) target = $region21
  $region20: #{fpn_forward.9} parent=0 // pred_region
    _
  $region21: #{fpn_forward.9} parent=0 // pred_fallthru
    _
  // Predicated region
  $region22: #{fpn_forward.9} parent=0 // pred_check
    _
  $region23: #{fpn_forward.9} parent=0 // pred_check_branch
    %262 = sbr.rel (0) target = $region25
  $region24: #{fpn_forward.9} parent=0 // pred_region
    _
  $region25: #{fpn_forward.9} parent=0 // pred_fallthru
    _

// kernel: fpn_forward.8
$region0: #{fpn_forward.8}
  #allocation0 [shape = 'u32[]', space=smem, size = 0x4, offset = 0x4, fixed_abs, tag = 'smem constant byte address 0x4 - core index']
  #allocation1 [shape = 'u32[144,128]{1,0:T(1,128)}', space=vmem, size = 0x12000, scoped, tag = 'internal scratch']
  %s0 = inlined_call_operand.vmem [shape: bf16[32,32], index: 0, kind: input, shape index: {}]
  %s1 = inlined_call_operand.vmem [shape: bf16[32,128], index: 1, kind: input, shape index: {}]
  %s2 = inlined_call_operand.vmem [shape: f32[1,128], index: 2, kind: input, shape index: {}]
  %s3 = inlined_call_operand.vmem [shape: f32[32,128], index: 3, kind: output, shape index: {}]
  %s4 = sld [smem:[#allocation0]]
  $region22: #{fpn_forward.8} parent=0
    _
  %s6 = ssub.s32 1, %s4
  %s7 = scalar_select 0, %s6, %s4
  // Predicated region
  $region2: #{fpn_forward.8} parent=0 // pred_check
    _
  $region3: #{fpn_forward.8} parent=0 // pred_check_branch
    %9 = sbr.rel (0) target = $region5
  $region4: #{fpn_forward.8} parent=0 // pred_region
    _
  $region5: #{fpn_forward.8} parent=0 // pred_fallthru
    _
  // Predicated region
  $region6: #{fpn_forward.8} parent=0 // pred_check
    _
  $region7: #{fpn_forward.8} parent=0 // pred_check_branch
    %11 = sbr.rel (0) target = $region9
  $region8: #{fpn_forward.8} parent=0 // pred_region
    _
  $region9: #{fpn_forward.8} parent=0 // pred_fallthru
    _
  // Predicated region
  $region10: #{fpn_forward.8} parent=0 // pred_check
    _
  $region11: #{fpn_forward.8} parent=0 // pred_check_branch
    %13 = sbr.rel (0) target = $region13
  $region12: #{fpn_forward.8} parent=0 // pred_region
    _
  $region13: #{fpn_forward.8} parent=0 // pred_fallthru
    _
  %v15 = vld [vmem:[%s0] sm:$0xf]
  %v16 = vld [vmem:[%s0 + $0x4] sm:$0xf]
  %v17 = vld [vmem:[%s0 + $0x8] sm:$0xf]
  %v18 = vld [vmem:[%s0 + $0xc] sm:$0xf]
  %v19 = vld [vmem:[%s1] sm:$0xf]
  %v20 = vld [vmem:[%s1 + $0x4] sm:$0xf]
  %v21 = vld [vmem:[%s1 + $0x8] sm:$0xf]
  %v22 = vld [vmem:[%s1 + $0xc] sm:$0xf]
  %v23 = vld [vmem:[%s2] sm:$0x1]
  %v25 = vlaneseq
  %v26 = vshrl.u32 %v25, 7
  %v27 = vsub.s32 0, %v26
  %v28 = vrot.slane %v23, %v27
  %v34 = vunpack.c.l.b16 %v15
  %v35 = vunpack.c.l.b16 %v16
  %v36 = vunpack.c.l.b16 %v17
  %v37 = vunpack.c.l.b16 %v18
  %v38 = vpack.c.b16 %v35, %v34
  %v39 = vpack.c.b16 %v37, %v36
  %v44 = vunpack.c.l.b16 %v19
  %v45 = vunpack.c.l.b16 %v20
  %v46 = vunpack.c.l.b16 %v21
  %v47 = vunpack.c.l.b16 %v22
  %v48 = vpack.c.b16 %v45, %v44
  %v49 = vpack.c.b16 %v47, %v46
  %vm52 = vcmask 261120
  %v54 = vsel %vm52, %v38, 0
  %v57 = vsel %vm52, %v39, 0
  %59 = vmatprep.subr.bf16.mxu0 0
  %60 = vmatpush1.bf16.msra.mxu0 %v48
  %61 = vmatprep.subr.bf16.mxu0 0
  %62 = vmatpush1.bf16.msra.mxu0 %v49
  %63 = vmatprep.subr.bf16.mxu0 0
  %64 = vmatpush1.bf16.msra.mxu0 0
  %65 = vmatprep.subr.bf16.mxu0 0
  %66 = vmatpush1.bf16.msra.mxu0 0
  %67 = vmatprep.subr.bf16.mxu0 0
  %68 = vmatpush1.bf16.msra.mxu0 0
  %69 = vmatprep.subr.bf16.mxu0 0
  %70 = vmatpush1.bf16.msra.mxu0 0
  %71 = vmatprep.subr.bf16.mxu0 0
  %72 = vmatpush1.bf16.msra.mxu0 0
  %73 = vmatprep.subr.bf16.mxu0 0
  %74 = vmatpush1.bf16.msra.mxu0 0
  %75 = vmatprep.subr.bf16.mxu0 0
  %76 = vmatpush1.bf16.msra.mxu0 0
  %77 = vmatprep.subr.bf16.mxu0 0
  %78 = vmatpush1.bf16.msra.mxu0 0
  %79 = vmatprep.subr.bf16.mxu0 0
  %80 = vmatpush1.bf16.msra.mxu0 0
  %81 = vmatprep.subr.bf16.mxu0 0
  %82 = vmatpush1.bf16.msra.mxu0 0
  %83 = vmatprep.subr.bf16.mxu0 0
  %84 = vmatpush1.bf16.msra.mxu0 0
  %85 = vmatprep.subr.bf16.mxu0 0
  %86 = vmatpush1.bf16.msra.mxu0 0
  %87 = vmatprep.subr.bf16.mxu0 0
  %88 = vmatpush1.bf16.msra.mxu0 0
  %89 = vmatprep.subr.bf16.mxu0 0
  %90 = vmatpush1.bf16.msra.mxu0 0
  %91 = vmatprep.mubr.bf16.mxu0 0
  %92 = vmatmul.mubr.bf16.gmra.mrb[0].mxu0 %v54
  %v93 = vpop.f32.mrb[0].mxu0
  %v94 = vadd.f32 %v28, %v93
  %v95 = vpop.f32.mrb[0].mxu0
  %v96 = vpop.f32.mrb[0].mxu0
  %v97 = vadd.f32 %v28, %v96
  %v98 = vpop.f32.mrb[0].mxu0
  %99 = vmatprep.mubr.bf16.mxu0 0
  %100 = vmatmul.mubr.bf16.gmra.mrb[0].mxu0 %v57
  %v101 = vpop.f32.mrb[0].mxu0
  %v102 = vadd.f32 %v28, %v101
  %v103 = vpop.f32.mrb[0].mxu0
  %v104 = vpop.f32.mrb[0].mxu0
  %v105 = vadd.f32 %v28, %v104
  %v106 = vpop.f32.mrb[0].mxu0
  %107 = vdwg.mxu0
  %108 = vst [vmem:[%s3] sm:$0xff] %v94
  %109 = vst [vmem:[%s3 + $0x8] sm:$0xff] %v97
  %110 = vst [vmem:[%s3 + $0x10] sm:$0xff] %v102
  %111 = vst [vmem:[%s3 + $0x18] sm:$0xff] %v105
  // Predicated region
  $region14: #{fpn_forward.8} parent=0 // pred_check
    _
  $region15: #{fpn_forward.8} parent=0 // pred_check_branch
    %113 = sbr.rel (0) target = $region17
  $region16: #{fpn_forward.8} parent=0 // pred_region
    _
  $region17: #{fpn_forward.8} parent=0 // pred_fallthru
    _
  // Predicated region
  $region18: #{fpn_forward.8} parent=0 // pred_check
    _
  $region19: #{fpn_forward.8} parent=0 // pred_check_branch
    %115 = sbr.rel (0) target = $region21
  $region20: #{fpn_forward.8} parent=0 // pred_region
    _
  $region21: #{fpn_forward.8} parent=0 // pred_fallthru
    _

// kernel: fpn_forward.10
$region0: #{fpn_forward.10}
  #allocation0 [shape = 'u32[]', space=smem, size = 0x4, offset = 0x4, fixed_abs, tag = 'smem constant byte address 0x4 - core index']
  #allocation1 [shape = 'u32[144,128]{1,0:T(1,128)}', space=vmem, size = 0x12000, scoped, tag = 'internal scratch']
  %s0 = inlined_call_operand.vmem [shape: bf16[512,8], index: 0, kind: input, shape index: {}]
  %s1 = inlined_call_operand.vmem [shape: bf16[8,128], index: 1, kind: input, shape index: {}]
  %s2 = inlined_call_operand.vmem [shape: f32[1,128], index: 2, kind: input, shape index: {}]
  %s3 = inlined_call_operand.vmem [shape: f32[512,128], index: 3, kind: input, shape index: {}]
  %s4 = inlined_call_operand.vmem [shape: f32[512,128], index: 4, kind: output, shape index: {}]
  %s5 = sld [smem:[#allocation0]]
  $region26: #{fpn_forward.10} parent=0
    _
  %s7 = ssub.s32 1, %s5
  %s8 = scalar_select 0, %s7, %s5
  // Predicated region
  $region2: #{fpn_forward.10} parent=0 // pred_check
    _
  $region3: #{fpn_forward.10} parent=0 // pred_check_branch
    %10 = sbr.rel (0) target = $region5
  $region4: #{fpn_forward.10} parent=0 // pred_region
    _
  $region5: #{fpn_forward.10} parent=0 // pred_fallthru
    _
  // Predicated region
  $region6: #{fpn_forward.10} parent=0 // pred_check
    _
  $region7: #{fpn_forward.10} parent=0 // pred_check_branch
    %12 = sbr.rel (0) target = $region9
  $region8: #{fpn_forward.10} parent=0 // pred_region
    _
  $region9: #{fpn_forward.10} parent=0 // pred_fallthru
    _
  // Predicated region
  $region10: #{fpn_forward.10} parent=0 // pred_check
    _
  $region11: #{fpn_forward.10} parent=0 // pred_check_branch
    %14 = sbr.rel (0) target = $region13
  $region12: #{fpn_forward.10} parent=0 // pred_region
    _
  $region13: #{fpn_forward.10} parent=0 // pred_fallthru
    _
  // Predicated region
  $region14: #{fpn_forward.10} parent=0 // pred_check
    _
  $region15: #{fpn_forward.10} parent=0 // pred_check_branch
    %16 = sbr.rel (0) target = $region17
  $region16: #{fpn_forward.10} parent=0 // pred_region
    _
  $region17: #{fpn_forward.10} parent=0 // pred_fallthru
    _
  %v18 = vld [vmem:[%s0] sm:$0xf]
  %v19 = vld [vmem:[%s0 + $0x4] sm:$0xf]
  %v20 = vld [vmem:[%s0 + $0x8] sm:$0xf]
  %v21 = vld [vmem:[%s0 + $0xc] sm:$0xf]
  %v22 = vld [vmem:[%s0 + $0x10] sm:$0xf]
  %v23 = vld [vmem:[%s0 + $0x14] sm:$0xf]
  %v24 = vld [vmem:[%s0 + $0x18] sm:$0xf]
  %v25 = vld [vmem:[%s0 + $0x1c] sm:$0xf]
  %v26 = vld [vmem:[%s0 + $0x20] sm:$0xf]
  %v27 = vld [vmem:[%s0 + $0x24] sm:$0xf]
  %v28 = vld [vmem:[%s0 + $0x28] sm:$0xf]
  %v29 = vld [vmem:[%s0 + $0x2c] sm:$0xf]
  %v30 = vld [vmem:[%s0 + $0x30] sm:$0xf]
  %v31 = vld [vmem:[%s0 + $0x34] sm:$0xf]
  %v32 = vld [vmem:[%s0 + $0x38] sm:$0xf]
  %v33 = vld [vmem:[%s0 + $0x3c] sm:$0xf]
  %v34 = vld [vmem:[%s0 + $0x40] sm:$0xf]
  %v35 = vld [vmem:[%s0 + $0x44] sm:$0xf]
  %v36 = vld [vmem:[%s0 + $0x48] sm:$0xf]
  %v37 = vld [vmem:[%s0 + $0x4c] sm:$0xf]
  %v38 = vld [vmem:[%s0 + $0x50] sm:$0xf]
  %v39 = vld [vmem:[%s0 + $0x54] sm:$0xf]
  %v40 = vld [vmem:[%s0 + $0x58] sm:$0xf]
  %v41 = vld [vmem:[%s0 + $0x5c] sm:$0xf]
  %v42 = vld [vmem:[%s0 + $0x60] sm:$0xf]
  %v43 = vld [vmem:[%s0 + $0x64] sm:$0xf]
  %v44 = vld [vmem:[%s0 + $0x68] sm:$0xf]
  %v45 = vld [vmem:[%s0 + $0x6c] sm:$0xf]
  %v46 = vld [vmem:[%s0 + $0x70] sm:$0xf]
  %v47 = vld [vmem:[%s0 + $0x74] sm:$0xf]
  %v48 = vld [vmem:[%s0 + $0x78] sm:$0xf]
  %v49 = vld [vmem:[%s0 + $0x7c] sm:$0xf]
  %v50 = vld [vmem:[%s0 + $0x80] sm:$0xf]
  %v51 = vld [vmem:[%s0 + $0x84] sm:$0xf]
  %v52 = vld [vmem:[%s0 + $0x88] sm:$0xf]
  %v53 = vld [vmem:[%s0 + $0x8c] sm:$0xf]
  %v54 = vld [vmem:[%s0 + $0x90] sm:$0xf]
  %v55 = vld [vmem:[%s0 + $0x94] sm:$0xf]
  %v56 = vld [vmem:[%s0 + $0x98] sm:$0xf]
  %v57 = vld [vmem:[%s0 + $0x9c] sm:$0xf]
  %v58 = vld [vmem:[%s0 + $0xa0] sm:$0xf]
  %v59 = vld [vmem:[%s0 + $0xa4] sm:$0xf]
  %v60 = vld [vmem:[%s0 + $0xa8] sm:$0xf]
  %v61 = vld [vmem:[%s0 + $0xac] sm:$0xf]
  %v62 = vld [vmem:[%s0 + $0xb0] sm:$0xf]
  %v63 = vld [vmem:[%s0 + $0xb4] sm:$0xf]
  %v64 = vld [vmem:[%s0 + $0xb8] sm:$0xf]
  %v65 = vld [vmem:[%s0 + $0xbc] sm:$0xf]
  %v66 = vld [vmem:[%s0 + $0xc0] sm:$0xf]
  %v67 = vld [vmem:[%s0 + $0xc4] sm:$0xf]
  %v68 = vld [vmem:[%s0 + $0xc8] sm:$0xf]
  %v69 = vld [vmem:[%s0 + $0xcc] sm:$0xf]
  %v70 = vld [vmem:[%s0 + $0xd0] sm:$0xf]
  %v71 = vld [vmem:[%s0 + $0xd4] sm:$0xf]
  %v72 = vld [vmem:[%s0 + $0xd8] sm:$0xf]
  %v73 = vld [vmem:[%s0 + $0xdc] sm:$0xf]
  %v74 = vld [vmem:[%s0 + $0xe0] sm:$0xf]
  %v75 = vld [vmem:[%s0 + $0xe4] sm:$0xf]
  %v76 = vld [vmem:[%s0 + $0xe8] sm:$0xf]
  %v77 = vld [vmem:[%s0 + $0xec] sm:$0xf]
  %v78 = vld [vmem:[%s0 + $0xf0] sm:$0xf]
  %v79 = vld [vmem:[%s0 + $0xf4] sm:$0xf]
  %v80 = vld [vmem:[%s0 + $0xf8] sm:$0xf]
  %v81 = vld [vmem:[%s0 + $0xfc] sm:$0xf]
  %v82 = vld [vmem:[%s1] sm:$0xf]
  %v83 = vld [vmem:[%s2] sm:$0x1]
  %v85 = vlaneseq
  %v86 = vshrl.u32 %v85, 7
  %v87 = vsub.s32 0, %v86
  %v88 = vrot.slane %v83, %v87
  %v154 = vunpack.c.l.b16 %v18
  %v155 = vunpack.c.l.b16 %v19
  %v156 = vunpack.c.l.b16 %v20
  %v157 = vunpack.c.l.b16 %v21
  %v158 = vunpack.c.l.b16 %v22
  %v159 = vunpack.c.l.b16 %v23
  %v160 = vunpack.c.l.b16 %v24
  %v161 = vunpack.c.l.b16 %v25
  %v162 = vunpack.c.l.b16 %v26
  %v163 = vunpack.c.l.b16 %v27
  %v164 = vunpack.c.l.b16 %v28
  %v165 = vunpack.c.l.b16 %v29
  %v166 = vunpack.c.l.b16 %v30
  %v167 = vunpack.c.l.b16 %v31
  %v168 = vunpack.c.l.b16 %v32
  %v169 = vunpack.c.l.b16 %v33
  %v170 = vunpack.c.l.b16 %v34
  %v171 = vunpack.c.l.b16 %v35
  %v172 = vunpack.c.l.b16 %v36
  %v173 = vunpack.c.l.b16 %v37
  %v174 = vunpack.c.l.b16 %v38
  %v175 = vunpack.c.l.b16 %v39
  %v176 = vunpack.c.l.b16 %v40
  %v177 = vunpack.c.l.b16 %v41
  %v178 = vunpack.c.l.b16 %v42
  %v179 = vunpack.c.l.b16 %v43
  %v180 = vunpack.c.l.b16 %v44
  %v181 = vunpack.c.l.b16 %v45
  %v182 = vunpack.c.l.b16 %v46
  %v183 = vunpack.c.l.b16 %v47
  %v184 = vunpack.c.l.b16 %v48
  %v185 = vunpack.c.l.b16 %v49
  %v186 = vunpack.c.l.b16 %v50
  %v187 = vunpack.c.l.b16 %v51
  %v188 = vunpack.c.l.b16 %v52
  %v189 = vunpack.c.l.b16 %v53
  %v190 = vunpack.c.l.b16 %v54
  %v191 = vunpack.c.l.b16 %v55
  %v192 = vunpack.c.l.b16 %v56
  %v193 = vunpack.c.l.b16 %v57
  %v194 = vunpack.c.l.b16 %v58
  %v195 = vunpack.c.l.b16 %v59
  %v196 = vunpack.c.l.b16 %v60
  %v197 = vunpack.c.l.b16 %v61
  %v198 = vunpack.c.l.b16 %v62
  %v199 = vunpack.c.l.b16 %v63
  %v200 = vunpack.c.l.b16 %v64
  %v201 = vunpack.c.l.b16 %v65
  %v202 = vunpack.c.l.b16 %v66
  %v203 = vunpack.c.l.b16 %v67
  %v204 = vunpack.c.l.b16 %v68
  %v205 = vunpack.c.l.b16 %v69
  %v206 = vunpack.c.l.b16 %v70
  %v207 = vunpack.c.l.b16 %v71
  %v208 = vunpack.c.l.b16 %v72
  %v209 = vunpack.c.l.b16 %v73
  %v210 = vunpack.c.l.b16 %v74
  %v211 = vunpack.c.l.b16 %v75
  %v212 = vunpack.c.l.b16 %v76
  %v213 = vunpack.c.l.b16 %v77
  %v214 = vunpack.c.l.b16 %v78
  %v215 = vunpack.c.l.b16 %v79
  %v216 = vunpack.c.l.b16 %v80
  %v217 = vunpack.c.l.b16 %v81
  %v218 = vpack.c.b16 %v155, %v154
  %v219 = vpack.c.b16 %v157, %v156
  %v220 = vpack.c.b16 %v159, %v158
  %v221 = vpack.c.b16 %v161, %v160
  %v222 = vpack.c.b16 %v163, %v162
  %v223 = vpack.c.b16 %v165, %v164
  %v224 = vpack.c.b16 %v167, %v166
  %v225 = vpack.c.b16 %v169, %v168
  %v226 = vpack.c.b16 %v171, %v170
  %v227 = vpack.c.b16 %v173, %v172
  %v228 = vpack.c.b16 %v175, %v174
  %v229 = vpack.c.b16 %v177, %v176
  %v230 = vpack.c.b16 %v179, %v178
  %v231 = vpack.c.b16 %v181, %v180
  %v232 = vpack.c.b16 %v183, %v182
  %v233 = vpack.c.b16 %v185, %v184
  %v234 = vpack.c.b16 %v187, %v186
  %v235 = vpack.c.b16 %v189, %v188
  %v236 = vpack.c.b16 %v191, %v190
  %v237 = vpack.c.b16 %v193, %v192
  %v238 = vpack.c.b16 %v195, %v194
  %v239 = vpack.c.b16 %v197, %v196
  %v240 = vpack.c.b16 %v199, %v198
  %v241 = vpack.c.b16 %v201, %v200
  %v242 = vpack.c.b16 %v203, %v202
  %v243 = vpack.c.b16 %v205, %v204
  %v244 = vpack.c.b16 %v207, %v206
  %v245 = vpack.c.b16 %v209, %v208
  %v246 = vpack.c.b16 %v211, %v210
  %v247 = vpack.c.b16 %v213, %v212
  %v248 = vpack.c.b16 %v215, %v214
  %v249 = vpack.c.b16 %v217, %v216
  %vm250 = vcmask 64512
  %v252 = vsel %vm250, %v218, 0
  %v255 = vsel %vm250, %v219, 0
  %v258 = vsel %vm250, %v220, 0
  %v261 = vsel %vm250, %v221, 0
  %v264 = vsel %vm250, %v222, 0
  %v267 = vsel %vm250, %v223, 0
  %v270 = vsel %vm250, %v224, 0
  %v273 = vsel %vm250, %v225, 0
  %v276 = vsel %vm250, %v226, 0
  %v279 = vsel %vm250, %v227, 0
  %v282 = vsel %vm250, %v228, 0
  %v285 = vsel %vm250, %v229, 0
  %v288 = vsel %vm250, %v230, 0
  %v291 = vsel %vm250, %v231, 0
  %v294 = vsel %vm250, %v232, 0
  %v297 = vsel %vm250, %v233, 0
  %v300 = vsel %vm250, %v234, 0
  %v303 = vsel %vm250, %v235, 0
  %v306 = vsel %vm250, %v236, 0
  %v309 = vsel %vm250, %v237, 0
  %v312 = vsel %vm250, %v238, 0
  %v315 = vsel %vm250, %v239, 0
  %v318 = vsel %vm250, %v240, 0
  %v321 = vsel %vm250, %v241, 0
  %v324 = vsel %vm250, %v242, 0
  %v327 = vsel %vm250, %v243, 0
  %v330 = vsel %vm250, %v244, 0
  %v333 = vsel %vm250, %v245, 0
  %v336 = vsel %vm250, %v246, 0
  %v339 = vsel %vm250, %v247, 0
  %v342 = vsel %vm250, %v248, 0
  %v345 = vsel %vm250, %v249, 0
  %vm347 = vcmask 1043456
  %v349 = vsel %vm347, %v82, 0
  %351 = vmatprep.subr.bf16.mxu0 0
  %352 = vmatpush1.bf16.msra.mxu0 %v349
  %353 = vmatprep.subr.bf16.mxu0 0
  %354 = vmatpush1.bf16.msra.mxu0 0
  %355 = vmatprep.subr.bf16.mxu0 0
  %356 = vmatpush1.bf16.msra.mxu0 0
  %357 = vmatprep.subr.bf16.mxu0 0
  %358 = vmatpush1.bf16.msra.mxu0 0
  %359 = vmatprep.subr.bf16.mxu0 0
  %360 = vmatpush1.bf16.msra.mxu0 0
  %361 = vmatprep.subr.bf16.mxu0 0
  %362 = vmatpush1.bf16.msra.mxu0 0
  %363 = vmatprep.subr.bf16.mxu0 0
  %364 = vmatpush1.bf16.msra.mxu0 0
  %365 = vmatprep.subr.bf16.mxu0 0
  %366 = vmatpush1.bf16.msra.mxu0 0
  %367 = vmatprep.subr.bf16.mxu0 0
  %368 = vmatpush1.bf16.msra.mxu0 0
  %369 = vmatprep.subr.bf16.mxu0 0
  %370 = vmatpush1.bf16.msra.mxu0 0
  %371 = vmatprep.subr.bf16.mxu0 0
  %372 = vmatpush1.bf16.msra.mxu0 0
  %373 = vmatprep.subr.bf16.mxu0 0
  %374 = vmatpush1.bf16.msra.mxu0 0
  %375 = vmatprep.subr.bf16.mxu0 0
  %376 = vmatpush1.bf16.msra.mxu0 0
  %377 = vmatprep.subr.bf16.mxu0 0
  %378 = vmatpush1.bf16.msra.mxu0 0
  %379 = vmatprep.subr.bf16.mxu0 0
  %380 = vmatpush1.bf16.msra.mxu0 0
  %381 = vmatprep.subr.bf16.mxu0 0
  %382 = vmatpush1.bf16.msra.mxu0 0
  %383 = vmatprep.mubr.bf16.mxu0 0
  %384 = vmatmul.mubr.bf16.gmra.mrb[0].mxu0 %v252
  %v385 = vpop.f32.mrb[0].mxu0
  %v386 = vadd.f32 %v88, %v385
  %v387 = vpop.f32.mrb[0].mxu0
  %v388 = vpop.f32.mrb[0].mxu0
  %v389 = vadd.f32 %v88, %v388
  %v390 = vpop.f32.mrb[0].mxu0
  %391 = vmatprep.mubr.bf16.mxu0 0
  %392 = vmatmul.mubr.bf16.gmra.mrb[0].mxu0 %v255
  %v393 = vpop.f32.mrb[0].mxu0
  %v394 = vadd.f32 %v88, %v393
  %v395 = vpop.f32.mrb[0].mxu0
  %v396 = vpop.f32.mrb[0].mxu0
  %v397 = vadd.f32 %v88, %v396
  %v398 = vpop.f32.mrb[0].mxu0
  %399 = vmatprep.mubr.bf16.mxu0 0
  %400 = vmatmul.mubr.bf16.gmra.mrb[0].mxu0 %v258
  %v401 = vpop.f32.mrb[0].mxu0
  %v402 = vadd.f32 %v88, %v401
  %v403 = vpop.f32.mrb[0].mxu0
  %v404 = vpop.f32.mrb[0].mxu0
  %v405 = vadd.f32 %v88, %v404
  %v406 = vpop.f32.mrb[0].mxu0
  %407 = vmatprep.mubr.bf16.mxu0 0
  %408 = vmatmul.mubr.bf16.gmra.mrb[0].mxu0 %v261
  %v409 = vpop.f32.mrb[0].mxu0
  %v410 = vadd.f32 %v88, %v409
  %v411 = vpop.f32.mrb[0].mxu0
  %v412 = vpop.f32.mrb[0].mxu0
  %v413 = vadd.f32 %v88, %v412
  %v414 = vpop.f32.mrb[0].mxu0
  %415 = vmatprep.mubr.bf16.mxu0 0
  %416 = vmatmul.mubr.bf16.gmra.mrb[0].mxu0 %v264
  %v417 = vpop.f32.mrb[0].mxu0
  %v418 = vadd.f32 %v88, %v417
  %v419 = vpop.f32.mrb[0].mxu0
  %v420 = vpop.f32.mrb[0].mxu0
  %v421 = vadd.f32 %v88, %v420
  %v422 = vpop.f32.mrb[0].mxu0
  %423 = vmatprep.mubr.bf16.mxu0 0
  %424 = vmatmul.mubr.bf16.gmra.mrb[0].mxu0 %v267
  %v425 = vpop.f32.mrb[0].mxu0
  %v426 = vadd.f32 %v88, %v425
  %v427 = vpop.f32.mrb[0].mxu0
  %v428 = vpop.f32.mrb[0].mxu0
  %v429 = vadd.f32 %v88, %v428
  %v430 = vpop.f32.mrb[0].mxu0
  %431 = vmatprep.mubr.bf16.mxu0 0
  %432 = vmatmul.mubr.bf16.gmra.mrb[0].mxu0 %v270
  %v433 = vpop.f32.mrb[0].mxu0
  %v434 = vadd.f32 %v88, %v433
  %v435 = vpop.f32.mrb[0].mxu0
  %v436 = vpop.f32.mrb[0].mxu0
  %v437 = vadd.f32 %v88, %v436
  %v438 = vpop.f32.mrb[0].mxu0
  %439 = vmatprep.mubr.bf16.mxu0 0
  %440 = vmatmul.mubr.bf16.gmra.mrb[0].mxu0 %v273
  %v441 = vpop.f32.mrb[0].mxu0
  %v442 = vadd.f32 %v88, %v441
  %v443 = vpop.f32.mrb[0].mxu0
  %v444 = vpop.f32.mrb[0].mxu0
  %v445 = vadd.f32 %v88, %v444
  %v446 = vpop.f32.mrb[0].mxu0
  %447 = vmatprep.mubr.bf16.mxu0 0
  %448 = vmatmul.mubr.bf16.gmra.mrb[0].mxu0 %v276
  %v449 = vpop.f32.mrb[0].mxu0
  %v450 = vadd.f32 %v88, %v449
  %v451 = vpop.f32.mrb[0].mxu0
  %v452 = vpop.f32.mrb[0].mxu0
  %v453 = vadd.f32 %v88, %v452
  %v454 = vpop.f32.mrb[0].mxu0
  %455 = vmatprep.mubr.bf16.mxu0 0
  %456 = vmatmul.mubr.bf16.gmra.mrb[0].mxu0 %v279
  %v457 = vpop.f32.mrb[0].mxu0
  %v458 = vadd.f32 %v88, %v457
  %v459 = vpop.f32.mrb[0].mxu0
  %v460 = vpop.f32.mrb[0].mxu0
  %v461 = vadd.f32 %v88, %v460
  %v462 = vpop.f32.mrb[0].mxu0
  %463 = vmatprep.mubr.bf16.mxu0 0
  %464 = vmatmul.mubr.bf16.gmra.mrb[0].mxu0 %v282
  %v465 = vpop.f32.mrb[0].mxu0
  %v466 = vadd.f32 %v88, %v465
  %v467 = vpop.f32.mrb[0].mxu0
  %v468 = vpop.f32.mrb[0].mxu0
  %v469 = vadd.f32 %v88, %v468
  %v470 = vpop.f32.mrb[0].mxu0
  %471 = vmatprep.mubr.bf16.mxu0 0
  %472 = vmatmul.mubr.bf16.gmra.mrb[0].mxu0 %v285
  %v473 = vpop.f32.mrb[0].mxu0
  %v474 = vadd.f32 %v88, %v473
  %v475 = vpop.f32.mrb[0].mxu0
  %v476 = vpop.f32.mrb[0].mxu0
  %v477 = vadd.f32 %v88, %v476
  %v478 = vpop.f32.mrb[0].mxu0
  %479 = vmatprep.mubr.bf16.mxu0 0
  %480 = vmatmul.mubr.bf16.gmra.mrb[0].mxu0 %v288
  %v481 = vpop.f32.mrb[0].mxu0
  %v482 = vadd.f32 %v88, %v481
  %v483 = vpop.f32.mrb[0].mxu0
  %v484 = vpop.f32.mrb[0].mxu0
  %v485 = vadd.f32 %v88, %v484
  %v486 = vpop.f32.mrb[0].mxu0
  %487 = vmatprep.mubr.bf16.mxu0 0
  %488 = vmatmul.mubr.bf16.gmra.mrb[0].mxu0 %v291
  %v489 = vpop.f32.mrb[0].mxu0
  %v490 = vadd.f32 %v88, %v489
  %v491 = vpop.f32.mrb[0].mxu0
  %v492 = vpop.f32.mrb[0].mxu0
  %v493 = vadd.f32 %v88, %v492
  %v494 = vpop.f32.mrb[0].mxu0
  %495 = vmatprep.mubr.bf16.mxu0 0
  %496 = vmatmul.mubr.bf16.gmra.mrb[0].mxu0 %v294
  %v497 = vpop.f32.mrb[0].mxu0
  %v498 = vadd.f32 %v88, %v497
  %v499 = vpop.f32.mrb[0].mxu0
  %v500 = vpop.f32.mrb[0].mxu0
  %v501 = vadd.f32 %v88, %v500
  %v502 = vpop.f32.mrb[0].mxu0
  %503 = vmatprep.mubr.bf16.mxu0 0
  %504 = vmatmul.mubr.bf16.gmra.mrb[0].mxu0 %v297
  %v505 = vpop.f32.mrb[0].mxu0
  %v506 = vadd.f32 %v88, %v505
  %v507 = vpop.f32.mrb[0].mxu0
  %v508 = vpop.f32.mrb[0].mxu0
  %v509 = vadd.f32 %v88, %v508
  %v510 = vpop.f32.mrb[0].mxu0
  %511 = vmatprep.mubr.bf16.mxu0 0
  %512 = vmatmul.mubr.bf16.gmra.mrb[0].mxu0 %v300
  %v513 = vpop.f32.mrb[0].mxu0
  %v514 = vadd.f32 %v88, %v513
  %v515 = vpop.f32.mrb[0].mxu0
  %v516 = vpop.f32.mrb[0].mxu0
  %v517 = vadd.f32 %v88, %v516
  %v518 = vpop.f32.mrb[0].mxu0
  %519 = vmatprep.mubr.bf16.mxu0 0
  %520 = vmatmul.mubr.bf16.gmra.mrb[0].mxu0 %v303
  %v521 = vpop.f32.mrb[0].mxu0
  %v522 = vadd.f32 %v88, %v521
  %v523 = vpop.f32.mrb[0].mxu0
  %v524 = vpop.f32.mrb[0].mxu0
  %v525 = vadd.f32 %v88, %v524
  %v526 = vpop.f32.mrb[0].mxu0
  %527 = vmatprep.mubr.bf16.mxu0 0
  %528 = vmatmul.mubr.bf16.gmra.mrb[0].mxu0 %v306
  %v529 = vpop.f32.mrb[0].mxu0
  %v530 = vadd.f32 %v88, %v529
  %v531 = vpop.f32.mrb[0].mxu0
  %v532 = vpop.f32.mrb[0].mxu0
  %v533 = vadd.f32 %v88, %v532
  %v534 = vpop.f32.mrb[0].mxu0
  %535 = vmatprep.mubr.bf16.mxu0 0
  %536 = vmatmul.mubr.bf16.gmra.mrb[0].mxu0 %v309
  %v537 = vpop.f32.mrb[0].mxu0
  %v538 = vadd.f32 %v88, %v537
  %v539 = vpop.f32.mrb[0].mxu0
  %v540 = vpop.f32.mrb[0].mxu0
  %v541 = vadd.f32 %v88, %v540
  %v542 = vpop.f32.mrb[0].mxu0
  %543 = vmatprep.mubr.bf16.mxu0 0
  %544 = vmatmul.mubr.bf16.gmra.mrb[0].mxu0 %v312
  %v545 = vpop.f32.mrb[0].mxu0
  %v546 = vadd.f32 %v88, %v545
  %v547 = vpop.f32.mrb[0].mxu0
  %v548 = vpop.f32.mrb[0].mxu0
  %v549 = vadd.f32 %v88, %v548
  %v550 = vpop.f32.mrb[0].mxu0
  %551 = vmatprep.mubr.bf16.mxu0 0
  %552 = vmatmul.mubr.bf16.gmra.mrb[0].mxu0 %v315
  %v553 = vpop.f32.mrb[0].mxu0
  %v554 = vadd.f32 %v88, %v553
  %v555 = vpop.f32.mrb[0].mxu0
  %v556 = vpop.f32.mrb[0].mxu0
  %v557 = vadd.f32 %v88, %v556
  %v558 = vpop.f32.mrb[0].mxu0
  %559 = vmatprep.mubr.bf16.mxu0 0
  %560 = vmatmul.mubr.bf16.gmra.mrb[0].mxu0 %v318
  %v561 = vpop.f32.mrb[0].mxu0
  %v562 = vadd.f32 %v88, %v561
  %v563 = vpop.f32.mrb[0].mxu0
  %v564 = vpop.f32.mrb[0].mxu0
  %v565 = vadd.f32 %v88, %v564
  %v566 = vpop.f32.mrb[0].mxu0
  %567 = vmatprep.mubr.bf16.mxu0 0
  %568 = vmatmul.mubr.bf16.gmra.mrb[0].mxu0 %v321
  %v569 = vpop.f32.mrb[0].mxu0
  %v570 = vadd.f32 %v88, %v569
  %v571 = vpop.f32.mrb[0].mxu0
  %v572 = vpop.f32.mrb[0].mxu0
  %v573 = vadd.f32 %v88, %v572
  %v574 = vpop.f32.mrb[0].mxu0
  %575 = vmatprep.mubr.bf16.mxu0 0
  %576 = vmatmul.mubr.bf16.gmra.mrb[0].mxu0 %v324
  %v577 = vpop.f32.mrb[0].mxu0
  %v578 = vadd.f32 %v88, %v577
  %v579 = vpop.f32.mrb[0].mxu0
  %v580 = vpop.f32.mrb[0].mxu0
  %v581 = vadd.f32 %v88, %v580
  %v582 = vpop.f32.mrb[0].mxu0
  %583 = vmatprep.mubr.bf16.mxu0 0
  %584 = vmatmul.mubr.bf16.gmra.mrb[0].mxu0 %v327
  %v585 = vpop.f32.mrb[0].mxu0
  %v586 = vadd.f32 %v88, %v585
  %v587 = vpop.f32.mrb[0].mxu0
  %v588 = vpop.f32.mrb[0].mxu0
  %v589 = vadd.f32 %v88, %v588
  %v590 = vpop.f32.mrb[0].mxu0
  %591 = vmatprep.mubr.bf16.mxu0 0
  %592 = vmatmul.mubr.bf16.gmra.mrb[0].mxu0 %v330
  %v593 = vpop.f32.mrb[0].mxu0
  %v594 = vadd.f32 %v88, %v593
  %v595 = vpop.f32.mrb[0].mxu0
  %v596 = vpop.f32.mrb[0].mxu0
  %v597 = vadd.f32 %v88, %v596
  %v598 = vpop.f32.mrb[0].mxu0
  %599 = vmatprep.mubr.bf16.mxu0 0
  %600 = vmatmul.mubr.bf16.gmra.mrb[0].mxu0 %v333
  %v601 = vpop.f32.mrb[0].mxu0
  %v602 = vadd.f32 %v88, %v601
  %v603 = vpop.f32.mrb[0].mxu0
  %v604 = vpop.f32.mrb[0].mxu0
  %v605 = vadd.f32 %v88, %v604
  %v606 = vpop.f32.mrb[0].mxu0
  %607 = vmatprep.mubr.bf16.mxu0 0
  %608 = vmatmul.mubr.bf16.gmra.mrb[0].mxu0 %v336
  %v609 = vpop.f32.mrb[0].mxu0
  %v610 = vadd.f32 %v88, %v609
  %v611 = vpop.f32.mrb[0].mxu0
  %v612 = vpop.f32.mrb[0].mxu0
  %v613 = vadd.f32 %v88, %v612
  %v614 = vpop.f32.mrb[0].mxu0
  %615 = vmatprep.mubr.bf16.mxu0 0
  %616 = vmatmul.mubr.bf16.gmra.mrb[0].mxu0 %v339
  %v617 = vpop.f32.mrb[0].mxu0
  %v618 = vadd.f32 %v88, %v617
  %v619 = vpop.f32.mrb[0].mxu0
  %v620 = vpop.f32.mrb[0].mxu0
  %v621 = vadd.f32 %v88, %v620
  %v622 = vpop.f32.mrb[0].mxu0
  %623 = vmatprep.mubr.bf16.mxu0 0
  %624 = vmatmul.mubr.bf16.gmra.mrb[0].mxu0 %v342
  %v625 = vpop.f32.mrb[0].mxu0
  %v626 = vadd.f32 %v88, %v625
  %v627 = vpop.f32.mrb[0].mxu0
  %v628 = vpop.f32.mrb[0].mxu0
  %v629 = vadd.f32 %v88, %v628
  %v630 = vpop.f32.mrb[0].mxu0
  %631 = vmatprep.mubr.bf16.mxu0 0
  %632 = vmatmul.mubr.bf16.gmra.mrb[0].mxu0 %v345
  %v633 = vpop.f32.mrb[0].mxu0
  %v634 = vadd.f32 %v88, %v633
  %v635 = vpop.f32.mrb[0].mxu0
  %v636 = vpop.f32.mrb[0].mxu0
  %v637 = vadd.f32 %v88, %v636
  %v638 = vpop.f32.mrb[0].mxu0
  %639 = vdwg.mxu0
  %v640 = vld [vmem:[%s3] sm:$0xff]
  %v641 = vld [vmem:[%s3 + $0x8] sm:$0xff]
  %v642 = vld [vmem:[%s3 + $0x10] sm:$0xff]
  %v643 = vld [vmem:[%s3 + $0x18] sm:$0xff]
  %v644 = vld [vmem:[%s3 + $0x20] sm:$0xff]
  %v645 = vld [vmem:[%s3 + $0x28] sm:$0xff]
  %v646 = vld [vmem:[%s3 + $0x30] sm:$0xff]
  %v647 = vld [vmem:[%s3 + $0x38] sm:$0xff]
  %v648 = vld [vmem:[%s3 + $0x40] sm:$0xff]
  %v649 = vld [vmem:[%s3 + $0x48] sm:$0xff]
  %v650 = vld [vmem:[%s3 + $0x50] sm:$0xff]
  %v651 = vld [vmem:[%s3 + $0x58] sm:$0xff]
  %v652 = vld [vmem:[%s3 + $0x60] sm:$0xff]
  %v653 = vld [vmem:[%s3 + $0x68] sm:$0xff]
  %v654 = vld [vmem:[%s3 + $0x70] sm:$0xff]
  %v655 = vld [vmem:[%s3 + $0x78] sm:$0xff]
  %v656 = vld [vmem:[%s3 + $0x80] sm:$0xff]
  %v657 = vld [vmem:[%s3 + $0x88] sm:$0xff]
  %v658 = vld [vmem:[%s3 + $0x90] sm:$0xff]
  %v659 = vld [vmem:[%s3 + $0x98] sm:$0xff]
  %v660 = vld [vmem:[%s3 + $0xa0] sm:$0xff]
  %v661 = vld [vmem:[%s3 + $0xa8] sm:$0xff]
  %v662 = vld [vmem:[%s3 + $0xb0] sm:$0xff]
  %v663 = vld [vmem:[%s3 + $0xb8] sm:$0xff]
  %v664 = vld [vmem:[%s3 + $0xc0] sm:$0xff]
  %v665 = vld [vmem:[%s3 + $0xc8] sm:$0xff]
  %v666 = vld [vmem:[%s3 + $0xd0] sm:$0xff]
  %v667 = vld [vmem:[%s3 + $0xd8] sm:$0xff]
  %v668 = vld [vmem:[%s3 + $0xe0] sm:$0xff]
  %v669 = vld [vmem:[%s3 + $0xe8] sm:$0xff]
  %v670 = vld [vmem:[%s3 + $0xf0] sm:$0xff]
  %v671 = vld [vmem:[%s3 + $0xf8] sm:$0xff]
  %v672 = vld [vmem:[%s3 + $0x100] sm:$0xff]
  %v673 = vld [vmem:[%s3 + $0x108] sm:$0xff]
  %v674 = vld [vmem:[%s3 + $0x110] sm:$0xff]
  %v675 = vld [vmem:[%s3 + $0x118] sm:$0xff]
  %v676 = vld [vmem:[%s3 + $0x120] sm:$0xff]
  %v677 = vld [vmem:[%s3 + $0x128] sm:$0xff]
  %v678 = vld [vmem:[%s3 + $0x130] sm:$0xff]
  %v679 = vld [vmem:[%s3 + $0x138] sm:$0xff]
  %v680 = vld [vmem:[%s3 + $0x140] sm:$0xff]
  %v681 = vld [vmem:[%s3 + $0x148] sm:$0xff]
  %v682 = vld [vmem:[%s3 + $0x150] sm:$0xff]
  %v683 = vld [vmem:[%s3 + $0x158] sm:$0xff]
  %v684 = vld [vmem:[%s3 + $0x160] sm:$0xff]
  %v685 = vld [vmem:[%s3 + $0x168] sm:$0xff]
  %v686 = vld [vmem:[%s3 + $0x170] sm:$0xff]
  %v687 = vld [vmem:[%s3 + $0x178] sm:$0xff]
  %v688 = vld [vmem:[%s3 + $0x180] sm:$0xff]
  %v689 = vld [vmem:[%s3 + $0x188] sm:$0xff]
  %v690 = vld [vmem:[%s3 + $0x190] sm:$0xff]
  %v691 = vld [vmem:[%s3 + $0x198] sm:$0xff]
  %v692 = vld [vmem:[%s3 + $0x1a0] sm:$0xff]
  %v693 = vld [vmem:[%s3 + $0x1a8] sm:$0xff]
  %v694 = vld [vmem:[%s3 + $0x1b0] sm:$0xff]
  %v695 = vld [vmem:[%s3 + $0x1b8] sm:$0xff]
  %v696 = vld [vmem:[%s3 + $0x1c0] sm:$0xff]
  %v697 = vld [vmem:[%s3 + $0x1c8] sm:$0xff]
  %v698 = vld [vmem:[%s3 + $0x1d0] sm:$0xff]
  %v699 = vld [vmem:[%s3 + $0x1d8] sm:$0xff]
  %v700 = vld [vmem:[%s3 + $0x1e0] sm:$0xff]
  %v701 = vld [vmem:[%s3 + $0x1e8] sm:$0xff]
  %v702 = vld [vmem:[%s3 + $0x1f0] sm:$0xff]
  %v703 = vld [vmem:[%s3 + $0x1f8] sm:$0xff]
  %v704 = vadd.f32 %v386, %v640
  %v705 = vadd.f32 %v389, %v641
  %v706 = vadd.f32 %v394, %v642
  %v707 = vadd.f32 %v397, %v643
  %v708 = vadd.f32 %v402, %v644
  %v709 = vadd.f32 %v405, %v645
  %v710 = vadd.f32 %v410, %v646
  %v711 = vadd.f32 %v413, %v647
  %v712 = vadd.f32 %v418, %v648
  %v713 = vadd.f32 %v421, %v649
  %v714 = vadd.f32 %v426, %v650
  %v715 = vadd.f32 %v429, %v651
  %v716 = vadd.f32 %v434, %v652
  %v717 = vadd.f32 %v437, %v653
  %v718 = vadd.f32 %v442, %v654
  %v719 = vadd.f32 %v445, %v655
  %v720 = vadd.f32 %v450, %v656
  %v721 = vadd.f32 %v453, %v657
  %v722 = vadd.f32 %v458, %v658
  %v723 = vadd.f32 %v461, %v659
  %v724 = vadd.f32 %v466, %v660
  %v725 = vadd.f32 %v469, %v661
  %v726 = vadd.f32 %v474, %v662
  %v727 = vadd.f32 %v477, %v663
  %v728 = vadd.f32 %v482, %v664
  %v729 = vadd.f32 %v485, %v665
  %v730 = vadd.f32 %v490, %v666
  %v731 = vadd.f32 %v493, %v667
  %v732 = vadd.f32 %v498, %v668
  %v733 = vadd.f32 %v501, %v669
  %v734 = vadd.f32 %v506, %v670
  %v735 = vadd.f32 %v509, %v671
  %v736 = vadd.f32 %v514, %v672
  %v737 = vadd.f32 %v517, %v673
  %v738 = vadd.f32 %v522, %v674
  %v739 = vadd.f32 %v525, %v675
  %v740 = vadd.f32 %v530, %v676
  %v741 = vadd.f32 %v533, %v677
  %v742 = vadd.f32 %v538, %v678
  %v743 = vadd.f32 %v541, %v679
  %v744 = vadd.f32 %v546, %v680
  %v745 = vadd.f32 %v549, %v681
  %v746 = vadd.f32 %v554, %v682
  %v747 = vadd.f32 %v557, %v683
  %v748 = vadd.f32 %v562, %v684
  %v749 = vadd.f32 %v565, %v685
  %v750 = vadd.f32 %v570, %v686
  %v751 = vadd.f32 %v573, %v687
  %v752 = vadd.f32 %v578, %v688
  %v753 = vadd.f32 %v581, %v689
  %v754 = vadd.f32 %v586, %v690
  %v755 = vadd.f32 %v589, %v691
  %v756 = vadd.f32 %v594, %v692
  %v757 = vadd.f32 %v597, %v693
  %v758 = vadd.f32 %v602, %v694
  %v759 = vadd.f32 %v605, %v695
  %v760 = vadd.f32 %v610, %v696
  %v761 = vadd.f32 %v613, %v697
  %v762 = vadd.f32 %v618, %v698
  %v763 = vadd.f32 %v621, %v699
  %v764 = vadd.f32 %v626, %v700
  %v765 = vadd.f32 %v629, %v701
  %v766 = vadd.f32 %v634, %v702
  %v767 = vadd.f32 %v637, %v703
  %768 = vst [vmem:[%s4] sm:$0xff] %v704
  %769 = vst [vmem:[%s4 + $0x8] sm:$0xff] %v705
  %770 = vst [vmem:[%s4 + $0x10] sm:$0xff] %v706
  %771 = vst [vmem:[%s4 + $0x18] sm:$0xff] %v707
  %772 = vst [vmem:[%s4 + $0x20] sm:$0xff] %v708
  %773 = vst [vmem:[%s4 + $0x28] sm:$0xff] %v709
  %774 = vst [vmem:[%s4 + $0x30] sm:$0xff] %v710
  %775 = vst [vmem:[%s4 + $0x38] sm:$0xff] %v711
  %776 = vst [vmem:[%s4 + $0x40] sm:$0xff] %v712
  %777 = vst [vmem:[%s4 + $0x48] sm:$0xff] %v713
  %778 = vst [vmem:[%s4 + $0x50] sm:$0xff] %v714
  %779 = vst [vmem:[%s4 + $0x58] sm:$0xff] %v715
  %780 = vst [vmem:[%s4 + $0x60] sm:$0xff] %v716
  %781 = vst [vmem:[%s4 + $0x68] sm:$0xff] %v717
  %782 = vst [vmem:[%s4 + $0x70] sm:$0xff] %v718
  %783 = vst [vmem:[%s4 + $0x78] sm:$0xff] %v719
  %784 = vst [vmem:[%s4 + $0x80] sm:$0xff] %v720
  %785 = vst [vmem:[%s4 + $0x88] sm:$0xff] %v721
  %786 = vst [vmem:[%s4 + $0x90] sm:$0xff] %v722
  %787 = vst [vmem:[%s4 + $0x98] sm:$0xff] %v723
  %788 = vst [vmem:[%s4 + $0xa0] sm:$0xff] %v724
  %789 = vst [vmem:[%s4 + $0xa8] sm:$0xff] %v725
  %790 = vst [vmem:[%s4 + $0xb0] sm:$0xff] %v726
  %791 = vst [vmem:[%s4 + $0xb8] sm:$0xff] %v727
  %792 = vst [vmem:[%s4 + $0xc0] sm:$0xff] %v728
  %793 = vst [vmem:[%s4 + $0xc8] sm:$0xff] %v729
  %794 = vst [vmem:[%s4 + $0xd0] sm:$0xff] %v730
  %795 = vst [vmem:[%s4 + $0xd8] sm:$0xff] %v731
  %796 = vst [vmem:[%s4 + $0xe0] sm:$0xff] %v732
  %797 = vst [vmem:[%s4 + $0xe8] sm:$0xff] %v733
  %798 = vst [vmem:[%s4 + $0xf0] sm:$0xff] %v734
  %799 = vst [vmem:[%s4 + $0xf8] sm:$0xff] %v735
  %800 = vst [vmem:[%s4 + $0x100] sm:$0xff] %v736
  %801 = vst [vmem:[%s4 + $0x108] sm:$0xff] %v737
  %802 = vst [vmem:[%s4 + $0x110] sm:$0xff] %v738
  %803 = vst [vmem:[%s4 + $0x118] sm:$0xff] %v739
  %804 = vst [vmem:[%s4 + $0x120] sm:$0xff] %v740
  %805 = vst [vmem:[%s4 + $0x128] sm:$0xff] %v741
  %806 = vst [vmem:[%s4 + $0x130] sm:$0xff] %v742
  %807 = vst [vmem:[%s4 + $0x138] sm:$0xff] %v743
  %808 = vst [vmem:[%s4 + $0x140] sm:$0xff] %v744
  %809 = vst [vmem:[%s4 + $0x148] sm:$0xff] %v745
  %810 = vst [vmem:[%s4 + $0x150] sm:$0xff] %v746
  %811 = vst [vmem:[%s4 + $0x158] sm:$0xff] %v747
  %812 = vst [vmem:[%s4 + $0x160] sm:$0xff] %v748
  %813 = vst [vmem:[%s4 + $0x168] sm:$0xff] %v749
  %814 = vst [vmem:[%s4 + $0x170] sm:$0xff] %v750
  %815 = vst [vmem:[%s4 + $0x178] sm:$0xff] %v751
  %816 = vst [vmem:[%s4 + $0x180] sm:$0xff] %v752
  %817 = vst [vmem:[%s4 + $0x188] sm:$0xff] %v753
  %818 = vst [vmem:[%s4 + $0x190] sm:$0xff] %v754
  %819 = vst [vmem:[%s4 + $0x198] sm:$0xff] %v755
  %820 = vst [vmem:[%s4 + $0x1a0] sm:$0xff] %v756
  %821 = vst [vmem:[%s4 + $0x1a8] sm:$0xff] %v757
  %822 = vst [vmem:[%s4 + $0x1b0] sm:$0xff] %v758
  %823 = vst [vmem:[%s4 + $0x1b8] sm:$0xff] %v759
  %824 = vst [vmem:[%s4 + $0x1c0] sm:$0xff] %v760
  %825 = vst [vmem:[%s4 + $0x1c8] sm:$0xff] %v761
  %826 = vst [vmem:[%s4 + $0x1d0] sm:$0xff] %v762
  %827 = vst [vmem:[%s4 + $0x1d8] sm:$0xff] %v763
  %828 = vst [vmem:[%s4 + $0x1e0] sm:$0xff] %v764
  %829 = vst [vmem:[%s4 + $0x1e8] sm:$0xff] %v765
  %830 = vst [vmem:[%s4 + $0x1f0] sm:$0xff] %v766
  %831 = vst [vmem:[%s4 + $0x1f8] sm:$0xff] %v767
  // Predicated region
  $region18: #{fpn_forward.10} parent=0 // pred_check
    _
  $region19: #{fpn_forward.10} parent=0 // pred_check_branch
    %833 = sbr.rel (0) target = $region21
  $region20: #{fpn_forward.10} parent=0 // pred_region
    _
  $region21: #{fpn_forward.10} parent=0 // pred_fallthru
    _
  // Predicated region
  $region22: #{fpn_forward.10} parent=0 // pred_check
    _
  $region23: #{fpn_forward.10} parent=0 // pred_check_branch
    %835 = sbr.rel (0) target = $region25
  $region24: #{fpn_forward.10} parent=0 // pred_region
    _
  $region25: #{fpn_forward.10} parent=0 // pred_fallthru
    _

// kernel: fpn_forward.15
$region0: #{fpn_forward.15}
  #allocation0 [shape = 'u32[]', space=smem, size = 0x4, offset = 0x4, fixed_abs, tag = 'smem constant byte address 0x4 - core index']
  #allocation1 [shape = 'u32[144,128]{1,0:T(1,128)}', space=vmem, size = 0x12000, scoped, tag = 'internal scratch']
  %s0 = inlined_call_operand.vmem [shape: f32[2,328,128], index: 0, kind: input, shape index: {}]
  %s1 = inlined_call_operand.vmem [shape: bf16[9,128,128], index: 1, kind: input, shape index: {}]
  %s2 = inlined_call_operand.vmem [shape: f32[1,128], index: 2, kind: input, shape index: {}]
  %s3 = inlined_call_operand.vmem [shape: f32[2,288,128], index: 3, kind: output, shape index: {}]
  %s4 = sld [smem:[#allocation0]]
  $region45: #{fpn_forward.15} parent=0
    _
  %s6 = ssub.s32 1, %s4
  %s7 = scalar_select 0, %s6, %s4
  loop: start=0, step=1, limit=4
  $region2: #{fpn_forward.15} parent=0 // loop_pre_header
    _
  $region3: #{fpn_forward.15} parent=0 // loop_header
    %s9 = sphi 0, %s13
    %p10 = scmp.ge.s32.totalorder %s9, 4
    %s16 = sphi 0, %s28
    %s17 = sphi 0, %s24
    %s18 = sphi 0, %s16
    %s19 = sphi 0, %s17
    %s20 = sphi 0, %s18
    %s21 = sphi 0, %s19
    %s31 = sphi 0, %s33
    %s34 = sphi 0, %s31
    %s35 = sphi 0, %s34
    %s51 = sphi 0, %s35
    %s55 = sphi 0, %s55
    %s57 = sphi 0, %s55
    %s58 = sphi 0, %s57
    %s72 = sphi 0, %s58
    %s76 = sphi 0, %s76
    %s78 = sphi 0, %s76
    %s79 = sphi 0, %s78
    %s93 = sphi 0, %s79
    %s101 = sphi 0, %s103
    %s104 = sphi 0, %s101
    %s105 = sphi 0, %s104
    %s121 = sphi 0, %s105
  $region4: #{fpn_forward.15} parent=0 // loop_header_branch
    %12 = sbr.rel (%p10) target = $region8
  $region5: #{fpn_forward.15} parent=0 // loop_body
    %s14 = ssub.s32 %s9, 1
    %s15 = ssub.s32 %s9, 2
    %s22 = sadd.s32 1, %s17
    %p23 = scmp.ge.s32.totalorder %s22, 1
    %s24 = scalar_select %p23, 0, %s22
    %s25 = sadd.s32 1, %s16
    %s26 = scalar_select %p23, %s25, %s16
    %p27 = scmp.ge.s32.totalorder %s26, 2
    %s28 = scalar_select %p27, 0, %s26
    %s29 = ssub.s32 %s16, %s28
    %p30 = scmp.eq.s32.totalorder %s29, 0
    %s32 = sadd.s32 %s31, 1
    %s33 = scalar_select %p30, %s31, %s32
    %p36 = pneg %p30
    %p37 = scmp.eq.s32.totalorder %s9, 1
    %p38 = por %p36, %p37
    %p39 = scmp.ne.s32.totalorder %s31, %s34
    %p40 = scmp.eq.s32.totalorder %s9, 0
    %p41 = por %p39, %p40
    %p42 = scmp.ne.s32.totalorder %s31, %s34
    %p43 = scmp.eq.s32.totalorder %s14, 1
    %p44 = por %p42, %p43
    %p45 = scmp.ne.s32.totalorder %s34, %s35
    %p46 = scmp.eq.s32.totalorder %s14, 0
    %p47 = por %p45, %p46
    %p48 = scmp.ne.s32.totalorder %s34, %s35
    %p49 = scmp.eq.s32.totalorder %s15, 1
    %p50 = por %p48, %p49
    %p52 = scmp.ne.s32.totalorder %s35, %s51
    %p53 = scmp.eq.s32.totalorder %s15, 0
    %p54 = por %p52, %p53
    %s56 = sadd.s32 %s55, 1
    %p59 = scmp.eq.s32.totalorder %s9, 1
    %p60 = scmp.ne.s32.totalorder %s55, %s57
    %p61 = scmp.eq.s32.totalorder %s9, 0
    %p62 = por %p60, %p61
    %p63 = scmp.ne.s32.totalorder %s55, %s57
    %p64 = scmp.eq.s32.totalorder %s14, 1
    %p65 = por %p63, %p64
    %p66 = scmp.ne.s32.totalorder %s57, %s58
    %p67 = scmp.eq.s32.totalorder %s14, 0
    %p68 = por %p66, %p67
    %p69 = scmp.ne.s32.totalorder %s57, %s58
    %p70 = scmp.eq.s32.totalorder %s15, 1
    %p71 = por %p69, %p70
    %p73 = scmp.ne.s32.totalorder %s58, %s72
    %p74 = scmp.eq.s32.totalorder %s15, 0
    %p75 = por %p73, %p74
    %s77 = sadd.s32 %s76, 1
    %p80 = scmp.eq.s32.totalorder %s9, 1
    %p81 = scmp.ne.s32.totalorder %s76, %s78
    %p82 = scmp.eq.s32.totalorder %s9, 0
    %p83 = por %p81, %p82
    %p84 = scmp.ne.s32.totalorder %s76, %s78
    %p85 = scmp.eq.s32.totalorder %s14, 1
    %p86 = por %p84, %p85
    %p87 = scmp.ne.s32.totalorder %s78, %s79
    %p88 = scmp.eq.s32.totalorder %s14, 0
    %p89 = por %p87, %p88
    %p90 = scmp.ne.s32.totalorder %s78, %s79
    %p91 = scmp.eq.s32.totalorder %s15, 1
    %p92 = por %p90, %p91
    %p94 = scmp.ne.s32.totalorder %s79, %s93
    %p95 = scmp.eq.s32.totalorder %s15, 0
    %p96 = por %p94, %p95
    %s97 = ssub.s32 %s16, %s28
    %s98 = ssub.s32 %s17, %s24
    %s99 = sor.u32 %s97, %s98
    %p100 = scmp.eq.s32.totalorder %s99, 0
    %s102 = sadd.s32 %s101, 1
    %s103 = scalar_select %p100, %s101, %s102
    %p106 = pneg %p100
    %p107 = scmp.eq.s32.totalorder %s9, 1
    %p108 = por %p106, %p107
    %p109 = scmp.ne.s32.totalorder %s101, %s104
    %p110 = scmp.eq.s32.totalorder %s9, 0
    %p111 = por %p109, %p110
    %p112 = scmp.ne.s32.totalorder %s101, %s104
    %p113 = scmp.eq.s32.totalorder %s14, 1
    %p114 = por %p112, %p113
    %p115 = scmp.ne.s32.totalorder %s104, %s105
    %p116 = scmp.eq.s32.totalorder %s14, 0
    %p117 = por %p115, %p116
    %p118 = scmp.ne.s32.totalorder %s104, %s105
    %p119 = scmp.eq.s32.totalorder %s15, 1
    %p120 = por %p118, %p119
    %p122 = scmp.ne.s32.totalorder %s105, %s121
    %p123 = scmp.eq.s32.totalorder %s15, 0
    %p124 = por %p122, %p123
    %p125 = scmp.le.s32.totalorder 1, %s9
    %p126 = scmp.lt.s32.totalorder %s9, 3
    %p127 = pnand %p125, %p126
    %p128 = pneg %p127
    // Predicated region
    $region9: #{fpn_forward.15} parent=5 // pred_check
      _
    $region10: #{fpn_forward.15} parent=5 // pred_check_branch
      %130 = sbr.rel (%p127) target = $region12
    $region11: #{fpn_forward.15} parent=5 // pred_region
      %s131 = ssub.s32 %s9, 1
      // Predicated region
      $region13: #{fpn_forward.15} parent=11 // pred_check
        %p132 = pneg %p68
      $region14: #{fpn_forward.15} parent=11 // pred_check_branch
        %134 = sbr.rel (%p132) target = $region16
      $region15: #{fpn_forward.15} parent=11 // pred_region
        _
      $region16: #{fpn_forward.15} parent=11 // pred_fallthru
        _
      // Predicated region
      $region17: #{fpn_forward.15} parent=11 // pred_check
        %p135 = pneg %p89
      $region18: #{fpn_forward.15} parent=11 // pred_check_branch
        %137 = sbr.rel (%p135) target = $region20
      $region19: #{fpn_forward.15} parent=11 // pred_region
        _
      $region20: #{fpn_forward.15} parent=11 // pred_fallthru
        _
    $region12: #{fpn_forward.15} parent=5 // pred_fallthru
      _
    %p138 = scmp.lt.s32.totalorder %s9, 2
    // Predicated region
    $region21: #{fpn_forward.15} parent=5 // pred_check
      %p139 = pneg %p138
    $region22: #{fpn_forward.15} parent=5 // pred_check_branch
      %141 = sbr.rel (%p139) target = $region24
    $region23: #{fpn_forward.15} parent=5 // pred_region
      // Predicated region
      $region25: #{fpn_forward.15} parent=23 // pred_check
        %p142 = pneg %p41
      $region26: #{fpn_forward.15} parent=23 // pred_check_branch
        %144 = sbr.rel (%p142) target = $region28
      $region27: #{fpn_forward.15} parent=23 // pred_region
        %p145 = scmp.lt.s32.totalorder %s16, 1
        %s146 = scalar_select %p145, %s16, 1
        %s147 = smul.addr %s146, 41
        %s148 = smul.addr %s147, 8
        %s149 = scalar_lea.vmem %s0, %s148
      $region28: #{fpn_forward.15} parent=23 // pred_fallthru
        _
    $region24: #{fpn_forward.15} parent=5 // pred_fallthru
      _
    %p150 = scmp.le.s32.totalorder 1, %s9
    %p151 = scmp.lt.s32.totalorder %s9, 3
    %p152 = pnand %p150, %p151
    %p153 = pneg %p152
    // Predicated region
    $region29: #{fpn_forward.15} parent=5 // pred_check
      _
    $region30: #{fpn_forward.15} parent=5 // pred_check_branch
      %155 = sbr.rel (%p152) target = $region32
    $region31: #{fpn_forward.15} parent=5 // pred_region
      %s156 = ssub.s32 %s9, 1
      %p157 = scmp.lt.s32.totalorder %s18, 1
      %s158 = scalar_select %p157, %s18, 1
      %s159 = smul.addr %s158, 41
      %s160 = smul.addr %s159, 8
      %s161 = scalar_lea.vmem %s0, %s160
      %p162 = pneg %p47
      %p163 = pneg %p44
      %p164 = pneg %p68
      %p165 = pneg %p65
      %p166 = pneg %p89
      %p167 = pneg %p86
      %p168 = pneg %p117
      %p169 = pneg %p114
      %s170 = smul.u32 36, %s19
      %p171 = scmp.lt.s32.totalorder %s18, 1
      %s172 = scalar_select %p171, %s18, 1
      %p173 = scmp.lt.s32.totalorder %s170, 35
      %s174 = scalar_select %p173, %s170, 35
      %s175 = smul.addr %s172, 36
      %s176 = sadd.s32 %s174, %s175
      %s177 = smul.addr %s176, 8
      %s178 = scalar_lea.vmem %s3, %s177
      %p179 = scmp.lt.s32.totalorder %s18, 1
      %s180 = scalar_select %p179, %s18, 1
      %s181 = smul.addr %s180, 41
      %s182 = smul.addr %s181, 8
      %s183 = scalar_lea.vmem %s0, %s182
      %s184 = smul.u32 36, %s19
      %p185 = scmp.lt.s32.totalorder %s18, 1
      %s186 = scalar_select %p185, %s18, 1
      %p187 = scmp.lt.s32.totalorder %s184, 35
      %s188 = scalar_select %p187, %s184, 35
      %s189 = smul.addr %s186, 36
      %s190 = sadd.s32 %s188, %s189
      %s191 = smul.addr %s190, 8
      %s192 = scalar_lea.vmem %s3, %s191
      %s193 = smul.u32 36, %s19
      %s195 = smul.u32 %s19, 288
      %s196 = scalar_lea.vmem %s183, %s195
      %v197 = vld [vmem:[%s196] sm:$0xff]
      %v198 = vld [vmem:[%s196 + $0x8] sm:$0xff]
      %v199 = vld [vmem:[%s196 + $0x10] sm:$0xff]
      %v200 = vld [vmem:[%s196 + $0x18] sm:$0xff]
      %v201 = vld [vmem:[%s196 + $0x20] sm:$0xff]
      %v202 = vld [vmem:[%s196 + $0x28] sm:$0xff]
      %v203 = vld [vmem:[%s196 + $0x30] sm:$0xff]
      %v204 = vld [vmem:[%s196 + $0x38] sm:$0xff]
      %v205 = vld [vmem:[%s196 + $0x40] sm:$0xff]
      %v206 = vld [vmem:[%s196 + $0x48] sm:$0xff]
      %v207 = vld [vmem:[%s196 + $0x50] sm:$0xff]
      %v208 = vld [vmem:[%s196 + $0x58] sm:$0xff]
      %v209 = vld [vmem:[%s196 + $0x60] sm:$0xff]
      %v210 = vld [vmem:[%s196 + $0x68] sm:$0xff]
      %v211 = vld [vmem:[%s196 + $0x70] sm:$0xff]
      %v212 = vld [vmem:[%s196 + $0x78] sm:$0xff]
      %v213 = vld [vmem:[%s196 + $0x80] sm:$0xff]
      %v214 = vld [vmem:[%s196 + $0x88] sm:$0xff]
      %v215 = vld [vmem:[%s196 + $0x90] sm:$0xff]
      %v216 = vld [vmem:[%s196 + $0x98] sm:$0xff]
      %v217 = vld [vmem:[%s196 + $0xa0] sm:$0xff]
      %v218 = vld [vmem:[%s196 + $0xa8] sm:$0xff]
      %v219 = vld [vmem:[%s196 + $0xb0] sm:$0xff]
      %v220 = vld [vmem:[%s196 + $0xb8] sm:$0xff]
      %v221 = vld [vmem:[%s196 + $0xc0] sm:$0xff]
      %v222 = vld [vmem:[%s196 + $0xc8] sm:$0xff]
      %v223 = vld [vmem:[%s196 + $0xd0] sm:$0xff]
      %v224 = vld [vmem:[%s196 + $0xd8] sm:$0xff]
      %v225 = vld [vmem:[%s196 + $0xe0] sm:$0xff]
      %v226 = vld [vmem:[%s196 + $0xe8] sm:$0xff]
      %v227 = vld [vmem:[%s196 + $0xf0] sm:$0xff]
      %v228 = vld [vmem:[%s196 + $0xf8] sm:$0xff]
      %v229 = vld [vmem:[%s196 + $0x100] sm:$0xff]
      %v230 = vld [vmem:[%s196 + $0x108] sm:$0xff]
      %v231 = vld [vmem:[%s196 + $0x110] sm:$0xff]
      %v232 = vld [vmem:[%s196 + $0x118] sm:$0xff]
      %v233 = vpack.c.bf16 %v198, %v197
      %v234 = vpack.c.bf16 %v200, %v199
      %v235 = vpack.c.bf16 %v202, %v201
      %v236 = vpack.c.bf16 %v204, %v203
      %v237 = vpack.c.bf16 %v206, %v205
      %v238 = vpack.c.bf16 %v208, %v207
      %v239 = vpack.c.bf16 %v210, %v209
      %v240 = vpack.c.bf16 %v212, %v211
      %v241 = vpack.c.bf16 %v214, %v213
      %v242 = vpack.c.bf16 %v216, %v215
      %v243 = vpack.c.bf16 %v218, %v217
      %v244 = vpack.c.bf16 %v220, %v219
      %v245 = vpack.c.bf16 %v222, %v221
      %v246 = vpack.c.bf16 %v224, %v223
      %v247 = vpack.c.bf16 %v226, %v225
      %v248 = vpack.c.bf16 %v228, %v227
      %v249 = vpack.c.bf16 %v230, %v229
      %v250 = vpack.c.bf16 %v232, %v231
      %v251 = vld [vmem:[%s1] sm:$0xf]
      %v252 = vld [vmem:[%s1 + $0x4] sm:$0xf]
      %v253 = vld [vmem:[%s1 + $0x8] sm:$0xf]
      %v254 = vld [vmem:[%s1 + $0xc] sm:$0xf]
      %v255 = vld [vmem:[%s1 + $0x10] sm:$0xf]
      %v256 = vld [vmem:[%s1 + $0x14] sm:$0xf]
      %v257 = vld [vmem:[%s1 + $0x18] sm:$0xf]
      %v258 = vld [vmem:[%s1 + $0x1c] sm:$0xf]
      %v259 = vld [vmem:[%s1 + $0x20] sm:$0xf]
      %v260 = vld [vmem:[%s1 + $0x24] sm:$0xf]
      %v261 = vld [vmem:[%s1 + $0x28] sm:$0xf]
      %v262 = vld [vmem:[%s1 + $0x2c] sm:$0xf]
      %v263 = vld [vmem:[%s1 + $0x30] sm:$0xf]
      %v264 = vld [vmem:[%s1 + $0x34] sm:$0xf]
      %v265 = vld [vmem:[%s1 + $0x38] sm:$0xf]
      %v266 = vld [vmem:[%s1 + $0x3c] sm:$0xf]
      %s267 = sadd.s32 %s195, 1
      %s268 = scalar_lea.vmem %s183, %s267
      %v269 = vld [vmem:[%s268] sm:$0xff]
      %v270 = vld [vmem:[%s268 + $0x8] sm:$0xff]
      %v271 = vld [vmem:[%s268 + $0x10] sm:$0xff]
      %v272 = vld [vmem:[%s268 + $0x18] sm:$0xff]
      %v273 = vld [vmem:[%s268 + $0x20] sm:$0xff]
      %v274 = vld [vmem:[%s268 + $0x28] sm:$0xff]
      %v275 = vld [vmem:[%s268 + $0x30] sm:$0xff]
      %v276 = vld [vmem:[%s268 + $0x38] sm:$0xff]
      %v277 = vld [vmem:[%s268 + $0x40] sm:$0xff]
      %v278 = vld [vmem:[%s268 + $0x48] sm:$0xff]
      %v279 = vld [vmem:[%s268 + $0x50] sm:$0xff]
      %v280 = vld [vmem:[%s268 + $0x58] sm:$0xff]
      %v281 = vld [vmem:[%s268 + $0x60] sm:$0xff]
      %v282 = vld [vmem:[%s268 + $0x68] sm:$0xff]
      %v283 = vld [vmem:[%s268 + $0x70] sm:$0xff]
      %v284 = vld [vmem:[%s268 + $0x78] sm:$0xff]
      %v285 = vld [vmem:[%s268 + $0x80] sm:$0xff]
      %v286 = vld [vmem:[%s268 + $0x88] sm:$0xff]
      %v287 = vld [vmem:[%s268 + $0x90] sm:$0xff]
      %v288 = vld [vmem:[%s268 + $0x98] sm:$0xff]
      %v289 = vld [vmem:[%s268 + $0xa0] sm:$0xff]
      %v290 = vld [vmem:[%s268 + $0xa8] sm:$0xff]
      %v291 = vld [vmem:[%s268 + $0xb0] sm:$0xff]
      %v292 = vld [vmem:[%s268 + $0xb8] sm:$0xff]
      %v293 = vld [vmem:[%s268 + $0xc0] sm:$0xff]
      %v294 = vld [vmem:[%s268 + $0xc8] sm:$0xff]
      %v295 = vld [vmem:[%s268 + $0xd0] sm:$0xff]
      %v296 = vld [vmem:[%s268 + $0xd8] sm:$0xff]
      %v297 = vld [vmem:[%s268 + $0xe0] sm:$0xff]
      %v298 = vld [vmem:[%s268 + $0xe8] sm:$0xff]
      %v299 = vld [vmem:[%s268 + $0xf0] sm:$0xff]
      %v300 = vld [vmem:[%s268 + $0xf8] sm:$0xff]
      %v301 = vld [vmem:[%s268 + $0x100] sm:$0xff]
      %v302 = vld [vmem:[%s268 + $0x108] sm:$0xff]
      %v303 = vld [vmem:[%s268 + $0x110] sm:$0xff]
      %v304 = vld [vmem:[%s268 + $0x118] sm:$0xff]
      %v305 = vpack.c.bf16 %v270, %v269
      %v306 = vpack.c.bf16 %v272, %v271
      %v307 = vpack.c.bf16 %v274, %v273
      %v308 = vpack.c.bf16 %v276, %v275
      %v309 = vpack.c.bf16 %v278, %v277
      %v310 = vpack.c.bf16 %v280, %v279
      %v311 = vpack.c.bf16 %v282, %v281
      %v312 = vpack.c.bf16 %v284, %v283
      %v313 = vpack.c.bf16 %v286, %v285
      %v314 = vpack.c.bf16 %v288, %v287
      %v315 = vpack.c.bf16 %v290, %v289
      %v316 = vpack.c.bf16 %v292, %v291
      %v317 = vpack.c.bf16 %v294, %v293
      %v318 = vpack.c.bf16 %v296, %v295
      %v319 = vpack.c.bf16 %v298, %v297
      %v320 = vpack.c.bf16 %v300, %v299
      %v321 = vpack.c.bf16 %v302, %v301
      %v322 = vpack.c.bf16 %v304, %v303
      %s323 = scalar_lea.vmem %s1, 64
      %v324 = vld [vmem:[%s323] sm:$0xf]
      %v325 = vld [vmem:[%s323 + $0x4] sm:$0xf]
      %v326 = vld [vmem:[%s323 + $0x8] sm:$0xf]
      %v327 = vld [vmem:[%s323 + $0xc] sm:$0xf]
      %v328 = vld [vmem:[%s323 + $0x10] sm:$0xf]
      %v329 = vld [vmem:[%s323 + $0x14] sm:$0xf]
      %v330 = vld [vmem:[%s323 + $0x18] sm:$0xf]
      %v331 = vld [vmem:[%s323 + $0x1c] sm:$0xf]
      %v332 = vld [vmem:[%s323 + $0x20] sm:$0xf]
      %v333 = vld [vmem:[%s323 + $0x24] sm:$0xf]
      %v334 = vld [vmem:[%s323 + $0x28] sm:$0xf]
      %v335 = vld [vmem:[%s323 + $0x2c] sm:$0xf]
      %v336 = vld [vmem:[%s323 + $0x30] sm:$0xf]
      %v337 = vld [vmem:[%s323 + $0x34] sm:$0xf]
      %v338 = vld [vmem:[%s323 + $0x38] sm:$0xf]
      %v339 = vld [vmem:[%s323 + $0x3c] sm:$0xf]
      %v356 = vunpack.c.l.b16 %v324
      %v357 = vunpack.c.l.b16 %v325
      %v358 = vunpack.c.l.b16 %v326
      %v359 = vunpack.c.l.b16 %v327
      %v360 = vunpack.c.l.b16 %v328
      %v361 = vunpack.c.l.b16 %v329
      %v362 = vunpack.c.l.b16 %v330
      %v363 = vunpack.c.l.b16 %v331
      %v364 = vunpack.c.l.b16 %v332
      %v365 = vunpack.c.l.b16 %v333
      %v366 = vunpack.c.l.b16 %v334
      %v367 = vunpack.c.l.b16 %v335
      %v368 = vunpack.c.l.b16 %v336
      %v369 = vunpack.c.l.b16 %v337
      %v370 = vunpack.c.l.b16 %v338
      %v371 = vunpack.c.l.b16 %v339
      %v372 = vpack.c.b16 %v357, %v356
      %v373 = vpack.c.b16 %v359, %v358
      %v374 = vpack.c.b16 %v361, %v360
      %v375 = vpack.c.b16 %v363, %v362
      %v376 = vpack.c.b16 %v365, %v364
      %v377 = vpack.c.b16 %v367, %v366
      %v378 = vpack.c.b16 %v369, %v368
      %v379 = vpack.c.b16 %v371, %v370
      %388 = vmatprep.subr.bf16.mxu0 0
      %389 = vmatpush1.bf16.msra.mxu0 %v372
      %390 = vmatprep.subr.bf16.mxu0 0
      %391 = vmatpush1.bf16.msra.mxu0 %v373
      %392 = vmatprep.subr.bf16.mxu0 0
      %393 = vmatpush1.bf16.msra.mxu0 %v374
      %394 = vmatprep.subr.bf16.mxu0 0
      %395 = vmatpush1.bf16.msra.mxu0 %v375
      %396 = vmatprep.subr.bf16.mxu0 0
      %397 = vmatpush1.bf16.msra.mxu0 %v376
      %398 = vmatprep.subr.bf16.mxu0 0
      %399 = vmatpush1.bf16.msra.mxu0 %v377
      %400 = vmatprep.subr.bf16.mxu0 0
      %401 = vmatpush1.bf16.msra.mxu0 %v378
      %402 = vmatprep.subr.bf16.mxu0 0
      %403 = vmatpush1.bf16.msra.mxu0 %v379
      %404 = vmatprep.subr.bf16.mxu0 0
      %405 = vmatpush1.bf16.msra.mxu0 0
      %406 = vmatprep.subr.bf16.mxu0 0
      %407 = vmatpush1.bf16.msra.mxu0 0
      %408 = vmatprep.subr.bf16.mxu0 0
      %409 = vmatpush1.bf16.msra.mxu0 0
      %410 = vmatprep.subr.bf16.mxu0 0
      %411 = vmatpush1.bf16.msra.mxu0 0
      %412 = vmatprep.subr.bf16.mxu0 0
      %413 = vmatpush1.bf16.msra.mxu0 0
      %414 = vmatprep.subr.bf16.mxu0 0
      %415 = vmatpush1.bf16.msra.mxu0 0
      %416 = vmatprep.subr.bf16.mxu0 0
      %417 = vmatpush1.bf16.msra.mxu0 0
      %418 = vmatprep.subr.bf16.mxu0 0
      %419 = vmatpush1.bf16.msra.mxu0 0
      %420 = vmatprep.mubr.bf16.mxu0 0
      %421 = vmatmul.mubr.bf16.gmra.mrb[0].mxu0 %v305
      %v422 = vpop.f32.mrb[0].mxu0
      %v423 = vadd.f32 0.0, %v422
      %v424 = vpop.f32.mrb[0].mxu0
      %v425 = vpop.f32.mrb[0].mxu0
      %v426 = vadd.f32 0.0, %v425
      %v427 = vpop.f32.mrb[0].mxu0
      %428 = vmatprep.mubr.bf16.mxu0 0
      %429 = vmatmul.mubr.bf16.gmra.mrb[0].mxu0 %v306
      %v430 = vpop.f32.mrb[0].mxu0
      %v431 = vadd.f32 0.0, %v430
      %v432 = vpop.f32.mrb[0].mxu0
      %v433 = vpop.f32.mrb[0].mxu0
      %v434 = vadd.f32 0.0, %v433
      %v435 = vpop.f32.mrb[0].mxu0
      %436 = vmatprep.mubr.bf16.mxu0 0
      %437 = vmatmul.mubr.bf16.gmra.mrb[0].mxu0 %v307
      %v438 = vpop.f32.mrb[0].mxu0
      %v439 = vadd.f32 0.0, %v438
      %v440 = vpop.f32.mrb[0].mxu0
      %v441 = vpop.f32.mrb[0].mxu0
      %v442 = vadd.f32 0.0, %v441
      %v443 = vpop.f32.mrb[0].mxu0
      %444 = vmatprep.mubr.bf16.mxu0 0
      %445 = vmatmul.mubr.bf16.gmra.mrb[0].mxu0 %v308
      %v446 = vpop.f32.mrb[0].mxu0
      %v447 = vadd.f32 0.0, %v446
      %v448 = vpop.f32.mrb[0].mxu0
      %v449 = vpop.f32.mrb[0].mxu0
      %v450 = vadd.f32 0.0, %v449
      %v451 = vpop.f32.mrb[0].mxu0
      %452 = vmatprep.mubr.bf16.mxu0 0
      %453 = vmatmul.mubr.bf16.gmra.mrb[0].mxu0 %v309
      %v454 = vpop.f32.mrb[0].mxu0
      %v455 = vadd.f32 0.0, %v454
      %v456 = vpop.f32.mrb[0].mxu0
      %v457 = vpop.f32.mrb[0].mxu0
      %v458 = vadd.f32 0.0, %v457
      %v459 = vpop.f32.mrb[0].mxu0
      %460 = vmatprep.mubr.bf16.mxu0 0
      %461 = vmatmul.mubr.bf16.gmra.mrb[0].mxu0 %v310
      %v462 = vpop.f32.mrb[0].mxu0
      %v463 = vadd.f32 0.0, %v462
      %v464 = vpop.f32.mrb[0].mxu0
      %v465 = vpop.f32.mrb[0].mxu0
      %v466 = vadd.f32 0.0, %v465
      %v467 = vpop.f32.mrb[0].mxu0
      %468 = vmatprep.mubr.bf16.mxu0 0
      %469 = vmatmul.mubr.bf16.gmra.mrb[0].mxu0 %v311
      %v470 = vpop.f32.mrb[0].mxu0
      %v471 = vadd.f32 0.0, %v470
      %v472 = vpop.f32.mrb[0].mxu0
      %v473 = vpop.f32.mrb[0].mxu0
      %v474 = vadd.f32 0.0, %v473
      %v475 = vpop.f32.mrb[0].mxu0
      %476 = vmatprep.mubr.bf16.mxu0 0
      %477 = vmatmul.mubr.bf16.gmra.mrb[0].mxu0 %v312
      %v478 = vpop.f32.mrb[0].mxu0
      %v479 = vadd.f32 0.0, %v478
      %v480 = vpop.f32.mrb[0].mxu0
      %v481 = vpop.f32.mrb[0].mxu0
      %v482 = vadd.f32 0.0, %v481
      %v483 = vpop.f32.mrb[0].mxu0
      %484 = vmatprep.mubr.bf16.mxu0 0
      %485 = vmatmul.mubr.bf16.gmra.mrb[0].mxu0 %v313
      %v486 = vpop.f32.mrb[0].mxu0
      %v487 = vadd.f32 0.0, %v486
      %v488 = vpop.f32.mrb[0].mxu0
      %v489 = vpop.f32.mrb[0].mxu0
      %v490 = vadd.f32 0.0, %v489
      %v491 = vpop.f32.mrb[0].mxu0
      %492 = vmatprep.mubr.bf16.mxu0 0
      %493 = vmatmul.mubr.bf16.gmra.mrb[0].mxu0 %v314
      %v494 = vpop.f32.mrb[0].mxu0
      %v495 = vadd.f32 0.0, %v494
      %v496 = vpop.f32.mrb[0].mxu0
      %v497 = vpop.f32.mrb[0].mxu0
      %v498 = vadd.f32 0.0, %v497
      %v499 = vpop.f32.mrb[0].mxu0
      %500 = vmatprep.mubr.bf16.mxu0 0
      %501 = vmatmul.mubr.bf16.gmra.mrb[0].mxu0 %v315
      %v502 = vpop.f32.mrb[0].mxu0
      %v503 = vadd.f32 0.0, %v502
      %v504 = vpop.f32.mrb[0].mxu0
      %v505 = vpop.f32.mrb[0].mxu0
      %v506 = vadd.f32 0.0, %v505
      %v507 = vpop.f32.mrb[0].mxu0
      %508 = vmatprep.mubr.bf16.mxu0 0
      %509 = vmatmul.mubr.bf16.gmra.mrb[0].mxu0 %v316
      %v510 = vpop.f32.mrb[0].mxu0
      %v511 = vadd.f32 0.0, %v510
      %v512 = vpop.f32.mrb[0].mxu0
      %v513 = vpop.f32.mrb[0].mxu0
      %v514 = vadd.f32 0.0, %v513
      %v515 = vpop.f32.mrb[0].mxu0
      %516 = vmatprep.mubr.bf16.mxu0 0
      %517 = vmatmul.mubr.bf16.gmra.mrb[0].mxu0 %v317
      %v518 = vpop.f32.mrb[0].mxu0
      %v519 = vadd.f32 0.0, %v518
      %v520 = vpop.f32.mrb[0].mxu0
      %v521 = vpop.f32.mrb[0].mxu0
      %v522 = vadd.f32 0.0, %v521
      %v523 = vpop.f32.mrb[0].mxu0
      %524 = vmatprep.mubr.bf16.mxu0 0
      %525 = vmatmul.mubr.bf16.gmra.mrb[0].mxu0 %v318
      %v526 = vpop.f32.mrb[0].mxu0
      %v527 = vadd.f32 0.0, %v526
      %v528 = vpop.f32.mrb[0].mxu0
      %v529 = vpop.f32.mrb[0].mxu0
      %v530 = vadd.f32 0.0, %v529
      %v531 = vpop.f32.mrb[0].mxu0
      %532 = vmatprep.mubr.bf16.mxu0 0
      %533 = vmatmul.mubr.bf16.gmra.mrb[0].mxu0 %v319
      %v534 = vpop.f32.mrb[0].mxu0
      %v535 = vadd.f32 0.0, %v534
      %v536 = vpop.f32.mrb[0].mxu0
      %v537 = vpop.f32.mrb[0].mxu0
      %v538 = vadd.f32 0.0, %v537
      %v539 = vpop.f32.mrb[0].mxu0
      %540 = vmatprep.mubr.bf16.mxu0 0
      %541 = vmatmul.mubr.bf16.gmra.mrb[0].mxu0 %v320
      %v542 = vpop.f32.mrb[0].mxu0
      %v543 = vadd.f32 0.0, %v542
      %v544 = vpop.f32.mrb[0].mxu0
      %v545 = vpop.f32.mrb[0].mxu0
      %v546 = vadd.f32 0.0, %v545
      %v547 = vpop.f32.mrb[0].mxu0
      %548 = vmatprep.mubr.bf16.mxu0 0
      %549 = vmatmul.mubr.bf16.gmra.mrb[0].mxu0 %v321
      %v550 = vpop.f32.mrb[0].mxu0
      %v551 = vadd.f32 0.0, %v550
      %v552 = vpop.f32.mrb[0].mxu0
      %v553 = vpop.f32.mrb[0].mxu0
      %v554 = vadd.f32 0.0, %v553
      %v555 = vpop.f32.mrb[0].mxu0
      %556 = vmatprep.mubr.bf16.mxu0 0
      %557 = vmatmul.mubr.bf16.gmra.mrb[0].mxu0 %v322
      %v558 = vpop.f32.mrb[0].mxu0
      %v559 = vadd.f32 0.0, %v558
      %v560 = vpop.f32.mrb[0].mxu0
      %v561 = vpop.f32.mrb[0].mxu0
      %v562 = vadd.f32 0.0, %v561
      %v563 = vpop.f32.mrb[0].mxu0
      %564 = vdwg.mxu0
      %v581 = vunpack.c.l.b16 %v251
      %v582 = vunpack.c.l.b16 %v252
      %v583 = vunpack.c.l.b16 %v253
      %v584 = vunpack.c.l.b16 %v254
      %v585 = vunpack.c.l.b16 %v255
      %v586 = vunpack.c.l.b16 %v256
      %v587 = vunpack.c.l.b16 %v257
      %v588 = vunpack.c.l.b16 %v258
      %v589 = vunpack.c.l.b16 %v259
      %v590 = vunpack.c.l.b16 %v260
      %v591 = vunpack.c.l.b16 %v261
      %v592 = vunpack.c.l.b16 %v262
      %v593 = vunpack.c.l.b16 %v263
      %v594 = vunpack.c.l.b16 %v264
      %v595 = vunpack.c.l.b16 %v265
      %v596 = vunpack.c.l.b16 %v266
      %v597 = vpack.c.b16 %v582, %v581
      %v598 = vpack.c.b16 %v584, %v583
      %v599 = vpack.c.b16 %v586, %v585
      %v600 = vpack.c.b16 %v588, %v587
      %v601 = vpack.c.b16 %v590, %v589
      %v602 = vpack.c.b16 %v592, %v591
      %v603 = vpack.c.b16 %v594, %v593
      %v604 = vpack.c.b16 %v596, %v595
      %613 = vmatprep.subr.bf16.mxu0 0
      %614 = vmatpush1.bf16.msra.mxu0 %v597
      %615 = vmatprep.subr.bf16.mxu0 0
      %616 = vmatpush1.bf16.msra.mxu0 %v598
      %617 = vmatprep.subr.bf16.mxu0 0
      %618 = vmatpush1.bf16.msra.mxu0 %v599
      %619 = vmatprep.subr.bf16.mxu0 0
      %620 = vmatpush1.bf16.msra.mxu0 %v600
      %621 = vmatprep.subr.bf16.mxu0 0
      %622 = vmatpush1.bf16.msra.mxu0 %v601
      %623 = vmatprep.subr.bf16.mxu0 0
      %624 = vmatpush1.bf16.msra.mxu0 %v602
      %625 = vmatprep.subr.bf16.mxu0 0
      %626 = vmatpush1.bf16.msra.mxu0 %v603
      %627 = vmatprep.subr.bf16.mxu0 0
      %628 = vmatpush1.bf16.msra.mxu0 %v604
      %629 = vmatprep.subr.bf16.mxu0 0
      %630 = vmatpush1.bf16.msra.mxu0 0
      %631 = vmatprep.subr.bf16.mxu0 0
      %632 = vmatpush1.bf16.msra.mxu0 0
      %633 = vmatprep.subr.bf16.mxu0 0
      %634 = vmatpush1.bf16.msra.mxu0 0
      %635 = vmatprep.subr.bf16.mxu0 0
      %636 = vmatpush1.bf16.msra.mxu0 0
      %637 = vmatprep.subr.bf16.mxu0 0
      %638 = vmatpush1.bf16.msra.mxu0 0
      %639 = vmatprep.subr.bf16.mxu0 0
      %640 = vmatpush1.bf16.msra.mxu0 0
      %641 = vmatprep.subr.bf16.mxu0 0
      %642 = vmatpush1.bf16.msra.mxu0 0
      %643 = vmatprep.subr.bf16.mxu0 0
      %644 = vmatpush1.bf16.msra.mxu0 0
      %645 = vmatprep.mubr.bf16.mxu0 0
      %646 = vmatmul.mubr.bf16.gmra.mrb[0].mxu0 %v233
      %v647 = vpop.f32.mrb[0].mxu0
      %v648 = vadd.f32 %v423, %v647
      %v649 = vpop.f32.mrb[0].mxu0
      %v650 = vpop.f32.mrb[0].mxu0
      %v651 = vadd.f32 %v426, %v650
      %v652 = vpop.f32.mrb[0].mxu0
      %653 = vmatprep.mubr.bf16.mxu0 0
      %654 = vmatmul.mubr.bf16.gmra.mrb[0].mxu0 %v234
      %v655 = vpop.f32.mrb[0].mxu0
      %v656 = vadd.f32 %v431, %v655
      %v657 = vpop.f32.mrb[0].mxu0
      %v658 = vpop.f32.mrb[0].mxu0
      %v659 = vadd.f32 %v434, %v658
      %v660 = vpop.f32.mrb[0].mxu0
      %661 = vmatprep.mubr.bf16.mxu0 0
      %662 = vmatmul.mubr.bf16.gmra.mrb[0].mxu0 %v235
      %v663 = vpop.f32.mrb[0].mxu0
      %v664 = vadd.f32 %v439, %v663
      %v665 = vpop.f32.mrb[0].mxu0
      %v666 = vpop.f32.mrb[0].mxu0
      %v667 = vadd.f32 %v442, %v666
      %v668 = vpop.f32.mrb[0].mxu0
      %669 = vmatprep.mubr.bf16.mxu0 0
      %670 = vmatmul.mubr.bf16.gmra.mrb[0].mxu0 %v236
      %v671 = vpop.f32.mrb[0].mxu0
      %v672 = vadd.f32 %v447, %v671
      %v673 = vpop.f32.mrb[0].mxu0
      %v674 = vpop.f32.mrb[0].mxu0
      %v675 = vadd.f32 %v450, %v674
      %v676 = vpop.f32.mrb[0].mxu0
      %677 = vmatprep.mubr.bf16.mxu0 0
      %678 = vmatmul.mubr.bf16.gmra.mrb[0].mxu0 %v237
      %v679 = vpop.f32.mrb[0].mxu0
      %v680 = vadd.f32 %v455, %v679
      %v681 = vpop.f32.mrb[0].mxu0
      %v682 = vpop.f32.mrb[0].mxu0
      %v683 = vadd.f32 %v458, %v682
      %v684 = vpop.f32.mrb[0].mxu0
      %685 = vmatprep.mubr.bf16.mxu0 0
      %686 = vmatmul.mubr.bf16.gmra.mrb[0].mxu0 %v238
      %v687 = vpop.f32.mrb[0].mxu0
      %v688 = vadd.f32 %v463, %v687
      %v689 = vpop.f32.mrb[0].mxu0
      %v690 = vpop.f32.mrb[0].mxu0
      %v691 = vadd.f32 %v466, %v690
      %v692 = vpop.f32.mrb[0].mxu0
      %693 = vmatprep.mubr.bf16.mxu0 0
      %694 = vmatmul.mubr.bf16.gmra.mrb[0].mxu0 %v239
      %v695 = vpop.f32.mrb[0].mxu0
      %v696 = vadd.f32 %v471, %v695
      %v697 = vpop.f32.mrb[0].mxu0
      %v698 = vpop.f32.mrb[0].mxu0
      %v699 = vadd.f32 %v474, %v698
      %v700 = vpop.f32.mrb[0].mxu0
      %701 = vmatprep.mubr.bf16.mxu0 0
      %702 = vmatmul.mubr.bf16.gmra.mrb[0].mxu0 %v240
      %v703 = vpop.f32.mrb[0].mxu0
      %v704 = vadd.f32 %v479, %v703
      %v705 = vpop.f32.mrb[0].mxu0
      %v706 = vpop.f32.mrb[0].mxu0
      %v707 = vadd.f32 %v482, %v706
      %v708 = vpop.f32.mrb[0].mxu0
      %709 = vmatprep.mubr.bf16.mxu0 0
      %710 = vmatmul.mubr.bf16.gmra.mrb[0].mxu0 %v241
      %v711 = vpop.f32.mrb[0].mxu0
      %v712 = vadd.f32 %v487, %v711
      %v713 = vpop.f32.mrb[0].mxu0
      %v714 = vpop.f32.mrb[0].mxu0
      %v715 = vadd.f32 %v490, %v714
      %v716 = vpop.f32.mrb[0].mxu0
      %717 = vmatprep.mubr.bf16.mxu0 0
      %718 = vmatmul.mubr.bf16.gmra.mrb[0].mxu0 %v242
      %v719 = vpop.f32.mrb[0].mxu0
      %v720 = vadd.f32 %v495, %v719
      %v721 = vpop.f32.mrb[0].mxu0
      %v722 = vpop.f32.mrb[0].mxu0
      %v723 = vadd.f32 %v498, %v722
      %v724 = vpop.f32.mrb[0].mxu0
      %725 = vmatprep.mubr.bf16.mxu0 0
      %726 = vmatmul.mubr.bf16.gmra.mrb[0].mxu0 %v243
      %v727 = vpop.f32.mrb[0].mxu0
      %v728 = vadd.f32 %v503, %v727
      %v729 = vpop.f32.mrb[0].mxu0
      %v730 = vpop.f32.mrb[0].mxu0
      %v731 = vadd.f32 %v506, %v730
      %v732 = vpop.f32.mrb[0].mxu0
      %733 = vmatprep.mubr.bf16.mxu0 0
      %734 = vmatmul.mubr.bf16.gmra.mrb[0].mxu0 %v244
      %v735 = vpop.f32.mrb[0].mxu0
      %v736 = vadd.f32 %v511, %v735
      %v737 = vpop.f32.mrb[0].mxu0
      %v738 = vpop.f32.mrb[0].mxu0
      %v739 = vadd.f32 %v514, %v738
      %v740 = vpop.f32.mrb[0].mxu0
      %741 = vmatprep.mubr.bf16.mxu0 0
      %742 = vmatmul.mubr.bf16.gmra.mrb[0].mxu0 %v245
      %v743 = vpop.f32.mrb[0].mxu0
      %v744 = vadd.f32 %v519, %v743
      %v745 = vpop.f32.mrb[0].mxu0
      %v746 = vpop.f32.mrb[0].mxu0
      %v747 = vadd.f32 %v522, %v746
      %v748 = vpop.f32.mrb[0].mxu0
      %749 = vmatprep.mubr.bf16.mxu0 0
      %750 = vmatmul.mubr.bf16.gmra.mrb[0].mxu0 %v246
      %v751 = vpop.f32.mrb[0].mxu0
      %v752 = vadd.f32 %v527, %v751
      %v753 = vpop.f32.mrb[0].mxu0
      %v754 = vpop.f32.mrb[0].mxu0
      %v755 = vadd.f32 %v530, %v754
      %v756 = vpop.f32.mrb[0].mxu0
      %757 = vmatprep.mubr.bf16.mxu0 0
      %758 = vmatmul.mubr.bf16.gmra.mrb[0].mxu0 %v247
      %v759 = vpop.f32.mrb[0].mxu0
      %v760 = vadd.f32 %v535, %v759
      %v761 = vpop.f32.mrb[0].mxu0
      %v762 = vpop.f32.mrb[0].mxu0
      %v763 = vadd.f32 %v538, %v762
      %v764 = vpop.f32.mrb[0].mxu0
      %765 = vmatprep.mubr.bf16.mxu0 0
      %766 = vmatmul.mubr.bf16.gmra.mrb[0].mxu0 %v248
      %v767 = vpop.f32.mrb[0].mxu0
      %v768 = vadd.f32 %v543, %v767
      %v769 = vpop.f32.mrb[0].mxu0
      %v770 = vpop.f32.mrb[0].mxu0
      %v771 = vadd.f32 %v546, %v770
      %v772 = vpop.f32.mrb[0].mxu0
      %773 = vmatprep.mubr.bf16.mxu0 0
      %774 = vmatmul.mubr.bf16.gmra.mrb[0].mxu0 %v249
      %v775 = vpop.f32.mrb[0].mxu0
      %v776 = vadd.f32 %v551, %v775
      %v777 = vpop.f32.mrb[0].mxu0
      %v778 = vpop.f32.mrb[0].mxu0
      %v779 = vadd.f32 %v554, %v778
      %v780 = vpop.f32.mrb[0].mxu0
      %781 = vmatprep.mubr.bf16.mxu0 0
      %782 = vmatmul.mubr.bf16.gmra.mrb[0].mxu0 %v250
      %v783 = vpop.f32.mrb[0].mxu0
      %v784 = vadd.f32 %v559, %v783
      %v785 = vpop.f32.mrb[0].mxu0
      %v786 = vpop.f32.mrb[0].mxu0
      %v787 = vadd.f32 %v562, %v786
      %v788 = vpop.f32.mrb[0].mxu0
      %789 = vdwg.mxu0
      %s790 = sadd.s32 %s195, 2
      %s791 = scalar_lea.vmem %s183, %s790
      %v792 = vld [vmem:[%s791] sm:$0xff]
      %v793 = vld [vmem:[%s791 + $0x8] sm:$0xff]
      %v794 = vld [vmem:[%s791 + $0x10] sm:$0xff]
      %v795 = vld [vmem:[%s791 + $0x18] sm:$0xff]
      %v796 = vld [vmem:[%s791 + $0x20] sm:$0xff]
      %v797 = vld [vmem:[%s791 + $0x28] sm:$0xff]
      %v798 = vld [vmem:[%s791 + $0x30] sm:$0xff]
      %v799 = vld [vmem:[%s791 + $0x38] sm:$0xff]
      %v800 = vld [vmem:[%s791 + $0x40] sm:$0xff]
      %v801 = vld [vmem:[%s791 + $0x48] sm:$0xff]
      %v802 = vld [vmem:[%s791 + $0x50] sm:$0xff]
      %v803 = vld [vmem:[%s791 + $0x58] sm:$0xff]
      %v804 = vld [vmem:[%s791 + $0x60] sm:$0xff]
      %v805 = vld [vmem:[%s791 + $0x68] sm:$0xff]
      %v806 = vld [vmem:[%s791 + $0x70] sm:$0xff]
      %v807 = vld [vmem:[%s791 + $0x78] sm:$0xff]
      %v808 = vld [vmem:[%s791 + $0x80] sm:$0xff]
      %v809 = vld [vmem:[%s791 + $0x88] sm:$0xff]
      %v810 = vld [vmem:[%s791 + $0x90] sm:$0xff]
      %v811 = vld [vmem:[%s791 + $0x98] sm:$0xff]
      %v812 = vld [vmem:[%s791 + $0xa0] sm:$0xff]
      %v813 = vld [vmem:[%s791 + $0xa8] sm:$0xff]
      %v814 = vld [vmem:[%s791 + $0xb0] sm:$0xff]
      %v815 = vld [vmem:[%s791 + $0xb8] sm:$0xff]
      %v816 = vld [vmem:[%s791 + $0xc0] sm:$0xff]
      %v817 = vld [vmem:[%s791 + $0xc8] sm:$0xff]
      %v818 = vld [vmem:[%s791 + $0xd0] sm:$0xff]
      %v819 = vld [vmem:[%s791 + $0xd8] sm:$0xff]
      %v820 = vld [vmem:[%s791 + $0xe0] sm:$0xff]
      %v821 = vld [vmem:[%s791 + $0xe8] sm:$0xff]
      %v822 = vld [vmem:[%s791 + $0xf0] sm:$0xff]
      %v823 = vld [vmem:[%s791 + $0xf8] sm:$0xff]
      %v824 = vld [vmem:[%s791 + $0x100] sm:$0xff]
      %v825 = vld [vmem:[%s791 + $0x108] sm:$0xff]
      %v826 = vld [vmem:[%s791 + $0x110] sm:$0xff]
      %v827 = vld [vmem:[%s791 + $0x118] sm:$0xff]
      %v828 = vpack.c.bf16 %v793, %v792
      %v829 = vpack.c.bf16 %v795, %v794
      %v830 = vpack.c.bf16 %v797, %v796
      %v831 = vpack.c.bf16 %v799, %v798
      %v832 = vpack.c.bf16 %v801, %v800
      %v833 = vpack.c.bf16 %v803, %v802
      %v834 = vpack.c.bf16 %v805, %v804
      %v835 = vpack.c.bf16 %v807, %v806
      %v836 = vpack.c.bf16 %v809, %v808
      %v837 = vpack.c.bf16 %v811, %v810
      %v838 = vpack.c.bf16 %v813, %v812
      %v839 = vpack.c.bf16 %v815, %v814
      %v840 = vpack.c.bf16 %v817, %v816
      %v841 = vpack.c.bf16 %v819, %v818
      %v842 = vpack.c.bf16 %v821, %v820
      %v843 = vpack.c.bf16 %v823, %v822
      %v844 = vpack.c.bf16 %v825, %v824
      %v845 = vpack.c.bf16 %v827, %v826
      %s846 = scalar_lea.vmem %s1, 128
      %v847 = vld [vmem:[%s846] sm:$0xf]
      %v848 = vld [vmem:[%s846 + $0x4] sm:$0xf]
      %v849 = vld [vmem:[%s846 + $0x8] sm:$0xf]
      %v850 = vld [vmem:[%s846 + $0xc] sm:$0xf]
      %v851 = vld [vmem:[%s846 + $0x10] sm:$0xf]
      %v852 = vld [vmem:[%s846 + $0x14] sm:$0xf]
      %v853 = vld [vmem:[%s846 + $0x18] sm:$0xf]
      %v854 = vld [vmem:[%s846 + $0x1c] sm:$0xf]
      %v855 = vld [vmem:[%s846 + $0x20] sm:$0xf]
      %v856 = vld [vmem:[%s846 + $0x24] sm:$0xf]
      %v857 = vld [vmem:[%s846 + $0x28] sm:$0xf]
      %v858 = vld [vmem:[%s846 + $0x2c] sm:$0xf]
      %v859 = vld [vmem:[%s846 + $0x30] sm:$0xf]
      %v860 = vld [vmem:[%s846 + $0x34] sm:$0xf]
      %v861 = vld [vmem:[%s846 + $0x38] sm:$0xf]
      %v862 = vld [vmem:[%s846 + $0x3c] sm:$0xf]
      %v879 = vunpack.c.l.b16 %v847
      %v880 = vunpack.c.l.b16 %v848
      %v881 = vunpack.c.l.b16 %v849
      %v882 = vunpack.c.l.b16 %v850
      %v883 = vunpack.c.l.b16 %v851
      %v884 = vunpack.c.l.b16 %v852
      %v885 = vunpack.c.l.b16 %v853
      %v886 = vunpack.c.l.b16 %v854
      %v887 = vunpack.c.l.b16 %v855
      %v888 = vunpack.c.l.b16 %v856
      %v889 = vunpack.c.l.b16 %v857
      %v890 = vunpack.c.l.b16 %v858
      %v891 = vunpack.c.l.b16 %v859
      %v892 = vunpack.c.l.b16 %v860
      %v893 = vunpack.c.l.b16 %v861
      %v894 = vunpack.c.l.b16 %v862
      %v895 = vpack.c.b16 %v880, %v879
      %v896 = vpack.c.b16 %v882, %v881
      %v897 = vpack.c.b16 %v884, %v883
      %v898 = vpack.c.b16 %v886, %v885
      %v899 = vpack.c.b16 %v888, %v887
      %v900 = vpack.c.b16 %v890, %v889
      %v901 = vpack.c.b16 %v892, %v891
      %v902 = vpack.c.b16 %v894, %v893
      %911 = vmatprep.subr.bf16.mxu0 0
      %912 = vmatpush1.bf16.msra.mxu0 %v895
      %913 = vmatprep.subr.bf16.mxu0 0
      %914 = vmatpush1.bf16.msra.mxu0 %v896
      %915 = vmatprep.subr.bf16.mxu0 0
      %916 = vmatpush1.bf16.msra.mxu0 %v897
      %917 = vmatprep.subr.bf16.mxu0 0
      %918 = vmatpush1.bf16.msra.mxu0 %v898
      %919 = vmatprep.subr.bf16.mxu0 0
      %920 = vmatpush1.bf16.msra.mxu0 %v899
      %921 = vmatprep.subr.bf16.mxu0 0
      %922 = vmatpush1.bf16.msra.mxu0 %v900
      %923 = vmatprep.subr.bf16.mxu0 0
      %924 = vmatpush1.bf16.msra.mxu0 %v901
      %925 = vmatprep.subr.bf16.mxu0 0
      %926 = vmatpush1.bf16.msra.mxu0 %v902
      %927 = vmatprep.subr.bf16.mxu0 0
      %928 = vmatpush1.bf16.msra.mxu0 0
      %929 = vmatprep.subr.bf16.mxu0 0
      %930 = vmatpush1.bf16.msra.mxu0 0
      %931 = vmatprep.subr.bf16.mxu0 0
      %932 = vmatpush1.bf16.msra.mxu0 0
      %933 = vmatprep.subr.bf16.mxu0 0
      %934 = vmatpush1.bf16.msra.mxu0 0
      %935 = vmatprep.subr.bf16.mxu0 0
      %936 = vmatpush1.bf16.msra.mxu0 0
      %937 = vmatprep.subr.bf16.mxu0 0
      %938 = vmatpush1.bf16.msra.mxu0 0
      %939 = vmatprep.subr.bf16.mxu0 0
      %940 = vmatpush1.bf16.msra.mxu0 0
      %941 = vmatprep.subr.bf16.mxu0 0
      %942 = vmatpush1.bf16.msra.mxu0 0
      %943 = vmatprep.mubr.bf16.mxu0 0
      %944 = vmatmul.mubr.bf16.gmra.mrb[0].mxu0 %v828
      %v945 = vpop.f32.mrb[0].mxu0
      %v946 = vadd.f32 0.0, %v945
      %v947 = vpop.f32.mrb[0].mxu0
      %v948 = vpop.f32.mrb[0].mxu0
      %v949 = vadd.f32 0.0, %v948
      %v950 = vpop.f32.mrb[0].mxu0
      %951 = vmatprep.mubr.bf16.mxu0 0
      %952 = vmatmul.mubr.bf16.gmra.mrb[0].mxu0 %v829
      %v953 = vpop.f32.mrb[0].mxu0
      %v954 = vadd.f32 0.0, %v953
      %v955 = vpop.f32.mrb[0].mxu0
      %v956 = vpop.f32.mrb[0].mxu0
      %v957 = vadd.f32 0.0, %v956
      %v958 = vpop.f32.mrb[0].mxu0
      %959 = vmatprep.mubr.bf16.mxu0 0
      %960 = vmatmul.mubr.bf16.gmra.mrb[0].mxu0 %v830
      %v961 = vpop.f32.mrb[0].mxu0
      %v962 = vadd.f32 0.0, %v961
      %v963 = vpop.f32.mrb[0].mxu0
      %v964 = vpop.f32.mrb[0].mxu0
      %v965 = vadd.f32 0.0, %v964
      %v966 = vpop.f32.mrb[0].mxu0
      %967 = vmatprep.mubr.bf16.mxu0 0
      %968 = vmatmul.mubr.bf16.gmra.mrb[0].mxu0 %v831
      %v969 = vpop.f32.mrb[0].mxu0
      %v970 = vadd.f32 0.0, %v969
      %v971 = vpop.f32.mrb[0].mxu0
      %v972 = vpop.f32.mrb[0].mxu0
      %v973 = vadd.f32 0.0, %v972
      %v974 = vpop.f32.mrb[0].mxu0
      %975 = vmatprep.mubr.bf16.mxu0 0
      %976 = vmatmul.mubr.bf16.gmra.mrb[0].mxu0 %v832
      %v977 = vpop.f32.mrb[0].mxu0
      %v978 = vadd.f32 0.0, %v977
      %v979 = vpop.f32.mrb[0].mxu0
      %v980 = vpop.f32.mrb[0].mxu0
      %v981 = vadd.f32 0.0, %v980
      %v982 = vpop.f32.mrb[0].mxu0
      %983 = vmatprep.mubr.bf16.mxu0 0
      %984 = vmatmul.mubr.bf16.gmra.mrb[0].mxu0 %v833
      %v985 = vpop.f32.mrb[0].mxu0
      %v986 = vadd.f32 0.0, %v985
      %v987 = vpop.f32.mrb[0].mxu0
      %v988 = vpop.f32.mrb[0].mxu0
      %v989 = vadd.f32 0.0, %v988
      %v990 = vpop.f32.mrb[0].mxu0
      %991 = vmatprep.mubr.bf16.mxu0 0
      %992 = vmatmul.mubr.bf16.gmra.mrb[0].mxu0 %v834
      %v993 = vpop.f32.mrb[0].mxu0
      %v994 = vadd.f32 0.0, %v993
      %v995 = vpop.f32.mrb[0].mxu0
      %v996 = vpop.f32.mrb[0].mxu0
      %v997 = vadd.f32 0.0, %v996
      %v998 = vpop.f32.mrb[0].mxu0
      %999 = vmatprep.mubr.bf16.mxu0 0
      %1000 = vmatmul.mubr.bf16.gmra.mrb[0].mxu0 %v835
      %v1001 = vpop.f32.mrb[0].mxu0
      %v1002 = vadd.f32 0.0, %v1001
      %v1003 = vpop.f32.mrb[0].mxu0
      %v1004 = vpop.f32.mrb[0].mxu0
      %v1005 = vadd.f32 0.0, %v1004
      %v1006 = vpop.f32.mrb[0].mxu0
      %1007 = vmatprep.mubr.bf16.mxu0 0
      %1008 = vmatmul.mubr.bf16.gmra.mrb[0].mxu0 %v836
      %v1009 = vpop.f32.mrb[0].mxu0
      %v1010 = vadd.f32 0.0, %v1009
      %v1011 = vpop.f32.mrb[0].mxu0
      %v1012 = vpop.f32.mrb[0].mxu0
      %v1013 = vadd.f32 0.0, %v1012
      %v1014 = vpop.f32.mrb[0].mxu0
      %1015 = vmatprep.mubr.bf16.mxu0 0
      %1016 = vmatmul.mubr.bf16.gmra.mrb[0].mxu0 %v837
      %v1017 = vpop.f32.mrb[0].mxu0
      %v1018 = vadd.f32 0.0, %v1017
      %v1019 = vpop.f32.mrb[0].mxu0
      %v1020 = vpop.f32.mrb[0].mxu0
      %v1021 = vadd.f32 0.0, %v1020
      %v1022 = vpop.f32.mrb[0].mxu0
      %1023 = vmatprep.mubr.bf16.mxu0 0
      %1024 = vmatmul.mubr.bf16.gmra.mrb[0].mxu0 %v838
      %v1025 = vpop.f32.mrb[0].mxu0
      %v1026 = vadd.f32 0.0, %v1025
      %v1027 = vpop.f32.mrb[0].mxu0
      %v1028 = vpop.f32.mrb[0].mxu0
      %v1029 = vadd.f32 0.0, %v1028
      %v1030 = vpop.f32.mrb[0].mxu0
      %1031 = vmatprep.mubr.bf16.mxu0 0
      %1032 = vmatmul.mubr.bf16.gmra.mrb[0].mxu0 %v839
      %v1033 = vpop.f32.mrb[0].mxu0
      %v1034 = vadd.f32 0.0, %v1033
      %v1035 = vpop.f32.mrb[0].mxu0
      %v1036 = vpop.f32.mrb[0].mxu0
      %v1037 = vadd.f32 0.0, %v1036
      %v1038 = vpop.f32.mrb[0].mxu0
      %1039 = vmatprep.mubr.bf16.mxu0 0
      %1040 = vmatmul.mubr.bf16.gmra.mrb[0].mxu0 %v840
      %v1041 = vpop.f32.mrb[0].mxu0
      %v1042 = vadd.f32 0.0, %v1041
      %v1043 = vpop.f32.mrb[0].mxu0
      %v1044 = vpop.f32.mrb[0].mxu0
      %v1045 = vadd.f32 0.0, %v1044
      %v1046 = vpop.f32.mrb[0].mxu0
      %1047 = vmatprep.mubr.bf16.mxu0 0
      %1048 = vmatmul.mubr.bf16.gmra.mrb[0].mxu0 %v841
      %v1049 = vpop.f32.mrb[0].mxu0
      %v1050 = vadd.f32 0.0, %v1049
      %v1051 = vpop.f32.mrb[0].mxu0
      %v1052 = vpop.f32.mrb[0].mxu0
      %v1053 = vadd.f32 0.0, %v1052
      %v1054 = vpop.f32.mrb[0].mxu0
      %1055 = vmatprep.mubr.bf16.mxu0 0
      %1056 = vmatmul.mubr.bf16.gmra.mrb[0].mxu0 %v842
      %v1057 = vpop.f32.mrb[0].mxu0
      %v1058 = vadd.f32 0.0, %v1057
      %v1059 = vpop.f32.mrb[0].mxu0
      %v1060 = vpop.f32.mrb[0].mxu0
      %v1061 = vadd.f32 0.0, %v1060
      %v1062 = vpop.f32.mrb[0].mxu0
      %1063 = vmatprep.mubr.bf16.mxu0 0
      %1064 = vmatmul.mubr.bf16.gmra.mrb[0].mxu0 %v843
      %v1065 = vpop.f32.mrb[0].mxu0
      %v1066 = vadd.f32 0.0, %v1065
      %v1067 = vpop.f32.mrb[0].mxu0
      %v1068 = vpop.f32.mrb[0].mxu0
      %v1069 = vadd.f32 0.0, %v1068
      %v1070 = vpop.f32.mrb[0].mxu0
      %1071 = vmatprep.mubr.bf16.mxu0 0
      %1072 = vmatmul.mubr.bf16.gmra.mrb[0].mxu0 %v844
      %v1073 = vpop.f32.mrb[0].mxu0
      %v1074 = vadd.f32 0.0, %v1073
      %v1075 = vpop.f32.mrb[0].mxu0
      %v1076 = vpop.f32.mrb[0].mxu0
      %v1077 = vadd.f32 0.0, %v1076
      %v1078 = vpop.f32.mrb[0].mxu0
      %1079 = vmatprep.mubr.bf16.mxu0 0
      %1080 = vmatmul.mubr.bf16.gmra.mrb[0].mxu0 %v845
      %v1081 = vpop.f32.mrb[0].mxu0
      %v1082 = vadd.f32 0.0, %v1081
      %v1083 = vpop.f32.mrb[0].mxu0
      %v1084 = vpop.f32.mrb[0].mxu0
      %v1085 = vadd.f32 0.0, %v1084
      %v1086 = vpop.f32.mrb[0].mxu0
      %1087 = vdwg.mxu0
      %v1088 = vadd.f32 %v648, %v946
      %v1089 = vadd.f32 %v651, %v949
      %v1090 = vadd.f32 %v656, %v954
      %v1091 = vadd.f32 %v659, %v957
      %v1092 = vadd.f32 %v664, %v962
      %v1093 = vadd.f32 %v667, %v965
      %v1094 = vadd.f32 %v672, %v970
      %v1095 = vadd.f32 %v675, %v973
      %v1096 = vadd.f32 %v680, %v978
      %v1097 = vadd.f32 %v683, %v981
      %v1098 = vadd.f32 %v688, %v986
      %v1099 = vadd.f32 %v691, %v989
      %v1100 = vadd.f32 %v696, %v994
      %v1101 = vadd.f32 %v699, %v997
      %v1102 = vadd.f32 %v704, %v1002
      %v1103 = vadd.f32 %v707, %v1005
      %v1104 = vadd.f32 %v712, %v1010
      %v1105 = vadd.f32 %v715, %v1013
      %v1106 = vadd.f32 %v720, %v1018
      %v1107 = vadd.f32 %v723, %v1021
      %v1108 = vadd.f32 %v728, %v1026
      %v1109 = vadd.f32 %v731, %v1029
      %v1110 = vadd.f32 %v736, %v1034
      %v1111 = vadd.f32 %v739, %v1037
      %v1112 = vadd.f32 %v744, %v1042
      %v1113 = vadd.f32 %v747, %v1045
      %v1114 = vadd.f32 %v752, %v1050
      %v1115 = vadd.f32 %v755, %v1053
      %v1116 = vadd.f32 %v760, %v1058
      %v1117 = vadd.f32 %v763, %v1061
      %v1118 = vadd.f32 %v768, %v1066
      %v1119 = vadd.f32 %v771, %v1069
      %v1120 = vadd.f32 %v776, %v1074
      %v1121 = vadd.f32 %v779, %v1077
      %v1122 = vadd.f32 %v784, %v1082
      %v1123 = vadd.f32 %v787, %v1085
      %s1124 = sadd.s32 %s195, 18
      %s1125 = scalar_lea.vmem %s183, %s1124
      %v1126 = vld [vmem:[%s1125] sm:$0xff]
      %v1127 = vld [vmem:[%s1125 + $0x8] sm:$0xff]
      %v1128 = vld [vmem:[%s1125 + $0x10] sm:$0xff]
      %v1129 = vld [vmem:[%s1125 + $0x18] sm:$0xff]
      %v1130 = vld [vmem:[%s1125 + $0x20] sm:$0xff]
      %v1131 = vld [vmem:[%s1125 + $0x28] sm:$0xff]
      %v1132 = vld [vmem:[%s1125 + $0x30] sm:$0xff]
      %v1133 = vld [vmem:[%s1125 + $0x38] sm:$0xff]
      %v1134 = vld [vmem:[%s1125 + $0x40] sm:$0xff]
      %v1135 = vld [vmem:[%s1125 + $0x48] sm:$0xff]
      %v1136 = vld [vmem:[%s1125 + $0x50] sm:$0xff]
      %v1137 = vld [vmem:[%s1125 + $0x58] sm:$0xff]
      %v1138 = vld [vmem:[%s1125 + $0x60] sm:$0xff]
      %v1139 = vld [vmem:[%s1125 + $0x68] sm:$0xff]
      %v1140 = vld [vmem:[%s1125 + $0x70] sm:$0xff]
      %v1141 = vld [vmem:[%s1125 + $0x78] sm:$0xff]
      %v1142 = vld [vmem:[%s1125 + $0x80] sm:$0xff]
      %v1143 = vld [vmem:[%s1125 + $0x88] sm:$0xff]
      %v1144 = vld [vmem:[%s1125 + $0x90] sm:$0xff]
      %v1145 = vld [vmem:[%s1125 + $0x98] sm:$0xff]
      %v1146 = vld [vmem:[%s1125 + $0xa0] sm:$0xff]
      %v1147 = vld [vmem:[%s1125 + $0xa8] sm:$0xff]
      %v1148 = vld [vmem:[%s1125 + $0xb0] sm:$0xff]
      %v1149 = vld [vmem:[%s1125 + $0xb8] sm:$0xff]
      %v1150 = vld [vmem:[%s1125 + $0xc0] sm:$0xff]
      %v1151 = vld [vmem:[%s1125 + $0xc8] sm:$0xff]
      %v1152 = vld [vmem:[%s1125 + $0xd0] sm:$0xff]
      %v1153 = vld [vmem:[%s1125 + $0xd8] sm:$0xff]
      %v1154 = vld [vmem:[%s1125 + $0xe0] sm:$0xff]
      %v1155 = vld [vmem:[%s1125 + $0xe8] sm:$0xff]
      %v1156 = vld [vmem:[%s1125 + $0xf0] sm:$0xff]
      %v1157 = vld [vmem:[%s1125 + $0xf8] sm:$0xff]
      %v1158 = vld [vmem:[%s1125 + $0x100] sm:$0xff]
      %v1159 = vld [vmem:[%s1125 + $0x108] sm:$0xff]
      %v1160 = vld [vmem:[%s1125 + $0x110] sm:$0xff]
      %v1161 = vld [vmem:[%s1125 + $0x118] sm:$0xff]
      %v1162 = vpack.c.bf16 %v1127, %v1126
      %v1163 = vpack.c.bf16 %v1129, %v1128
      %v1164 = vpack.c.bf16 %v1131, %v1130
      %v1165 = vpack.c.bf16 %v1133, %v1132
      %v1166 = vpack.c.bf16 %v1135, %v1134
      %v1167 = vpack.c.bf16 %v1137, %v1136
      %v1168 = vpack.c.bf16 %v1139, %v1138
      %v1169 = vpack.c.bf16 %v1141, %v1140
      %v1170 = vpack.c.bf16 %v1143, %v1142
      %v1171 = vpack.c.bf16 %v1145, %v1144
      %v1172 = vpack.c.bf16 %v1147, %v1146
      %v1173 = vpack.c.bf16 %v1149, %v1148
      %v1174 = vpack.c.bf16 %v1151, %v1150
      %v1175 = vpack.c.bf16 %v1153, %v1152
      %v1176 = vpack.c.bf16 %v1155, %v1154
      %v1177 = vpack.c.bf16 %v1157, %v1156
      %v1178 = vpack.c.bf16 %v1159, %v1158
      %v1179 = vpack.c.bf16 %v1161, %v1160
      %s1180 = scalar_lea.vmem %s1, 192
      %v1181 = vld [vmem:[%s1180] sm:$0xf]
      %v1182 = vld [vmem:[%s1180 + $0x4] sm:$0xf]
      %v1183 = vld [vmem:[%s1180 + $0x8] sm:$0xf]
      %v1184 = vld [vmem:[%s1180 + $0xc] sm:$0xf]
      %v1185 = vld [vmem:[%s1180 + $0x10] sm:$0xf]
      %v1186 = vld [vmem:[%s1180 + $0x14] sm:$0xf]
      %v1187 = vld [vmem:[%s1180 + $0x18] sm:$0xf]
      %v1188 = vld [vmem:[%s1180 + $0x1c] sm:$0xf]
      %v1189 = vld [vmem:[%s1180 + $0x20] sm:$0xf]
      %v1190 = vld [vmem:[%s1180 + $0x24] sm:$0xf]
      %v1191 = vld [vmem:[%s1180 + $0x28] sm:$0xf]
      %v1192 = vld [vmem:[%s1180 + $0x2c] sm:$0xf]
      %v1193 = vld [vmem:[%s1180 + $0x30] sm:$0xf]
      %v1194 = vld [vmem:[%s1180 + $0x34] sm:$0xf]
      %v1195 = vld [vmem:[%s1180 + $0x38] sm:$0xf]
      %v1196 = vld [vmem:[%s1180 + $0x3c] sm:$0xf]
      %v1213 = vunpack.c.l.b16 %v1181
      %v1214 = vunpack.c.l.b16 %v1182
      %v1215 = vunpack.c.l.b16 %v1183
      %v1216 = vunpack.c.l.b16 %v1184
      %v1217 = vunpack.c.l.b16 %v1185
      %v1218 = vunpack.c.l.b16 %v1186
      %v1219 = vunpack.c.l.b16 %v1187
      %v1220 = vunpack.c.l.b16 %v1188
      %v1221 = vunpack.c.l.b16 %v1189
      %v1222 = vunpack.c.l.b16 %v1190
      %v1223 = vunpack.c.l.b16 %v1191
      %v1224 = vunpack.c.l.b16 %v1192
      %v1225 = vunpack.c.l.b16 %v1193
      %v1226 = vunpack.c.l.b16 %v1194
      %v1227 = vunpack.c.l.b16 %v1195
      %v1228 = vunpack.c.l.b16 %v1196
      %v1229 = vpack.c.b16 %v1214, %v1213
      %v1230 = vpack.c.b16 %v1216, %v1215
      %v1231 = vpack.c.b16 %v1218, %v1217
      %v1232 = vpack.c.b16 %v1220, %v1219
      %v1233 = vpack.c.b16 %v1222, %v1221
      %v1234 = vpack.c.b16 %v1224, %v1223
      %v1235 = vpack.c.b16 %v1226, %v1225
      %v1236 = vpack.c.b16 %v1228, %v1227
      %1245 = vmatprep.subr.bf16.mxu0 0
      %1246 = vmatpush1.bf16.msra.mxu0 %v1229
      %1247 = vmatprep.subr.bf16.mxu0 0
      %1248 = vmatpush1.bf16.msra.mxu0 %v1230
      %1249 = vmatprep.subr.bf16.mxu0 0
      %1250 = vmatpush1.bf16.msra.mxu0 %v1231
      %1251 = vmatprep.subr.bf16.mxu0 0
      %1252 = vmatpush1.bf16.msra.mxu0 %v1232
      %1253 = vmatprep.subr.bf16.mxu0 0
      %1254 = vmatpush1.bf16.msra.mxu0 %v1233
      %1255 = vmatprep.subr.bf16.mxu0 0
      %1256 = vmatpush1.bf16.msra.mxu0 %v1234
      %1257 = vmatprep.subr.bf16.mxu0 0
      %1258 = vmatpush1.bf16.msra.mxu0 %v1235
      %1259 = vmatprep.subr.bf16.mxu0 0
      %1260 = vmatpush1.bf16.msra.mxu0 %v1236
      %1261 = vmatprep.subr.bf16.mxu0 0
      %1262 = vmatpush1.bf16.msra.mxu0 0
      %1263 = vmatprep.subr.bf16.mxu0 0
      %1264 = vmatpush1.bf16.msra.mxu0 0
      %1265 = vmatprep.subr.bf16.mxu0 0
      %1266 = vmatpush1.bf16.msra.mxu0 0
      %1267 = vmatprep.subr.bf16.mxu0 0
      %1268 = vmatpush1.bf16.msra.mxu0 0
      %1269 = vmatprep.subr.bf16.mxu0 0
      %1270 = vmatpush1.bf16.msra.mxu0 0
      %1271 = vmatprep.subr.bf16.mxu0 0
      %1272 = vmatpush1.bf16.msra.mxu0 0
      %1273 = vmatprep.subr.bf16.mxu0 0
      %1274 = vmatpush1.bf16.msra.mxu0 0
      %1275 = vmatprep.subr.bf16.mxu0 0
      %1276 = vmatpush1.bf16.msra.mxu0 0
      %1277 = vmatprep.mubr.bf16.mxu0 0
      %1278 = vmatmul.mubr.bf16.gmra.mrb[0].mxu0 %v1162
      %v1279 = vpop.f32.mrb[0].mxu0
      %v1280 = vadd.f32 0.0, %v1279
      %v1281 = vpop.f32.mrb[0].mxu0
      %v1282 = vpop.f32.mrb[0].mxu0
      %v1283 = vadd.f32 0.0, %v1282
      %v1284 = vpop.f32.mrb[0].mxu0
      %1285 = vmatprep.mubr.bf16.mxu0 0
      %1286 = vmatmul.mubr.bf16.gmra.mrb[0].mxu0 %v1163
      %v1287 = vpop.f32.mrb[0].mxu0
      %v1288 = vadd.f32 0.0, %v1287
      %v1289 = vpop.f32.mrb[0].mxu0
      %v1290 = vpop.f32.mrb[0].mxu0
      %v1291 = vadd.f32 0.0, %v1290
      %v1292 = vpop.f32.mrb[0].mxu0
      %1293 = vmatprep.mubr.bf16.mxu0 0
      %1294 = vmatmul.mubr.bf16.gmra.mrb[0].mxu0 %v1164
      %v1295 = vpop.f32.mrb[0].mxu0
      %v1296 = vadd.f32 0.0, %v1295
      %v1297 = vpop.f32.mrb[0].mxu0
      %v1298 = vpop.f32.mrb[0].mxu0
      %v1299 = vadd.f32 0.0, %v1298
      %v1300 = vpop.f32.mrb[0].mxu0
      %1301 = vmatprep.mubr.bf16.mxu0 0
      %1302 = vmatmul.mubr.bf16.gmra.mrb[0].mxu0 %v1165
      %v1303 = vpop.f32.mrb[0].mxu0
      %v1304 = vadd.f32 0.0, %v1303
      %v1305 = vpop.f32.mrb[0].mxu0
      %v1306 = vpop.f32.mrb[0].mxu0
      %v1307 = vadd.f32 0.0, %v1306
      %v1308 = vpop.f32.mrb[0].mxu0
      %1309 = vmatprep.mubr.bf16.mxu0 0
      %1310 = vmatmul.mubr.bf16.gmra.mrb[0].mxu0 %v1166
      %v1311 = vpop.f32.mrb[0].mxu0
      %v1312 = vadd.f32 0.0, %v1311
      %v1313 = vpop.f32.mrb[0].mxu0
      %v1314 = vpop.f32.mrb[0].mxu0
      %v1315 = vadd.f32 0.0, %v1314
      %v1316 = vpop.f32.mrb[0].mxu0
      %1317 = vmatprep.mubr.bf16.mxu0 0
      %1318 = vmatmul.mubr.bf16.gmra.mrb[0].mxu0 %v1167
      %v1319 = vpop.f32.mrb[0].mxu0
      %v1320 = vadd.f32 0.0, %v1319
      %v1321 = vpop.f32.mrb[0].mxu0
      %v1322 = vpop.f32.mrb[0].mxu0
      %v1323 = vadd.f32 0.0, %v1322
      %v1324 = vpop.f32.mrb[0].mxu0
      %1325 = vmatprep.mubr.bf16.mxu0 0
      %1326 = vmatmul.mubr.bf16.gmra.mrb[0].mxu0 %v1168
      %v1327 = vpop.f32.mrb[0].mxu0
      %v1328 = vadd.f32 0.0, %v1327
      %v1329 = vpop.f32.mrb[0].mxu0
      %v1330 = vpop.f32.mrb[0].mxu0
      %v1331 = vadd.f32 0.0, %v1330
      %v1332 = vpop.f32.mrb[0].mxu0
      %1333 = vmatprep.mubr.bf16.mxu0 0
      %1334 = vmatmul.mubr.bf16.gmra.mrb[0].mxu0 %v1169
      %v1335 = vpop.f32.mrb[0].mxu0
      %v1336 = vadd.f32 0.0, %v1335
      %v1337 = vpop.f32.mrb[0].mxu0
      %v1338 = vpop.f32.mrb[0].mxu0
      %v1339 = vadd.f32 0.0, %v1338
      %v1340 = vpop.f32.mrb[0].mxu0
      %1341 = vmatprep.mubr.bf16.mxu0 0
      %1342 = vmatmul.mubr.bf16.gmra.mrb[0].mxu0 %v1170
      %v1343 = vpop.f32.mrb[0].mxu0
      %v1344 = vadd.f32 0.0, %v1343
      %v1345 = vpop.f32.mrb[0].mxu0
      %v1346 = vpop.f32.mrb[0].mxu0
      %v1347 = vadd.f32 0.0, %v1346
      %v1348 = vpop.f32.mrb[0].mxu0
      %1349 = vmatprep.mubr.bf16.mxu0 0
      %1350 = vmatmul.mubr.bf16.gmra.mrb[0].mxu0 %v1171
      %v1351 = vpop.f32.mrb[0].mxu0
      %v1352 = vadd.f32 0.0, %v1351
      %v1353 = vpop.f32.mrb[0].mxu0
      %v1354 = vpop.f32.mrb[0].mxu0
      %v1355 = vadd.f32 0.0, %v1354
      %v1356 = vpop.f32.mrb[0].mxu0
      %1357 = vmatprep.mubr.bf16.mxu0 0
      %1358 = vmatmul.mubr.bf16.gmra.mrb[0].mxu0 %v1172
      %v1359 = vpop.f32.mrb[0].mxu0
      %v1360 = vadd.f32 0.0, %v1359
      %v1361 = vpop.f32.mrb[0].mxu0
      %v1362 = vpop.f32.mrb[0].mxu0
      %v1363 = vadd.f32 0.0, %v1362
      %v1364 = vpop.f32.mrb[0].mxu0
      %1365 = vmatprep.mubr.bf16.mxu0 0
      %1366 = vmatmul.mubr.bf16.gmra.mrb[0].mxu0 %v1173
      %v1367 = vpop.f32.mrb[0].mxu0
      %v1368 = vadd.f32 0.0, %v1367
      %v1369 = vpop.f32.mrb[0].mxu0
      %v1370 = vpop.f32.mrb[0].mxu0
      %v1371 = vadd.f32 0.0, %v1370
      %v1372 = vpop.f32.mrb[0].mxu0
      %1373 = vmatprep.mubr.bf16.mxu0 0
      %1374 = vmatmul.mubr.bf16.gmra.mrb[0].mxu0 %v1174
      %v1375 = vpop.f32.mrb[0].mxu0
      %v1376 = vadd.f32 0.0, %v1375
      %v1377 = vpop.f32.mrb[0].mxu0
      %v1378 = vpop.f32.mrb[0].mxu0
      %v1379 = vadd.f32 0.0, %v1378
      %v1380 = vpop.f32.mrb[0].mxu0
      %1381 = vmatprep.mubr.bf16.mxu0 0
      %1382 = vmatmul.mubr.bf16.gmra.mrb[0].mxu0 %v1175
      %v1383 = vpop.f32.mrb[0].mxu0
      %v1384 = vadd.f32 0.0, %v1383
      %v1385 = vpop.f32.mrb[0].mxu0
      %v1386 = vpop.f32.mrb[0].mxu0
      %v1387 = vadd.f32 0.0, %v1386
      %v1388 = vpop.f32.mrb[0].mxu0
      %1389 = vmatprep.mubr.bf16.mxu0 0
      %1390 = vmatmul.mubr.bf16.gmra.mrb[0].mxu0 %v1176
      %v1391 = vpop.f32.mrb[0].mxu0
      %v1392 = vadd.f32 0.0, %v1391
      %v1393 = vpop.f32.mrb[0].mxu0
      %v1394 = vpop.f32.mrb[0].mxu0
      %v1395 = vadd.f32 0.0, %v1394
      %v1396 = vpop.f32.mrb[0].mxu0
      %1397 = vmatprep.mubr.bf16.mxu0 0
      %1398 = vmatmul.mubr.bf16.gmra.mrb[0].mxu0 %v1177
      %v1399 = vpop.f32.mrb[0].mxu0
      %v1400 = vadd.f32 0.0, %v1399
      %v1401 = vpop.f32.mrb[0].mxu0
      %v1402 = vpop.f32.mrb[0].mxu0
      %v1403 = vadd.f32 0.0, %v1402
      %v1404 = vpop.f32.mrb[0].mxu0
      %1405 = vmatprep.mubr.bf16.mxu0 0
      %1406 = vmatmul.mubr.bf16.gmra.mrb[0].mxu0 %v1178
      %v1407 = vpop.f32.mrb[0].mxu0
      %v1408 = vadd.f32 0.0, %v1407
      %v1409 = vpop.f32.mrb[0].mxu0
      %v1410 = vpop.f32.mrb[0].mxu0
      %v1411 = vadd.f32 0.0, %v1410
      %v1412 = vpop.f32.mrb[0].mxu0
      %1413 = vmatprep.mubr.bf16.mxu0 0
      %1414 = vmatmul.mubr.bf16.gmra.mrb[0].mxu0 %v1179
      %v1415 = vpop.f32.mrb[0].mxu0
      %v1416 = vadd.f32 0.0, %v1415
      %v1417 = vpop.f32.mrb[0].mxu0
      %v1418 = vpop.f32.mrb[0].mxu0
      %v1419 = vadd.f32 0.0, %v1418
      %v1420 = vpop.f32.mrb[0].mxu0
      %1421 = vdwg.mxu0
      %v1422 = vadd.f32 %v1088, %v1280
      %v1423 = vadd.f32 %v1089, %v1283
      %v1424 = vadd.f32 %v1090, %v1288
      %v1425 = vadd.f32 %v1091, %v1291
      %v1426 = vadd.f32 %v1092, %v1296
      %v1427 = vadd.f32 %v1093, %v1299
      %v1428 = vadd.f32 %v1094, %v1304
      %v1429 = vadd.f32 %v1095, %v1307
      %v1430 = vadd.f32 %v1096, %v1312
      %v1431 = vadd.f32 %v1097, %v1315
      %v1432 = vadd.f32 %v1098, %v1320
      %v1433 = vadd.f32 %v1099, %v1323
      %v1434 = vadd.f32 %v1100, %v1328
      %v1435 = vadd.f32 %v1101, %v1331
      %v1436 = vadd.f32 %v1102, %v1336
      %v1437 = vadd.f32 %v1103, %v1339
      %v1438 = vadd.f32 %v1104, %v1344
      %v1439 = vadd.f32 %v1105, %v1347
      %v1440 = vadd.f32 %v1106, %v1352
      %v1441 = vadd.f32 %v1107, %v1355
      %v1442 = vadd.f32 %v1108, %v1360
      %v1443 = vadd.f32 %v1109, %v1363
      %v1444 = vadd.f32 %v1110, %v1368
      %v1445 = vadd.f32 %v1111, %v1371
      %v1446 = vadd.f32 %v1112, %v1376
      %v1447 = vadd.f32 %v1113, %v1379
      %v1448 = vadd.f32 %v1114, %v1384
      %v1449 = vadd.f32 %v1115, %v1387
      %v1450 = vadd.f32 %v1116, %v1392
      %v1451 = vadd.f32 %v1117, %v1395
      %v1452 = vadd.f32 %v1118, %v1400
      %v1453 = vadd.f32 %v1119, %v1403
      %v1454 = vadd.f32 %v1120, %v1408
      %v1455 = vadd.f32 %v1121, %v1411
      %v1456 = vadd.f32 %v1122, %v1416
      %v1457 = vadd.f32 %v1123, %v1419
      %s1458 = sadd.s32 %s195, 19
      %s1459 = scalar_lea.vmem %s183, %s1458
      %v1460 = vld [vmem:[%s1459] sm:$0xff]
      %v1461 = vld [vmem:[%s1459 + $0x8] sm:$0xff]
      %v1462 = vld [vmem:[%s1459 + $0x10] sm:$0xff]
      %v1463 = vld [vmem:[%s1459 + $0x18] sm:$0xff]
      %v1464 = vld [vmem:[%s1459 + $0x20] sm:$0xff]
      %v1465 = vld [vmem:[%s1459 + $0x28] sm:$0xff]
      %v1466 = vld [vmem:[%s1459 + $0x30] sm:$0xff]
      %v1467 = vld [vmem:[%s1459 + $0x38] sm:$0xff]
      %v1468 = vld [vmem:[%s1459 + $0x40] sm:$0xff]
      %v1469 = vld [vmem:[%s1459 + $0x48] sm:$0xff]
      %v1470 = vld [vmem:[%s1459 + $0x50] sm:$0xff]
      %v1471 = vld [vmem:[%s1459 + $0x58] sm:$0xff]
      %v1472 = vld [vmem:[%s1459 + $0x60] sm:$0xff]
      %v1473 = vld [vmem:[%s1459 + $0x68] sm:$0xff]
      %v1474 = vld [vmem:[%s1459 + $0x70] sm:$0xff]
      %v1475 = vld [vmem:[%s1459 + $0x78] sm:$0xff]
      %v1476 = vld [vmem:[%s1459 + $0x80] sm:$0xff]
      %v1477 = vld [vmem:[%s1459 + $0x88] sm:$0xff]
      %v1478 = vld [vmem:[%s1459 + $0x90] sm:$0xff]
      %v1479 = vld [vmem:[%s1459 + $0x98] sm:$0xff]
      %v1480 = vld [vmem:[%s1459 + $0xa0] sm:$0xff]
      %v1481 = vld [vmem:[%s1459 + $0xa8] sm:$0xff]
      %v1482 = vld [vmem:[%s1459 + $0xb0] sm:$0xff]
      %v1483 = vld [vmem:[%s1459 + $0xb8] sm:$0xff]
      %v1484 = vld [vmem:[%s1459 + $0xc0] sm:$0xff]
      %v1485 = vld [vmem:[%s1459 + $0xc8] sm:$0xff]
      %v1486 = vld [vmem:[%s1459 + $0xd0] sm:$0xff]
      %v1487 = vld [vmem:[%s1459 + $0xd8] sm:$0xff]
      %v1488 = vld [vmem:[%s1459 + $0xe0] sm:$0xff]
      %v1489 = vld [vmem:[%s1459 + $0xe8] sm:$0xff]
      %v1490 = vld [vmem:[%s1459 + $0xf0] sm:$0xff]
      %v1491 = vld [vmem:[%s1459 + $0xf8] sm:$0xff]
      %v1492 = vld [vmem:[%s1459 + $0x100] sm:$0xff]
      %v1493 = vld [vmem:[%s1459 + $0x108] sm:$0xff]
      %v1494 = vld [vmem:[%s1459 + $0x110] sm:$0xff]
      %v1495 = vld [vmem:[%s1459 + $0x118] sm:$0xff]
      %v1496 = vpack.c.bf16 %v1461, %v1460
      %v1497 = vpack.c.bf16 %v1463, %v1462
      %v1498 = vpack.c.bf16 %v1465, %v1464
      %v1499 = vpack.c.bf16 %v1467, %v1466
      %v1500 = vpack.c.bf16 %v1469, %v1468
      %v1501 = vpack.c.bf16 %v1471, %v1470
      %v1502 = vpack.c.bf16 %v1473, %v1472
      %v1503 = vpack.c.bf16 %v1475, %v1474
      %v1504 = vpack.c.bf16 %v1477, %v1476
      %v1505 = vpack.c.bf16 %v1479, %v1478
      %v1506 = vpack.c.bf16 %v1481, %v1480
      %v1507 = vpack.c.bf16 %v1483, %v1482
      %v1508 = vpack.c.bf16 %v1485, %v1484
      %v1509 = vpack.c.bf16 %v1487, %v1486
      %v1510 = vpack.c.bf16 %v1489, %v1488
      %v1511 = vpack.c.bf16 %v1491, %v1490
      %v1512 = vpack.c.bf16 %v1493, %v1492
      %v1513 = vpack.c.bf16 %v1495, %v1494
      %s1514 = scalar_lea.vmem %s1, 256
      %v1515 = vld [vmem:[%s1514] sm:$0xf]
      %v1516 = vld [vmem:[%s1514 + $0x4] sm:$0xf]
      %v1517 = vld [vmem:[%s1514 + $0x8] sm:$0xf]
      %v1518 = vld [vmem:[%s1514 + $0xc] sm:$0xf]
      %v1519 = vld [vmem:[%s1514 + $0x10] sm:$0xf]
      %v1520 = vld [vmem:[%s1514 + $0x14] sm:$0xf]
      %v1521 = vld [vmem:[%s1514 + $0x18] sm:$0xf]
      %v1522 = vld [vmem:[%s1514 + $0x1c] sm:$0xf]
      %v1523 = vld [vmem:[%s1514 + $0x20] sm:$0xf]
      %v1524 = vld [vmem:[%s1514 + $0x24] sm:$0xf]
      %v1525 = vld [vmem:[%s1514 + $0x28] sm:$0xf]
      %v1526 = vld [vmem:[%s1514 + $0x2c] sm:$0xf]
      %v1527 = vld [vmem:[%s1514 + $0x30] sm:$0xf]
      %v1528 = vld [vmem:[%s1514 + $0x34] sm:$0xf]
      %v1529 = vld [vmem:[%s1514 + $0x38] sm:$0xf]
      %v1530 = vld [vmem:[%s1514 + $0x3c] sm:$0xf]
      %v1547 = vunpack.c.l.b16 %v1515
      %v1548 = vunpack.c.l.b16 %v1516
      %v1549 = vunpack.c.l.b16 %v1517
      %v1550 = vunpack.c.l.b16 %v1518
      %v1551 = vunpack.c.l.b16 %v1519
      %v1552 = vunpack.c.l.b16 %v1520
      %v1553 = vunpack.c.l.b16 %v1521
      %v1554 = vunpack.c.l.b16 %v1522
      %v1555 = vunpack.c.l.b16 %v1523
      %v1556 = vunpack.c.l.b16 %v1524
      %v1557 = vunpack.c.l.b16 %v1525
      %v1558 = vunpack.c.l.b16 %v1526
      %v1559 = vunpack.c.l.b16 %v1527
      %v1560 = vunpack.c.l.b16 %v1528
      %v1561 = vunpack.c.l.b16 %v1529
      %v1562 = vunpack.c.l.b16 %v1530
      %v1563 = vpack.c.b16 %v1548, %v1547
      %v1564 = vpack.c.b16 %v1550, %v1549
      %v1565 = vpack.c.b16 %v1552, %v1551
      %v1566 = vpack.c.b16 %v1554, %v1553
      %v1567 = vpack.c.b16 %v1556, %v1555
      %v1568 = vpack.c.b16 %v1558, %v1557
      %v1569 = vpack.c.b16 %v1560, %v1559
      %v1570 = vpack.c.b16 %v1562, %v1561
      %1579 = vmatprep.subr.bf16.mxu0 0
      %1580 = vmatpush1.bf16.msra.mxu0 %v1563
      %1581 = vmatprep.subr.bf16.mxu0 0
      %1582 = vmatpush1.bf16.msra.mxu0 %v1564
      %1583 = vmatprep.subr.bf16.mxu0 0
      %1584 = vmatpush1.bf16.msra.mxu0 %v1565
      %1585 = vmatprep.subr.bf16.mxu0 0
      %1586 = vmatpush1.bf16.msra.mxu0 %v1566
      %1587 = vmatprep.subr.bf16.mxu0 0
      %1588 = vmatpush1.bf16.msra.mxu0 %v1567
      %1589 = vmatprep.subr.bf16.mxu0 0
      %1590 = vmatpush1.bf16.msra.mxu0 %v1568
      %1591 = vmatprep.subr.bf16.mxu0 0
      %1592 = vmatpush1.bf16.msra.mxu0 %v1569
      %1593 = vmatprep.subr.bf16.mxu0 0
      %1594 = vmatpush1.bf16.msra.mxu0 %v1570
      %1595 = vmatprep.subr.bf16.mxu0 0
      %1596 = vmatpush1.bf16.msra.mxu0 0
      %1597 = vmatprep.subr.bf16.mxu0 0
      %1598 = vmatpush1.bf16.msra.mxu0 0
      %1599 = vmatprep.subr.bf16.mxu0 0
      %1600 = vmatpush1.bf16.msra.mxu0 0
      %1601 = vmatprep.subr.bf16.mxu0 0
      %1602 = vmatpush1.bf16.msra.mxu0 0
      %1603 = vmatprep.subr.bf16.mxu0 0
      %1604 = vmatpush1.bf16.msra.mxu0 0
      %1605 = vmatprep.subr.bf16.mxu0 0
      %1606 = vmatpush1.bf16.msra.mxu0 0
      %1607 = vmatprep.subr.bf16.mxu0 0
      %1608 = vmatpush1.bf16.msra.mxu0 0
      %1609 = vmatprep.subr.bf16.mxu0 0
      %1610 = vmatpush1.bf16.msra.mxu0 0
      %1611 = vmatprep.mubr.bf16.mxu0 0
      %1612 = vmatmul.mubr.bf16.gmra.mrb[0].mxu0 %v1496
      %v1613 = vpop.f32.mrb[0].mxu0
      %v1614 = vadd.f32 0.0, %v1613
      %v1615 = vpop.f32.mrb[0].mxu0
      %v1616 = vpop.f32.mrb[0].mxu0
      %v1617 = vadd.f32 0.0, %v1616
      %v1618 = vpop.f32.mrb[0].mxu0
      %1619 = vmatprep.mubr.bf16.mxu0 0
      %1620 = vmatmul.mubr.bf16.gmra.mrb[0].mxu0 %v1497
      %v1621 = vpop.f32.mrb[0].mxu0
      %v1622 = vadd.f32 0.0, %v1621
      %v1623 = vpop.f32.mrb[0].mxu0
      %v1624 = vpop.f32.mrb[0].mxu0
      %v1625 = vadd.f32 0.0, %v1624
      %v1626 = vpop.f32.mrb[0].mxu0
      %1627 = vmatprep.mubr.bf16.mxu0 0
      %1628 = vmatmul.mubr.bf16.gmra.mrb[0].mxu0 %v1498
      %v1629 = vpop.f32.mrb[0].mxu0
      %v1630 = vadd.f32 0.0, %v1629
      %v1631 = vpop.f32.mrb[0].mxu0
      %v1632 = vpop.f32.mrb[0].mxu0
      %v1633 = vadd.f32 0.0, %v1632
      %v1634 = vpop.f32.mrb[0].mxu0
      %1635 = vmatprep.mubr.bf16.mxu0 0
      %1636 = vmatmul.mubr.bf16.gmra.mrb[0].mxu0 %v1499
      %v1637 = vpop.f32.mrb[0].mxu0
      %v1638 = vadd.f32 0.0, %v1637
      %v1639 = vpop.f32.mrb[0].mxu0
      %v1640 = vpop.f32.mrb[0].mxu0
      %v1641 = vadd.f32 0.0, %v1640
      %v1642 = vpop.f32.mrb[0].mxu0
      %1643 = vmatprep.mubr.bf16.mxu0 0
      %1644 = vmatmul.mubr.bf16.gmra.mrb[0].mxu0 %v1500
      %v1645 = vpop.f32.mrb[0].mxu0
      %v1646 = vadd.f32 0.0, %v1645
      %v1647 = vpop.f32.mrb[0].mxu0
      %v1648 = vpop.f32.mrb[0].mxu0
      %v1649 = vadd.f32 0.0, %v1648
      %v1650 = vpop.f32.mrb[0].mxu0
      %1651 = vmatprep.mubr.bf16.mxu0 0
      %1652 = vmatmul.mubr.bf16.gmra.mrb[0].mxu0 %v1501
      %v1653 = vpop.f32.mrb[0].mxu0
      %v1654 = vadd.f32 0.0, %v1653
      %v1655 = vpop.f32.mrb[0].mxu0
      %v1656 = vpop.f32.mrb[0].mxu0
      %v1657 = vadd.f32 0.0, %v1656
      %v1658 = vpop.f32.mrb[0].mxu0
      %1659 = vmatprep.mubr.bf16.mxu0 0
      %1660 = vmatmul.mubr.bf16.gmra.mrb[0].mxu0 %v1502
      %v1661 = vpop.f32.mrb[0].mxu0
      %v1662 = vadd.f32 0.0, %v1661
      %v1663 = vpop.f32.mrb[0].mxu0
      %v1664 = vpop.f32.mrb[0].mxu0
      %v1665 = vadd.f32 0.0, %v1664
      %v1666 = vpop.f32.mrb[0].mxu0
      %1667 = vmatprep.mubr.bf16.mxu0 0
      %1668 = vmatmul.mubr.bf16.gmra.mrb[0].mxu0 %v1503
      %v1669 = vpop.f32.mrb[0].mxu0
      %v1670 = vadd.f32 0.0, %v1669
      %v1671 = vpop.f32.mrb[0].mxu0
      %v1672 = vpop.f32.mrb[0].mxu0
      %v1673 = vadd.f32 0.0, %v1672
      %v1674 = vpop.f32.mrb[0].mxu0
      %1675 = vmatprep.mubr.bf16.mxu0 0
      %1676 = vmatmul.mubr.bf16.gmra.mrb[0].mxu0 %v1504
      %v1677 = vpop.f32.mrb[0].mxu0
      %v1678 = vadd.f32 0.0, %v1677
      %v1679 = vpop.f32.mrb[0].mxu0
      %v1680 = vpop.f32.mrb[0].mxu0
      %v1681 = vadd.f32 0.0, %v1680
      %v1682 = vpop.f32.mrb[0].mxu0
      %1683 = vmatprep.mubr.bf16.mxu0 0
      %1684 = vmatmul.mubr.bf16.gmra.mrb[0].mxu0 %v1505
      %v1685 = vpop.f32.mrb[0].mxu0
      %v1686 = vadd.f32 0.0, %v1685
      %v1687 = vpop.f32.mrb[0].mxu0
      %v1688 = vpop.f32.mrb[0].mxu0
      %v1689 = vadd.f32 0.0, %v1688
      %v1690 = vpop.f32.mrb[0].mxu0
      %1691 = vmatprep.mubr.bf16.mxu0 0
      %1692 = vmatmul.mubr.bf16.gmra.mrb[0].mxu0 %v1506
      %v1693 = vpop.f32.mrb[0].mxu0
      %v1694 = vadd.f32 0.0, %v1693
      %v1695 = vpop.f32.mrb[0].mxu0
      %v1696 = vpop.f32.mrb[0].mxu0
      %v1697 = vadd.f32 0.0, %v1696
      %v1698 = vpop.f32.mrb[0].mxu0
      %1699 = vmatprep.mubr.bf16.mxu0 0
      %1700 = vmatmul.mubr.bf16.gmra.mrb[0].mxu0 %v1507
      %v1701 = vpop.f32.mrb[0].mxu0
      %v1702 = vadd.f32 0.0, %v1701
      %v1703 = vpop.f32.mrb[0].mxu0
      %v1704 = vpop.f32.mrb[0].mxu0
      %v1705 = vadd.f32 0.0, %v1704
      %v1706 = vpop.f32.mrb[0].mxu0
      %1707 = vmatprep.mubr.bf16.mxu0 0
      %1708 = vmatmul.mubr.bf16.gmra.mrb[0].mxu0 %v1508
      %v1709 = vpop.f32.mrb[0].mxu0
      %v1710 = vadd.f32 0.0, %v1709
      %v1711 = vpop.f32.mrb[0].mxu0
      %v1712 = vpop.f32.mrb[0].mxu0
      %v1713 = vadd.f32 0.0, %v1712
      %v1714 = vpop.f32.mrb[0].mxu0
      %1715 = vmatprep.mubr.bf16.mxu0 0
      %1716 = vmatmul.mubr.bf16.gmra.mrb[0].mxu0 %v1509
      %v1717 = vpop.f32.mrb[0].mxu0
      %v1718 = vadd.f32 0.0, %v1717
      %v1719 = vpop.f32.mrb[0].mxu0
      %v1720 = vpop.f32.mrb[0].mxu0
      %v1721 = vadd.f32 0.0, %v1720
      %v1722 = vpop.f32.mrb[0].mxu0
      %1723 = vmatprep.mubr.bf16.mxu0 0
      %1724 = vmatmul.mubr.bf16.gmra.mrb[0].mxu0 %v1510
      %v1725 = vpop.f32.mrb[0].mxu0
      %v1726 = vadd.f32 0.0, %v1725
      %v1727 = vpop.f32.mrb[0].mxu0
      %v1728 = vpop.f32.mrb[0].mxu0
      %v1729 = vadd.f32 0.0, %v1728
      %v1730 = vpop.f32.mrb[0].mxu0
      %1731 = vmatprep.mubr.bf16.mxu0 0
      %1732 = vmatmul.mubr.bf16.gmra.mrb[0].mxu0 %v1511
      %v1733 = vpop.f32.mrb[0].mxu0
      %v1734 = vadd.f32 0.0, %v1733
      %v1735 = vpop.f32.mrb[0].mxu0
      %v1736 = vpop.f32.mrb[0].mxu0
      %v1737 = vadd.f32 0.0, %v1736
      %v1738 = vpop.f32.mrb[0].mxu0
      %1739 = vmatprep.mubr.bf16.mxu0 0
      %1740 = vmatmul.mubr.bf16.gmra.mrb[0].mxu0 %v1512
      %v1741 = vpop.f32.mrb[0].mxu0
      %v1742 = vadd.f32 0.0, %v1741
      %v1743 = vpop.f32.mrb[0].mxu0
      %v1744 = vpop.f32.mrb[0].mxu0
      %v1745 = vadd.f32 0.0, %v1744
      %v1746 = vpop.f32.mrb[0].mxu0
      %1747 = vmatprep.mubr.bf16.mxu0 0
      %1748 = vmatmul.mubr.bf16.gmra.mrb[0].mxu0 %v1513
      %v1749 = vpop.f32.mrb[0].mxu0
      %v1750 = vadd.f32 0.0, %v1749
      %v1751 = vpop.f32.mrb[0].mxu0
      %v1752 = vpop.f32.mrb[0].mxu0
      %v1753 = vadd.f32 0.0, %v1752
      %v1754 = vpop.f32.mrb[0].mxu0
      %1755 = vdwg.mxu0
      %v1756 = vadd.f32 %v1422, %v1614
      %v1757 = vadd.f32 %v1423, %v1617
      %v1758 = vadd.f32 %v1424, %v1622
      %v1759 = vadd.f32 %v1425, %v1625
      %v1760 = vadd.f32 %v1426, %v1630
      %v1761 = vadd.f32 %v1427, %v1633
      %v1762 = vadd.f32 %v1428, %v1638
      %v1763 = vadd.f32 %v1429, %v1641
      %v1764 = vadd.f32 %v1430, %v1646
      %v1765 = vadd.f32 %v1431, %v1649
      %v1766 = vadd.f32 %v1432, %v1654
      %v1767 = vadd.f32 %v1433, %v1657
      %v1768 = vadd.f32 %v1434, %v1662
      %v1769 = vadd.f32 %v1435, %v1665
      %v1770 = vadd.f32 %v1436, %v1670
      %v1771 = vadd.f32 %v1437, %v1673
      %v1772 = vadd.f32 %v1438, %v1678
      %v1773 = vadd.f32 %v1439, %v1681
      %v1774 = vadd.f32 %v1440, %v1686
      %v1775 = vadd.f32 %v1441, %v1689
      %v1776 = vadd.f32 %v1442, %v1694
      %v1777 = vadd.f32 %v1443, %v1697
      %v1778 = vadd.f32 %v1444, %v1702
      %v1779 = vadd.f32 %v1445, %v1705
      %v1780 = vadd.f32 %v1446, %v1710
      %v1781 = vadd.f32 %v1447, %v1713
      %v1782 = vadd.f32 %v1448, %v1718
      %v1783 = vadd.f32 %v1449, %v1721
      %v1784 = vadd.f32 %v1450, %v1726
      %v1785 = vadd.f32 %v1451, %v1729
      %v1786 = vadd.f32 %v1452, %v1734
      %v1787 = vadd.f32 %v1453, %v1737
      %v1788 = vadd.f32 %v1454, %v1742
      %v1789 = vadd.f32 %v1455, %v1745
      %v1790 = vadd.f32 %v1456, %v1750
      %v1791 = vadd.f32 %v1457, %v1753
      %s1792 = sadd.s32 %s195, 20
      %s1793 = scalar_lea.vmem %s183, %s1792
      %v1794 = vld [vmem:[%s1793] sm:$0xff]
      %v1795 = vld [vmem:[%s1793 + $0x8] sm:$0xff]
      %v1796 = vld [vmem:[%s1793 + $0x10] sm:$0xff]
      %v1797 = vld [vmem:[%s1793 + $0x18] sm:$0xff]
      %v1798 = vld [vmem:[%s1793 + $0x20] sm:$0xff]
      %v1799 = vld [vmem:[%s1793 + $0x28] sm:$0xff]
      %v1800 = vld [vmem:[%s1793 + $0x30] sm:$0xff]
      %v1801 = vld [vmem:[%s1793 + $0x38] sm:$0xff]
      %v1802 = vld [vmem:[%s1793 + $0x40] sm:$0xff]
      %v1803 = vld [vmem:[%s1793 + $0x48] sm:$0xff]
      %v1804 = vld [vmem:[%s1793 + $0x50] sm:$0xff]
      %v1805 = vld [vmem:[%s1793 + $0x58] sm:$0xff]
      %v1806 = vld [vmem:[%s1793 + $0x60] sm:$0xff]
      %v1807 = vld [vmem:[%s1793 + $0x68] sm:$0xff]
      %v1808 = vld [vmem:[%s1793 + $0x70] sm:$0xff]
      %v1809 = vld [vmem:[%s1793 + $0x78] sm:$0xff]
      %v1810 = vld [vmem:[%s1793 + $0x80] sm:$0xff]
      %v1811 = vld [vmem:[%s1793 + $0x88] sm:$0xff]
      %v1812 = vld [vmem:[%s1793 + $0x90] sm:$0xff]
      %v1813 = vld [vmem:[%s1793 + $0x98] sm:$0xff]
      %v1814 = vld [vmem:[%s1793 + $0xa0] sm:$0xff]
      %v1815 = vld [vmem:[%s1793 + $0xa8] sm:$0xff]
      %v1816 = vld [vmem:[%s1793 + $0xb0] sm:$0xff]
      %v1817 = vld [vmem:[%s1793 + $0xb8] sm:$0xff]
      %v1818 = vld [vmem:[%s1793 + $0xc0] sm:$0xff]
      %v1819 = vld [vmem:[%s1793 + $0xc8] sm:$0xff]
      %v1820 = vld [vmem:[%s1793 + $0xd0] sm:$0xff]
      %v1821 = vld [vmem:[%s1793 + $0xd8] sm:$0xff]
      %v1822 = vld [vmem:[%s1793 + $0xe0] sm:$0xff]
      %v1823 = vld [vmem:[%s1793 + $0xe8] sm:$0xff]
      %v1824 = vld [vmem:[%s1793 + $0xf0] sm:$0xff]
      %v1825 = vld [vmem:[%s1793 + $0xf8] sm:$0xff]
      %v1826 = vld [vmem:[%s1793 + $0x100] sm:$0xff]
      %v1827 = vld [vmem:[%s1793 + $0x108] sm:$0xff]
      %v1828 = vld [vmem:[%s1793 + $0x110] sm:$0xff]
      %v1829 = vld [vmem:[%s1793 + $0x118] sm:$0xff]
      %v1830 = vpack.c.bf16 %v1795, %v1794
      %v1831 = vpack.c.bf16 %v1797, %v1796
      %v1832 = vpack.c.bf16 %v1799, %v1798
      %v1833 = vpack.c.bf16 %v1801, %v1800
      %v1834 = vpack.c.bf16 %v1803, %v1802
      %v1835 = vpack.c.bf16 %v1805, %v1804
      %v1836 = vpack.c.bf16 %v1807, %v1806
      %v1837 = vpack.c.bf16 %v1809, %v1808
      %v1838 = vpack.c.bf16 %v1811, %v1810
      %v1839 = vpack.c.bf16 %v1813, %v1812
      %v1840 = vpack.c.bf16 %v1815, %v1814
      %v1841 = vpack.c.bf16 %v1817, %v1816
      %v1842 = vpack.c.bf16 %v1819, %v1818
      %v1843 = vpack.c.bf16 %v1821, %v1820
      %v1844 = vpack.c.bf16 %v1823, %v1822
      %v1845 = vpack.c.bf16 %v1825, %v1824
      %v1846 = vpack.c.bf16 %v1827, %v1826
      %v1847 = vpack.c.bf16 %v1829, %v1828
      %s1848 = scalar_lea.vmem %s1, 320
      %v1849 = vld [vmem:[%s1848] sm:$0xf]
      %v1850 = vld [vmem:[%s1848 + $0x4] sm:$0xf]
      %v1851 = vld [vmem:[%s1848 + $0x8] sm:$0xf]
      %v1852 = vld [vmem:[%s1848 + $0xc] sm:$0xf]
      %v1853 = vld [vmem:[%s1848 + $0x10] sm:$0xf]
      %v1854 = vld [vmem:[%s1848 + $0x14] sm:$0xf]
      %v1855 = vld [vmem:[%s1848 + $0x18] sm:$0xf]
      %v1856 = vld [vmem:[%s1848 + $0x1c] sm:$0xf]
      %v1857 = vld [vmem:[%s1848 + $0x20] sm:$0xf]
      %v1858 = vld [vmem:[%s1848 + $0x24] sm:$0xf]
      %v1859 = vld [vmem:[%s1848 + $0x28] sm:$0xf]
      %v1860 = vld [vmem:[%s1848 + $0x2c] sm:$0xf]
      %v1861 = vld [vmem:[%s1848 + $0x30] sm:$0xf]
      %v1862 = vld [vmem:[%s1848 + $0x34] sm:$0xf]
      %v1863 = vld [vmem:[%s1848 + $0x38] sm:$0xf]
      %v1864 = vld [vmem:[%s1848 + $0x3c] sm:$0xf]
      %v1881 = vunpack.c.l.b16 %v1849
      %v1882 = vunpack.c.l.b16 %v1850
      %v1883 = vunpack.c.l.b16 %v1851
      %v1884 = vunpack.c.l.b16 %v1852
      %v1885 = vunpack.c.l.b16 %v1853
      %v1886 = vunpack.c.l.b16 %v1854
      %v1887 = vunpack.c.l.b16 %v1855
      %v1888 = vunpack.c.l.b16 %v1856
      %v1889 = vunpack.c.l.b16 %v1857
      %v1890 = vunpack.c.l.b16 %v1858
      %v1891 = vunpack.c.l.b16 %v1859
      %v1892 = vunpack.c.l.b16 %v1860
      %v1893 = vunpack.c.l.b16 %v1861
      %v1894 = vunpack.c.l.b16 %v1862
      %v1895 = vunpack.c.l.b16 %v1863
      %v1896 = vunpack.c.l.b16 %v1864
      %v1897 = vpack.c.b16 %v1882, %v1881
      %v1898 = vpack.c.b16 %v1884, %v1883
      %v1899 = vpack.c.b16 %v1886, %v1885
      %v1900 = vpack.c.b16 %v1888, %v1887
      %v1901 = vpack.c.b16 %v1890, %v1889
      %v1902 = vpack.c.b16 %v1892, %v1891
      %v1903 = vpack.c.b16 %v1894, %v1893
      %v1904 = vpack.c.b16 %v1896, %v1895
      %1913 = vmatprep.subr.bf16.mxu0 0
      %1914 = vmatpush1.bf16.msra.mxu0 %v1897
      %1915 = vmatprep.subr.bf16.mxu0 0
      %1916 = vmatpush1.bf16.msra.mxu0 %v1898
      %1917 = vmatprep.subr.bf16.mxu0 0
      %1918 = vmatpush1.bf16.msra.mxu0 %v1899
      %1919 = vmatprep.subr.bf16.mxu0 0
      %1920 = vmatpush1.bf16.msra.mxu0 %v1900
      %1921 = vmatprep.subr.bf16.mxu0 0
      %1922 = vmatpush1.bf16.msra.mxu0 %v1901
      %1923 = vmatprep.subr.bf16.mxu0 0
      %1924 = vmatpush1.bf16.msra.mxu0 %v1902
      %1925 = vmatprep.subr.bf16.mxu0 0
      %1926 = vmatpush1.bf16.msra.mxu0 %v1903
      %1927 = vmatprep.subr.bf16.mxu0 0
      %1928 = vmatpush1.bf16.msra.mxu0 %v1904
      %1929 = vmatprep.subr.bf16.mxu0 0
      %1930 = vmatpush1.bf16.msra.mxu0 0
      %1931 = vmatprep.subr.bf16.mxu0 0
      %1932 = vmatpush1.bf16.msra.mxu0 0
      %1933 = vmatprep.subr.bf16.mxu0 0
      %1934 = vmatpush1.bf16.msra.mxu0 0
      %1935 = vmatprep.subr.bf16.mxu0 0
      %1936 = vmatpush1.bf16.msra.mxu0 0
      %1937 = vmatprep.subr.bf16.mxu0 0
      %1938 = vmatpush1.bf16.msra.mxu0 0
      %1939 = vmatprep.subr.bf16.mxu0 0
      %1940 = vmatpush1.bf16.msra.mxu0 0
      %1941 = vmatprep.subr.bf16.mxu0 0
      %1942 = vmatpush1.bf16.msra.mxu0 0
      %1943 = vmatprep.subr.bf16.mxu0 0
      %1944 = vmatpush1.bf16.msra.mxu0 0
      %1945 = vmatprep.mubr.bf16.mxu0 0
      %1946 = vmatmul.mubr.bf16.gmra.mrb[0].mxu0 %v1830
      %v1947 = vpop.f32.mrb[0].mxu0
      %v1948 = vadd.f32 0.0, %v1947
      %v1949 = vpop.f32.mrb[0].mxu0
      %v1950 = vpop.f32.mrb[0].mxu0
      %v1951 = vadd.f32 0.0, %v1950
      %v1952 = vpop.f32.mrb[0].mxu0
      %1953 = vmatprep.mubr.bf16.mxu0 0
      %1954 = vmatmul.mubr.bf16.gmra.mrb[0].mxu0 %v1831
      %v1955 = vpop.f32.mrb[0].mxu0
      %v1956 = vadd.f32 0.0, %v1955
      %v1957 = vpop.f32.mrb[0].mxu0
      %v1958 = vpop.f32.mrb[0].mxu0
      %v1959 = vadd.f32 0.0, %v1958
      %v1960 = vpop.f32.mrb[0].mxu0
      %1961 = vmatprep.mubr.bf16.mxu0 0
      %1962 = vmatmul.mubr.bf16.gmra.mrb[0].mxu0 %v1832
      %v1963 = vpop.f32.mrb[0].mxu0
      %v1964 = vadd.f32 0.0, %v1963
      %v1965 = vpop.f32.mrb[0].mxu0
      %v1966 = vpop.f32.mrb[0].mxu0
      %v1967 = vadd.f32 0.0, %v1966
      %v1968 = vpop.f32.mrb[0].mxu0
      %1969 = vmatprep.mubr.bf16.mxu0 0
      %1970 = vmatmul.mubr.bf16.gmra.mrb[0].mxu0 %v1833
      %v1971 = vpop.f32.mrb[0].mxu0
      %v1972 = vadd.f32 0.0, %v1971
      %v1973 = vpop.f32.mrb[0].mxu0
      %v1974 = vpop.f32.mrb[0].mxu0
      %v1975 = vadd.f32 0.0, %v1974
      %v1976 = vpop.f32.mrb[0].mxu0
      %1977 = vmatprep.mubr.bf16.mxu0 0
      %1978 = vmatmul.mubr.bf16.gmra.mrb[0].mxu0 %v1834
      %v1979 = vpop.f32.mrb[0].mxu0
      %v1980 = vadd.f32 0.0, %v1979
      %v1981 = vpop.f32.mrb[0].mxu0
      %v1982 = vpop.f32.mrb[0].mxu0
      %v1983 = vadd.f32 0.0, %v1982
      %v1984 = vpop.f32.mrb[0].mxu0
      %1985 = vmatprep.mubr.bf16.mxu0 0
      %1986 = vmatmul.mubr.bf16.gmra.mrb[0].mxu0 %v1835
      %v1987 = vpop.f32.mrb[0].mxu0
      %v1988 = vadd.f32 0.0, %v1987
      %v1989 = vpop.f32.mrb[0].mxu0
      %v1990 = vpop.f32.mrb[0].mxu0
      %v1991 = vadd.f32 0.0, %v1990
      %v1992 = vpop.f32.mrb[0].mxu0
      %1993 = vmatprep.mubr.bf16.mxu0 0
      %1994 = vmatmul.mubr.bf16.gmra.mrb[0].mxu0 %v1836
      %v1995 = vpop.f32.mrb[0].mxu0
      %v1996 = vadd.f32 0.0, %v1995
      %v1997 = vpop.f32.mrb[0].mxu0
      %v1998 = vpop.f32.mrb[0].mxu0
      %v1999 = vadd.f32 0.0, %v1998
      %v2000 = vpop.f32.mrb[0].mxu0
      %2001 = vmatprep.mubr.bf16.mxu0 0
      %2002 = vmatmul.mubr.bf16.gmra.mrb[0].mxu0 %v1837
      %v2003 = vpop.f32.mrb[0].mxu0
      %v2004 = vadd.f32 0.0, %v2003
      %v2005 = vpop.f32.mrb[0].mxu0
      %v2006 = vpop.f32.mrb[0].mxu0
      %v2007 = vadd.f32 0.0, %v2006
      %v2008 = vpop.f32.mrb[0].mxu0
      %2009 = vmatprep.mubr.bf16.mxu0 0
      %2010 = vmatmul.mubr.bf16.gmra.mrb[0].mxu0 %v1838
      %v2011 = vpop.f32.mrb[0].mxu0
      %v2012 = vadd.f32 0.0, %v2011
      %v2013 = vpop.f32.mrb[0].mxu0
      %v2014 = vpop.f32.mrb[0].mxu0
      %v2015 = vadd.f32 0.0, %v2014
      %v2016 = vpop.f32.mrb[0].mxu0
      %2017 = vmatprep.mubr.bf16.mxu0 0
      %2018 = vmatmul.mubr.bf16.gmra.mrb[0].mxu0 %v1839
      %v2019 = vpop.f32.mrb[0].mxu0
      %v2020 = vadd.f32 0.0, %v2019
      %v2021 = vpop.f32.mrb[0].mxu0
      %v2022 = vpop.f32.mrb[0].mxu0
      %v2023 = vadd.f32 0.0, %v2022
      %v2024 = vpop.f32.mrb[0].mxu0
      %2025 = vmatprep.mubr.bf16.mxu0 0
      %2026 = vmatmul.mubr.bf16.gmra.mrb[0].mxu0 %v1840
      %v2027 = vpop.f32.mrb[0].mxu0
      %v2028 = vadd.f32 0.0, %v2027
      %v2029 = vpop.f32.mrb[0].mxu0
      %v2030 = vpop.f32.mrb[0].mxu0
      %v2031 = vadd.f32 0.0, %v2030
      %v2032 = vpop.f32.mrb[0].mxu0
      %2033 = vmatprep.mubr.bf16.mxu0 0
      %2034 = vmatmul.mubr.bf16.gmra.mrb[0].mxu0 %v1841
      %v2035 = vpop.f32.mrb[0].mxu0
      %v2036 = vadd.f32 0.0, %v2035
      %v2037 = vpop.f32.mrb[0].mxu0
      %v2038 = vpop.f32.mrb[0].mxu0
      %v2039 = vadd.f32 0.0, %v2038
      %v2040 = vpop.f32.mrb[0].mxu0
      %2041 = vmatprep.mubr.bf16.mxu0 0
      %2042 = vmatmul.mubr.bf16.gmra.mrb[0].mxu0 %v1842
      %v2043 = vpop.f32.mrb[0].mxu0
      %v2044 = vadd.f32 0.0, %v2043
      %v2045 = vpop.f32.mrb[0].mxu0
      %v2046 = vpop.f32.mrb[0].mxu0
      %v2047 = vadd.f32 0.0, %v2046
      %v2048 = vpop.f32.mrb[0].mxu0
      %2049 = vmatprep.mubr.bf16.mxu0 0
      %2050 = vmatmul.mubr.bf16.gmra.mrb[0].mxu0 %v1843
      %v2051 = vpop.f32.mrb[0].mxu0
      %v2052 = vadd.f32 0.0, %v2051
      %v2053 = vpop.f32.mrb[0].mxu0
      %v2054 = vpop.f32.mrb[0].mxu0
      %v2055 = vadd.f32 0.0, %v2054
      %v2056 = vpop.f32.mrb[0].mxu0
      %2057 = vmatprep.mubr.bf16.mxu0 0
      %2058 = vmatmul.mubr.bf16.gmra.mrb[0].mxu0 %v1844
      %v2059 = vpop.f32.mrb[0].mxu0
      %v2060 = vadd.f32 0.0, %v2059
      %v2061 = vpop.f32.mrb[0].mxu0
      %v2062 = vpop.f32.mrb[0].mxu0
      %v2063 = vadd.f32 0.0, %v2062
      %v2064 = vpop.f32.mrb[0].mxu0
      %2065 = vmatprep.mubr.bf16.mxu0 0
      %2066 = vmatmul.mubr.bf16.gmra.mrb[0].mxu0 %v1845
      %v2067 = vpop.f32.mrb[0].mxu0
      %v2068 = vadd.f32 0.0, %v2067
      %v2069 = vpop.f32.mrb[0].mxu0
      %v2070 = vpop.f32.mrb[0].mxu0
      %v2071 = vadd.f32 0.0, %v2070
      %v2072 = vpop.f32.mrb[0].mxu0
      %2073 = vmatprep.mubr.bf16.mxu0 0
      %2074 = vmatmul.mubr.bf16.gmra.mrb[0].mxu0 %v1846
      %v2075 = vpop.f32.mrb[0].mxu0
      %v2076 = vadd.f32 0.0, %v2075
      %v2077 = vpop.f32.mrb[0].mxu0
      %v2078 = vpop.f32.mrb[0].mxu0
      %v2079 = vadd.f32 0.0, %v2078
      %v2080 = vpop.f32.mrb[0].mxu0
      %2081 = vmatprep.mubr.bf16.mxu0 0
      %2082 = vmatmul.mubr.bf16.gmra.mrb[0].mxu0 %v1847
      %v2083 = vpop.f32.mrb[0].mxu0
      %v2084 = vadd.f32 0.0, %v2083
      %v2085 = vpop.f32.mrb[0].mxu0
      %v2086 = vpop.f32.mrb[0].mxu0
      %v2087 = vadd.f32 0.0, %v2086
      %v2088 = vpop.f32.mrb[0].mxu0
      %2089 = vdwg.mxu0
      %v2090 = vadd.f32 %v1756, %v1948
      %v2091 = vadd.f32 %v1757, %v1951
      %v2092 = vadd.f32 %v1758, %v1956
      %v2093 = vadd.f32 %v1759, %v1959
      %v2094 = vadd.f32 %v1760, %v1964
      %v2095 = vadd.f32 %v1761, %v1967
      %v2096 = vadd.f32 %v1762, %v1972
      %v2097 = vadd.f32 %v1763, %v1975
      %v2098 = vadd.f32 %v1764, %v1980
      %v2099 = vadd.f32 %v1765, %v1983
      %v2100 = vadd.f32 %v1766, %v1988
      %v2101 = vadd.f32 %v1767, %v1991
      %v2102 = vadd.f32 %v1768, %v1996
      %v2103 = vadd.f32 %v1769, %v1999
      %v2104 = vadd.f32 %v1770, %v2004
      %v2105 = vadd.f32 %v1771, %v2007
      %v2106 = vadd.f32 %v1772, %v2012
      %v2107 = vadd.f32 %v1773, %v2015
      %v2108 = vadd.f32 %v1774, %v2020
      %v2109 = vadd.f32 %v1775, %v2023
      %v2110 = vadd.f32 %v1776, %v2028
      %v2111 = vadd.f32 %v1777, %v2031
      %v2112 = vadd.f32 %v1778, %v2036
      %v2113 = vadd.f32 %v1779, %v2039
      %v2114 = vadd.f32 %v1780, %v2044
      %v2115 = vadd.f32 %v1781, %v2047
      %v2116 = vadd.f32 %v1782, %v2052
      %v2117 = vadd.f32 %v1783, %v2055
      %v2118 = vadd.f32 %v1784, %v2060
      %v2119 = vadd.f32 %v1785, %v2063
      %v2120 = vadd.f32 %v1786, %v2068
      %v2121 = vadd.f32 %v1787, %v2071
      %v2122 = vadd.f32 %v1788, %v2076
      %v2123 = vadd.f32 %v1789, %v2079
      %v2124 = vadd.f32 %v1790, %v2084
      %v2125 = vadd.f32 %v1791, %v2087
      %s2126 = sadd.s32 %s195, 36
      %s2127 = scalar_lea.vmem %s183, %s2126
      %v2128 = vld [vmem:[%s2127] sm:$0xff]
      %v2129 = vld [vmem:[%s2127 + $0x8] sm:$0xff]
      %v2130 = vld [vmem:[%s2127 + $0x10] sm:$0xff]
      %v2131 = vld [vmem:[%s2127 + $0x18] sm:$0xff]
      %v2132 = vld [vmem:[%s2127 + $0x20] sm:$0xff]
      %v2133 = vld [vmem:[%s2127 + $0x28] sm:$0xff]
      %v2134 = vld [vmem:[%s2127 + $0x30] sm:$0xff]
      %v2135 = vld [vmem:[%s2127 + $0x38] sm:$0xff]
      %v2136 = vld [vmem:[%s2127 + $0x40] sm:$0xff]
      %v2137 = vld [vmem:[%s2127 + $0x48] sm:$0xff]
      %v2138 = vld [vmem:[%s2127 + $0x50] sm:$0xff]
      %v2139 = vld [vmem:[%s2127 + $0x58] sm:$0xff]
      %v2140 = vld [vmem:[%s2127 + $0x60] sm:$0xff]
      %v2141 = vld [vmem:[%s2127 + $0x68] sm:$0xff]
      %v2142 = vld [vmem:[%s2127 + $0x70] sm:$0xff]
      %v2143 = vld [vmem:[%s2127 + $0x78] sm:$0xff]
      %v2144 = vld [vmem:[%s2127 + $0x80] sm:$0xff]
      %v2145 = vld [vmem:[%s2127 + $0x88] sm:$0xff]
      %v2146 = vld [vmem:[%s2127 + $0x90] sm:$0xff]
      %v2147 = vld [vmem:[%s2127 + $0x98] sm:$0xff]
      %v2148 = vld [vmem:[%s2127 + $0xa0] sm:$0xff]
      %v2149 = vld [vmem:[%s2127 + $0xa8] sm:$0xff]
      %v2150 = vld [vmem:[%s2127 + $0xb0] sm:$0xff]
      %v2151 = vld [vmem:[%s2127 + $0xb8] sm:$0xff]
      %v2152 = vld [vmem:[%s2127 + $0xc0] sm:$0xff]
      %v2153 = vld [vmem:[%s2127 + $0xc8] sm:$0xff]
      %v2154 = vld [vmem:[%s2127 + $0xd0] sm:$0xff]
      %v2155 = vld [vmem:[%s2127 + $0xd8] sm:$0xff]
      %v2156 = vld [vmem:[%s2127 + $0xe0] sm:$0xff]
      %v2157 = vld [vmem:[%s2127 + $0xe8] sm:$0xff]
      %v2158 = vld [vmem:[%s2127 + $0xf0] sm:$0xff]
      %v2159 = vld [vmem:[%s2127 + $0xf8] sm:$0xff]
      %v2160 = vld [vmem:[%s2127 + $0x100] sm:$0xff]
      %v2161 = vld [vmem:[%s2127 + $0x108] sm:$0xff]
      %v2162 = vld [vmem:[%s2127 + $0x110] sm:$0xff]
      %v2163 = vld [vmem:[%s2127 + $0x118] sm:$0xff]
      %v2164 = vpack.c.bf16 %v2129, %v2128
      %v2165 = vpack.c.bf16 %v2131, %v2130
      %v2166 = vpack.c.bf16 %v2133, %v2132
      %v2167 = vpack.c.bf16 %v2135, %v2134
      %v2168 = vpack.c.bf16 %v2137, %v2136
      %v2169 = vpack.c.bf16 %v2139, %v2138
      %v2170 = vpack.c.bf16 %v2141, %v2140
      %v2171 = vpack.c.bf16 %v2143, %v2142
      %v2172 = vpack.c.bf16 %v2145, %v2144
      %v2173 = vpack.c.bf16 %v2147, %v2146
      %v2174 = vpack.c.bf16 %v2149, %v2148
      %v2175 = vpack.c.bf16 %v2151, %v2150
      %v2176 = vpack.c.bf16 %v2153, %v2152
      %v2177 = vpack.c.bf16 %v2155, %v2154
      %v2178 = vpack.c.bf16 %v2157, %v2156
      %v2179 = vpack.c.bf16 %v2159, %v2158
      %v2180 = vpack.c.bf16 %v2161, %v2160
      %v2181 = vpack.c.bf16 %v2163, %v2162
      %s2182 = scalar_lea.vmem %s1, 384
      %v2183 = vld [vmem:[%s2182] sm:$0xf]
      %v2184 = vld [vmem:[%s2182 + $0x4] sm:$0xf]
      %v2185 = vld [vmem:[%s2182 + $0x8] sm:$0xf]
      %v2186 = vld [vmem:[%s2182 + $0xc] sm:$0xf]
      %v2187 = vld [vmem:[%s2182 + $0x10] sm:$0xf]
      %v2188 = vld [vmem:[%s2182 + $0x14] sm:$0xf]
      %v2189 = vld [vmem:[%s2182 + $0x18] sm:$0xf]
      %v2190 = vld [vmem:[%s2182 + $0x1c] sm:$0xf]
      %v2191 = vld [vmem:[%s2182 + $0x20] sm:$0xf]
      %v2192 = vld [vmem:[%s2182 + $0x24] sm:$0xf]
      %v2193 = vld [vmem:[%s2182 + $0x28] sm:$0xf]
      %v2194 = vld [vmem:[%s2182 + $0x2c] sm:$0xf]
      %v2195 = vld [vmem:[%s2182 + $0x30] sm:$0xf]
      %v2196 = vld [vmem:[%s2182 + $0x34] sm:$0xf]
      %v2197 = vld [vmem:[%s2182 + $0x38] sm:$0xf]
      %v2198 = vld [vmem:[%s2182 + $0x3c] sm:$0xf]
      %v2215 = vunpack.c.l.b16 %v2183
      %v2216 = vunpack.c.l.b16 %v2184
      %v2217 = vunpack.c.l.b16 %v2185
      %v2218 = vunpack.c.l.b16 %v2186
      %v2219 = vunpack.c.l.b16 %v2187
      %v2220 = vunpack.c.l.b16 %v2188
      %v2221 = vunpack.c.l.b16 %v2189
      %v2222 = vunpack.c.l.b16 %v2190
      %v2223 = vunpack.c.l.b16 %v2191
      %v2224 = vunpack.c.l.b16 %v2192
      %v2225 = vunpack.c.l.b16 %v2193
      %v2226 = vunpack.c.l.b16 %v2194
      %v2227 = vunpack.c.l.b16 %v2195
      %v2228 = vunpack.c.l.b16 %v2196
      %v2229 = vunpack.c.l.b16 %v2197
      %v2230 = vunpack.c.l.b16 %v2198
      %v2231 = vpack.c.b16 %v2216, %v2215
      %v2232 = vpack.c.b16 %v2218, %v2217
      %v2233 = vpack.c.b16 %v2220, %v2219
      %v2234 = vpack.c.b16 %v2222, %v2221
      %v2235 = vpack.c.b16 %v2224, %v2223
      %v2236 = vpack.c.b16 %v2226, %v2225
      %v2237 = vpack.c.b16 %v2228, %v2227
      %v2238 = vpack.c.b16 %v2230, %v2229
      %2247 = vmatprep.subr.bf16.mxu0 0
      %2248 = vmatpush1.bf16.msra.mxu0 %v2231
      %2249 = vmatprep.subr.bf16.mxu0 0
      %2250 = vmatpush1.bf16.msra.mxu0 %v2232
      %2251 = vmatprep.subr.bf16.mxu0 0
      %2252 = vmatpush1.bf16.msra.mxu0 %v2233
      %2253 = vmatprep.subr.bf16.mxu0 0
      %2254 = vmatpush1.bf16.msra.mxu0 %v2234
      %2255 = vmatprep.subr.bf16.mxu0 0
      %2256 = vmatpush1.bf16.msra.mxu0 %v2235
      %2257 = vmatprep.subr.bf16.mxu0 0
      %2258 = vmatpush1.bf16.msra.mxu0 %v2236
      %2259 = vmatprep.subr.bf16.mxu0 0
      %2260 = vmatpush1.bf16.msra.mxu0 %v2237
      %2261 = vmatprep.subr.bf16.mxu0 0
      %2262 = vmatpush1.bf16.msra.mxu0 %v2238
      %2263 = vmatprep.subr.bf16.mxu0 0
      %2264 = vmatpush1.bf16.msra.mxu0 0
      %2265 = vmatprep.subr.bf16.mxu0 0
      %2266 = vmatpush1.bf16.msra.mxu0 0
      %2267 = vmatprep.subr.bf16.mxu0 0
      %2268 = vmatpush1.bf16.msra.mxu0 0
      %2269 = vmatprep.subr.bf16.mxu0 0
      %2270 = vmatpush1.bf16.msra.mxu0 0
      %2271 = vmatprep.subr.bf16.mxu0 0
      %2272 = vmatpush1.bf16.msra.mxu0 0
      %2273 = vmatprep.subr.bf16.mxu0 0
      %2274 = vmatpush1.bf16.msra.mxu0 0
      %2275 = vmatprep.subr.bf16.mxu0 0
      %2276 = vmatpush1.bf16.msra.mxu0 0
      %2277 = vmatprep.subr.bf16.mxu0 0
      %2278 = vmatpush1.bf16.msra.mxu0 0
      %2279 = vmatprep.mubr.bf16.mxu0 0
      %2280 = vmatmul.mubr.bf16.gmra.mrb[0].mxu0 %v2164
      %v2281 = vpop.f32.mrb[0].mxu0
      %v2282 = vadd.f32 0.0, %v2281
      %v2283 = vpop.f32.mrb[0].mxu0
      %v2284 = vpop.f32.mrb[0].mxu0
      %v2285 = vadd.f32 0.0, %v2284
      %v2286 = vpop.f32.mrb[0].mxu0
      %2287 = vmatprep.mubr.bf16.mxu0 0
      %2288 = vmatmul.mubr.bf16.gmra.mrb[0].mxu0 %v2165
      %v2289 = vpop.f32.mrb[0].mxu0
      %v2290 = vadd.f32 0.0, %v2289
      %v2291 = vpop.f32.mrb[0].mxu0
      %v2292 = vpop.f32.mrb[0].mxu0
      %v2293 = vadd.f32 0.0, %v2292
      %v2294 = vpop.f32.mrb[0].mxu0
      %2295 = vmatprep.mubr.bf16.mxu0 0
      %2296 = vmatmul.mubr.bf16.gmra.mrb[0].mxu0 %v2166
      %v2297 = vpop.f32.mrb[0].mxu0
      %v2298 = vadd.f32 0.0, %v2297
      %v2299 = vpop.f32.mrb[0].mxu0
      %v2300 = vpop.f32.mrb[0].mxu0
      %v2301 = vadd.f32 0.0, %v2300
      %v2302 = vpop.f32.mrb[0].mxu0
      %2303 = vmatprep.mubr.bf16.mxu0 0
      %2304 = vmatmul.mubr.bf16.gmra.mrb[0].mxu0 %v2167
      %v2305 = vpop.f32.mrb[0].mxu0
      %v2306 = vadd.f32 0.0, %v2305
      %v2307 = vpop.f32.mrb[0].mxu0
      %v2308 = vpop.f32.mrb[0].mxu0
      %v2309 = vadd.f32 0.0, %v2308
      %v2310 = vpop.f32.mrb[0].mxu0
      %2311 = vmatprep.mubr.bf16.mxu0 0
      %2312 = vmatmul.mubr.bf16.gmra.mrb[0].mxu0 %v2168
      %v2313 = vpop.f32.mrb[0].mxu0
      %v2314 = vadd.f32 0.0, %v2313
      %v2315 = vpop.f32.mrb[0].mxu0
      %v2316 = vpop.f32.mrb[0].mxu0
      %v2317 = vadd.f32 0.0, %v2316
      %v2318 = vpop.f32.mrb[0].mxu0
      %2319 = vmatprep.mubr.bf16.mxu0 0
      %2320 = vmatmul.mubr.bf16.gmra.mrb[0].mxu0 %v2169
      %v2321 = vpop.f32.mrb[0].mxu0
      %v2322 = vadd.f32 0.0, %v2321
      %v2323 = vpop.f32.mrb[0].mxu0
      %v2324 = vpop.f32.mrb[0].mxu0
      %v2325 = vadd.f32 0.0, %v2324
      %v2326 = vpop.f32.mrb[0].mxu0
      %2327 = vmatprep.mubr.bf16.mxu0 0
      %2328 = vmatmul.mubr.bf16.gmra.mrb[0].mxu0 %v2170
      %v2329 = vpop.f32.mrb[0].mxu0
      %v2330 = vadd.f32 0.0, %v2329
      %v2331 = vpop.f32.mrb[0].mxu0
      %v2332 = vpop.f32.mrb[0].mxu0
      %v2333 = vadd.f32 0.0, %v2332
      %v2334 = vpop.f32.mrb[0].mxu0
      %2335 = vmatprep.mubr.bf16.mxu0 0
      %2336 = vmatmul.mubr.bf16.gmra.mrb[0].mxu0 %v2171
      %v2337 = vpop.f32.mrb[0].mxu0
      %v2338 = vadd.f32 0.0, %v2337
      %v2339 = vpop.f32.mrb[0].mxu0
      %v2340 = vpop.f32.mrb[0].mxu0
      %v2341 = vadd.f32 0.0, %v2340
      %v2342 = vpop.f32.mrb[0].mxu0
      %2343 = vmatprep.mubr.bf16.mxu0 0
      %2344 = vmatmul.mubr.bf16.gmra.mrb[0].mxu0 %v2172
      %v2345 = vpop.f32.mrb[0].mxu0
      %v2346 = vadd.f32 0.0, %v2345
      %v2347 = vpop.f32.mrb[0].mxu0
      %v2348 = vpop.f32.mrb[0].mxu0
      %v2349 = vadd.f32 0.0, %v2348
      %v2350 = vpop.f32.mrb[0].mxu0
      %2351 = vmatprep.mubr.bf16.mxu0 0
      %2352 = vmatmul.mubr.bf16.gmra.mrb[0].mxu0 %v2173
      %v2353 = vpop.f32.mrb[0].mxu0
      %v2354 = vadd.f32 0.0, %v2353
      %v2355 = vpop.f32.mrb[0].mxu0
      %v2356 = vpop.f32.mrb[0].mxu0
      %v2357 = vadd.f32 0.0, %v2356
      %v2358 = vpop.f32.mrb[0].mxu0
      %2359 = vmatprep.mubr.bf16.mxu0 0
      %2360 = vmatmul.mubr.bf16.gmra.mrb[0].mxu0 %v2174
      %v2361 = vpop.f32.mrb[0].mxu0
      %v2362 = vadd.f32 0.0, %v2361
      %v2363 = vpop.f32.mrb[0].mxu0
      %v2364 = vpop.f32.mrb[0].mxu0
      %v2365 = vadd.f32 0.0, %v2364
      %v2366 = vpop.f32.mrb[0].mxu0
      %2367 = vmatprep.mubr.bf16.mxu0 0
      %2368 = vmatmul.mubr.bf16.gmra.mrb[0].mxu0 %v2175
      %v2369 = vpop.f32.mrb[0].mxu0
      %v2370 = vadd.f32 0.0, %v2369
      %v2371 = vpop.f32.mrb[0].mxu0
      %v2372 = vpop.f32.mrb[0].mxu0
      %v2373 = vadd.f32 0.0, %v2372
      %v2374 = vpop.f32.mrb[0].mxu0
      %2375 = vmatprep.mubr.bf16.mxu0 0
      %2376 = vmatmul.mubr.bf16.gmra.mrb[0].mxu0 %v2176
      %v2377 = vpop.f32.mrb[0].mxu0
      %v2378 = vadd.f32 0.0, %v2377
      %v2379 = vpop.f32.mrb[0].mxu0
      %v2380 = vpop.f32.mrb[0].mxu0
      %v2381 = vadd.f32 0.0, %v2380
      %v2382 = vpop.f32.mrb[0].mxu0
      %2383 = vmatprep.mubr.bf16.mxu0 0
      %2384 = vmatmul.mubr.bf16.gmra.mrb[0].mxu0 %v2177
      %v2385 = vpop.f32.mrb[0].mxu0
      %v2386 = vadd.f32 0.0, %v2385
      %v2387 = vpop.f32.mrb[0].mxu0
      %v2388 = vpop.f32.mrb[0].mxu0
      %v2389 = vadd.f32 0.0, %v2388
      %v2390 = vpop.f32.mrb[0].mxu0
      %2391 = vmatprep.mubr.bf16.mxu0 0
      %2392 = vmatmul.mubr.bf16.gmra.mrb[0].mxu0 %v2178
      %v2393 = vpop.f32.mrb[0].mxu0
      %v2394 = vadd.f32 0.0, %v2393
      %v2395 = vpop.f32.mrb[0].mxu0
      %v2396 = vpop.f32.mrb[0].mxu0
      %v2397 = vadd.f32 0.0, %v2396
      %v2398 = vpop.f32.mrb[0].mxu0
      %2399 = vmatprep.mubr.bf16.mxu0 0
      %2400 = vmatmul.mubr.bf16.gmra.mrb[0].mxu0 %v2179
      %v2401 = vpop.f32.mrb[0].mxu0
      %v2402 = vadd.f32 0.0, %v2401
      %v2403 = vpop.f32.mrb[0].mxu0
      %v2404 = vpop.f32.mrb[0].mxu0
      %v2405 = vadd.f32 0.0, %v2404
      %v2406 = vpop.f32.mrb[0].mxu0
      %2407 = vmatprep.mubr.bf16.mxu0 0
      %2408 = vmatmul.mubr.bf16.gmra.mrb[0].mxu0 %v2180
      %v2409 = vpop.f32.mrb[0].mxu0
      %v2410 = vadd.f32 0.0, %v2409
      %v2411 = vpop.f32.mrb[0].mxu0
      %v2412 = vpop.f32.mrb[0].mxu0
      %v2413 = vadd.f32 0.0, %v2412
      %v2414 = vpop.f32.mrb[0].mxu0
      %2415 = vmatprep.mubr.bf16.mxu0 0
      %2416 = vmatmul.mubr.bf16.gmra.mrb[0].mxu0 %v2181
      %v2417 = vpop.f32.mrb[0].mxu0
      %v2418 = vadd.f32 0.0, %v2417
      %v2419 = vpop.f32.mrb[0].mxu0
      %v2420 = vpop.f32.mrb[0].mxu0
      %v2421 = vadd.f32 0.0, %v2420
      %v2422 = vpop.f32.mrb[0].mxu0
      %2423 = vdwg.mxu0
      %v2424 = vadd.f32 %v2090, %v2282
      %v2425 = vadd.f32 %v2091, %v2285
      %v2426 = vadd.f32 %v2092, %v2290
      %v2427 = vadd.f32 %v2093, %v2293
      %v2428 = vadd.f32 %v2094, %v2298
      %v2429 = vadd.f32 %v2095, %v2301
      %v2430 = vadd.f32 %v2096, %v2306
      %v2431 = vadd.f32 %v2097, %v2309
      %v2432 = vadd.f32 %v2098, %v2314
      %v2433 = vadd.f32 %v2099, %v2317
      %v2434 = vadd.f32 %v2100, %v2322
      %v2435 = vadd.f32 %v2101, %v2325
      %v2436 = vadd.f32 %v2102, %v2330
      %v2437 = vadd.f32 %v2103, %v2333
      %v2438 = vadd.f32 %v2104, %v2338
      %v2439 = vadd.f32 %v2105, %v2341
      %v2440 = vadd.f32 %v2106, %v2346
      %v2441 = vadd.f32 %v2107, %v2349
      %v2442 = vadd.f32 %v2108, %v2354
      %v2443 = vadd.f32 %v2109, %v2357
      %v2444 = vadd.f32 %v2110, %v2362
      %v2445 = vadd.f32 %v2111, %v2365
      %v2446 = vadd.f32 %v2112, %v2370
      %v2447 = vadd.f32 %v2113, %v2373
      %v2448 = vadd.f32 %v2114, %v2378
      %v2449 = vadd.f32 %v2115, %v2381
      %v2450 = vadd.f32 %v2116, %v2386
      %v2451 = vadd.f32 %v2117, %v2389
      %v2452 = vadd.f32 %v2118, %v2394
      %v2453 = vadd.f32 %v2119, %v2397
      %v2454 = vadd.f32 %v2120, %v2402
      %v2455 = vadd.f32 %v2121, %v2405
      %v2456 = vadd.f32 %v2122, %v2410
      %v2457 = vadd.f32 %v2123, %v2413
      %v2458 = vadd.f32 %v2124, %v2418
      %v2459 = vadd.f32 %v2125, %v2421
      %s2460 = sadd.s32 %s195, 37
      %s2461 = scalar_lea.vmem %s183, %s2460
      %v2462 = vld [vmem:[%s2461] sm:$0xff]
      %v2463 = vld [vmem:[%s2461 + $0x8] sm:$0xff]
      %v2464 = vld [vmem:[%s2461 + $0x10] sm:$0xff]
      %v2465 = vld [vmem:[%s2461 + $0x18] sm:$0xff]
      %v2466 = vld [vmem:[%s2461 + $0x20] sm:$0xff]
      %v2467 = vld [vmem:[%s2461 + $0x28] sm:$0xff]
      %v2468 = vld [vmem:[%s2461 + $0x30] sm:$0xff]
      %v2469 = vld [vmem:[%s2461 + $0x38] sm:$0xff]
      %v2470 = vld [vmem:[%s2461 + $0x40] sm:$0xff]
      %v2471 = vld [vmem:[%s2461 + $0x48] sm:$0xff]
      %v2472 = vld [vmem:[%s2461 + $0x50] sm:$0xff]
      %v2473 = vld [vmem:[%s2461 + $0x58] sm:$0xff]
      %v2474 = vld [vmem:[%s2461 + $0x60] sm:$0xff]
      %v2475 = vld [vmem:[%s2461 + $0x68] sm:$0xff]
      %v2476 = vld [vmem:[%s2461 + $0x70] sm:$0xff]
      %v2477 = vld [vmem:[%s2461 + $0x78] sm:$0xff]
      %v2478 = vld [vmem:[%s2461 + $0x80] sm:$0xff]
      %v2479 = vld [vmem:[%s2461 + $0x88] sm:$0xff]
      %v2480 = vld [vmem:[%s2461 + $0x90] sm:$0xff]
      %v2481 = vld [vmem:[%s2461 + $0x98] sm:$0xff]
      %v2482 = vld [vmem:[%s2461 + $0xa0] sm:$0xff]
      %v2483 = vld [vmem:[%s2461 + $0xa8] sm:$0xff]
      %v2484 = vld [vmem:[%s2461 + $0xb0] sm:$0xff]
      %v2485 = vld [vmem:[%s2461 + $0xb8] sm:$0xff]
      %v2486 = vld [vmem:[%s2461 + $0xc0] sm:$0xff]
      %v2487 = vld [vmem:[%s2461 + $0xc8] sm:$0xff]
      %v2488 = vld [vmem:[%s2461 + $0xd0] sm:$0xff]
      %v2489 = vld [vmem:[%s2461 + $0xd8] sm:$0xff]
      %v2490 = vld [vmem:[%s2461 + $0xe0] sm:$0xff]
      %v2491 = vld [vmem:[%s2461 + $0xe8] sm:$0xff]
      %v2492 = vld [vmem:[%s2461 + $0xf0] sm:$0xff]
      %v2493 = vld [vmem:[%s2461 + $0xf8] sm:$0xff]
      %v2494 = vld [vmem:[%s2461 + $0x100] sm:$0xff]
      %v2495 = vld [vmem:[%s2461 + $0x108] sm:$0xff]
      %v2496 = vld [vmem:[%s2461 + $0x110] sm:$0xff]
      %v2497 = vld [vmem:[%s2461 + $0x118] sm:$0xff]
      %v2498 = vpack.c.bf16 %v2463, %v2462
      %v2499 = vpack.c.bf16 %v2465, %v2464
      %v2500 = vpack.c.bf16 %v2467, %v2466
      %v2501 = vpack.c.bf16 %v2469, %v2468
      %v2502 = vpack.c.bf16 %v2471, %v2470
      %v2503 = vpack.c.bf16 %v2473, %v2472
      %v2504 = vpack.c.bf16 %v2475, %v2474
      %v2505 = vpack.c.bf16 %v2477, %v2476
      %v2506 = vpack.c.bf16 %v2479, %v2478
      %v2507 = vpack.c.bf16 %v2481, %v2480
      %v2508 = vpack.c.bf16 %v2483, %v2482
      %v2509 = vpack.c.bf16 %v2485, %v2484
      %v2510 = vpack.c.bf16 %v2487, %v2486
      %v2511 = vpack.c.bf16 %v2489, %v2488
      %v2512 = vpack.c.bf16 %v2491, %v2490
      %v2513 = vpack.c.bf16 %v2493, %v2492
      %v2514 = vpack.c.bf16 %v2495, %v2494
      %v2515 = vpack.c.bf16 %v2497, %v2496
      %s2516 = scalar_lea.vmem %s1, 448
      %v2517 = vld [vmem:[%s2516] sm:$0xf]
      %v2518 = vld [vmem:[%s2516 + $0x4] sm:$0xf]
      %v2519 = vld [vmem:[%s2516 + $0x8] sm:$0xf]
      %v2520 = vld [vmem:[%s2516 + $0xc] sm:$0xf]
      %v2521 = vld [vmem:[%s2516 + $0x10] sm:$0xf]
      %v2522 = vld [vmem:[%s2516 + $0x14] sm:$0xf]
      %v2523 = vld [vmem:[%s2516 + $0x18] sm:$0xf]
      %v2524 = vld [vmem:[%s2516 + $0x1c] sm:$0xf]
      %v2525 = vld [vmem:[%s2516 + $0x20] sm:$0xf]
      %v2526 = vld [vmem:[%s2516 + $0x24] sm:$0xf]
      %v2527 = vld [vmem:[%s2516 + $0x28] sm:$0xf]
      %v2528 = vld [vmem:[%s2516 + $0x2c] sm:$0xf]
      %v2529 = vld [vmem:[%s2516 + $0x30] sm:$0xf]
      %v2530 = vld [vmem:[%s2516 + $0x34] sm:$0xf]
      %v2531 = vld [vmem:[%s2516 + $0x38] sm:$0xf]
      %v2532 = vld [vmem:[%s2516 + $0x3c] sm:$0xf]
      %v2549 = vunpack.c.l.b16 %v2517
      %v2550 = vunpack.c.l.b16 %v2518
      %v2551 = vunpack.c.l.b16 %v2519
      %v2552 = vunpack.c.l.b16 %v2520
      %v2553 = vunpack.c.l.b16 %v2521
      %v2554 = vunpack.c.l.b16 %v2522
      %v2555 = vunpack.c.l.b16 %v2523
      %v2556 = vunpack.c.l.b16 %v2524
      %v2557 = vunpack.c.l.b16 %v2525
      %v2558 = vunpack.c.l.b16 %v2526
      %v2559 = vunpack.c.l.b16 %v2527
      %v2560 = vunpack.c.l.b16 %v2528
      %v2561 = vunpack.c.l.b16 %v2529
      %v2562 = vunpack.c.l.b16 %v2530
      %v2563 = vunpack.c.l.b16 %v2531
      %v2564 = vunpack.c.l.b16 %v2532
      %v2565 = vpack.c.b16 %v2550, %v2549
      %v2566 = vpack.c.b16 %v2552, %v2551
      %v2567 = vpack.c.b16 %v2554, %v2553
      %v2568 = vpack.c.b16 %v2556, %v2555
      %v2569 = vpack.c.b16 %v2558, %v2557
      %v2570 = vpack.c.b16 %v2560, %v2559
      %v2571 = vpack.c.b16 %v2562, %v2561
      %v2572 = vpack.c.b16 %v2564, %v2563
      %2581 = vmatprep.subr.bf16.mxu0 0
      %2582 = vmatpush1.bf16.msra.mxu0 %v2565
      %2583 = vmatprep.subr.bf16.mxu0 0
      %2584 = vmatpush1.bf16.msra.mxu0 %v2566
      %2585 = vmatprep.subr.bf16.mxu0 0
      %2586 = vmatpush1.bf16.msra.mxu0 %v2567
      %2587 = vmatprep.subr.bf16.mxu0 0
      %2588 = vmatpush1.bf16.msra.mxu0 %v2568
      %2589 = vmatprep.subr.bf16.mxu0 0
      %2590 = vmatpush1.bf16.msra.mxu0 %v2569
      %2591 = vmatprep.subr.bf16.mxu0 0
      %2592 = vmatpush1.bf16.msra.mxu0 %v2570
      %2593 = vmatprep.subr.bf16.mxu0 0
      %2594 = vmatpush1.bf16.msra.mxu0 %v2571
      %2595 = vmatprep.subr.bf16.mxu0 0
      %2596 = vmatpush1.bf16.msra.mxu0 %v2572
      %2597 = vmatprep.subr.bf16.mxu0 0
      %2598 = vmatpush1.bf16.msra.mxu0 0
      %2599 = vmatprep.subr.bf16.mxu0 0
      %2600 = vmatpush1.bf16.msra.mxu0 0
      %2601 = vmatprep.subr.bf16.mxu0 0
      %2602 = vmatpush1.bf16.msra.mxu0 0
      %2603 = vmatprep.subr.bf16.mxu0 0
      %2604 = vmatpush1.bf16.msra.mxu0 0
      %2605 = vmatprep.subr.bf16.mxu0 0
      %2606 = vmatpush1.bf16.msra.mxu0 0
      %2607 = vmatprep.subr.bf16.mxu0 0
      %2608 = vmatpush1.bf16.msra.mxu0 0
      %2609 = vmatprep.subr.bf16.mxu0 0
      %2610 = vmatpush1.bf16.msra.mxu0 0
      %2611 = vmatprep.subr.bf16.mxu0 0
      %2612 = vmatpush1.bf16.msra.mxu0 0
      %2613 = vmatprep.mubr.bf16.mxu0 0
      %2614 = vmatmul.mubr.bf16.gmra.mrb[0].mxu0 %v2498
      %v2615 = vpop.f32.mrb[0].mxu0
      %v2616 = vadd.f32 0.0, %v2615
      %v2617 = vpop.f32.mrb[0].mxu0
      %v2618 = vpop.f32.mrb[0].mxu0
      %v2619 = vadd.f32 0.0, %v2618
      %v2620 = vpop.f32.mrb[0].mxu0
      %2621 = vmatprep.mubr.bf16.mxu0 0
      %2622 = vmatmul.mubr.bf16.gmra.mrb[0].mxu0 %v2499
      %v2623 = vpop.f32.mrb[0].mxu0
      %v2624 = vadd.f32 0.0, %v2623
      %v2625 = vpop.f32.mrb[0].mxu0
      %v2626 = vpop.f32.mrb[0].mxu0
      %v2627 = vadd.f32 0.0, %v2626
      %v2628 = vpop.f32.mrb[0].mxu0
      %2629 = vmatprep.mubr.bf16.mxu0 0
      %2630 = vmatmul.mubr.bf16.gmra.mrb[0].mxu0 %v2500
      %v2631 = vpop.f32.mrb[0].mxu0
      %v2632 = vadd.f32 0.0, %v2631
      %v2633 = vpop.f32.mrb[0].mxu0
      %v2634 = vpop.f32.mrb[0].mxu0
      %v2635 = vadd.f32 0.0, %v2634
      %v2636 = vpop.f32.mrb[0].mxu0
      %2637 = vmatprep.mubr.bf16.mxu0 0
      %2638 = vmatmul.mubr.bf16.gmra.mrb[0].mxu0 %v2501
      %v2639 = vpop.f32.mrb[0].mxu0
      %v2640 = vadd.f32 0.0, %v2639
      %v2641 = vpop.f32.mrb[0].mxu0
      %v2642 = vpop.f32.mrb[0].mxu0
      %v2643 = vadd.f32 0.0, %v2642
      %v2644 = vpop.f32.mrb[0].mxu0
      %2645 = vmatprep.mubr.bf16.mxu0 0
      %2646 = vmatmul.mubr.bf16.gmra.mrb[0].mxu0 %v2502
      %v2647 = vpop.f32.mrb[0].mxu0
      %v2648 = vadd.f32 0.0, %v2647
      %v2649 = vpop.f32.mrb[0].mxu0
      %v2650 = vpop.f32.mrb[0].mxu0
      %v2651 = vadd.f32 0.0, %v2650
      %v2652 = vpop.f32.mrb[0].mxu0
      %2653 = vmatprep.mubr.bf16.mxu0 0
      %2654 = vmatmul.mubr.bf16.gmra.mrb[0].mxu0 %v2503
      %v2655 = vpop.f32.mrb[0].mxu0
      %v2656 = vadd.f32 0.0, %v2655
      %v2657 = vpop.f32.mrb[0].mxu0
      %v2658 = vpop.f32.mrb[0].mxu0
      %v2659 = vadd.f32 0.0, %v2658
      %v2660 = vpop.f32.mrb[0].mxu0
      %2661 = vmatprep.mubr.bf16.mxu0 0
      %2662 = vmatmul.mubr.bf16.gmra.mrb[0].mxu0 %v2504
      %v2663 = vpop.f32.mrb[0].mxu0
      %v2664 = vadd.f32 0.0, %v2663
      %v2665 = vpop.f32.mrb[0].mxu0
      %v2666 = vpop.f32.mrb[0].mxu0
      %v2667 = vadd.f32 0.0, %v2666
      %v2668 = vpop.f32.mrb[0].mxu0
      %2669 = vmatprep.mubr.bf16.mxu0 0
      %2670 = vmatmul.mubr.bf16.gmra.mrb[0].mxu0 %v2505
      %v2671 = vpop.f32.mrb[0].mxu0
      %v2672 = vadd.f32 0.0, %v2671
      %v2673 = vpop.f32.mrb[0].mxu0
      %v2674 = vpop.f32.mrb[0].mxu0
      %v2675 = vadd.f32 0.0, %v2674
      %v2676 = vpop.f32.mrb[0].mxu0
      %2677 = vmatprep.mubr.bf16.mxu0 0
      %2678 = vmatmul.mubr.bf16.gmra.mrb[0].mxu0 %v2506
      %v2679 = vpop.f32.mrb[0].mxu0
      %v2680 = vadd.f32 0.0, %v2679
      %v2681 = vpop.f32.mrb[0].mxu0
      %v2682 = vpop.f32.mrb[0].mxu0
      %v2683 = vadd.f32 0.0, %v2682
      %v2684 = vpop.f32.mrb[0].mxu0
      %2685 = vmatprep.mubr.bf16.mxu0 0
      %2686 = vmatmul.mubr.bf16.gmra.mrb[0].mxu0 %v2507
      %v2687 = vpop.f32.mrb[0].mxu0
      %v2688 = vadd.f32 0.0, %v2687
      %v2689 = vpop.f32.mrb[0].mxu0
      %v2690 = vpop.f32.mrb[0].mxu0
      %v2691 = vadd.f32 0.0, %v2690
      %v2692 = vpop.f32.mrb[0].mxu0
      %2693 = vmatprep.mubr.bf16.mxu0 0
      %2694 = vmatmul.mubr.bf16.gmra.mrb[0].mxu0 %v2508
      %v2695 = vpop.f32.mrb[0].mxu0
      %v2696 = vadd.f32 0.0, %v2695
      %v2697 = vpop.f32.mrb[0].mxu0
      %v2698 = vpop.f32.mrb[0].mxu0
      %v2699 = vadd.f32 0.0, %v2698
      %v2700 = vpop.f32.mrb[0].mxu0
      %2701 = vmatprep.mubr.bf16.mxu0 0
      %2702 = vmatmul.mubr.bf16.gmra.mrb[0].mxu0 %v2509
      %v2703 = vpop.f32.mrb[0].mxu0
      %v2704 = vadd.f32 0.0, %v2703
      %v2705 = vpop.f32.mrb[0].mxu0
      %v2706 = vpop.f32.mrb[0].mxu0
      %v2707 = vadd.f32 0.0, %v2706
      %v2708 = vpop.f32.mrb[0].mxu0
      %2709 = vmatprep.mubr.bf16.mxu0 0
      %2710 = vmatmul.mubr.bf16.gmra.mrb[0].mxu0 %v2510
      %v2711 = vpop.f32.mrb[0].mxu0
      %v2712 = vadd.f32 0.0, %v2711
      %v2713 = vpop.f32.mrb[0].mxu0
      %v2714 = vpop.f32.mrb[0].mxu0
      %v2715 = vadd.f32 0.0, %v2714
      %v2716 = vpop.f32.mrb[0].mxu0
      %2717 = vmatprep.mubr.bf16.mxu0 0
      %2718 = vmatmul.mubr.bf16.gmra.mrb[0].mxu0 %v2511
      %v2719 = vpop.f32.mrb[0].mxu0
      %v2720 = vadd.f32 0.0, %v2719
      %v2721 = vpop.f32.mrb[0].mxu0
      %v2722 = vpop.f32.mrb[0].mxu0
      %v2723 = vadd.f32 0.0, %v2722
      %v2724 = vpop.f32.mrb[0].mxu0
      %2725 = vmatprep.mubr.bf16.mxu0 0
      %2726 = vmatmul.mubr.bf16.gmra.mrb[0].mxu0 %v2512
      %v2727 = vpop.f32.mrb[0].mxu0
      %v2728 = vadd.f32 0.0, %v2727
      %v2729 = vpop.f32.mrb[0].mxu0
      %v2730 = vpop.f32.mrb[0].mxu0
      %v2731 = vadd.f32 0.0, %v2730
      %v2732 = vpop.f32.mrb[0].mxu0
      %2733 = vmatprep.mubr.bf16.mxu0 0
      %2734 = vmatmul.mubr.bf16.gmra.mrb[0].mxu0 %v2513
      %v2735 = vpop.f32.mrb[0].mxu0
      %v2736 = vadd.f32 0.0, %v2735
      %v2737 = vpop.f32.mrb[0].mxu0
      %v2738 = vpop.f32.mrb[0].mxu0
      %v2739 = vadd.f32 0.0, %v2738
      %v2740 = vpop.f32.mrb[0].mxu0
      %2741 = vmatprep.mubr.bf16.mxu0 0
      %2742 = vmatmul.mubr.bf16.gmra.mrb[0].mxu0 %v2514
      %v2743 = vpop.f32.mrb[0].mxu0
      %v2744 = vadd.f32 0.0, %v2743
      %v2745 = vpop.f32.mrb[0].mxu0
      %v2746 = vpop.f32.mrb[0].mxu0
      %v2747 = vadd.f32 0.0, %v2746
      %v2748 = vpop.f32.mrb[0].mxu0
      %2749 = vmatprep.mubr.bf16.mxu0 0
      %2750 = vmatmul.mubr.bf16.gmra.mrb[0].mxu0 %v2515
      %v2751 = vpop.f32.mrb[0].mxu0
      %v2752 = vadd.f32 0.0, %v2751
      %v2753 = vpop.f32.mrb[0].mxu0
      %v2754 = vpop.f32.mrb[0].mxu0
      %v2755 = vadd.f32 0.0, %v2754
      %v2756 = vpop.f32.mrb[0].mxu0
      %2757 = vdwg.mxu0
      %v2758 = vadd.f32 %v2424, %v2616
      %v2759 = vadd.f32 %v2425, %v2619
      %v2760 = vadd.f32 %v2426, %v2624
      %v2761 = vadd.f32 %v2427, %v2627
      %v2762 = vadd.f32 %v2428, %v2632
      %v2763 = vadd.f32 %v2429, %v2635
      %v2764 = vadd.f32 %v2430, %v2640
      %v2765 = vadd.f32 %v2431, %v2643
      %v2766 = vadd.f32 %v2432, %v2648
      %v2767 = vadd.f32 %v2433, %v2651
      %v2768 = vadd.f32 %v2434, %v2656
      %v2769 = vadd.f32 %v2435, %v2659
      %v2770 = vadd.f32 %v2436, %v2664
      %v2771 = vadd.f32 %v2437, %v2667
      %v2772 = vadd.f32 %v2438, %v2672
      %v2773 = vadd.f32 %v2439, %v2675
      %v2774 = vadd.f32 %v2440, %v2680
      %v2775 = vadd.f32 %v2441, %v2683
      %v2776 = vadd.f32 %v2442, %v2688
      %v2777 = vadd.f32 %v2443, %v2691
      %v2778 = vadd.f32 %v2444, %v2696
      %v2779 = vadd.f32 %v2445, %v2699
      %v2780 = vadd.f32 %v2446, %v2704
      %v2781 = vadd.f32 %v2447, %v2707
      %v2782 = vadd.f32 %v2448, %v2712
      %v2783 = vadd.f32 %v2449, %v2715
      %v2784 = vadd.f32 %v2450, %v2720
      %v2785 = vadd.f32 %v2451, %v2723
      %v2786 = vadd.f32 %v2452, %v2728
      %v2787 = vadd.f32 %v2453, %v2731
      %v2788 = vadd.f32 %v2454, %v2736
      %v2789 = vadd.f32 %v2455, %v2739
      %v2790 = vadd.f32 %v2456, %v2744
      %v2791 = vadd.f32 %v2457, %v2747
      %v2792 = vadd.f32 %v2458, %v2752
      %v2793 = vadd.f32 %v2459, %v2755
      %s2794 = sadd.s32 %s195, 38
      %s2795 = scalar_lea.vmem %s183, %s2794
      %v2796 = vld [vmem:[%s2795] sm:$0xff]
      %v2797 = vld [vmem:[%s2795 + $0x8] sm:$0xff]
      %v2798 = vld [vmem:[%s2795 + $0x10] sm:$0xff]
      %v2799 = vld [vmem:[%s2795 + $0x18] sm:$0xff]
      %v2800 = vld [vmem:[%s2795 + $0x20] sm:$0xff]
      %v2801 = vld [vmem:[%s2795 + $0x28] sm:$0xff]
      %v2802 = vld [vmem:[%s2795 + $0x30] sm:$0xff]
      %v2803 = vld [vmem:[%s2795 + $0x38] sm:$0xff]
      %v2804 = vld [vmem:[%s2795 + $0x40] sm:$0xff]
      %v2805 = vld [vmem:[%s2795 + $0x48] sm:$0xff]
      %v2806 = vld [vmem:[%s2795 + $0x50] sm:$0xff]
      %v2807 = vld [vmem:[%s2795 + $0x58] sm:$0xff]
      %v2808 = vld [vmem:[%s2795 + $0x60] sm:$0xff]
      %v2809 = vld [vmem:[%s2795 + $0x68] sm:$0xff]
      %v2810 = vld [vmem:[%s2795 + $0x70] sm:$0xff]
      %v2811 = vld [vmem:[%s2795 + $0x78] sm:$0xff]
      %v2812 = vld [vmem:[%s2795 + $0x80] sm:$0xff]
      %v2813 = vld [vmem:[%s2795 + $0x88] sm:$0xff]
      %v2814 = vld [vmem:[%s2795 + $0x90] sm:$0xff]
      %v2815 = vld [vmem:[%s2795 + $0x98] sm:$0xff]
      %v2816 = vld [vmem:[%s2795 + $0xa0] sm:$0xff]
      %v2817 = vld [vmem:[%s2795 + $0xa8] sm:$0xff]
      %v2818 = vld [vmem:[%s2795 + $0xb0] sm:$0xff]
      %v2819 = vld [vmem:[%s2795 + $0xb8] sm:$0xff]
      %v2820 = vld [vmem:[%s2795 + $0xc0] sm:$0xff]
      %v2821 = vld [vmem:[%s2795 + $0xc8] sm:$0xff]
      %v2822 = vld [vmem:[%s2795 + $0xd0] sm:$0xff]
      %v2823 = vld [vmem:[%s2795 + $0xd8] sm:$0xff]
      %v2824 = vld [vmem:[%s2795 + $0xe0] sm:$0xff]
      %v2825 = vld [vmem:[%s2795 + $0xe8] sm:$0xff]
      %v2826 = vld [vmem:[%s2795 + $0xf0] sm:$0xff]
      %v2827 = vld [vmem:[%s2795 + $0xf8] sm:$0xff]
      %v2828 = vld [vmem:[%s2795 + $0x100] sm:$0xff]
      %v2829 = vld [vmem:[%s2795 + $0x108] sm:$0xff]
      %v2830 = vld [vmem:[%s2795 + $0x110] sm:$0xff]
      %v2831 = vld [vmem:[%s2795 + $0x118] sm:$0xff]
      %v2832 = vpack.c.bf16 %v2797, %v2796
      %v2833 = vpack.c.bf16 %v2799, %v2798
      %v2834 = vpack.c.bf16 %v2801, %v2800
      %v2835 = vpack.c.bf16 %v2803, %v2802
      %v2836 = vpack.c.bf16 %v2805, %v2804
      %v2837 = vpack.c.bf16 %v2807, %v2806
      %v2838 = vpack.c.bf16 %v2809, %v2808
      %v2839 = vpack.c.bf16 %v2811, %v2810
      %v2840 = vpack.c.bf16 %v2813, %v2812
      %v2841 = vpack.c.bf16 %v2815, %v2814
      %v2842 = vpack.c.bf16 %v2817, %v2816
      %v2843 = vpack.c.bf16 %v2819, %v2818
      %v2844 = vpack.c.bf16 %v2821, %v2820
      %v2845 = vpack.c.bf16 %v2823, %v2822
      %v2846 = vpack.c.bf16 %v2825, %v2824
      %v2847 = vpack.c.bf16 %v2827, %v2826
      %v2848 = vpack.c.bf16 %v2829, %v2828
      %v2849 = vpack.c.bf16 %v2831, %v2830
      %s2850 = scalar_lea.vmem %s1, 512
      %v2851 = vld [vmem:[%s2850] sm:$0xf]
      %v2852 = vld [vmem:[%s2850 + $0x4] sm:$0xf]
      %v2853 = vld [vmem:[%s2850 + $0x8] sm:$0xf]
      %v2854 = vld [vmem:[%s2850 + $0xc] sm:$0xf]
      %v2855 = vld [vmem:[%s2850 + $0x10] sm:$0xf]
      %v2856 = vld [vmem:[%s2850 + $0x14] sm:$0xf]
      %v2857 = vld [vmem:[%s2850 + $0x18] sm:$0xf]
      %v2858 = vld [vmem:[%s2850 + $0x1c] sm:$0xf]
      %v2859 = vld [vmem:[%s2850 + $0x20] sm:$0xf]
      %v2860 = vld [vmem:[%s2850 + $0x24] sm:$0xf]
      %v2861 = vld [vmem:[%s2850 + $0x28] sm:$0xf]
      %v2862 = vld [vmem:[%s2850 + $0x2c] sm:$0xf]
      %v2863 = vld [vmem:[%s2850 + $0x30] sm:$0xf]
      %v2864 = vld [vmem:[%s2850 + $0x34] sm:$0xf]
      %v2865 = vld [vmem:[%s2850 + $0x38] sm:$0xf]
      %v2866 = vld [vmem:[%s2850 + $0x3c] sm:$0xf]
      %v2883 = vunpack.c.l.b16 %v2851
      %v2884 = vunpack.c.l.b16 %v2852
      %v2885 = vunpack.c.l.b16 %v2853
      %v2886 = vunpack.c.l.b16 %v2854
      %v2887 = vunpack.c.l.b16 %v2855
      %v2888 = vunpack.c.l.b16 %v2856
      %v2889 = vunpack.c.l.b16 %v2857
      %v2890 = vunpack.c.l.b16 %v2858
      %v2891 = vunpack.c.l.b16 %v2859
      %v2892 = vunpack.c.l.b16 %v2860
      %v2893 = vunpack.c.l.b16 %v2861
      %v2894 = vunpack.c.l.b16 %v2862
      %v2895 = vunpack.c.l.b16 %v2863
      %v2896 = vunpack.c.l.b16 %v2864
      %v2897 = vunpack.c.l.b16 %v2865
      %v2898 = vunpack.c.l.b16 %v2866
      %v2899 = vpack.c.b16 %v2884, %v2883
      %v2900 = vpack.c.b16 %v2886, %v2885
      %v2901 = vpack.c.b16 %v2888, %v2887
      %v2902 = vpack.c.b16 %v2890, %v2889
      %v2903 = vpack.c.b16 %v2892, %v2891
      %v2904 = vpack.c.b16 %v2894, %v2893
      %v2905 = vpack.c.b16 %v2896, %v2895
      %v2906 = vpack.c.b16 %v2898, %v2897
      %2915 = vmatprep.subr.bf16.mxu0 0
      %2916 = vmatpush1.bf16.msra.mxu0 %v2899
      %2917 = vmatprep.subr.bf16.mxu0 0
      %2918 = vmatpush1.bf16.msra.mxu0 %v2900
      %2919 = vmatprep.subr.bf16.mxu0 0
      %2920 = vmatpush1.bf16.msra.mxu0 %v2901
      %2921 = vmatprep.subr.bf16.mxu0 0
      %2922 = vmatpush1.bf16.msra.mxu0 %v2902
      %2923 = vmatprep.subr.bf16.mxu0 0
      %2924 = vmatpush1.bf16.msra.mxu0 %v2903
      %2925 = vmatprep.subr.bf16.mxu0 0
      %2926 = vmatpush1.bf16.msra.mxu0 %v2904
      %2927 = vmatprep.subr.bf16.mxu0 0
      %2928 = vmatpush1.bf16.msra.mxu0 %v2905
      %2929 = vmatprep.subr.bf16.mxu0 0
      %2930 = vmatpush1.bf16.msra.mxu0 %v2906
      %2931 = vmatprep.subr.bf16.mxu0 0
      %2932 = vmatpush1.bf16.msra.mxu0 0
      %2933 = vmatprep.subr.bf16.mxu0 0
      %2934 = vmatpush1.bf16.msra.mxu0 0
      %2935 = vmatprep.subr.bf16.mxu0 0
      %2936 = vmatpush1.bf16.msra.mxu0 0
      %2937 = vmatprep.subr.bf16.mxu0 0
      %2938 = vmatpush1.bf16.msra.mxu0 0
      %2939 = vmatprep.subr.bf16.mxu0 0
      %2940 = vmatpush1.bf16.msra.mxu0 0
      %2941 = vmatprep.subr.bf16.mxu0 0
      %2942 = vmatpush1.bf16.msra.mxu0 0
      %2943 = vmatprep.subr.bf16.mxu0 0
      %2944 = vmatpush1.bf16.msra.mxu0 0
      %2945 = vmatprep.subr.bf16.mxu0 0
      %2946 = vmatpush1.bf16.msra.mxu0 0
      %2947 = vmatprep.mubr.bf16.mxu0 0
      %2948 = vmatmul.mubr.bf16.gmra.mrb[0].mxu0 %v2832
      %v2949 = vpop.f32.mrb[0].mxu0
      %v2950 = vadd.f32 0.0, %v2949
      %v2951 = vpop.f32.mrb[0].mxu0
      %v2952 = vpop.f32.mrb[0].mxu0
      %v2953 = vadd.f32 0.0, %v2952
      %v2954 = vpop.f32.mrb[0].mxu0
      %2955 = vmatprep.mubr.bf16.mxu0 0
      %2956 = vmatmul.mubr.bf16.gmra.mrb[0].mxu0 %v2833
      %v2957 = vpop.f32.mrb[0].mxu0
      %v2958 = vadd.f32 0.0, %v2957
      %v2959 = vpop.f32.mrb[0].mxu0
      %v2960 = vpop.f32.mrb[0].mxu0
      %v2961 = vadd.f32 0.0, %v2960
      %v2962 = vpop.f32.mrb[0].mxu0
      %2963 = vmatprep.mubr.bf16.mxu0 0
      %2964 = vmatmul.mubr.bf16.gmra.mrb[0].mxu0 %v2834
      %v2965 = vpop.f32.mrb[0].mxu0
      %v2966 = vadd.f32 0.0, %v2965
      %v2967 = vpop.f32.mrb[0].mxu0
      %v2968 = vpop.f32.mrb[0].mxu0
      %v2969 = vadd.f32 0.0, %v2968
      %v2970 = vpop.f32.mrb[0].mxu0
      %2971 = vmatprep.mubr.bf16.mxu0 0
      %2972 = vmatmul.mubr.bf16.gmra.mrb[0].mxu0 %v2835
      %v2973 = vpop.f32.mrb[0].mxu0
      %v2974 = vadd.f32 0.0, %v2973
      %v2975 = vpop.f32.mrb[0].mxu0
      %v2976 = vpop.f32.mrb[0].mxu0
      %v2977 = vadd.f32 0.0, %v2976
      %v2978 = vpop.f32.mrb[0].mxu0
      %2979 = vmatprep.mubr.bf16.mxu0 0
      %2980 = vmatmul.mubr.bf16.gmra.mrb[0].mxu0 %v2836
      %v2981 = vpop.f32.mrb[0].mxu0
      %v2982 = vadd.f32 0.0, %v2981
      %v2983 = vpop.f32.mrb[0].mxu0
      %v2984 = vpop.f32.mrb[0].mxu0
      %v2985 = vadd.f32 0.0, %v2984
      %v2986 = vpop.f32.mrb[0].mxu0
      %2987 = vmatprep.mubr.bf16.mxu0 0
      %2988 = vmatmul.mubr.bf16.gmra.mrb[0].mxu0 %v2837
      %v2989 = vpop.f32.mrb[0].mxu0
      %v2990 = vadd.f32 0.0, %v2989
      %v2991 = vpop.f32.mrb[0].mxu0
      %v2992 = vpop.f32.mrb[0].mxu0
      %v2993 = vadd.f32 0.0, %v2992
      %v2994 = vpop.f32.mrb[0].mxu0
      %2995 = vmatprep.mubr.bf16.mxu0 0
      %2996 = vmatmul.mubr.bf16.gmra.mrb[0].mxu0 %v2838
      %v2997 = vpop.f32.mrb[0].mxu0
      %v2998 = vadd.f32 0.0, %v2997
      %v2999 = vpop.f32.mrb[0].mxu0
      %v3000 = vpop.f32.mrb[0].mxu0
      %v3001 = vadd.f32 0.0, %v3000
      %v3002 = vpop.f32.mrb[0].mxu0
      %3003 = vmatprep.mubr.bf16.mxu0 0
      %3004 = vmatmul.mubr.bf16.gmra.mrb[0].mxu0 %v2839
      %v3005 = vpop.f32.mrb[0].mxu0
      %v3006 = vadd.f32 0.0, %v3005
      %v3007 = vpop.f32.mrb[0].mxu0
      %v3008 = vpop.f32.mrb[0].mxu0
      %v3009 = vadd.f32 0.0, %v3008
      %v3010 = vpop.f32.mrb[0].mxu0
      %3011 = vmatprep.mubr.bf16.mxu0 0
      %3012 = vmatmul.mubr.bf16.gmra.mrb[0].mxu0 %v2840
      %v3013 = vpop.f32.mrb[0].mxu0
      %v3014 = vadd.f32 0.0, %v3013
      %v3015 = vpop.f32.mrb[0].mxu0
      %v3016 = vpop.f32.mrb[0].mxu0
      %v3017 = vadd.f32 0.0, %v3016
      %v3018 = vpop.f32.mrb[0].mxu0
      %3019 = vmatprep.mubr.bf16.mxu0 0
      %3020 = vmatmul.mubr.bf16.gmra.mrb[0].mxu0 %v2841
      %v3021 = vpop.f32.mrb[0].mxu0
      %v3022 = vadd.f32 0.0, %v3021
      %v3023 = vpop.f32.mrb[0].mxu0
      %v3024 = vpop.f32.mrb[0].mxu0
      %v3025 = vadd.f32 0.0, %v3024
      %v3026 = vpop.f32.mrb[0].mxu0
      %3027 = vmatprep.mubr.bf16.mxu0 0
      %3028 = vmatmul.mubr.bf16.gmra.mrb[0].mxu0 %v2842
      %v3029 = vpop.f32.mrb[0].mxu0
      %v3030 = vadd.f32 0.0, %v3029
      %v3031 = vpop.f32.mrb[0].mxu0
      %v3032 = vpop.f32.mrb[0].mxu0
      %v3033 = vadd.f32 0.0, %v3032
      %v3034 = vpop.f32.mrb[0].mxu0
      %3035 = vmatprep.mubr.bf16.mxu0 0
      %3036 = vmatmul.mubr.bf16.gmra.mrb[0].mxu0 %v2843
      %v3037 = vpop.f32.mrb[0].mxu0
      %v3038 = vadd.f32 0.0, %v3037
      %v3039 = vpop.f32.mrb[0].mxu0
      %v3040 = vpop.f32.mrb[0].mxu0
      %v3041 = vadd.f32 0.0, %v3040
      %v3042 = vpop.f32.mrb[0].mxu0
      %3043 = vmatprep.mubr.bf16.mxu0 0
      %3044 = vmatmul.mubr.bf16.gmra.mrb[0].mxu0 %v2844
      %v3045 = vpop.f32.mrb[0].mxu0
      %v3046 = vadd.f32 0.0, %v3045
      %v3047 = vpop.f32.mrb[0].mxu0
      %v3048 = vpop.f32.mrb[0].mxu0
      %v3049 = vadd.f32 0.0, %v3048
      %v3050 = vpop.f32.mrb[0].mxu0
      %3051 = vmatprep.mubr.bf16.mxu0 0
      %3052 = vmatmul.mubr.bf16.gmra.mrb[0].mxu0 %v2845
      %v3053 = vpop.f32.mrb[0].mxu0
      %v3054 = vadd.f32 0.0, %v3053
      %v3055 = vpop.f32.mrb[0].mxu0
      %v3056 = vpop.f32.mrb[0].mxu0
      %v3057 = vadd.f32 0.0, %v3056
      %v3058 = vpop.f32.mrb[0].mxu0
      %3059 = vmatprep.mubr.bf16.mxu0 0
      %3060 = vmatmul.mubr.bf16.gmra.mrb[0].mxu0 %v2846
      %v3061 = vpop.f32.mrb[0].mxu0
      %v3062 = vadd.f32 0.0, %v3061
      %v3063 = vpop.f32.mrb[0].mxu0
      %v3064 = vpop.f32.mrb[0].mxu0
      %v3065 = vadd.f32 0.0, %v3064
      %v3066 = vpop.f32.mrb[0].mxu0
      %3067 = vmatprep.mubr.bf16.mxu0 0
      %3068 = vmatmul.mubr.bf16.gmra.mrb[0].mxu0 %v2847
      %v3069 = vpop.f32.mrb[0].mxu0
      %v3070 = vadd.f32 0.0, %v3069
      %v3071 = vpop.f32.mrb[0].mxu0
      %v3072 = vpop.f32.mrb[0].mxu0
      %v3073 = vadd.f32 0.0, %v3072
      %v3074 = vpop.f32.mrb[0].mxu0
      %3075 = vmatprep.mubr.bf16.mxu0 0
      %3076 = vmatmul.mubr.bf16.gmra.mrb[0].mxu0 %v2848
      %v3077 = vpop.f32.mrb[0].mxu0
      %v3078 = vadd.f32 0.0, %v3077
      %v3079 = vpop.f32.mrb[0].mxu0
      %v3080 = vpop.f32.mrb[0].mxu0
      %v3081 = vadd.f32 0.0, %v3080
      %v3082 = vpop.f32.mrb[0].mxu0
      %3083 = vmatprep.mubr.bf16.mxu0 0
      %3084 = vmatmul.mubr.bf16.gmra.mrb[0].mxu0 %v2849
      %v3085 = vpop.f32.mrb[0].mxu0
      %v3086 = vadd.f32 0.0, %v3085
      %v3087 = vpop.f32.mrb[0].mxu0
      %v3088 = vpop.f32.mrb[0].mxu0
      %v3089 = vadd.f32 0.0, %v3088
      %v3090 = vpop.f32.mrb[0].mxu0
      %3091 = vdwg.mxu0
      %v3092 = vadd.f32 %v2758, %v2950
      %v3093 = vadd.f32 %v2759, %v2953
      %v3094 = vadd.f32 %v2760, %v2958
      %v3095 = vadd.f32 %v2761, %v2961
      %v3096 = vadd.f32 %v2762, %v2966
      %v3097 = vadd.f32 %v2763, %v2969
      %v3098 = vadd.f32 %v2764, %v2974
      %v3099 = vadd.f32 %v2765, %v2977
      %v3100 = vadd.f32 %v2766, %v2982
      %v3101 = vadd.f32 %v2767, %v2985
      %v3102 = vadd.f32 %v2768, %v2990
      %v3103 = vadd.f32 %v2769, %v2993
      %v3104 = vadd.f32 %v2770, %v2998
      %v3105 = vadd.f32 %v2771, %v3001
      %v3106 = vadd.f32 %v2772, %v3006
      %v3107 = vadd.f32 %v2773, %v3009
      %v3108 = vadd.f32 %v2774, %v3014
      %v3109 = vadd.f32 %v2775, %v3017
      %v3110 = vadd.f32 %v2776, %v3022
      %v3111 = vadd.f32 %v2777, %v3025
      %v3112 = vadd.f32 %v2778, %v3030
      %v3113 = vadd.f32 %v2779, %v3033
      %v3114 = vadd.f32 %v2780, %v3038
      %v3115 = vadd.f32 %v2781, %v3041
      %v3116 = vadd.f32 %v2782, %v3046
      %v3117 = vadd.f32 %v2783, %v3049
      %v3118 = vadd.f32 %v2784, %v3054
      %v3119 = vadd.f32 %v2785, %v3057
      %v3120 = vadd.f32 %v2786, %v3062
      %v3121 = vadd.f32 %v2787, %v3065
      %v3122 = vadd.f32 %v2788, %v3070
      %v3123 = vadd.f32 %v2789, %v3073
      %v3124 = vadd.f32 %v2790, %v3078
      %v3125 = vadd.f32 %v2791, %v3081
      %v3126 = vadd.f32 %v2792, %v3086
      %v3127 = vadd.f32 %v2793, %v3089
      %v3128 = vld [vmem:[%s2] sm:$0x1]
      %v3130 = vlaneseq
      %v3131 = vshrl.u32 %v3130, 7
      %v3132 = vsub.s32 0, %v3131
      %v3133 = vrot.slane %v3128, %v3132
      %v3135 = vadd.f32 %v3092, %v3133
      %v3136 = vadd.f32 %v3093, %v3133
      %v3137 = vadd.f32 %v3094, %v3133
      %v3138 = vadd.f32 %v3095, %v3133
      %v3139 = vadd.f32 %v3096, %v3133
      %v3140 = vadd.f32 %v3097, %v3133
      %v3141 = vadd.f32 %v3098, %v3133
      %v3142 = vadd.f32 %v3099, %v3133
      %v3143 = vadd.f32 %v3100, %v3133
      %v3144 = vadd.f32 %v3101, %v3133
      %v3145 = vadd.f32 %v3102, %v3133
      %v3146 = vadd.f32 %v3103, %v3133
      %v3147 = vadd.f32 %v3104, %v3133
      %v3148 = vadd.f32 %v3105, %v3133
      %v3149 = vadd.f32 %v3106, %v3133
      %v3150 = vadd.f32 %v3107, %v3133
      %v3151 = vadd.f32 %v3108, %v3133
      %v3152 = vadd.f32 %v3109, %v3133
      %v3153 = vadd.f32 %v3110, %v3133
      %v3154 = vadd.f32 %v3111, %v3133
      %v3155 = vadd.f32 %v3112, %v3133
      %v3156 = vadd.f32 %v3113, %v3133
      %v3157 = vadd.f32 %v3114, %v3133
      %v3158 = vadd.f32 %v3115, %v3133
      %v3159 = vadd.f32 %v3116, %v3133
      %v3160 = vadd.f32 %v3117, %v3133
      %v3161 = vadd.f32 %v3118, %v3133
      %v3162 = vadd.f32 %v3119, %v3133
      %v3163 = vadd.f32 %v3120, %v3133
      %v3164 = vadd.f32 %v3121, %v3133
      %v3165 = vadd.f32 %v3122, %v3133
      %v3166 = vadd.f32 %v3123, %v3133
      %v3167 = vadd.f32 %v3124, %v3133
      %v3168 = vadd.f32 %v3125, %v3133
      %v3169 = vadd.f32 %v3126, %v3133
      %v3170 = vadd.f32 %v3127, %v3133
      %3171 = vst [vmem:[%s192] sm:$0xff] %v3135
      %3172 = vst [vmem:[%s192 + $0x8] sm:$0xff] %v3136
      %3173 = vst [vmem:[%s192 + $0x10] sm:$0xff] %v3137
      %3174 = vst [vmem:[%s192 + $0x18] sm:$0xff] %v3138
      %3175 = vst [vmem:[%s192 + $0x20] sm:$0xff] %v3139
      %3176 = vst [vmem:[%s192 + $0x28] sm:$0xff] %v3140
      %3177 = vst [vmem:[%s192 + $0x30] sm:$0xff] %v3141
      %3178 = vst [vmem:[%s192 + $0x38] sm:$0xff] %v3142
      %3179 = vst [vmem:[%s192 + $0x40] sm:$0xff] %v3143
      %3180 = vst [vmem:[%s192 + $0x48] sm:$0xff] %v3144
      %3181 = vst [vmem:[%s192 + $0x50] sm:$0xff] %v3145
      %3182 = vst [vmem:[%s192 + $0x58] sm:$0xff] %v3146
      %3183 = vst [vmem:[%s192 + $0x60] sm:$0xff] %v3147
      %3184 = vst [vmem:[%s192 + $0x68] sm:$0xff] %v3148
      %3185 = vst [vmem:[%s192 + $0x70] sm:$0xff] %v3149
      %3186 = vst [vmem:[%s192 + $0x78] sm:$0xff] %v3150
      %3187 = vst [vmem:[%s192 + $0x80] sm:$0xff] %v3151
      %3188 = vst [vmem:[%s192 + $0x88] sm:$0xff] %v3152
      %3189 = vst [vmem:[%s192 + $0x90] sm:$0xff] %v3153
      %3190 = vst [vmem:[%s192 + $0x98] sm:$0xff] %v3154
      %3191 = vst [vmem:[%s192 + $0xa0] sm:$0xff] %v3155
      %3192 = vst [vmem:[%s192 + $0xa8] sm:$0xff] %v3156
      %3193 = vst [vmem:[%s192 + $0xb0] sm:$0xff] %v3157
      %3194 = vst [vmem:[%s192 + $0xb8] sm:$0xff] %v3158
      %3195 = vst [vmem:[%s192 + $0xc0] sm:$0xff] %v3159
      %3196 = vst [vmem:[%s192 + $0xc8] sm:$0xff] %v3160
      %3197 = vst [vmem:[%s192 + $0xd0] sm:$0xff] %v3161
      %3198 = vst [vmem:[%s192 + $0xd8] sm:$0xff] %v3162
      %3199 = vst [vmem:[%s192 + $0xe0] sm:$0xff] %v3163
      %3200 = vst [vmem:[%s192 + $0xe8] sm:$0xff] %v3164
      %3201 = vst [vmem:[%s192 + $0xf0] sm:$0xff] %v3165
      %3202 = vst [vmem:[%s192 + $0xf8] sm:$0xff] %v3166
      %3203 = vst [vmem:[%s192 + $0x100] sm:$0xff] %v3167
      %3204 = vst [vmem:[%s192 + $0x108] sm:$0xff] %v3168
      %3205 = vst [vmem:[%s192 + $0x110] sm:$0xff] %v3169
      %3206 = vst [vmem:[%s192 + $0x118] sm:$0xff] %v3170
      %s3207 = smul.u32 36, %s19
      %p3208 = scmp.lt.s32.totalorder %s18, 1
      %s3209 = scalar_select %p3208, %s18, 1
      %p3210 = scmp.lt.s32.totalorder %s3207, 35
      %s3211 = scalar_select %p3210, %s3207, 35
      %s3212 = smul.addr %s3209, 36
      %s3213 = sadd.s32 %s3211, %s3212
      %s3214 = smul.addr %s3213, 8
      %s3215 = scalar_lea.vmem %s3, %s3214
      // Predicated region
      $region33: #{fpn_forward.15} parent=31 // pred_check
        %p3216 = pneg %p114
      $region34: #{fpn_forward.15} parent=31 // pred_check_branch
        %3218 = sbr.rel (%p3216) target = $region36
      $region35: #{fpn_forward.15} parent=31 // pred_region
        %s3219 = smul.u32 36, %s19
      $region36: #{fpn_forward.15} parent=31 // pred_fallthru
        _
    $region32: #{fpn_forward.15} parent=5 // pred_fallthru
      _
    %p3220 = scmp.le.s32.totalorder 2, %s9
    // Predicated region
    $region37: #{fpn_forward.15} parent=5 // pred_check
      %p3221 = pneg %p3220
    $region38: #{fpn_forward.15} parent=5 // pred_check_branch
      %3223 = sbr.rel (%p3221) target = $region40
    $region39: #{fpn_forward.15} parent=5 // pred_region
      %s3224 = ssub.s32 %s9, 2
      // Predicated region
      $region41: #{fpn_forward.15} parent=39 // pred_check
        %p3225 = pneg %p120
      $region42: #{fpn_forward.15} parent=39 // pred_check_branch
        %3227 = sbr.rel (%p3225) target = $region44
      $region43: #{fpn_forward.15} parent=39 // pred_region
        %s3228 = smul.u32 36, %s21
        %p3229 = scmp.lt.s32.totalorder %s20, 1
        %s3230 = scalar_select %p3229, %s20, 1
        %p3231 = scmp.lt.s32.totalorder %s3228, 35
        %s3232 = scalar_select %p3231, %s3228, 35
        %s3233 = smul.addr %s3230, 36
        %s3234 = sadd.s32 %s3232, %s3233
        %s3235 = smul.addr %s3234, 8
        %s3236 = scalar_lea.vmem %s3, %s3235
      $region44: #{fpn_forward.15} parent=39 // pred_fallthru
        _
    $region40: #{fpn_forward.15} parent=5 // pred_fallthru
      _
  $region6: #{fpn_forward.15} parent=0 // loop_footer
    %s13 = sadd.s32 1, %s9
  $region7: #{fpn_forward.15} parent=0 // loop_footer_branch
    %8 = sbr.rel target = $region3
  $region8: #{fpn_forward.15} parent=0 // loop_exit
    _

// kernel: fpn_forward.14
$region0: #{fpn_forward.14}
  #allocation0 [shape = 'u32[]', space=smem, size = 0x4, offset = 0x4, fixed_abs, tag = 'smem constant byte address 0x4 - core index']
  #allocation1 [shape = 'u32[144,128]{1,0:T(1,128)}', space=vmem, size = 0x12000, scoped, tag = 'internal scratch']
  %s0 = inlined_call_operand.vmem [shape: f32[2,104,128], index: 0, kind: input, shape index: {}]
  %s1 = inlined_call_operand.vmem [shape: bf16[9,128,128], index: 1, kind: input, shape index: {}]
  %s2 = inlined_call_operand.vmem [shape: f32[1,128], index: 2, kind: input, shape index: {}]
  %s3 = inlined_call_operand.vmem [shape: f32[2,80,128], index: 3, kind: output, shape index: {}]
  %s4 = sld [smem:[#allocation0]]
  $region45: #{fpn_forward.14} parent=0
    _
  %s6 = ssub.s32 1, %s4
  %s7 = scalar_select 0, %s6, %s4
  loop: start=0, step=1, limit=4
  $region2: #{fpn_forward.14} parent=0 // loop_pre_header
    _
  $region3: #{fpn_forward.14} parent=0 // loop_header
    %s9 = sphi 0, %s13
    %p10 = scmp.ge.s32.totalorder %s9, 4
    %s16 = sphi 0, %s28
    %s17 = sphi 0, %s24
    %s18 = sphi 0, %s16
    %s19 = sphi 0, %s17
    %s20 = sphi 0, %s18
    %s21 = sphi 0, %s19
    %s31 = sphi 0, %s33
    %s34 = sphi 0, %s31
    %s35 = sphi 0, %s34
    %s51 = sphi 0, %s35
    %s55 = sphi 0, %s55
    %s57 = sphi 0, %s55
    %s58 = sphi 0, %s57
    %s72 = sphi 0, %s58
    %s76 = sphi 0, %s76
    %s78 = sphi 0, %s76
    %s79 = sphi 0, %s78
    %s93 = sphi 0, %s79
    %s101 = sphi 0, %s103
    %s104 = sphi 0, %s101
    %s105 = sphi 0, %s104
    %s121 = sphi 0, %s105
  $region4: #{fpn_forward.14} parent=0 // loop_header_branch
    %12 = sbr.rel (%p10) target = $region8
  $region5: #{fpn_forward.14} parent=0 // loop_body
    %s14 = ssub.s32 %s9, 1
    %s15 = ssub.s32 %s9, 2
    %s22 = sadd.s32 1, %s17
    %p23 = scmp.ge.s32.totalorder %s22, 1
    %s24 = scalar_select %p23, 0, %s22
    %s25 = sadd.s32 1, %s16
    %s26 = scalar_select %p23, %s25, %s16
    %p27 = scmp.ge.s32.totalorder %s26, 2
    %s28 = scalar_select %p27, 0, %s26
    %s29 = ssub.s32 %s16, %s28
    %p30 = scmp.eq.s32.totalorder %s29, 0
    %s32 = sadd.s32 %s31, 1
    %s33 = scalar_select %p30, %s31, %s32
    %p36 = pneg %p30
    %p37 = scmp.eq.s32.totalorder %s9, 1
    %p38 = por %p36, %p37
    %p39 = scmp.ne.s32.totalorder %s31, %s34
    %p40 = scmp.eq.s32.totalorder %s9, 0
    %p41 = por %p39, %p40
    %p42 = scmp.ne.s32.totalorder %s31, %s34
    %p43 = scmp.eq.s32.totalorder %s14, 1
    %p44 = por %p42, %p43
    %p45 = scmp.ne.s32.totalorder %s34, %s35
    %p46 = scmp.eq.s32.totalorder %s14, 0
    %p47 = por %p45, %p46
    %p48 = scmp.ne.s32.totalorder %s34, %s35
    %p49 = scmp.eq.s32.totalorder %s15, 1
    %p50 = por %p48, %p49
    %p52 = scmp.ne.s32.totalorder %s35, %s51
    %p53 = scmp.eq.s32.totalorder %s15, 0
    %p54 = por %p52, %p53
    %s56 = sadd.s32 %s55, 1
    %p59 = scmp.eq.s32.totalorder %s9, 1
    %p60 = scmp.ne.s32.totalorder %s55, %s57
    %p61 = scmp.eq.s32.totalorder %s9, 0
    %p62 = por %p60, %p61
    %p63 = scmp.ne.s32.totalorder %s55, %s57
    %p64 = scmp.eq.s32.totalorder %s14, 1
    %p65 = por %p63, %p64
    %p66 = scmp.ne.s32.totalorder %s57, %s58
    %p67 = scmp.eq.s32.totalorder %s14, 0
    %p68 = por %p66, %p67
    %p69 = scmp.ne.s32.totalorder %s57, %s58
    %p70 = scmp.eq.s32.totalorder %s15, 1
    %p71 = por %p69, %p70
    %p73 = scmp.ne.s32.totalorder %s58, %s72
    %p74 = scmp.eq.s32.totalorder %s15, 0
    %p75 = por %p73, %p74
    %s77 = sadd.s32 %s76, 1
    %p80 = scmp.eq.s32.totalorder %s9, 1
    %p81 = scmp.ne.s32.totalorder %s76, %s78
    %p82 = scmp.eq.s32.totalorder %s9, 0
    %p83 = por %p81, %p82
    %p84 = scmp.ne.s32.totalorder %s76, %s78
    %p85 = scmp.eq.s32.totalorder %s14, 1
    %p86 = por %p84, %p85
    %p87 = scmp.ne.s32.totalorder %s78, %s79
    %p88 = scmp.eq.s32.totalorder %s14, 0
    %p89 = por %p87, %p88
    %p90 = scmp.ne.s32.totalorder %s78, %s79
    %p91 = scmp.eq.s32.totalorder %s15, 1
    %p92 = por %p90, %p91
    %p94 = scmp.ne.s32.totalorder %s79, %s93
    %p95 = scmp.eq.s32.totalorder %s15, 0
    %p96 = por %p94, %p95
    %s97 = ssub.s32 %s16, %s28
    %s98 = ssub.s32 %s17, %s24
    %s99 = sor.u32 %s97, %s98
    %p100 = scmp.eq.s32.totalorder %s99, 0
    %s102 = sadd.s32 %s101, 1
    %s103 = scalar_select %p100, %s101, %s102
    %p106 = pneg %p100
    %p107 = scmp.eq.s32.totalorder %s9, 1
    %p108 = por %p106, %p107
    %p109 = scmp.ne.s32.totalorder %s101, %s104
    %p110 = scmp.eq.s32.totalorder %s9, 0
    %p111 = por %p109, %p110
    %p112 = scmp.ne.s32.totalorder %s101, %s104
    %p113 = scmp.eq.s32.totalorder %s14, 1
    %p114 = por %p112, %p113
    %p115 = scmp.ne.s32.totalorder %s104, %s105
    %p116 = scmp.eq.s32.totalorder %s14, 0
    %p117 = por %p115, %p116
    %p118 = scmp.ne.s32.totalorder %s104, %s105
    %p119 = scmp.eq.s32.totalorder %s15, 1
    %p120 = por %p118, %p119
    %p122 = scmp.ne.s32.totalorder %s105, %s121
    %p123 = scmp.eq.s32.totalorder %s15, 0
    %p124 = por %p122, %p123
    %p125 = scmp.le.s32.totalorder 1, %s9
    %p126 = scmp.lt.s32.totalorder %s9, 3
    %p127 = pnand %p125, %p126
    %p128 = pneg %p127
    // Predicated region
    $region9: #{fpn_forward.14} parent=5 // pred_check
      _
    $region10: #{fpn_forward.14} parent=5 // pred_check_branch
      %130 = sbr.rel (%p127) target = $region12
    $region11: #{fpn_forward.14} parent=5 // pred_region
      %s131 = ssub.s32 %s9, 1
      // Predicated region
      $region13: #{fpn_forward.14} parent=11 // pred_check
        %p132 = pneg %p68
      $region14: #{fpn_forward.14} parent=11 // pred_check_branch
        %134 = sbr.rel (%p132) target = $region16
      $region15: #{fpn_forward.14} parent=11 // pred_region
        _
      $region16: #{fpn_forward.14} parent=11 // pred_fallthru
        _
      // Predicated region
      $region17: #{fpn_forward.14} parent=11 // pred_check
        %p135 = pneg %p89
      $region18: #{fpn_forward.14} parent=11 // pred_check_branch
        %137 = sbr.rel (%p135) target = $region20
      $region19: #{fpn_forward.14} parent=11 // pred_region
        _
      $region20: #{fpn_forward.14} parent=11 // pred_fallthru
        _
    $region12: #{fpn_forward.14} parent=5 // pred_fallthru
      _
    %p138 = scmp.lt.s32.totalorder %s9, 2
    // Predicated region
    $region21: #{fpn_forward.14} parent=5 // pred_check
      %p139 = pneg %p138
    $region22: #{fpn_forward.14} parent=5 // pred_check_branch
      %141 = sbr.rel (%p139) target = $region24
    $region23: #{fpn_forward.14} parent=5 // pred_region
      // Predicated region
      $region25: #{fpn_forward.14} parent=23 // pred_check
        %p142 = pneg %p41
      $region26: #{fpn_forward.14} parent=23 // pred_check_branch
        %144 = sbr.rel (%p142) target = $region28
      $region27: #{fpn_forward.14} parent=23 // pred_region
        %p145 = scmp.lt.s32.totalorder %s16, 1
        %s146 = scalar_select %p145, %s16, 1
        %s147 = smul.addr %s146, 13
        %s148 = smul.addr %s147, 8
        %s149 = scalar_lea.vmem %s0, %s148
      $region28: #{fpn_forward.14} parent=23 // pred_fallthru
        _
    $region24: #{fpn_forward.14} parent=5 // pred_fallthru
      _
    %p150 = scmp.le.s32.totalorder 1, %s9
    %p151 = scmp.lt.s32.totalorder %s9, 3
    %p152 = pnand %p150, %p151
    %p153 = pneg %p152
    // Predicated region
    $region29: #{fpn_forward.14} parent=5 // pred_check
      _
    $region30: #{fpn_forward.14} parent=5 // pred_check_branch
      %155 = sbr.rel (%p152) target = $region32
    $region31: #{fpn_forward.14} parent=5 // pred_region
      %s156 = ssub.s32 %s9, 1
      %p157 = scmp.lt.s32.totalorder %s18, 1
      %s158 = scalar_select %p157, %s18, 1
      %s159 = smul.addr %s158, 13
      %s160 = smul.addr %s159, 8
      %s161 = scalar_lea.vmem %s0, %s160
      %p162 = pneg %p47
      %p163 = pneg %p44
      %p164 = pneg %p68
      %p165 = pneg %p65
      %p166 = pneg %p89
      %p167 = pneg %p86
      %p168 = pneg %p117
      %p169 = pneg %p114
      %s170 = smul.u32 10, %s19
      %p171 = scmp.lt.s32.totalorder %s18, 1
      %s172 = scalar_select %p171, %s18, 1
      %p173 = scmp.lt.s32.totalorder %s170, 9
      %s174 = scalar_select %p173, %s170, 9
      %s175 = smul.addr %s172, 10
      %s176 = sadd.s32 %s174, %s175
      %s177 = smul.addr %s176, 8
      %s178 = scalar_lea.vmem %s3, %s177
      %p179 = scmp.lt.s32.totalorder %s18, 1
      %s180 = scalar_select %p179, %s18, 1
      %s181 = smul.addr %s180, 13
      %s182 = smul.addr %s181, 8
      %s183 = scalar_lea.vmem %s0, %s182
      %s184 = smul.u32 10, %s19
      %p185 = scmp.lt.s32.totalorder %s18, 1
      %s186 = scalar_select %p185, %s18, 1
      %p187 = scmp.lt.s32.totalorder %s184, 9
      %s188 = scalar_select %p187, %s184, 9
      %s189 = smul.addr %s186, 10
      %s190 = sadd.s32 %s188, %s189
      %s191 = smul.addr %s190, 8
      %s192 = scalar_lea.vmem %s3, %s191
      %s193 = smul.u32 10, %s19
      %s195 = smul.u32 %s19, 80
      %s196 = scalar_lea.vmem %s183, %s195
      %v197 = vld [vmem:[%s196] sm:$0xff]
      %v198 = vld [vmem:[%s196 + $0x8] sm:$0xff]
      %v199 = vld [vmem:[%s196 + $0x10] sm:$0xff]
      %v200 = vld [vmem:[%s196 + $0x18] sm:$0xff]
      %v201 = vld [vmem:[%s196 + $0x20] sm:$0xff]
      %v202 = vld [vmem:[%s196 + $0x28] sm:$0xff]
      %v203 = vld [vmem:[%s196 + $0x30] sm:$0xff]
      %v204 = vld [vmem:[%s196 + $0x38] sm:$0xff]
      %v205 = vld [vmem:[%s196 + $0x40] sm:$0xff]
      %v206 = vld [vmem:[%s196 + $0x48] sm:$0xff]
      %v207 = vpack.c.bf16 %v198, %v197
      %v208 = vpack.c.bf16 %v200, %v199
      %v209 = vpack.c.bf16 %v202, %v201
      %v210 = vpack.c.bf16 %v204, %v203
      %v211 = vpack.c.bf16 %v206, %v205
      %v212 = vld [vmem:[%s1] sm:$0xf]
      %v213 = vld [vmem:[%s1 + $0x4] sm:$0xf]
      %v214 = vld [vmem:[%s1 + $0x8] sm:$0xf]
      %v215 = vld [vmem:[%s1 + $0xc] sm:$0xf]
      %v216 = vld [vmem:[%s1 + $0x10] sm:$0xf]
      %v217 = vld [vmem:[%s1 + $0x14] sm:$0xf]
      %v218 = vld [vmem:[%s1 + $0x18] sm:$0xf]
      %v219 = vld [vmem:[%s1 + $0x1c] sm:$0xf]
      %v220 = vld [vmem:[%s1 + $0x20] sm:$0xf]
      %v221 = vld [vmem:[%s1 + $0x24] sm:$0xf]
      %v222 = vld [vmem:[%s1 + $0x28] sm:$0xf]
      %v223 = vld [vmem:[%s1 + $0x2c] sm:$0xf]
      %v224 = vld [vmem:[%s1 + $0x30] sm:$0xf]
      %v225 = vld [vmem:[%s1 + $0x34] sm:$0xf]
      %v226 = vld [vmem:[%s1 + $0x38] sm:$0xf]
      %v227 = vld [vmem:[%s1 + $0x3c] sm:$0xf]
      %s228 = sadd.s32 %s195, 1
      %s229 = scalar_lea.vmem %s183, %s228
      %v230 = vld [vmem:[%s229] sm:$0xff]
      %v231 = vld [vmem:[%s229 + $0x8] sm:$0xff]
      %v232 = vld [vmem:[%s229 + $0x10] sm:$0xff]
      %v233 = vld [vmem:[%s229 + $0x18] sm:$0xff]
      %v234 = vld [vmem:[%s229 + $0x20] sm:$0xff]
      %v235 = vld [vmem:[%s229 + $0x28] sm:$0xff]
      %v236 = vld [vmem:[%s229 + $0x30] sm:$0xff]
      %v237 = vld [vmem:[%s229 + $0x38] sm:$0xff]
      %v238 = vld [vmem:[%s229 + $0x40] sm:$0xff]
      %v239 = vld [vmem:[%s229 + $0x48] sm:$0xff]
      %v240 = vpack.c.bf16 %v231, %v230
      %v241 = vpack.c.bf16 %v233, %v232
      %v242 = vpack.c.bf16 %v235, %v234
      %v243 = vpack.c.bf16 %v237, %v236
      %v244 = vpack.c.bf16 %v239, %v238
      %s245 = scalar_lea.vmem %s1, 64
      %v246 = vld [vmem:[%s245] sm:$0xf]
      %v247 = vld [vmem:[%s245 + $0x4] sm:$0xf]
      %v248 = vld [vmem:[%s245 + $0x8] sm:$0xf]
      %v249 = vld [vmem:[%s245 + $0xc] sm:$0xf]
      %v250 = vld [vmem:[%s245 + $0x10] sm:$0xf]
      %v251 = vld [vmem:[%s245 + $0x14] sm:$0xf]
      %v252 = vld [vmem:[%s245 + $0x18] sm:$0xf]
      %v253 = vld [vmem:[%s245 + $0x1c] sm:$0xf]
      %v254 = vld [vmem:[%s245 + $0x20] sm:$0xf]
      %v255 = vld [vmem:[%s245 + $0x24] sm:$0xf]
      %v256 = vld [vmem:[%s245 + $0x28] sm:$0xf]
      %v257 = vld [vmem:[%s245 + $0x2c] sm:$0xf]
      %v258 = vld [vmem:[%s245 + $0x30] sm:$0xf]
      %v259 = vld [vmem:[%s245 + $0x34] sm:$0xf]
      %v260 = vld [vmem:[%s245 + $0x38] sm:$0xf]
      %v261 = vld [vmem:[%s245 + $0x3c] sm:$0xf]
      %v278 = vunpack.c.l.b16 %v246
      %v279 = vunpack.c.l.b16 %v247
      %v280 = vunpack.c.l.b16 %v248
      %v281 = vunpack.c.l.b16 %v249
      %v282 = vunpack.c.l.b16 %v250
      %v283 = vunpack.c.l.b16 %v251
      %v284 = vunpack.c.l.b16 %v252
      %v285 = vunpack.c.l.b16 %v253
      %v286 = vunpack.c.l.b16 %v254
      %v287 = vunpack.c.l.b16 %v255
      %v288 = vunpack.c.l.b16 %v256
      %v289 = vunpack.c.l.b16 %v257
      %v290 = vunpack.c.l.b16 %v258
      %v291 = vunpack.c.l.b16 %v259
      %v292 = vunpack.c.l.b16 %v260
      %v293 = vunpack.c.l.b16 %v261
      %v294 = vpack.c.b16 %v279, %v278
      %v295 = vpack.c.b16 %v281, %v280
      %v296 = vpack.c.b16 %v283, %v282
      %v297 = vpack.c.b16 %v285, %v284
      %v298 = vpack.c.b16 %v287, %v286
      %v299 = vpack.c.b16 %v289, %v288
      %v300 = vpack.c.b16 %v291, %v290
      %v301 = vpack.c.b16 %v293, %v292
      %310 = vmatprep.subr.bf16.mxu0 0
      %311 = vmatpush1.bf16.msra.mxu0 %v294
      %312 = vmatprep.subr.bf16.mxu0 0
      %313 = vmatpush1.bf16.msra.mxu0 %v295
      %314 = vmatprep.subr.bf16.mxu0 0
      %315 = vmatpush1.bf16.msra.mxu0 %v296
      %316 = vmatprep.subr.bf16.mxu0 0
      %317 = vmatpush1.bf16.msra.mxu0 %v297
      %318 = vmatprep.subr.bf16.mxu0 0
      %319 = vmatpush1.bf16.msra.mxu0 %v298
      %320 = vmatprep.subr.bf16.mxu0 0
      %321 = vmatpush1.bf16.msra.mxu0 %v299
      %322 = vmatprep.subr.bf16.mxu0 0
      %323 = vmatpush1.bf16.msra.mxu0 %v300
      %324 = vmatprep.subr.bf16.mxu0 0
      %325 = vmatpush1.bf16.msra.mxu0 %v301
      %326 = vmatprep.subr.bf16.mxu0 0
      %327 = vmatpush1.bf16.msra.mxu0 0
      %328 = vmatprep.subr.bf16.mxu0 0
      %329 = vmatpush1.bf16.msra.mxu0 0
      %330 = vmatprep.subr.bf16.mxu0 0
      %331 = vmatpush1.bf16.msra.mxu0 0
      %332 = vmatprep.subr.bf16.mxu0 0
      %333 = vmatpush1.bf16.msra.mxu0 0
      %334 = vmatprep.subr.bf16.mxu0 0
      %335 = vmatpush1.bf16.msra.mxu0 0
      %336 = vmatprep.subr.bf16.mxu0 0
      %337 = vmatpush1.bf16.msra.mxu0 0
      %338 = vmatprep.subr.bf16.mxu0 0
      %339 = vmatpush1.bf16.msra.mxu0 0
      %340 = vmatprep.subr.bf16.mxu0 0
      %341 = vmatpush1.bf16.msra.mxu0 0
      %342 = vmatprep.mubr.bf16.mxu0 0
      %343 = vmatmul.mubr.bf16.gmra.mrb[0].mxu0 %v240
      %v344 = vpop.f32.mrb[0].mxu0
      %v345 = vadd.f32 0.0, %v344
      %v346 = vpop.f32.mrb[0].mxu0
      %v347 = vpop.f32.mrb[0].mxu0
      %v348 = vadd.f32 0.0, %v347
      %v349 = vpop.f32.mrb[0].mxu0
      %350 = vmatprep.mubr.bf16.mxu0 0
      %351 = vmatmul.mubr.bf16.gmra.mrb[0].mxu0 %v241
      %v352 = vpop.f32.mrb[0].mxu0
      %v353 = vadd.f32 0.0, %v352
      %v354 = vpop.f32.mrb[0].mxu0
      %v355 = vpop.f32.mrb[0].mxu0
      %v356 = vadd.f32 0.0, %v355
      %v357 = vpop.f32.mrb[0].mxu0
      %358 = vmatprep.mubr.bf16.mxu0 0
      %359 = vmatmul.mubr.bf16.gmra.mrb[0].mxu0 %v242
      %v360 = vpop.f32.mrb[0].mxu0
      %v361 = vadd.f32 0.0, %v360
      %v362 = vpop.f32.mrb[0].mxu0
      %v363 = vpop.f32.mrb[0].mxu0
      %v364 = vadd.f32 0.0, %v363
      %v365 = vpop.f32.mrb[0].mxu0
      %366 = vmatprep.mubr.bf16.mxu0 0
      %367 = vmatmul.mubr.bf16.gmra.mrb[0].mxu0 %v243
      %v368 = vpop.f32.mrb[0].mxu0
      %v369 = vadd.f32 0.0, %v368
      %v370 = vpop.f32.mrb[0].mxu0
      %v371 = vpop.f32.mrb[0].mxu0
      %v372 = vadd.f32 0.0, %v371
      %v373 = vpop.f32.mrb[0].mxu0
      %374 = vmatprep.mubr.bf16.mxu0 0
      %375 = vmatmul.mubr.bf16.gmra.mrb[0].mxu0 %v244
      %v376 = vpop.f32.mrb[0].mxu0
      %v377 = vadd.f32 0.0, %v376
      %v378 = vpop.f32.mrb[0].mxu0
      %v379 = vpop.f32.mrb[0].mxu0
      %v380 = vadd.f32 0.0, %v379
      %v381 = vpop.f32.mrb[0].mxu0
      %382 = vdwg.mxu0
      %v399 = vunpack.c.l.b16 %v212
      %v400 = vunpack.c.l.b16 %v213
      %v401 = vunpack.c.l.b16 %v214
      %v402 = vunpack.c.l.b16 %v215
      %v403 = vunpack.c.l.b16 %v216
      %v404 = vunpack.c.l.b16 %v217
      %v405 = vunpack.c.l.b16 %v218
      %v406 = vunpack.c.l.b16 %v219
      %v407 = vunpack.c.l.b16 %v220
      %v408 = vunpack.c.l.b16 %v221
      %v409 = vunpack.c.l.b16 %v222
      %v410 = vunpack.c.l.b16 %v223
      %v411 = vunpack.c.l.b16 %v224
      %v412 = vunpack.c.l.b16 %v225
      %v413 = vunpack.c.l.b16 %v226
      %v414 = vunpack.c.l.b16 %v227
      %v415 = vpack.c.b16 %v400, %v399
      %v416 = vpack.c.b16 %v402, %v401
      %v417 = vpack.c.b16 %v404, %v403
      %v418 = vpack.c.b16 %v406, %v405
      %v419 = vpack.c.b16 %v408, %v407
      %v420 = vpack.c.b16 %v410, %v409
      %v421 = vpack.c.b16 %v412, %v411
      %v422 = vpack.c.b16 %v414, %v413
      %431 = vmatprep.subr.bf16.mxu0 0
      %432 = vmatpush1.bf16.msra.mxu0 %v415
      %433 = vmatprep.subr.bf16.mxu0 0
      %434 = vmatpush1.bf16.msra.mxu0 %v416
      %435 = vmatprep.subr.bf16.mxu0 0
      %436 = vmatpush1.bf16.msra.mxu0 %v417
      %437 = vmatprep.subr.bf16.mxu0 0
      %438 = vmatpush1.bf16.msra.mxu0 %v418
      %439 = vmatprep.subr.bf16.mxu0 0
      %440 = vmatpush1.bf16.msra.mxu0 %v419
      %441 = vmatprep.subr.bf16.mxu0 0
      %442 = vmatpush1.bf16.msra.mxu0 %v420
      %443 = vmatprep.subr.bf16.mxu0 0
      %444 = vmatpush1.bf16.msra.mxu0 %v421
      %445 = vmatprep.subr.bf16.mxu0 0
      %446 = vmatpush1.bf16.msra.mxu0 %v422
      %447 = vmatprep.subr.bf16.mxu0 0
      %448 = vmatpush1.bf16.msra.mxu0 0
      %449 = vmatprep.subr.bf16.mxu0 0
      %450 = vmatpush1.bf16.msra.mxu0 0
      %451 = vmatprep.subr.bf16.mxu0 0
      %452 = vmatpush1.bf16.msra.mxu0 0
      %453 = vmatprep.subr.bf16.mxu0 0
      %454 = vmatpush1.bf16.msra.mxu0 0
      %455 = vmatprep.subr.bf16.mxu0 0
      %456 = vmatpush1.bf16.msra.mxu0 0
      %457 = vmatprep.subr.bf16.mxu0 0
      %458 = vmatpush1.bf16.msra.mxu0 0
      %459 = vmatprep.subr.bf16.mxu0 0
      %460 = vmatpush1.bf16.msra.mxu0 0
      %461 = vmatprep.subr.bf16.mxu0 0
      %462 = vmatpush1.bf16.msra.mxu0 0
      %463 = vmatprep.mubr.bf16.mxu0 0
      %464 = vmatmul.mubr.bf16.gmra.mrb[0].mxu0 %v207
      %v465 = vpop.f32.mrb[0].mxu0
      %v466 = vadd.f32 %v345, %v465
      %v467 = vpop.f32.mrb[0].mxu0
      %v468 = vpop.f32.mrb[0].mxu0
      %v469 = vadd.f32 %v348, %v468
      %v470 = vpop.f32.mrb[0].mxu0
      %471 = vmatprep.mubr.bf16.mxu0 0
      %472 = vmatmul.mubr.bf16.gmra.mrb[0].mxu0 %v208
      %v473 = vpop.f32.mrb[0].mxu0
      %v474 = vadd.f32 %v353, %v473
      %v475 = vpop.f32.mrb[0].mxu0
      %v476 = vpop.f32.mrb[0].mxu0
      %v477 = vadd.f32 %v356, %v476
      %v478 = vpop.f32.mrb[0].mxu0
      %479 = vmatprep.mubr.bf16.mxu0 0
      %480 = vmatmul.mubr.bf16.gmra.mrb[0].mxu0 %v209
      %v481 = vpop.f32.mrb[0].mxu0
      %v482 = vadd.f32 %v361, %v481
      %v483 = vpop.f32.mrb[0].mxu0
      %v484 = vpop.f32.mrb[0].mxu0
      %v485 = vadd.f32 %v364, %v484
      %v486 = vpop.f32.mrb[0].mxu0
      %487 = vmatprep.mubr.bf16.mxu0 0
      %488 = vmatmul.mubr.bf16.gmra.mrb[0].mxu0 %v210
      %v489 = vpop.f32.mrb[0].mxu0
      %v490 = vadd.f32 %v369, %v489
      %v491 = vpop.f32.mrb[0].mxu0
      %v492 = vpop.f32.mrb[0].mxu0
      %v493 = vadd.f32 %v372, %v492
      %v494 = vpop.f32.mrb[0].mxu0
      %495 = vmatprep.mubr.bf16.mxu0 0
      %496 = vmatmul.mubr.bf16.gmra.mrb[0].mxu0 %v211
      %v497 = vpop.f32.mrb[0].mxu0
      %v498 = vadd.f32 %v377, %v497
      %v499 = vpop.f32.mrb[0].mxu0
      %v500 = vpop.f32.mrb[0].mxu0
      %v501 = vadd.f32 %v380, %v500
      %v502 = vpop.f32.mrb[0].mxu0
      %503 = vdwg.mxu0
      %s504 = sadd.s32 %s195, 2
      %s505 = scalar_lea.vmem %s183, %s504
      %v506 = vld [vmem:[%s505] sm:$0xff]
      %v507 = vld [vmem:[%s505 + $0x8] sm:$0xff]
      %v508 = vld [vmem:[%s505 + $0x10] sm:$0xff]
      %v509 = vld [vmem:[%s505 + $0x18] sm:$0xff]
      %v510 = vld [vmem:[%s505 + $0x20] sm:$0xff]
      %v511 = vld [vmem:[%s505 + $0x28] sm:$0xff]
      %v512 = vld [vmem:[%s505 + $0x30] sm:$0xff]
      %v513 = vld [vmem:[%s505 + $0x38] sm:$0xff]
      %v514 = vld [vmem:[%s505 + $0x40] sm:$0xff]
      %v515 = vld [vmem:[%s505 + $0x48] sm:$0xff]
      %v516 = vpack.c.bf16 %v507, %v506
      %v517 = vpack.c.bf16 %v509, %v508
      %v518 = vpack.c.bf16 %v511, %v510
      %v519 = vpack.c.bf16 %v513, %v512
      %v520 = vpack.c.bf16 %v515, %v514
      %s521 = scalar_lea.vmem %s1, 128
      %v522 = vld [vmem:[%s521] sm:$0xf]
      %v523 = vld [vmem:[%s521 + $0x4] sm:$0xf]
      %v524 = vld [vmem:[%s521 + $0x8] sm:$0xf]
      %v525 = vld [vmem:[%s521 + $0xc] sm:$0xf]
      %v526 = vld [vmem:[%s521 + $0x10] sm:$0xf]
      %v527 = vld [vmem:[%s521 + $0x14] sm:$0xf]
      %v528 = vld [vmem:[%s521 + $0x18] sm:$0xf]
      %v529 = vld [vmem:[%s521 + $0x1c] sm:$0xf]
      %v530 = vld [vmem:[%s521 + $0x20] sm:$0xf]
      %v531 = vld [vmem:[%s521 + $0x24] sm:$0xf]
      %v532 = vld [vmem:[%s521 + $0x28] sm:$0xf]
      %v533 = vld [vmem:[%s521 + $0x2c] sm:$0xf]
      %v534 = vld [vmem:[%s521 + $0x30] sm:$0xf]
      %v535 = vld [vmem:[%s521 + $0x34] sm:$0xf]
      %v536 = vld [vmem:[%s521 + $0x38] sm:$0xf]
      %v537 = vld [vmem:[%s521 + $0x3c] sm:$0xf]
      %v554 = vunpack.c.l.b16 %v522
      %v555 = vunpack.c.l.b16 %v523
      %v556 = vunpack.c.l.b16 %v524
      %v557 = vunpack.c.l.b16 %v525
      %v558 = vunpack.c.l.b16 %v526
      %v559 = vunpack.c.l.b16 %v527
      %v560 = vunpack.c.l.b16 %v528
      %v561 = vunpack.c.l.b16 %v529
      %v562 = vunpack.c.l.b16 %v530
      %v563 = vunpack.c.l.b16 %v531
      %v564 = vunpack.c.l.b16 %v532
      %v565 = vunpack.c.l.b16 %v533
      %v566 = vunpack.c.l.b16 %v534
      %v567 = vunpack.c.l.b16 %v535
      %v568 = vunpack.c.l.b16 %v536
      %v569 = vunpack.c.l.b16 %v537
      %v570 = vpack.c.b16 %v555, %v554
      %v571 = vpack.c.b16 %v557, %v556
      %v572 = vpack.c.b16 %v559, %v558
      %v573 = vpack.c.b16 %v561, %v560
      %v574 = vpack.c.b16 %v563, %v562
      %v575 = vpack.c.b16 %v565, %v564
      %v576 = vpack.c.b16 %v567, %v566
      %v577 = vpack.c.b16 %v569, %v568
      %586 = vmatprep.subr.bf16.mxu0 0
      %587 = vmatpush1.bf16.msra.mxu0 %v570
      %588 = vmatprep.subr.bf16.mxu0 0
      %589 = vmatpush1.bf16.msra.mxu0 %v571
      %590 = vmatprep.subr.bf16.mxu0 0
      %591 = vmatpush1.bf16.msra.mxu0 %v572
      %592 = vmatprep.subr.bf16.mxu0 0
      %593 = vmatpush1.bf16.msra.mxu0 %v573
      %594 = vmatprep.subr.bf16.mxu0 0
      %595 = vmatpush1.bf16.msra.mxu0 %v574
      %596 = vmatprep.subr.bf16.mxu0 0
      %597 = vmatpush1.bf16.msra.mxu0 %v575
      %598 = vmatprep.subr.bf16.mxu0 0
      %599 = vmatpush1.bf16.msra.mxu0 %v576
      %600 = vmatprep.subr.bf16.mxu0 0
      %601 = vmatpush1.bf16.msra.mxu0 %v577
      %602 = vmatprep.subr.bf16.mxu0 0
      %603 = vmatpush1.bf16.msra.mxu0 0
      %604 = vmatprep.subr.bf16.mxu0 0
      %605 = vmatpush1.bf16.msra.mxu0 0
      %606 = vmatprep.subr.bf16.mxu0 0
      %607 = vmatpush1.bf16.msra.mxu0 0
      %608 = vmatprep.subr.bf16.mxu0 0
      %609 = vmatpush1.bf16.msra.mxu0 0
      %610 = vmatprep.subr.bf16.mxu0 0
      %611 = vmatpush1.bf16.msra.mxu0 0
      %612 = vmatprep.subr.bf16.mxu0 0
      %613 = vmatpush1.bf16.msra.mxu0 0
      %614 = vmatprep.subr.bf16.mxu0 0
      %615 = vmatpush1.bf16.msra.mxu0 0
      %616 = vmatprep.subr.bf16.mxu0 0
      %617 = vmatpush1.bf16.msra.mxu0 0
      %618 = vmatprep.mubr.bf16.mxu0 0
      %619 = vmatmul.mubr.bf16.gmra.mrb[0].mxu0 %v516
      %v620 = vpop.f32.mrb[0].mxu0
      %v621 = vadd.f32 0.0, %v620
      %v622 = vpop.f32.mrb[0].mxu0
      %v623 = vpop.f32.mrb[0].mxu0
      %v624 = vadd.f32 0.0, %v623
      %v625 = vpop.f32.mrb[0].mxu0
      %626 = vmatprep.mubr.bf16.mxu0 0
      %627 = vmatmul.mubr.bf16.gmra.mrb[0].mxu0 %v517
      %v628 = vpop.f32.mrb[0].mxu0
      %v629 = vadd.f32 0.0, %v628
      %v630 = vpop.f32.mrb[0].mxu0
      %v631 = vpop.f32.mrb[0].mxu0
      %v632 = vadd.f32 0.0, %v631
      %v633 = vpop.f32.mrb[0].mxu0
      %634 = vmatprep.mubr.bf16.mxu0 0
      %635 = vmatmul.mubr.bf16.gmra.mrb[0].mxu0 %v518
      %v636 = vpop.f32.mrb[0].mxu0
      %v637 = vadd.f32 0.0, %v636
      %v638 = vpop.f32.mrb[0].mxu0
      %v639 = vpop.f32.mrb[0].mxu0
      %v640 = vadd.f32 0.0, %v639
      %v641 = vpop.f32.mrb[0].mxu0
      %642 = vmatprep.mubr.bf16.mxu0 0
      %643 = vmatmul.mubr.bf16.gmra.mrb[0].mxu0 %v519
      %v644 = vpop.f32.mrb[0].mxu0
      %v645 = vadd.f32 0.0, %v644
      %v646 = vpop.f32.mrb[0].mxu0
      %v647 = vpop.f32.mrb[0].mxu0
      %v648 = vadd.f32 0.0, %v647
      %v649 = vpop.f32.mrb[0].mxu0
      %650 = vmatprep.mubr.bf16.mxu0 0
      %651 = vmatmul.mubr.bf16.gmra.mrb[0].mxu0 %v520
      %v652 = vpop.f32.mrb[0].mxu0
      %v653 = vadd.f32 0.0, %v652
      %v654 = vpop.f32.mrb[0].mxu0
      %v655 = vpop.f32.mrb[0].mxu0
      %v656 = vadd.f32 0.0, %v655
      %v657 = vpop.f32.mrb[0].mxu0
      %658 = vdwg.mxu0
      %v659 = vadd.f32 %v466, %v621
      %v660 = vadd.f32 %v469, %v624
      %v661 = vadd.f32 %v474, %v629
      %v662 = vadd.f32 %v477, %v632
      %v663 = vadd.f32 %v482, %v637
      %v664 = vadd.f32 %v485, %v640
      %v665 = vadd.f32 %v490, %v645
      %v666 = vadd.f32 %v493, %v648
      %v667 = vadd.f32 %v498, %v653
      %v668 = vadd.f32 %v501, %v656
      %s669 = sadd.s32 %s195, 10
      %s670 = scalar_lea.vmem %s183, %s669
      %v671 = vld [vmem:[%s670] sm:$0xff]
      %v672 = vld [vmem:[%s670 + $0x8] sm:$0xff]
      %v673 = vld [vmem:[%s670 + $0x10] sm:$0xff]
      %v674 = vld [vmem:[%s670 + $0x18] sm:$0xff]
      %v675 = vld [vmem:[%s670 + $0x20] sm:$0xff]
      %v676 = vld [vmem:[%s670 + $0x28] sm:$0xff]
      %v677 = vld [vmem:[%s670 + $0x30] sm:$0xff]
      %v678 = vld [vmem:[%s670 + $0x38] sm:$0xff]
      %v679 = vld [vmem:[%s670 + $0x40] sm:$0xff]
      %v680 = vld [vmem:[%s670 + $0x48] sm:$0xff]
      %v681 = vpack.c.bf16 %v672, %v671
      %v682 = vpack.c.bf16 %v674, %v673
      %v683 = vpack.c.bf16 %v676, %v675
      %v684 = vpack.c.bf16 %v678, %v677
      %v685 = vpack.c.bf16 %v680, %v679
      %s686 = scalar_lea.vmem %s1, 192
      %v687 = vld [vmem:[%s686] sm:$0xf]
      %v688 = vld [vmem:[%s686 + $0x4] sm:$0xf]
      %v689 = vld [vmem:[%s686 + $0x8] sm:$0xf]
      %v690 = vld [vmem:[%s686 + $0xc] sm:$0xf]
      %v691 = vld [vmem:[%s686 + $0x10] sm:$0xf]
      %v692 = vld [vmem:[%s686 + $0x14] sm:$0xf]
      %v693 = vld [vmem:[%s686 + $0x18] sm:$0xf]
      %v694 = vld [vmem:[%s686 + $0x1c] sm:$0xf]
      %v695 = vld [vmem:[%s686 + $0x20] sm:$0xf]
      %v696 = vld [vmem:[%s686 + $0x24] sm:$0xf]
      %v697 = vld [vmem:[%s686 + $0x28] sm:$0xf]
      %v698 = vld [vmem:[%s686 + $0x2c] sm:$0xf]
      %v699 = vld [vmem:[%s686 + $0x30] sm:$0xf]
      %v700 = vld [vmem:[%s686 + $0x34] sm:$0xf]
      %v701 = vld [vmem:[%s686 + $0x38] sm:$0xf]
      %v702 = vld [vmem:[%s686 + $0x3c] sm:$0xf]
      %v719 = vunpack.c.l.b16 %v687
      %v720 = vunpack.c.l.b16 %v688
      %v721 = vunpack.c.l.b16 %v689
      %v722 = vunpack.c.l.b16 %v690
      %v723 = vunpack.c.l.b16 %v691
      %v724 = vunpack.c.l.b16 %v692
      %v725 = vunpack.c.l.b16 %v693
      %v726 = vunpack.c.l.b16 %v694
      %v727 = vunpack.c.l.b16 %v695
      %v728 = vunpack.c.l.b16 %v696
      %v729 = vunpack.c.l.b16 %v697
      %v730 = vunpack.c.l.b16 %v698
      %v731 = vunpack.c.l.b16 %v699
      %v732 = vunpack.c.l.b16 %v700
      %v733 = vunpack.c.l.b16 %v701
      %v734 = vunpack.c.l.b16 %v702
      %v735 = vpack.c.b16 %v720, %v719
      %v736 = vpack.c.b16 %v722, %v721
      %v737 = vpack.c.b16 %v724, %v723
      %v738 = vpack.c.b16 %v726, %v725
      %v739 = vpack.c.b16 %v728, %v727
      %v740 = vpack.c.b16 %v730, %v729
      %v741 = vpack.c.b16 %v732, %v731
      %v742 = vpack.c.b16 %v734, %v733
      %751 = vmatprep.subr.bf16.mxu0 0
      %752 = vmatpush1.bf16.msra.mxu0 %v735
      %753 = vmatprep.subr.bf16.mxu0 0
      %754 = vmatpush1.bf16.msra.mxu0 %v736
      %755 = vmatprep.subr.bf16.mxu0 0
      %756 = vmatpush1.bf16.msra.mxu0 %v737
      %757 = vmatprep.subr.bf16.mxu0 0
      %758 = vmatpush1.bf16.msra.mxu0 %v738
      %759 = vmatprep.subr.bf16.mxu0 0
      %760 = vmatpush1.bf16.msra.mxu0 %v739
      %761 = vmatprep.subr.bf16.mxu0 0
      %762 = vmatpush1.bf16.msra.mxu0 %v740
      %763 = vmatprep.subr.bf16.mxu0 0
      %764 = vmatpush1.bf16.msra.mxu0 %v741
      %765 = vmatprep.subr.bf16.mxu0 0
      %766 = vmatpush1.bf16.msra.mxu0 %v742
      %767 = vmatprep.subr.bf16.mxu0 0
      %768 = vmatpush1.bf16.msra.mxu0 0
      %769 = vmatprep.subr.bf16.mxu0 0
      %770 = vmatpush1.bf16.msra.mxu0 0
      %771 = vmatprep.subr.bf16.mxu0 0
      %772 = vmatpush1.bf16.msra.mxu0 0
      %773 = vmatprep.subr.bf16.mxu0 0
      %774 = vmatpush1.bf16.msra.mxu0 0
      %775 = vmatprep.subr.bf16.mxu0 0
      %776 = vmatpush1.bf16.msra.mxu0 0
      %777 = vmatprep.subr.bf16.mxu0 0
      %778 = vmatpush1.bf16.msra.mxu0 0
      %779 = vmatprep.subr.bf16.mxu0 0
      %780 = vmatpush1.bf16.msra.mxu0 0
      %781 = vmatprep.subr.bf16.mxu0 0
      %782 = vmatpush1.bf16.msra.mxu0 0
      %783 = vmatprep.mubr.bf16.mxu0 0
      %784 = vmatmul.mubr.bf16.gmra.mrb[0].mxu0 %v681
      %v785 = vpop.f32.mrb[0].mxu0
      %v786 = vadd.f32 0.0, %v785
      %v787 = vpop.f32.mrb[0].mxu0
      %v788 = vpop.f32.mrb[0].mxu0
      %v789 = vadd.f32 0.0, %v788
      %v790 = vpop.f32.mrb[0].mxu0
      %791 = vmatprep.mubr.bf16.mxu0 0
      %792 = vmatmul.mubr.bf16.gmra.mrb[0].mxu0 %v682
      %v793 = vpop.f32.mrb[0].mxu0
      %v794 = vadd.f32 0.0, %v793
      %v795 = vpop.f32.mrb[0].mxu0
      %v796 = vpop.f32.mrb[0].mxu0
      %v797 = vadd.f32 0.0, %v796
      %v798 = vpop.f32.mrb[0].mxu0
      %799 = vmatprep.mubr.bf16.mxu0 0
      %800 = vmatmul.mubr.bf16.gmra.mrb[0].mxu0 %v683
      %v801 = vpop.f32.mrb[0].mxu0
      %v802 = vadd.f32 0.0, %v801
      %v803 = vpop.f32.mrb[0].mxu0
      %v804 = vpop.f32.mrb[0].mxu0
      %v805 = vadd.f32 0.0, %v804
      %v806 = vpop.f32.mrb[0].mxu0
      %807 = vmatprep.mubr.bf16.mxu0 0
      %808 = vmatmul.mubr.bf16.gmra.mrb[0].mxu0 %v684
      %v809 = vpop.f32.mrb[0].mxu0
      %v810 = vadd.f32 0.0, %v809
      %v811 = vpop.f32.mrb[0].mxu0
      %v812 = vpop.f32.mrb[0].mxu0
      %v813 = vadd.f32 0.0, %v812
      %v814 = vpop.f32.mrb[0].mxu0
      %815 = vmatprep.mubr.bf16.mxu0 0
      %816 = vmatmul.mubr.bf16.gmra.mrb[0].mxu0 %v685
      %v817 = vpop.f32.mrb[0].mxu0
      %v818 = vadd.f32 0.0, %v817
      %v819 = vpop.f32.mrb[0].mxu0
      %v820 = vpop.f32.mrb[0].mxu0
      %v821 = vadd.f32 0.0, %v820
      %v822 = vpop.f32.mrb[0].mxu0
      %823 = vdwg.mxu0
      %v824 = vadd.f32 %v659, %v786
      %v825 = vadd.f32 %v660, %v789
      %v826 = vadd.f32 %v661, %v794
      %v827 = vadd.f32 %v662, %v797
      %v828 = vadd.f32 %v663, %v802
      %v829 = vadd.f32 %v664, %v805
      %v830 = vadd.f32 %v665, %v810
      %v831 = vadd.f32 %v666, %v813
      %v832 = vadd.f32 %v667, %v818
      %v833 = vadd.f32 %v668, %v821
      %s834 = sadd.s32 %s195, 11
      %s835 = scalar_lea.vmem %s183, %s834
      %v836 = vld [vmem:[%s835] sm:$0xff]
      %v837 = vld [vmem:[%s835 + $0x8] sm:$0xff]
      %v838 = vld [vmem:[%s835 + $0x10] sm:$0xff]
      %v839 = vld [vmem:[%s835 + $0x18] sm:$0xff]
      %v840 = vld [vmem:[%s835 + $0x20] sm:$0xff]
      %v841 = vld [vmem:[%s835 + $0x28] sm:$0xff]
      %v842 = vld [vmem:[%s835 + $0x30] sm:$0xff]
      %v843 = vld [vmem:[%s835 + $0x38] sm:$0xff]
      %v844 = vld [vmem:[%s835 + $0x40] sm:$0xff]
      %v845 = vld [vmem:[%s835 + $0x48] sm:$0xff]
      %v846 = vpack.c.bf16 %v837, %v836
      %v847 = vpack.c.bf16 %v839, %v838
      %v848 = vpack.c.bf16 %v841, %v840
      %v849 = vpack.c.bf16 %v843, %v842
      %v850 = vpack.c.bf16 %v845, %v844
      %s851 = scalar_lea.vmem %s1, 256
      %v852 = vld [vmem:[%s851] sm:$0xf]
      %v853 = vld [vmem:[%s851 + $0x4] sm:$0xf]
      %v854 = vld [vmem:[%s851 + $0x8] sm:$0xf]
      %v855 = vld [vmem:[%s851 + $0xc] sm:$0xf]
      %v856 = vld [vmem:[%s851 + $0x10] sm:$0xf]
      %v857 = vld [vmem:[%s851 + $0x14] sm:$0xf]
      %v858 = vld [vmem:[%s851 + $0x18] sm:$0xf]
      %v859 = vld [vmem:[%s851 + $0x1c] sm:$0xf]
      %v860 = vld [vmem:[%s851 + $0x20] sm:$0xf]
      %v861 = vld [vmem:[%s851 + $0x24] sm:$0xf]
      %v862 = vld [vmem:[%s851 + $0x28] sm:$0xf]
      %v863 = vld [vmem:[%s851 + $0x2c] sm:$0xf]
      %v864 = vld [vmem:[%s851 + $0x30] sm:$0xf]
      %v865 = vld [vmem:[%s851 + $0x34] sm:$0xf]
      %v866 = vld [vmem:[%s851 + $0x38] sm:$0xf]
      %v867 = vld [vmem:[%s851 + $0x3c] sm:$0xf]
      %v884 = vunpack.c.l.b16 %v852
      %v885 = vunpack.c.l.b16 %v853
      %v886 = vunpack.c.l.b16 %v854
      %v887 = vunpack.c.l.b16 %v855
      %v888 = vunpack.c.l.b16 %v856
      %v889 = vunpack.c.l.b16 %v857
      %v890 = vunpack.c.l.b16 %v858
      %v891 = vunpack.c.l.b16 %v859
      %v892 = vunpack.c.l.b16 %v860
      %v893 = vunpack.c.l.b16 %v861
      %v894 = vunpack.c.l.b16 %v862
      %v895 = vunpack.c.l.b16 %v863
      %v896 = vunpack.c.l.b16 %v864
      %v897 = vunpack.c.l.b16 %v865
      %v898 = vunpack.c.l.b16 %v866
      %v899 = vunpack.c.l.b16 %v867
      %v900 = vpack.c.b16 %v885, %v884
      %v901 = vpack.c.b16 %v887, %v886
      %v902 = vpack.c.b16 %v889, %v888
      %v903 = vpack.c.b16 %v891, %v890
      %v904 = vpack.c.b16 %v893, %v892
      %v905 = vpack.c.b16 %v895, %v894
      %v906 = vpack.c.b16 %v897, %v896
      %v907 = vpack.c.b16 %v899, %v898
      %916 = vmatprep.subr.bf16.mxu0 0
      %917 = vmatpush1.bf16.msra.mxu0 %v900
      %918 = vmatprep.subr.bf16.mxu0 0
      %919 = vmatpush1.bf16.msra.mxu0 %v901
      %920 = vmatprep.subr.bf16.mxu0 0
      %921 = vmatpush1.bf16.msra.mxu0 %v902
      %922 = vmatprep.subr.bf16.mxu0 0
      %923 = vmatpush1.bf16.msra.mxu0 %v903
      %924 = vmatprep.subr.bf16.mxu0 0
      %925 = vmatpush1.bf16.msra.mxu0 %v904
      %926 = vmatprep.subr.bf16.mxu0 0
      %927 = vmatpush1.bf16.msra.mxu0 %v905
      %928 = vmatprep.subr.bf16.mxu0 0
      %929 = vmatpush1.bf16.msra.mxu0 %v906
      %930 = vmatprep.subr.bf16.mxu0 0
      %931 = vmatpush1.bf16.msra.mxu0 %v907
      %932 = vmatprep.subr.bf16.mxu0 0
      %933 = vmatpush1.bf16.msra.mxu0 0
      %934 = vmatprep.subr.bf16.mxu0 0
      %935 = vmatpush1.bf16.msra.mxu0 0
      %936 = vmatprep.subr.bf16.mxu0 0
      %937 = vmatpush1.bf16.msra.mxu0 0
      %938 = vmatprep.subr.bf16.mxu0 0
      %939 = vmatpush1.bf16.msra.mxu0 0
      %940 = vmatprep.subr.bf16.mxu0 0
      %941 = vmatpush1.bf16.msra.mxu0 0
      %942 = vmatprep.subr.bf16.mxu0 0
      %943 = vmatpush1.bf16.msra.mxu0 0
      %944 = vmatprep.subr.bf16.mxu0 0
      %945 = vmatpush1.bf16.msra.mxu0 0
      %946 = vmatprep.subr.bf16.mxu0 0
      %947 = vmatpush1.bf16.msra.mxu0 0
      %948 = vmatprep.mubr.bf16.mxu0 0
      %949 = vmatmul.mubr.bf16.gmra.mrb[0].mxu0 %v846
      %v950 = vpop.f32.mrb[0].mxu0
      %v951 = vadd.f32 0.0, %v950
      %v952 = vpop.f32.mrb[0].mxu0
      %v953 = vpop.f32.mrb[0].mxu0
      %v954 = vadd.f32 0.0, %v953
      %v955 = vpop.f32.mrb[0].mxu0
      %956 = vmatprep.mubr.bf16.mxu0 0
      %957 = vmatmul.mubr.bf16.gmra.mrb[0].mxu0 %v847
      %v958 = vpop.f32.mrb[0].mxu0
      %v959 = vadd.f32 0.0, %v958
      %v960 = vpop.f32.mrb[0].mxu0
      %v961 = vpop.f32.mrb[0].mxu0
      %v962 = vadd.f32 0.0, %v961
      %v963 = vpop.f32.mrb[0].mxu0
      %964 = vmatprep.mubr.bf16.mxu0 0
      %965 = vmatmul.mubr.bf16.gmra.mrb[0].mxu0 %v848
      %v966 = vpop.f32.mrb[0].mxu0
      %v967 = vadd.f32 0.0, %v966
      %v968 = vpop.f32.mrb[0].mxu0
      %v969 = vpop.f32.mrb[0].mxu0
      %v970 = vadd.f32 0.0, %v969
      %v971 = vpop.f32.mrb[0].mxu0
      %972 = vmatprep.mubr.bf16.mxu0 0
      %973 = vmatmul.mubr.bf16.gmra.mrb[0].mxu0 %v849
      %v974 = vpop.f32.mrb[0].mxu0
      %v975 = vadd.f32 0.0, %v974
      %v976 = vpop.f32.mrb[0].mxu0
      %v977 = vpop.f32.mrb[0].mxu0
      %v978 = vadd.f32 0.0, %v977
      %v979 = vpop.f32.mrb[0].mxu0
      %980 = vmatprep.mubr.bf16.mxu0 0
      %981 = vmatmul.mubr.bf16.gmra.mrb[0].mxu0 %v850
      %v982 = vpop.f32.mrb[0].mxu0
      %v983 = vadd.f32 0.0, %v982
      %v984 = vpop.f32.mrb[0].mxu0
      %v985 = vpop.f32.mrb[0].mxu0
      %v986 = vadd.f32 0.0, %v985
      %v987 = vpop.f32.mrb[0].mxu0
      %988 = vdwg.mxu0
      %v989 = vadd.f32 %v824, %v951
      %v990 = vadd.f32 %v825, %v954
      %v991 = vadd.f32 %v826, %v959
      %v992 = vadd.f32 %v827, %v962
      %v993 = vadd.f32 %v828, %v967
      %v994 = vadd.f32 %v829, %v970
      %v995 = vadd.f32 %v830, %v975
      %v996 = vadd.f32 %v831, %v978
      %v997 = vadd.f32 %v832, %v983
      %v998 = vadd.f32 %v833, %v986
      %s999 = sadd.s32 %s195, 12
      %s1000 = scalar_lea.vmem %s183, %s999
      %v1001 = vld [vmem:[%s1000] sm:$0xff]
      %v1002 = vld [vmem:[%s1000 + $0x8] sm:$0xff]
      %v1003 = vld [vmem:[%s1000 + $0x10] sm:$0xff]
      %v1004 = vld [vmem:[%s1000 + $0x18] sm:$0xff]
      %v1005 = vld [vmem:[%s1000 + $0x20] sm:$0xff]
      %v1006 = vld [vmem:[%s1000 + $0x28] sm:$0xff]
      %v1007 = vld [vmem:[%s1000 + $0x30] sm:$0xff]
      %v1008 = vld [vmem:[%s1000 + $0x38] sm:$0xff]
      %v1009 = vld [vmem:[%s1000 + $0x40] sm:$0xff]
      %v1010 = vld [vmem:[%s1000 + $0x48] sm:$0xff]
      %v1011 = vpack.c.bf16 %v1002, %v1001
      %v1012 = vpack.c.bf16 %v1004, %v1003
      %v1013 = vpack.c.bf16 %v1006, %v1005
      %v1014 = vpack.c.bf16 %v1008, %v1007
      %v1015 = vpack.c.bf16 %v1010, %v1009
      %s1016 = scalar_lea.vmem %s1, 320
      %v1017 = vld [vmem:[%s1016] sm:$0xf]
      %v1018 = vld [vmem:[%s1016 + $0x4] sm:$0xf]
      %v1019 = vld [vmem:[%s1016 + $0x8] sm:$0xf]
      %v1020 = vld [vmem:[%s1016 + $0xc] sm:$0xf]
      %v1021 = vld [vmem:[%s1016 + $0x10] sm:$0xf]
      %v1022 = vld [vmem:[%s1016 + $0x14] sm:$0xf]
      %v1023 = vld [vmem:[%s1016 + $0x18] sm:$0xf]
      %v1024 = vld [vmem:[%s1016 + $0x1c] sm:$0xf]
      %v1025 = vld [vmem:[%s1016 + $0x20] sm:$0xf]
      %v1026 = vld [vmem:[%s1016 + $0x24] sm:$0xf]
      %v1027 = vld [vmem:[%s1016 + $0x28] sm:$0xf]
      %v1028 = vld [vmem:[%s1016 + $0x2c] sm:$0xf]
      %v1029 = vld [vmem:[%s1016 + $0x30] sm:$0xf]
      %v1030 = vld [vmem:[%s1016 + $0x34] sm:$0xf]
      %v1031 = vld [vmem:[%s1016 + $0x38] sm:$0xf]
      %v1032 = vld [vmem:[%s1016 + $0x3c] sm:$0xf]
      %v1049 = vunpack.c.l.b16 %v1017
      %v1050 = vunpack.c.l.b16 %v1018
      %v1051 = vunpack.c.l.b16 %v1019
      %v1052 = vunpack.c.l.b16 %v1020
      %v1053 = vunpack.c.l.b16 %v1021
      %v1054 = vunpack.c.l.b16 %v1022
      %v1055 = vunpack.c.l.b16 %v1023
      %v1056 = vunpack.c.l.b16 %v1024
      %v1057 = vunpack.c.l.b16 %v1025
      %v1058 = vunpack.c.l.b16 %v1026
      %v1059 = vunpack.c.l.b16 %v1027
      %v1060 = vunpack.c.l.b16 %v1028
      %v1061 = vunpack.c.l.b16 %v1029
      %v1062 = vunpack.c.l.b16 %v1030
      %v1063 = vunpack.c.l.b16 %v1031
      %v1064 = vunpack.c.l.b16 %v1032
      %v1065 = vpack.c.b16 %v1050, %v1049
      %v1066 = vpack.c.b16 %v1052, %v1051
      %v1067 = vpack.c.b16 %v1054, %v1053
      %v1068 = vpack.c.b16 %v1056, %v1055
      %v1069 = vpack.c.b16 %v1058, %v1057
      %v1070 = vpack.c.b16 %v1060, %v1059
      %v1071 = vpack.c.b16 %v1062, %v1061
      %v1072 = vpack.c.b16 %v1064, %v1063
      %1081 = vmatprep.subr.bf16.mxu0 0
      %1082 = vmatpush1.bf16.msra.mxu0 %v1065
      %1083 = vmatprep.subr.bf16.mxu0 0
      %1084 = vmatpush1.bf16.msra.mxu0 %v1066
      %1085 = vmatprep.subr.bf16.mxu0 0
      %1086 = vmatpush1.bf16.msra.mxu0 %v1067
      %1087 = vmatprep.subr.bf16.mxu0 0
      %1088 = vmatpush1.bf16.msra.mxu0 %v1068
      %1089 = vmatprep.subr.bf16.mxu0 0
      %1090 = vmatpush1.bf16.msra.mxu0 %v1069
      %1091 = vmatprep.subr.bf16.mxu0 0
      %1092 = vmatpush1.bf16.msra.mxu0 %v1070
      %1093 = vmatprep.subr.bf16.mxu0 0
      %1094 = vmatpush1.bf16.msra.mxu0 %v1071
      %1095 = vmatprep.subr.bf16.mxu0 0
      %1096 = vmatpush1.bf16.msra.mxu0 %v1072
      %1097 = vmatprep.subr.bf16.mxu0 0
      %1098 = vmatpush1.bf16.msra.mxu0 0
      %1099 = vmatprep.subr.bf16.mxu0 0
      %1100 = vmatpush1.bf16.msra.mxu0 0
      %1101 = vmatprep.subr.bf16.mxu0 0
      %1102 = vmatpush1.bf16.msra.mxu0 0
      %1103 = vmatprep.subr.bf16.mxu0 0
      %1104 = vmatpush1.bf16.msra.mxu0 0
      %1105 = vmatprep.subr.bf16.mxu0 0
      %1106 = vmatpush1.bf16.msra.mxu0 0
      %1107 = vmatprep.subr.bf16.mxu0 0
      %1108 = vmatpush1.bf16.msra.mxu0 0
      %1109 = vmatprep.subr.bf16.mxu0 0
      %1110 = vmatpush1.bf16.msra.mxu0 0
      %1111 = vmatprep.subr.bf16.mxu0 0
      %1112 = vmatpush1.bf16.msra.mxu0 0
      %1113 = vmatprep.mubr.bf16.mxu0 0
      %1114 = vmatmul.mubr.bf16.gmra.mrb[0].mxu0 %v1011
      %v1115 = vpop.f32.mrb[0].mxu0
      %v1116 = vadd.f32 0.0, %v1115
      %v1117 = vpop.f32.mrb[0].mxu0
      %v1118 = vpop.f32.mrb[0].mxu0
      %v1119 = vadd.f32 0.0, %v1118
      %v1120 = vpop.f32.mrb[0].mxu0
      %1121 = vmatprep.mubr.bf16.mxu0 0
      %1122 = vmatmul.mubr.bf16.gmra.mrb[0].mxu0 %v1012
      %v1123 = vpop.f32.mrb[0].mxu0
      %v1124 = vadd.f32 0.0, %v1123
      %v1125 = vpop.f32.mrb[0].mxu0
      %v1126 = vpop.f32.mrb[0].mxu0
      %v1127 = vadd.f32 0.0, %v1126
      %v1128 = vpop.f32.mrb[0].mxu0
      %1129 = vmatprep.mubr.bf16.mxu0 0
      %1130 = vmatmul.mubr.bf16.gmra.mrb[0].mxu0 %v1013
      %v1131 = vpop.f32.mrb[0].mxu0
      %v1132 = vadd.f32 0.0, %v1131
      %v1133 = vpop.f32.mrb[0].mxu0
      %v1134 = vpop.f32.mrb[0].mxu0
      %v1135 = vadd.f32 0.0, %v1134
      %v1136 = vpop.f32.mrb[0].mxu0
      %1137 = vmatprep.mubr.bf16.mxu0 0
      %1138 = vmatmul.mubr.bf16.gmra.mrb[0].mxu0 %v1014
      %v1139 = vpop.f32.mrb[0].mxu0
      %v1140 = vadd.f32 0.0, %v1139
      %v1141 = vpop.f32.mrb[0].mxu0
      %v1142 = vpop.f32.mrb[0].mxu0
      %v1143 = vadd.f32 0.0, %v1142
      %v1144 = vpop.f32.mrb[0].mxu0
      %1145 = vmatprep.mubr.bf16.mxu0 0
      %1146 = vmatmul.mubr.bf16.gmra.mrb[0].mxu0 %v1015
      %v1147 = vpop.f32.mrb[0].mxu0
      %v1148 = vadd.f32 0.0, %v1147
      %v1149 = vpop.f32.mrb[0].mxu0
      %v1150 = vpop.f32.mrb[0].mxu0
      %v1151 = vadd.f32 0.0, %v1150
      %v1152 = vpop.f32.mrb[0].mxu0
      %1153 = vdwg.mxu0
      %v1154 = vadd.f32 %v989, %v1116
      %v1155 = vadd.f32 %v990, %v1119
      %v1156 = vadd.f32 %v991, %v1124
      %v1157 = vadd.f32 %v992, %v1127
      %v1158 = vadd.f32 %v993, %v1132
      %v1159 = vadd.f32 %v994, %v1135
      %v1160 = vadd.f32 %v995, %v1140
      %v1161 = vadd.f32 %v996, %v1143
      %v1162 = vadd.f32 %v997, %v1148
      %v1163 = vadd.f32 %v998, %v1151
      %s1164 = sadd.s32 %s195, 20
      %s1165 = scalar_lea.vmem %s183, %s1164
      %v1166 = vld [vmem:[%s1165] sm:$0xff]
      %v1167 = vld [vmem:[%s1165 + $0x8] sm:$0xff]
      %v1168 = vld [vmem:[%s1165 + $0x10] sm:$0xff]
      %v1169 = vld [vmem:[%s1165 + $0x18] sm:$0xff]
      %v1170 = vld [vmem:[%s1165 + $0x20] sm:$0xff]
      %v1171 = vld [vmem:[%s1165 + $0x28] sm:$0xff]
      %v1172 = vld [vmem:[%s1165 + $0x30] sm:$0xff]
      %v1173 = vld [vmem:[%s1165 + $0x38] sm:$0xff]
      %v1174 = vld [vmem:[%s1165 + $0x40] sm:$0xff]
      %v1175 = vld [vmem:[%s1165 + $0x48] sm:$0xff]
      %v1176 = vpack.c.bf16 %v1167, %v1166
      %v1177 = vpack.c.bf16 %v1169, %v1168
      %v1178 = vpack.c.bf16 %v1171, %v1170
      %v1179 = vpack.c.bf16 %v1173, %v1172
      %v1180 = vpack.c.bf16 %v1175, %v1174
      %s1181 = scalar_lea.vmem %s1, 384
      %v1182 = vld [vmem:[%s1181] sm:$0xf]
      %v1183 = vld [vmem:[%s1181 + $0x4] sm:$0xf]
      %v1184 = vld [vmem:[%s1181 + $0x8] sm:$0xf]
      %v1185 = vld [vmem:[%s1181 + $0xc] sm:$0xf]
      %v1186 = vld [vmem:[%s1181 + $0x10] sm:$0xf]
      %v1187 = vld [vmem:[%s1181 + $0x14] sm:$0xf]
      %v1188 = vld [vmem:[%s1181 + $0x18] sm:$0xf]
      %v1189 = vld [vmem:[%s1181 + $0x1c] sm:$0xf]
      %v1190 = vld [vmem:[%s1181 + $0x20] sm:$0xf]
      %v1191 = vld [vmem:[%s1181 + $0x24] sm:$0xf]
      %v1192 = vld [vmem:[%s1181 + $0x28] sm:$0xf]
      %v1193 = vld [vmem:[%s1181 + $0x2c] sm:$0xf]
      %v1194 = vld [vmem:[%s1181 + $0x30] sm:$0xf]
      %v1195 = vld [vmem:[%s1181 + $0x34] sm:$0xf]
      %v1196 = vld [vmem:[%s1181 + $0x38] sm:$0xf]
      %v1197 = vld [vmem:[%s1181 + $0x3c] sm:$0xf]
      %v1214 = vunpack.c.l.b16 %v1182
      %v1215 = vunpack.c.l.b16 %v1183
      %v1216 = vunpack.c.l.b16 %v1184
      %v1217 = vunpack.c.l.b16 %v1185
      %v1218 = vunpack.c.l.b16 %v1186
      %v1219 = vunpack.c.l.b16 %v1187
      %v1220 = vunpack.c.l.b16 %v1188
      %v1221 = vunpack.c.l.b16 %v1189
      %v1222 = vunpack.c.l.b16 %v1190
      %v1223 = vunpack.c.l.b16 %v1191
      %v1224 = vunpack.c.l.b16 %v1192
      %v1225 = vunpack.c.l.b16 %v1193
      %v1226 = vunpack.c.l.b16 %v1194
      %v1227 = vunpack.c.l.b16 %v1195
      %v1228 = vunpack.c.l.b16 %v1196
      %v1229 = vunpack.c.l.b16 %v1197
      %v1230 = vpack.c.b16 %v1215, %v1214
      %v1231 = vpack.c.b16 %v1217, %v1216
      %v1232 = vpack.c.b16 %v1219, %v1218
      %v1233 = vpack.c.b16 %v1221, %v1220
      %v1234 = vpack.c.b16 %v1223, %v1222
      %v1235 = vpack.c.b16 %v1225, %v1224
      %v1236 = vpack.c.b16 %v1227, %v1226
      %v1237 = vpack.c.b16 %v1229, %v1228
      %1246 = vmatprep.subr.bf16.mxu0 0
      %1247 = vmatpush1.bf16.msra.mxu0 %v1230
      %1248 = vmatprep.subr.bf16.mxu0 0
      %1249 = vmatpush1.bf16.msra.mxu0 %v1231
      %1250 = vmatprep.subr.bf16.mxu0 0
      %1251 = vmatpush1.bf16.msra.mxu0 %v1232
      %1252 = vmatprep.subr.bf16.mxu0 0
      %1253 = vmatpush1.bf16.msra.mxu0 %v1233
      %1254 = vmatprep.subr.bf16.mxu0 0
      %1255 = vmatpush1.bf16.msra.mxu0 %v1234
      %1256 = vmatprep.subr.bf16.mxu0 0
      %1257 = vmatpush1.bf16.msra.mxu0 %v1235
      %1258 = vmatprep.subr.bf16.mxu0 0
      %1259 = vmatpush1.bf16.msra.mxu0 %v1236
      %1260 = vmatprep.subr.bf16.mxu0 0
      %1261 = vmatpush1.bf16.msra.mxu0 %v1237
      %1262 = vmatprep.subr.bf16.mxu0 0
      %1263 = vmatpush1.bf16.msra.mxu0 0
      %1264 = vmatprep.subr.bf16.mxu0 0
      %1265 = vmatpush1.bf16.msra.mxu0 0
      %1266 = vmatprep.subr.bf16.mxu0 0
      %1267 = vmatpush1.bf16.msra.mxu0 0
      %1268 = vmatprep.subr.bf16.mxu0 0
      %1269 = vmatpush1.bf16.msra.mxu0 0
      %1270 = vmatprep.subr.bf16.mxu0 0
      %1271 = vmatpush1.bf16.msra.mxu0 0
      %1272 = vmatprep.subr.bf16.mxu0 0
      %1273 = vmatpush1.bf16.msra.mxu0 0
      %1274 = vmatprep.subr.bf16.mxu0 0
      %1275 = vmatpush1.bf16.msra.mxu0 0
      %1276 = vmatprep.subr.bf16.mxu0 0
      %1277 = vmatpush1.bf16.msra.mxu0 0
      %1278 = vmatprep.mubr.bf16.mxu0 0
      %1279 = vmatmul.mubr.bf16.gmra.mrb[0].mxu0 %v1176
      %v1280 = vpop.f32.mrb[0].mxu0
      %v1281 = vadd.f32 0.0, %v1280
      %v1282 = vpop.f32.mrb[0].mxu0
      %v1283 = vpop.f32.mrb[0].mxu0
      %v1284 = vadd.f32 0.0, %v1283
      %v1285 = vpop.f32.mrb[0].mxu0
      %1286 = vmatprep.mubr.bf16.mxu0 0
      %1287 = vmatmul.mubr.bf16.gmra.mrb[0].mxu0 %v1177
      %v1288 = vpop.f32.mrb[0].mxu0
      %v1289 = vadd.f32 0.0, %v1288
      %v1290 = vpop.f32.mrb[0].mxu0
      %v1291 = vpop.f32.mrb[0].mxu0
      %v1292 = vadd.f32 0.0, %v1291
      %v1293 = vpop.f32.mrb[0].mxu0
      %1294 = vmatprep.mubr.bf16.mxu0 0
      %1295 = vmatmul.mubr.bf16.gmra.mrb[0].mxu0 %v1178
      %v1296 = vpop.f32.mrb[0].mxu0
      %v1297 = vadd.f32 0.0, %v1296
      %v1298 = vpop.f32.mrb[0].mxu0
      %v1299 = vpop.f32.mrb[0].mxu0
      %v1300 = vadd.f32 0.0, %v1299
      %v1301 = vpop.f32.mrb[0].mxu0
      %1302 = vmatprep.mubr.bf16.mxu0 0
      %1303 = vmatmul.mubr.bf16.gmra.mrb[0].mxu0 %v1179
      %v1304 = vpop.f32.mrb[0].mxu0
      %v1305 = vadd.f32 0.0, %v1304
      %v1306 = vpop.f32.mrb[0].mxu0
      %v1307 = vpop.f32.mrb[0].mxu0
      %v1308 = vadd.f32 0.0, %v1307
      %v1309 = vpop.f32.mrb[0].mxu0
      %1310 = vmatprep.mubr.bf16.mxu0 0
      %1311 = vmatmul.mubr.bf16.gmra.mrb[0].mxu0 %v1180
      %v1312 = vpop.f32.mrb[0].mxu0
      %v1313 = vadd.f32 0.0, %v1312
      %v1314 = vpop.f32.mrb[0].mxu0
      %v1315 = vpop.f32.mrb[0].mxu0
      %v1316 = vadd.f32 0.0, %v1315
      %v1317 = vpop.f32.mrb[0].mxu0
      %1318 = vdwg.mxu0
      %v1319 = vadd.f32 %v1154, %v1281
      %v1320 = vadd.f32 %v1155, %v1284
      %v1321 = vadd.f32 %v1156, %v1289
      %v1322 = vadd.f32 %v1157, %v1292
      %v1323 = vadd.f32 %v1158, %v1297
      %v1324 = vadd.f32 %v1159, %v1300
      %v1325 = vadd.f32 %v1160, %v1305
      %v1326 = vadd.f32 %v1161, %v1308
      %v1327 = vadd.f32 %v1162, %v1313
      %v1328 = vadd.f32 %v1163, %v1316
      %s1329 = sadd.s32 %s195, 21
      %s1330 = scalar_lea.vmem %s183, %s1329
      %v1331 = vld [vmem:[%s1330] sm:$0xff]
      %v1332 = vld [vmem:[%s1330 + $0x8] sm:$0xff]
      %v1333 = vld [vmem:[%s1330 + $0x10] sm:$0xff]
      %v1334 = vld [vmem:[%s1330 + $0x18] sm:$0xff]
      %v1335 = vld [vmem:[%s1330 + $0x20] sm:$0xff]
      %v1336 = vld [vmem:[%s1330 + $0x28] sm:$0xff]
      %v1337 = vld [vmem:[%s1330 + $0x30] sm:$0xff]
      %v1338 = vld [vmem:[%s1330 + $0x38] sm:$0xff]
      %v1339 = vld [vmem:[%s1330 + $0x40] sm:$0xff]
      %v1340 = vld [vmem:[%s1330 + $0x48] sm:$0xff]
      %v1341 = vpack.c.bf16 %v1332, %v1331
      %v1342 = vpack.c.bf16 %v1334, %v1333
      %v1343 = vpack.c.bf16 %v1336, %v1335
      %v1344 = vpack.c.bf16 %v1338, %v1337
      %v1345 = vpack.c.bf16 %v1340, %v1339
      %s1346 = scalar_lea.vmem %s1, 448
      %v1347 = vld [vmem:[%s1346] sm:$0xf]
      %v1348 = vld [vmem:[%s1346 + $0x4] sm:$0xf]
      %v1349 = vld [vmem:[%s1346 + $0x8] sm:$0xf]
      %v1350 = vld [vmem:[%s1346 + $0xc] sm:$0xf]
      %v1351 = vld [vmem:[%s1346 + $0x10] sm:$0xf]
      %v1352 = vld [vmem:[%s1346 + $0x14] sm:$0xf]
      %v1353 = vld [vmem:[%s1346 + $0x18] sm:$0xf]
      %v1354 = vld [vmem:[%s1346 + $0x1c] sm:$0xf]
      %v1355 = vld [vmem:[%s1346 + $0x20] sm:$0xf]
      %v1356 = vld [vmem:[%s1346 + $0x24] sm:$0xf]
      %v1357 = vld [vmem:[%s1346 + $0x28] sm:$0xf]
      %v1358 = vld [vmem:[%s1346 + $0x2c] sm:$0xf]
      %v1359 = vld [vmem:[%s1346 + $0x30] sm:$0xf]
      %v1360 = vld [vmem:[%s1346 + $0x34] sm:$0xf]
      %v1361 = vld [vmem:[%s1346 + $0x38] sm:$0xf]
      %v1362 = vld [vmem:[%s1346 + $0x3c] sm:$0xf]
      %v1379 = vunpack.c.l.b16 %v1347
      %v1380 = vunpack.c.l.b16 %v1348
      %v1381 = vunpack.c.l.b16 %v1349
      %v1382 = vunpack.c.l.b16 %v1350
      %v1383 = vunpack.c.l.b16 %v1351
      %v1384 = vunpack.c.l.b16 %v1352
      %v1385 = vunpack.c.l.b16 %v1353
      %v1386 = vunpack.c.l.b16 %v1354
      %v1387 = vunpack.c.l.b16 %v1355
      %v1388 = vunpack.c.l.b16 %v1356
      %v1389 = vunpack.c.l.b16 %v1357
      %v1390 = vunpack.c.l.b16 %v1358
      %v1391 = vunpack.c.l.b16 %v1359
      %v1392 = vunpack.c.l.b16 %v1360
      %v1393 = vunpack.c.l.b16 %v1361
      %v1394 = vunpack.c.l.b16 %v1362
      %v1395 = vpack.c.b16 %v1380, %v1379
      %v1396 = vpack.c.b16 %v1382, %v1381
      %v1397 = vpack.c.b16 %v1384, %v1383
      %v1398 = vpack.c.b16 %v1386, %v1385
      %v1399 = vpack.c.b16 %v1388, %v1387
      %v1400 = vpack.c.b16 %v1390, %v1389
      %v1401 = vpack.c.b16 %v1392, %v1391
      %v1402 = vpack.c.b16 %v1394, %v1393
      %1411 = vmatprep.subr.bf16.mxu0 0
      %1412 = vmatpush1.bf16.msra.mxu0 %v1395
      %1413 = vmatprep.subr.bf16.mxu0 0
      %1414 = vmatpush1.bf16.msra.mxu0 %v1396
      %1415 = vmatprep.subr.bf16.mxu0 0
      %1416 = vmatpush1.bf16.msra.mxu0 %v1397
      %1417 = vmatprep.subr.bf16.mxu0 0
      %1418 = vmatpush1.bf16.msra.mxu0 %v1398
      %1419 = vmatprep.subr.bf16.mxu0 0
      %1420 = vmatpush1.bf16.msra.mxu0 %v1399
      %1421 = vmatprep.subr.bf16.mxu0 0
      %1422 = vmatpush1.bf16.msra.mxu0 %v1400
      %1423 = vmatprep.subr.bf16.mxu0 0
      %1424 = vmatpush1.bf16.msra.mxu0 %v1401
      %1425 = vmatprep.subr.bf16.mxu0 0
      %1426 = vmatpush1.bf16.msra.mxu0 %v1402
      %1427 = vmatprep.subr.bf16.mxu0 0
      %1428 = vmatpush1.bf16.msra.mxu0 0
      %1429 = vmatprep.subr.bf16.mxu0 0
      %1430 = vmatpush1.bf16.msra.mxu0 0
      %1431 = vmatprep.subr.bf16.mxu0 0
      %1432 = vmatpush1.bf16.msra.mxu0 0
      %1433 = vmatprep.subr.bf16.mxu0 0
      %1434 = vmatpush1.bf16.msra.mxu0 0
      %1435 = vmatprep.subr.bf16.mxu0 0
      %1436 = vmatpush1.bf16.msra.mxu0 0
      %1437 = vmatprep.subr.bf16.mxu0 0
      %1438 = vmatpush1.bf16.msra.mxu0 0
      %1439 = vmatprep.subr.bf16.mxu0 0
      %1440 = vmatpush1.bf16.msra.mxu0 0
      %1441 = vmatprep.subr.bf16.mxu0 0
      %1442 = vmatpush1.bf16.msra.mxu0 0
      %1443 = vmatprep.mubr.bf16.mxu0 0
      %1444 = vmatmul.mubr.bf16.gmra.mrb[0].mxu0 %v1341
      %v1445 = vpop.f32.mrb[0].mxu0
      %v1446 = vadd.f32 0.0, %v1445
      %v1447 = vpop.f32.mrb[0].mxu0
      %v1448 = vpop.f32.mrb[0].mxu0
      %v1449 = vadd.f32 0.0, %v1448
      %v1450 = vpop.f32.mrb[0].mxu0
      %1451 = vmatprep.mubr.bf16.mxu0 0
      %1452 = vmatmul.mubr.bf16.gmra.mrb[0].mxu0 %v1342
      %v1453 = vpop.f32.mrb[0].mxu0
      %v1454 = vadd.f32 0.0, %v1453
      %v1455 = vpop.f32.mrb[0].mxu0
      %v1456 = vpop.f32.mrb[0].mxu0
      %v1457 = vadd.f32 0.0, %v1456
      %v1458 = vpop.f32.mrb[0].mxu0
      %1459 = vmatprep.mubr.bf16.mxu0 0
      %1460 = vmatmul.mubr.bf16.gmra.mrb[0].mxu0 %v1343
      %v1461 = vpop.f32.mrb[0].mxu0
      %v1462 = vadd.f32 0.0, %v1461
      %v1463 = vpop.f32.mrb[0].mxu0
      %v1464 = vpop.f32.mrb[0].mxu0
      %v1465 = vadd.f32 0.0, %v1464
      %v1466 = vpop.f32.mrb[0].mxu0
      %1467 = vmatprep.mubr.bf16.mxu0 0
      %1468 = vmatmul.mubr.bf16.gmra.mrb[0].mxu0 %v1344
      %v1469 = vpop.f32.mrb[0].mxu0
      %v1470 = vadd.f32 0.0, %v1469
      %v1471 = vpop.f32.mrb[0].mxu0
      %v1472 = vpop.f32.mrb[0].mxu0
      %v1473 = vadd.f32 0.0, %v1472
      %v1474 = vpop.f32.mrb[0].mxu0
      %1475 = vmatprep.mubr.bf16.mxu0 0
      %1476 = vmatmul.mubr.bf16.gmra.mrb[0].mxu0 %v1345
      %v1477 = vpop.f32.mrb[0].mxu0
      %v1478 = vadd.f32 0.0, %v1477
      %v1479 = vpop.f32.mrb[0].mxu0
      %v1480 = vpop.f32.mrb[0].mxu0
      %v1481 = vadd.f32 0.0, %v1480
      %v1482 = vpop.f32.mrb[0].mxu0
      %1483 = vdwg.mxu0
      %v1484 = vadd.f32 %v1319, %v1446
      %v1485 = vadd.f32 %v1320, %v1449
      %v1486 = vadd.f32 %v1321, %v1454
      %v1487 = vadd.f32 %v1322, %v1457
      %v1488 = vadd.f32 %v1323, %v1462
      %v1489 = vadd.f32 %v1324, %v1465
      %v1490 = vadd.f32 %v1325, %v1470
      %v1491 = vadd.f32 %v1326, %v1473
      %v1492 = vadd.f32 %v1327, %v1478
      %v1493 = vadd.f32 %v1328, %v1481
      %s1494 = sadd.s32 %s195, 22
      %s1495 = scalar_lea.vmem %s183, %s1494
      %v1496 = vld [vmem:[%s1495] sm:$0xff]
      %v1497 = vld [vmem:[%s1495 + $0x8] sm:$0xff]
      %v1498 = vld [vmem:[%s1495 + $0x10] sm:$0xff]
      %v1499 = vld [vmem:[%s1495 + $0x18] sm:$0xff]
      %v1500 = vld [vmem:[%s1495 + $0x20] sm:$0xff]
      %v1501 = vld [vmem:[%s1495 + $0x28] sm:$0xff]
      %v1502 = vld [vmem:[%s1495 + $0x30] sm:$0xff]
      %v1503 = vld [vmem:[%s1495 + $0x38] sm:$0xff]
      %v1504 = vld [vmem:[%s1495 + $0x40] sm:$0xff]
      %v1505 = vld [vmem:[%s1495 + $0x48] sm:$0xff]
      %v1506 = vpack.c.bf16 %v1497, %v1496
      %v1507 = vpack.c.bf16 %v1499, %v1498
      %v1508 = vpack.c.bf16 %v1501, %v1500
      %v1509 = vpack.c.bf16 %v1503, %v1502
      %v1510 = vpack.c.bf16 %v1505, %v1504
      %s1511 = scalar_lea.vmem %s1, 512
      %v1512 = vld [vmem:[%s1511] sm:$0xf]
      %v1513 = vld [vmem:[%s1511 + $0x4] sm:$0xf]
      %v1514 = vld [vmem:[%s1511 + $0x8] sm:$0xf]
      %v1515 = vld [vmem:[%s1511 + $0xc] sm:$0xf]
      %v1516 = vld [vmem:[%s1511 + $0x10] sm:$0xf]
      %v1517 = vld [vmem:[%s1511 + $0x14] sm:$0xf]
      %v1518 = vld [vmem:[%s1511 + $0x18] sm:$0xf]
      %v1519 = vld [vmem:[%s1511 + $0x1c] sm:$0xf]
      %v1520 = vld [vmem:[%s1511 + $0x20] sm:$0xf]
      %v1521 = vld [vmem:[%s1511 + $0x24] sm:$0xf]
      %v1522 = vld [vmem:[%s1511 + $0x28] sm:$0xf]
      %v1523 = vld [vmem:[%s1511 + $0x2c] sm:$0xf]
      %v1524 = vld [vmem:[%s1511 + $0x30] sm:$0xf]
      %v1525 = vld [vmem:[%s1511 + $0x34] sm:$0xf]
      %v1526 = vld [vmem:[%s1511 + $0x38] sm:$0xf]
      %v1527 = vld [vmem:[%s1511 + $0x3c] sm:$0xf]
      %v1544 = vunpack.c.l.b16 %v1512
      %v1545 = vunpack.c.l.b16 %v1513
      %v1546 = vunpack.c.l.b16 %v1514
      %v1547 = vunpack.c.l.b16 %v1515
      %v1548 = vunpack.c.l.b16 %v1516
      %v1549 = vunpack.c.l.b16 %v1517
      %v1550 = vunpack.c.l.b16 %v1518
      %v1551 = vunpack.c.l.b16 %v1519
      %v1552 = vunpack.c.l.b16 %v1520
      %v1553 = vunpack.c.l.b16 %v1521
      %v1554 = vunpack.c.l.b16 %v1522
      %v1555 = vunpack.c.l.b16 %v1523
      %v1556 = vunpack.c.l.b16 %v1524
      %v1557 = vunpack.c.l.b16 %v1525
      %v1558 = vunpack.c.l.b16 %v1526
      %v1559 = vunpack.c.l.b16 %v1527
      %v1560 = vpack.c.b16 %v1545, %v1544
      %v1561 = vpack.c.b16 %v1547, %v1546
      %v1562 = vpack.c.b16 %v1549, %v1548
      %v1563 = vpack.c.b16 %v1551, %v1550
      %v1564 = vpack.c.b16 %v1553, %v1552
      %v1565 = vpack.c.b16 %v1555, %v1554
      %v1566 = vpack.c.b16 %v1557, %v1556
      %v1567 = vpack.c.b16 %v1559, %v1558
      %1576 = vmatprep.subr.bf16.mxu0 0
      %1577 = vmatpush1.bf16.msra.mxu0 %v1560
      %1578 = vmatprep.subr.bf16.mxu0 0
      %1579 = vmatpush1.bf16.msra.mxu0 %v1561
      %1580 = vmatprep.subr.bf16.mxu0 0
      %1581 = vmatpush1.bf16.msra.mxu0 %v1562
      %1582 = vmatprep.subr.bf16.mxu0 0
      %1583 = vmatpush1.bf16.msra.mxu0 %v1563
      %1584 = vmatprep.subr.bf16.mxu0 0
      %1585 = vmatpush1.bf16.msra.mxu0 %v1564
      %1586 = vmatprep.subr.bf16.mxu0 0
      %1587 = vmatpush1.bf16.msra.mxu0 %v1565
      %1588 = vmatprep.subr.bf16.mxu0 0
      %1589 = vmatpush1.bf16.msra.mxu0 %v1566
      %1590 = vmatprep.subr.bf16.mxu0 0
      %1591 = vmatpush1.bf16.msra.mxu0 %v1567
      %1592 = vmatprep.subr.bf16.mxu0 0
      %1593 = vmatpush1.bf16.msra.mxu0 0
      %1594 = vmatprep.subr.bf16.mxu0 0
      %1595 = vmatpush1.bf16.msra.mxu0 0
      %1596 = vmatprep.subr.bf16.mxu0 0
      %1597 = vmatpush1.bf16.msra.mxu0 0
      %1598 = vmatprep.subr.bf16.mxu0 0
      %1599 = vmatpush1.bf16.msra.mxu0 0
      %1600 = vmatprep.subr.bf16.mxu0 0
      %1601 = vmatpush1.bf16.msra.mxu0 0
      %1602 = vmatprep.subr.bf16.mxu0 0
      %1603 = vmatpush1.bf16.msra.mxu0 0
      %1604 = vmatprep.subr.bf16.mxu0 0
      %1605 = vmatpush1.bf16.msra.mxu0 0
      %1606 = vmatprep.subr.bf16.mxu0 0
      %1607 = vmatpush1.bf16.msra.mxu0 0
      %1608 = vmatprep.mubr.bf16.mxu0 0
      %1609 = vmatmul.mubr.bf16.gmra.mrb[0].mxu0 %v1506
      %v1610 = vpop.f32.mrb[0].mxu0
      %v1611 = vadd.f32 0.0, %v1610
      %v1612 = vpop.f32.mrb[0].mxu0
      %v1613 = vpop.f32.mrb[0].mxu0
      %v1614 = vadd.f32 0.0, %v1613
      %v1615 = vpop.f32.mrb[0].mxu0
      %1616 = vmatprep.mubr.bf16.mxu0 0
      %1617 = vmatmul.mubr.bf16.gmra.mrb[0].mxu0 %v1507
      %v1618 = vpop.f32.mrb[0].mxu0
      %v1619 = vadd.f32 0.0, %v1618
      %v1620 = vpop.f32.mrb[0].mxu0
      %v1621 = vpop.f32.mrb[0].mxu0
      %v1622 = vadd.f32 0.0, %v1621
      %v1623 = vpop.f32.mrb[0].mxu0
      %1624 = vmatprep.mubr.bf16.mxu0 0
      %1625 = vmatmul.mubr.bf16.gmra.mrb[0].mxu0 %v1508
      %v1626 = vpop.f32.mrb[0].mxu0
      %v1627 = vadd.f32 0.0, %v1626
      %v1628 = vpop.f32.mrb[0].mxu0
      %v1629 = vpop.f32.mrb[0].mxu0
      %v1630 = vadd.f32 0.0, %v1629
      %v1631 = vpop.f32.mrb[0].mxu0
      %1632 = vmatprep.mubr.bf16.mxu0 0
      %1633 = vmatmul.mubr.bf16.gmra.mrb[0].mxu0 %v1509
      %v1634 = vpop.f32.mrb[0].mxu0
      %v1635 = vadd.f32 0.0, %v1634
      %v1636 = vpop.f32.mrb[0].mxu0
      %v1637 = vpop.f32.mrb[0].mxu0
      %v1638 = vadd.f32 0.0, %v1637
      %v1639 = vpop.f32.mrb[0].mxu0
      %1640 = vmatprep.mubr.bf16.mxu0 0
      %1641 = vmatmul.mubr.bf16.gmra.mrb[0].mxu0 %v1510
      %v1642 = vpop.f32.mrb[0].mxu0
      %v1643 = vadd.f32 0.0, %v1642
      %v1644 = vpop.f32.mrb[0].mxu0
      %v1645 = vpop.f32.mrb[0].mxu0
      %v1646 = vadd.f32 0.0, %v1645
      %v1647 = vpop.f32.mrb[0].mxu0
      %1648 = vdwg.mxu0
      %v1649 = vadd.f32 %v1484, %v1611
      %v1650 = vadd.f32 %v1485, %v1614
      %v1651 = vadd.f32 %v1486, %v1619
      %v1652 = vadd.f32 %v1487, %v1622
      %v1653 = vadd.f32 %v1488, %v1627
      %v1654 = vadd.f32 %v1489, %v1630
      %v1655 = vadd.f32 %v1490, %v1635
      %v1656 = vadd.f32 %v1491, %v1638
      %v1657 = vadd.f32 %v1492, %v1643
      %v1658 = vadd.f32 %v1493, %v1646
      %v1659 = vld [vmem:[%s2] sm:$0x1]
      %v1661 = vlaneseq
      %v1662 = vshrl.u32 %v1661, 7
      %v1663 = vsub.s32 0, %v1662
      %v1664 = vrot.slane %v1659, %v1663
      %v1666 = vadd.f32 %v1649, %v1664
      %v1667 = vadd.f32 %v1650, %v1664
      %v1668 = vadd.f32 %v1651, %v1664
      %v1669 = vadd.f32 %v1652, %v1664
      %v1670 = vadd.f32 %v1653, %v1664
      %v1671 = vadd.f32 %v1654, %v1664
      %v1672 = vadd.f32 %v1655, %v1664
      %v1673 = vadd.f32 %v1656, %v1664
      %v1674 = vadd.f32 %v1657, %v1664
      %v1675 = vadd.f32 %v1658, %v1664
      %1676 = vst [vmem:[%s192] sm:$0xff] %v1666
      %1677 = vst [vmem:[%s192 + $0x8] sm:$0xff] %v1667
      %1678 = vst [vmem:[%s192 + $0x10] sm:$0xff] %v1668
      %1679 = vst [vmem:[%s192 + $0x18] sm:$0xff] %v1669
      %1680 = vst [vmem:[%s192 + $0x20] sm:$0xff] %v1670
      %1681 = vst [vmem:[%s192 + $0x28] sm:$0xff] %v1671
      %1682 = vst [vmem:[%s192 + $0x30] sm:$0xff] %v1672
      %1683 = vst [vmem:[%s192 + $0x38] sm:$0xff] %v1673
      %1684 = vst [vmem:[%s192 + $0x40] sm:$0xff] %v1674
      %1685 = vst [vmem:[%s192 + $0x48] sm:$0xff] %v1675
      %s1686 = smul.u32 10, %s19
      %p1687 = scmp.lt.s32.totalorder %s18, 1
      %s1688 = scalar_select %p1687, %s18, 1
      %p1689 = scmp.lt.s32.totalorder %s1686, 9
      %s1690 = scalar_select %p1689, %s1686, 9
      %s1691 = smul.addr %s1688, 10
      %s1692 = sadd.s32 %s1690, %s1691
      %s1693 = smul.addr %s1692, 8
      %s1694 = scalar_lea.vmem %s3, %s1693
      // Predicated region
      $region33: #{fpn_forward.14} parent=31 // pred_check
        %p1695 = pneg %p114
      $region34: #{fpn_forward.14} parent=31 // pred_check_branch
        %1697 = sbr.rel (%p1695) target = $region36
      $region35: #{fpn_forward.14} parent=31 // pred_region
        %s1698 = smul.u32 10, %s19
      $region36: #{fpn_forward.14} parent=31 // pred_fallthru
        _
    $region32: #{fpn_forward.14} parent=5 // pred_fallthru
      _
    %p1699 = scmp.le.s32.totalorder 2, %s9
    // Predicated region
    $region37: #{fpn_forward.14} parent=5 // pred_check
      %p1700 = pneg %p1699
    $region38: #{fpn_forward.14} parent=5 // pred_check_branch
      %1702 = sbr.rel (%p1700) target = $region40
    $region39: #{fpn_forward.14} parent=5 // pred_region
      %s1703 = ssub.s32 %s9, 2
      // Predicated region
      $region41: #{fpn_forward.14} parent=39 // pred_check
        %p1704 = pneg %p120
      $region42: #{fpn_forward.14} parent=39 // pred_check_branch
        %1706 = sbr.rel (%p1704) target = $region44
      $region43: #{fpn_forward.14} parent=39 // pred_region
        %s1707 = smul.u32 10, %s21
        %p1708 = scmp.lt.s32.totalorder %s20, 1
        %s1709 = scalar_select %p1708, %s20, 1
        %p1710 = scmp.lt.s32.totalorder %s1707, 9
        %s1711 = scalar_select %p1710, %s1707, 9
        %s1712 = smul.addr %s1709, 10
        %s1713 = sadd.s32 %s1711, %s1712
        %s1714 = smul.addr %s1713, 8
        %s1715 = scalar_lea.vmem %s3, %s1714
      $region44: #{fpn_forward.14} parent=39 // pred_fallthru
        _
    $region40: #{fpn_forward.14} parent=5 // pred_fallthru
      _
  $region6: #{fpn_forward.14} parent=0 // loop_footer
    %s13 = sadd.s32 1, %s9
  $region7: #{fpn_forward.14} parent=0 // loop_footer_branch
    %8 = sbr.rel target = $region3
  $region8: #{fpn_forward.14} parent=0 // loop_exit
    _

// kernel: fpn_forward.13
$region0: #{fpn_forward.13}
  #allocation0 [shape = 'u32[]', space=smem, size = 0x4, offset = 0x4, fixed_abs, tag = 'smem constant byte address 0x4 - core index']
  #allocation1 [shape = 'u32[144,128]{1,0:T(1,128)}', space=vmem, size = 0x12000, scoped, tag = 'internal scratch']
  %s0 = inlined_call_operand.vmem [shape: f32[2,40,128], index: 0, kind: input, shape index: {}]
  %s1 = inlined_call_operand.vmem [shape: bf16[9,128,128], index: 1, kind: input, shape index: {}]
  %s2 = inlined_call_operand.vmem [shape: f32[1,128], index: 2, kind: input, shape index: {}]
  %s3 = inlined_call_operand.vmem [shape: f32[2,24,128], index: 3, kind: output, shape index: {}]
  %s4 = sld [smem:[#allocation0]]
  $region45: #{fpn_forward.13} parent=0
    _
  %s6 = ssub.s32 1, %s4
  %s7 = scalar_select 0, %s6, %s4
  loop: start=0, step=1, limit=4
  $region2: #{fpn_forward.13} parent=0 // loop_pre_header
    _
  $region3: #{fpn_forward.13} parent=0 // loop_header
    %s9 = sphi 0, %s13
    %p10 = scmp.ge.s32.totalorder %s9, 4
    %s16 = sphi 0, %s28
    %s17 = sphi 0, %s24
    %s18 = sphi 0, %s16
    %s19 = sphi 0, %s17
    %s20 = sphi 0, %s18
    %s21 = sphi 0, %s19
    %s31 = sphi 0, %s33
    %s34 = sphi 0, %s31
    %s35 = sphi 0, %s34
    %s51 = sphi 0, %s35
    %s55 = sphi 0, %s55
    %s57 = sphi 0, %s55
    %s58 = sphi 0, %s57
    %s72 = sphi 0, %s58
    %s76 = sphi 0, %s76
    %s78 = sphi 0, %s76
    %s79 = sphi 0, %s78
    %s93 = sphi 0, %s79
    %s101 = sphi 0, %s103
    %s104 = sphi 0, %s101
    %s105 = sphi 0, %s104
    %s121 = sphi 0, %s105
  $region4: #{fpn_forward.13} parent=0 // loop_header_branch
    %12 = sbr.rel (%p10) target = $region8
  $region5: #{fpn_forward.13} parent=0 // loop_body
    %s14 = ssub.s32 %s9, 1
    %s15 = ssub.s32 %s9, 2
    %s22 = sadd.s32 1, %s17
    %p23 = scmp.ge.s32.totalorder %s22, 1
    %s24 = scalar_select %p23, 0, %s22
    %s25 = sadd.s32 1, %s16
    %s26 = scalar_select %p23, %s25, %s16
    %p27 = scmp.ge.s32.totalorder %s26, 2
    %s28 = scalar_select %p27, 0, %s26
    %s29 = ssub.s32 %s16, %s28
    %p30 = scmp.eq.s32.totalorder %s29, 0
    %s32 = sadd.s32 %s31, 1
    %s33 = scalar_select %p30, %s31, %s32
    %p36 = pneg %p30
    %p37 = scmp.eq.s32.totalorder %s9, 1
    %p38 = por %p36, %p37
    %p39 = scmp.ne.s32.totalorder %s31, %s34
    %p40 = scmp.eq.s32.totalorder %s9, 0
    %p41 = por %p39, %p40
    %p42 = scmp.ne.s32.totalorder %s31, %s34
    %p43 = scmp.eq.s32.totalorder %s14, 1
    %p44 = por %p42, %p43
    %p45 = scmp.ne.s32.totalorder %s34, %s35
    %p46 = scmp.eq.s32.totalorder %s14, 0
    %p47 = por %p45, %p46
    %p48 = scmp.ne.s32.totalorder %s34, %s35
    %p49 = scmp.eq.s32.totalorder %s15, 1
    %p50 = por %p48, %p49
    %p52 = scmp.ne.s32.totalorder %s35, %s51
    %p53 = scmp.eq.s32.totalorder %s15, 0
    %p54 = por %p52, %p53
    %s56 = sadd.s32 %s55, 1
    %p59 = scmp.eq.s32.totalorder %s9, 1
    %p60 = scmp.ne.s32.totalorder %s55, %s57
    %p61 = scmp.eq.s32.totalorder %s9, 0
    %p62 = por %p60, %p61
    %p63 = scmp.ne.s32.totalorder %s55, %s57
    %p64 = scmp.eq.s32.totalorder %s14, 1
    %p65 = por %p63, %p64
    %p66 = scmp.ne.s32.totalorder %s57, %s58
    %p67 = scmp.eq.s32.totalorder %s14, 0
    %p68 = por %p66, %p67
    %p69 = scmp.ne.s32.totalorder %s57, %s58
    %p70 = scmp.eq.s32.totalorder %s15, 1
    %p71 = por %p69, %p70
    %p73 = scmp.ne.s32.totalorder %s58, %s72
    %p74 = scmp.eq.s32.totalorder %s15, 0
    %p75 = por %p73, %p74
    %s77 = sadd.s32 %s76, 1
    %p80 = scmp.eq.s32.totalorder %s9, 1
    %p81 = scmp.ne.s32.totalorder %s76, %s78
    %p82 = scmp.eq.s32.totalorder %s9, 0
    %p83 = por %p81, %p82
    %p84 = scmp.ne.s32.totalorder %s76, %s78
    %p85 = scmp.eq.s32.totalorder %s14, 1
    %p86 = por %p84, %p85
    %p87 = scmp.ne.s32.totalorder %s78, %s79
    %p88 = scmp.eq.s32.totalorder %s14, 0
    %p89 = por %p87, %p88
    %p90 = scmp.ne.s32.totalorder %s78, %s79
    %p91 = scmp.eq.s32.totalorder %s15, 1
    %p92 = por %p90, %p91
    %p94 = scmp.ne.s32.totalorder %s79, %s93
    %p95 = scmp.eq.s32.totalorder %s15, 0
    %p96 = por %p94, %p95
    %s97 = ssub.s32 %s16, %s28
    %s98 = ssub.s32 %s17, %s24
    %s99 = sor.u32 %s97, %s98
    %p100 = scmp.eq.s32.totalorder %s99, 0
    %s102 = sadd.s32 %s101, 1
    %s103 = scalar_select %p100, %s101, %s102
    %p106 = pneg %p100
    %p107 = scmp.eq.s32.totalorder %s9, 1
    %p108 = por %p106, %p107
    %p109 = scmp.ne.s32.totalorder %s101, %s104
    %p110 = scmp.eq.s32.totalorder %s9, 0
    %p111 = por %p109, %p110
    %p112 = scmp.ne.s32.totalorder %s101, %s104
    %p113 = scmp.eq.s32.totalorder %s14, 1
    %p114 = por %p112, %p113
    %p115 = scmp.ne.s32.totalorder %s104, %s105
    %p116 = scmp.eq.s32.totalorder %s14, 0
    %p117 = por %p115, %p116
    %p118 = scmp.ne.s32.totalorder %s104, %s105
    %p119 = scmp.eq.s32.totalorder %s15, 1
    %p120 = por %p118, %p119
    %p122 = scmp.ne.s32.totalorder %s105, %s121
    %p123 = scmp.eq.s32.totalorder %s15, 0
    %p124 = por %p122, %p123
    %p125 = scmp.le.s32.totalorder 1, %s9
    %p126 = scmp.lt.s32.totalorder %s9, 3
    %p127 = pnand %p125, %p126
    %p128 = pneg %p127
    // Predicated region
    $region9: #{fpn_forward.13} parent=5 // pred_check
      _
    $region10: #{fpn_forward.13} parent=5 // pred_check_branch
      %130 = sbr.rel (%p127) target = $region12
    $region11: #{fpn_forward.13} parent=5 // pred_region
      %s131 = ssub.s32 %s9, 1
      // Predicated region
      $region13: #{fpn_forward.13} parent=11 // pred_check
        %p132 = pneg %p68
      $region14: #{fpn_forward.13} parent=11 // pred_check_branch
        %134 = sbr.rel (%p132) target = $region16
      $region15: #{fpn_forward.13} parent=11 // pred_region
        _
      $region16: #{fpn_forward.13} parent=11 // pred_fallthru
        _
      // Predicated region
      $region17: #{fpn_forward.13} parent=11 // pred_check
        %p135 = pneg %p89
      $region18: #{fpn_forward.13} parent=11 // pred_check_branch
        %137 = sbr.rel (%p135) target = $region20
      $region19: #{fpn_forward.13} parent=11 // pred_region
        _
      $region20: #{fpn_forward.13} parent=11 // pred_fallthru
        _
    $region12: #{fpn_forward.13} parent=5 // pred_fallthru
      _
    %p138 = scmp.lt.s32.totalorder %s9, 2
    // Predicated region
    $region21: #{fpn_forward.13} parent=5 // pred_check
      %p139 = pneg %p138
    $region22: #{fpn_forward.13} parent=5 // pred_check_branch
      %141 = sbr.rel (%p139) target = $region24
    $region23: #{fpn_forward.13} parent=5 // pred_region
      // Predicated region
      $region25: #{fpn_forward.13} parent=23 // pred_check
        %p142 = pneg %p41
      $region26: #{fpn_forward.13} parent=23 // pred_check_branch
        %144 = sbr.rel (%p142) target = $region28
      $region27: #{fpn_forward.13} parent=23 // pred_region
        %p145 = scmp.lt.s32.totalorder %s16, 1
        %s146 = scalar_select %p145, %s16, 1
        %s147 = smul.addr %s146, 5
        %s148 = smul.addr %s147, 8
        %s149 = scalar_lea.vmem %s0, %s148
      $region28: #{fpn_forward.13} parent=23 // pred_fallthru
        _
    $region24: #{fpn_forward.13} parent=5 // pred_fallthru
      _
    %p150 = scmp.le.s32.totalorder 1, %s9
    %p151 = scmp.lt.s32.totalorder %s9, 3
    %p152 = pnand %p150, %p151
    %p153 = pneg %p152
    // Predicated region
    $region29: #{fpn_forward.13} parent=5 // pred_check
      _
    $region30: #{fpn_forward.13} parent=5 // pred_check_branch
      %155 = sbr.rel (%p152) target = $region32
    $region31: #{fpn_forward.13} parent=5 // pred_region
      %s156 = ssub.s32 %s9, 1
      %p157 = scmp.lt.s32.totalorder %s18, 1
      %s158 = scalar_select %p157, %s18, 1
      %s159 = smul.addr %s158, 5
      %s160 = smul.addr %s159, 8
      %s161 = scalar_lea.vmem %s0, %s160
      %p162 = pneg %p47
      %p163 = pneg %p44
      %p164 = pneg %p68
      %p165 = pneg %p65
      %p166 = pneg %p89
      %p167 = pneg %p86
      %p168 = pneg %p117
      %p169 = pneg %p114
      %s170 = smul.u32 3, %s19
      %p171 = scmp.lt.s32.totalorder %s18, 1
      %s172 = scalar_select %p171, %s18, 1
      %p173 = scmp.lt.s32.totalorder %s170, 2
      %s174 = scalar_select %p173, %s170, 2
      %s175 = smul.addr %s172, 3
      %s176 = sadd.s32 %s174, %s175
      %s177 = smul.addr %s176, 8
      %s178 = scalar_lea.vmem %s3, %s177
      %p179 = scmp.lt.s32.totalorder %s18, 1
      %s180 = scalar_select %p179, %s18, 1
      %s181 = smul.addr %s180, 5
      %s182 = smul.addr %s181, 8
      %s183 = scalar_lea.vmem %s0, %s182
      %s184 = smul.u32 3, %s19
      %p185 = scmp.lt.s32.totalorder %s18, 1
      %s186 = scalar_select %p185, %s18, 1
      %p187 = scmp.lt.s32.totalorder %s184, 2
      %s188 = scalar_select %p187, %s184, 2
      %s189 = smul.addr %s186, 3
      %s190 = sadd.s32 %s188, %s189
      %s191 = smul.addr %s190, 8
      %s192 = scalar_lea.vmem %s3, %s191
      %s193 = smul.u32 3, %s19
      %s195 = smul.u32 %s19, 24
      %s196 = scalar_lea.vmem %s183, %s195
      %v197 = vld [vmem:[%s196] sm:$0xff]
      %v198 = vld [vmem:[%s196 + $0x8] sm:$0xff]
      %v199 = vld [vmem:[%s196 + $0x10] sm:$0xff]
      %v200 = vpack.c.bf16 %v198, %v197
      %v201 = vpack.c.bf16 %v199, %v199
      %v202 = vld [vmem:[%s1] sm:$0xf]
      %v203 = vld [vmem:[%s1 + $0x4] sm:$0xf]
      %v204 = vld [vmem:[%s1 + $0x8] sm:$0xf]
      %v205 = vld [vmem:[%s1 + $0xc] sm:$0xf]
      %v206 = vld [vmem:[%s1 + $0x10] sm:$0xf]
      %v207 = vld [vmem:[%s1 + $0x14] sm:$0xf]
      %v208 = vld [vmem:[%s1 + $0x18] sm:$0xf]
      %v209 = vld [vmem:[%s1 + $0x1c] sm:$0xf]
      %v210 = vld [vmem:[%s1 + $0x20] sm:$0xf]
      %v211 = vld [vmem:[%s1 + $0x24] sm:$0xf]
      %v212 = vld [vmem:[%s1 + $0x28] sm:$0xf]
      %v213 = vld [vmem:[%s1 + $0x2c] sm:$0xf]
      %v214 = vld [vmem:[%s1 + $0x30] sm:$0xf]
      %v215 = vld [vmem:[%s1 + $0x34] sm:$0xf]
      %v216 = vld [vmem:[%s1 + $0x38] sm:$0xf]
      %v217 = vld [vmem:[%s1 + $0x3c] sm:$0xf]
      %s218 = sadd.s32 %s195, 1
      %s219 = scalar_lea.vmem %s183, %s218
      %v220 = vld [vmem:[%s219] sm:$0xff]
      %v221 = vld [vmem:[%s219 + $0x8] sm:$0xff]
      %v222 = vld [vmem:[%s219 + $0x10] sm:$0xff]
      %v223 = vpack.c.bf16 %v221, %v220
      %v224 = vpack.c.bf16 %v222, %v222
      %s225 = scalar_lea.vmem %s1, 64
      %v226 = vld [vmem:[%s225] sm:$0xf]
      %v227 = vld [vmem:[%s225 + $0x4] sm:$0xf]
      %v228 = vld [vmem:[%s225 + $0x8] sm:$0xf]
      %v229 = vld [vmem:[%s225 + $0xc] sm:$0xf]
      %v230 = vld [vmem:[%s225 + $0x10] sm:$0xf]
      %v231 = vld [vmem:[%s225 + $0x14] sm:$0xf]
      %v232 = vld [vmem:[%s225 + $0x18] sm:$0xf]
      %v233 = vld [vmem:[%s225 + $0x1c] sm:$0xf]
      %v234 = vld [vmem:[%s225 + $0x20] sm:$0xf]
      %v235 = vld [vmem:[%s225 + $0x24] sm:$0xf]
      %v236 = vld [vmem:[%s225 + $0x28] sm:$0xf]
      %v237 = vld [vmem:[%s225 + $0x2c] sm:$0xf]
      %v238 = vld [vmem:[%s225 + $0x30] sm:$0xf]
      %v239 = vld [vmem:[%s225 + $0x34] sm:$0xf]
      %v240 = vld [vmem:[%s225 + $0x38] sm:$0xf]
      %v241 = vld [vmem:[%s225 + $0x3c] sm:$0xf]
      %v258 = vunpack.c.l.b16 %v226
      %v259 = vunpack.c.l.b16 %v227
      %v260 = vunpack.c.l.b16 %v228
      %v261 = vunpack.c.l.b16 %v229
      %v262 = vunpack.c.l.b16 %v230
      %v263 = vunpack.c.l.b16 %v231
      %v264 = vunpack.c.l.b16 %v232
      %v265 = vunpack.c.l.b16 %v233
      %v266 = vunpack.c.l.b16 %v234
      %v267 = vunpack.c.l.b16 %v235
      %v268 = vunpack.c.l.b16 %v236
      %v269 = vunpack.c.l.b16 %v237
      %v270 = vunpack.c.l.b16 %v238
      %v271 = vunpack.c.l.b16 %v239
      %v272 = vunpack.c.l.b16 %v240
      %v273 = vunpack.c.l.b16 %v241
      %v274 = vpack.c.b16 %v259, %v258
      %v275 = vpack.c.b16 %v261, %v260
      %v276 = vpack.c.b16 %v263, %v262
      %v277 = vpack.c.b16 %v265, %v264
      %v278 = vpack.c.b16 %v267, %v266
      %v279 = vpack.c.b16 %v269, %v268
      %v280 = vpack.c.b16 %v271, %v270
      %v281 = vpack.c.b16 %v273, %v272
      %290 = vmatprep.subr.bf16.mxu0 0
      %291 = vmatpush1.bf16.msra.mxu0 %v274
      %292 = vmatprep.subr.bf16.mxu0 0
      %293 = vmatpush1.bf16.msra.mxu0 %v275
      %294 = vmatprep.subr.bf16.mxu0 0
      %295 = vmatpush1.bf16.msra.mxu0 %v276
      %296 = vmatprep.subr.bf16.mxu0 0
      %297 = vmatpush1.bf16.msra.mxu0 %v277
      %298 = vmatprep.subr.bf16.mxu0 0
      %299 = vmatpush1.bf16.msra.mxu0 %v278
      %300 = vmatprep.subr.bf16.mxu0 0
      %301 = vmatpush1.bf16.msra.mxu0 %v279
      %302 = vmatprep.subr.bf16.mxu0 0
      %303 = vmatpush1.bf16.msra.mxu0 %v280
      %304 = vmatprep.subr.bf16.mxu0 0
      %305 = vmatpush1.bf16.msra.mxu0 %v281
      %306 = vmatprep.subr.bf16.mxu0 0
      %307 = vmatpush1.bf16.msra.mxu0 0
      %308 = vmatprep.subr.bf16.mxu0 0
      %309 = vmatpush1.bf16.msra.mxu0 0
      %310 = vmatprep.subr.bf16.mxu0 0
      %311 = vmatpush1.bf16.msra.mxu0 0
      %312 = vmatprep.subr.bf16.mxu0 0
      %313 = vmatpush1.bf16.msra.mxu0 0
      %314 = vmatprep.subr.bf16.mxu0 0
      %315 = vmatpush1.bf16.msra.mxu0 0
      %316 = vmatprep.subr.bf16.mxu0 0
      %317 = vmatpush1.bf16.msra.mxu0 0
      %318 = vmatprep.subr.bf16.mxu0 0
      %319 = vmatpush1.bf16.msra.mxu0 0
      %320 = vmatprep.subr.bf16.mxu0 0
      %321 = vmatpush1.bf16.msra.mxu0 0
      %322 = vmatprep.mubr.bf16.mxu0 0
      %323 = vmatmul.mubr.bf16.gmra.mrb[0].mxu0 %v223
      %v324 = vpop.f32.mrb[0].mxu0
      %v325 = vadd.f32 0.0, %v324
      %v326 = vpop.f32.mrb[0].mxu0
      %v327 = vpop.f32.mrb[0].mxu0
      %v328 = vadd.f32 0.0, %v327
      %v329 = vpop.f32.mrb[0].mxu0
      %330 = vmatprep.mubr.bf16.mxu0 0
      %331 = vmatmul.mubr.bf16.gmra.mrb[0].mxu0 %v224
      %v332 = vpop.f32.mrb[0].mxu0
      %v333 = vadd.f32 0.0, %v332
      %v334 = vpop.f32.mrb[0].mxu0
      %v335 = vpop.f32.mrb[0].mxu0
      %v336 = vpop.f32.mrb[0].mxu0
      %337 = vdwg.mxu0
      %v354 = vunpack.c.l.b16 %v202
      %v355 = vunpack.c.l.b16 %v203
      %v356 = vunpack.c.l.b16 %v204
      %v357 = vunpack.c.l.b16 %v205
      %v358 = vunpack.c.l.b16 %v206
      %v359 = vunpack.c.l.b16 %v207
      %v360 = vunpack.c.l.b16 %v208
      %v361 = vunpack.c.l.b16 %v209
      %v362 = vunpack.c.l.b16 %v210
      %v363 = vunpack.c.l.b16 %v211
      %v364 = vunpack.c.l.b16 %v212
      %v365 = vunpack.c.l.b16 %v213
      %v366 = vunpack.c.l.b16 %v214
      %v367 = vunpack.c.l.b16 %v215
      %v368 = vunpack.c.l.b16 %v216
      %v369 = vunpack.c.l.b16 %v217
      %v370 = vpack.c.b16 %v355, %v354
      %v371 = vpack.c.b16 %v357, %v356
      %v372 = vpack.c.b16 %v359, %v358
      %v373 = vpack.c.b16 %v361, %v360
      %v374 = vpack.c.b16 %v363, %v362
      %v375 = vpack.c.b16 %v365, %v364
      %v376 = vpack.c.b16 %v367, %v366
      %v377 = vpack.c.b16 %v369, %v368
      %386 = vmatprep.subr.bf16.mxu0 0
      %387 = vmatpush1.bf16.msra.mxu0 %v370
      %388 = vmatprep.subr.bf16.mxu0 0
      %389 = vmatpush1.bf16.msra.mxu0 %v371
      %390 = vmatprep.subr.bf16.mxu0 0
      %391 = vmatpush1.bf16.msra.mxu0 %v372
      %392 = vmatprep.subr.bf16.mxu0 0
      %393 = vmatpush1.bf16.msra.mxu0 %v373
      %394 = vmatprep.subr.bf16.mxu0 0
      %395 = vmatpush1.bf16.msra.mxu0 %v374
      %396 = vmatprep.subr.bf16.mxu0 0
      %397 = vmatpush1.bf16.msra.mxu0 %v375
      %398 = vmatprep.subr.bf16.mxu0 0
      %399 = vmatpush1.bf16.msra.mxu0 %v376
      %400 = vmatprep.subr.bf16.mxu0 0
      %401 = vmatpush1.bf16.msra.mxu0 %v377
      %402 = vmatprep.subr.bf16.mxu0 0
      %403 = vmatpush1.bf16.msra.mxu0 0
      %404 = vmatprep.subr.bf16.mxu0 0
      %405 = vmatpush1.bf16.msra.mxu0 0
      %406 = vmatprep.subr.bf16.mxu0 0
      %407 = vmatpush1.bf16.msra.mxu0 0
      %408 = vmatprep.subr.bf16.mxu0 0
      %409 = vmatpush1.bf16.msra.mxu0 0
      %410 = vmatprep.subr.bf16.mxu0 0
      %411 = vmatpush1.bf16.msra.mxu0 0
      %412 = vmatprep.subr.bf16.mxu0 0
      %413 = vmatpush1.bf16.msra.mxu0 0
      %414 = vmatprep.subr.bf16.mxu0 0
      %415 = vmatpush1.bf16.msra.mxu0 0
      %416 = vmatprep.subr.bf16.mxu0 0
      %417 = vmatpush1.bf16.msra.mxu0 0
      %418 = vmatprep.mubr.bf16.mxu0 0
      %419 = vmatmul.mubr.bf16.gmra.mrb[0].mxu0 %v200
      %v420 = vpop.f32.mrb[0].mxu0
      %v421 = vadd.f32 %v325, %v420
      %v422 = vpop.f32.mrb[0].mxu0
      %v423 = vpop.f32.mrb[0].mxu0
      %v424 = vadd.f32 %v328, %v423
      %v425 = vpop.f32.mrb[0].mxu0
      %426 = vmatprep.mubr.bf16.mxu0 0
      %427 = vmatmul.mubr.bf16.gmra.mrb[0].mxu0 %v201
      %v428 = vpop.f32.mrb[0].mxu0
      %v429 = vadd.f32 %v333, %v428
      %v430 = vpop.f32.mrb[0].mxu0
      %v431 = vpop.f32.mrb[0].mxu0
      %v432 = vpop.f32.mrb[0].mxu0
      %433 = vdwg.mxu0
      %s434 = sadd.s32 %s195, 2
      %s435 = scalar_lea.vmem %s183, %s434
      %v436 = vld [vmem:[%s435] sm:$0xff]
      %v437 = vld [vmem:[%s435 + $0x8] sm:$0xff]
      %v438 = vld [vmem:[%s435 + $0x10] sm:$0xff]
      %v439 = vpack.c.bf16 %v437, %v436
      %v440 = vpack.c.bf16 %v438, %v438
      %s441 = scalar_lea.vmem %s1, 128
      %v442 = vld [vmem:[%s441] sm:$0xf]
      %v443 = vld [vmem:[%s441 + $0x4] sm:$0xf]
      %v444 = vld [vmem:[%s441 + $0x8] sm:$0xf]
      %v445 = vld [vmem:[%s441 + $0xc] sm:$0xf]
      %v446 = vld [vmem:[%s441 + $0x10] sm:$0xf]
      %v447 = vld [vmem:[%s441 + $0x14] sm:$0xf]
      %v448 = vld [vmem:[%s441 + $0x18] sm:$0xf]
      %v449 = vld [vmem:[%s441 + $0x1c] sm:$0xf]
      %v450 = vld [vmem:[%s441 + $0x20] sm:$0xf]
      %v451 = vld [vmem:[%s441 + $0x24] sm:$0xf]
      %v452 = vld [vmem:[%s441 + $0x28] sm:$0xf]
      %v453 = vld [vmem:[%s441 + $0x2c] sm:$0xf]
      %v454 = vld [vmem:[%s441 + $0x30] sm:$0xf]
      %v455 = vld [vmem:[%s441 + $0x34] sm:$0xf]
      %v456 = vld [vmem:[%s441 + $0x38] sm:$0xf]
      %v457 = vld [vmem:[%s441 + $0x3c] sm:$0xf]
      %v474 = vunpack.c.l.b16 %v442
      %v475 = vunpack.c.l.b16 %v443
      %v476 = vunpack.c.l.b16 %v444
      %v477 = vunpack.c.l.b16 %v445
      %v478 = vunpack.c.l.b16 %v446
      %v479 = vunpack.c.l.b16 %v447
      %v480 = vunpack.c.l.b16 %v448
      %v481 = vunpack.c.l.b16 %v449
      %v482 = vunpack.c.l.b16 %v450
      %v483 = vunpack.c.l.b16 %v451
      %v484 = vunpack.c.l.b16 %v452
      %v485 = vunpack.c.l.b16 %v453
      %v486 = vunpack.c.l.b16 %v454
      %v487 = vunpack.c.l.b16 %v455
      %v488 = vunpack.c.l.b16 %v456
      %v489 = vunpack.c.l.b16 %v457
      %v490 = vpack.c.b16 %v475, %v474
      %v491 = vpack.c.b16 %v477, %v476
      %v492 = vpack.c.b16 %v479, %v478
      %v493 = vpack.c.b16 %v481, %v480
      %v494 = vpack.c.b16 %v483, %v482
      %v495 = vpack.c.b16 %v485, %v484
      %v496 = vpack.c.b16 %v487, %v486
      %v497 = vpack.c.b16 %v489, %v488
      %506 = vmatprep.subr.bf16.mxu0 0
      %507 = vmatpush1.bf16.msra.mxu0 %v490
      %508 = vmatprep.subr.bf16.mxu0 0
      %509 = vmatpush1.bf16.msra.mxu0 %v491
      %510 = vmatprep.subr.bf16.mxu0 0
      %511 = vmatpush1.bf16.msra.mxu0 %v492
      %512 = vmatprep.subr.bf16.mxu0 0
      %513 = vmatpush1.bf16.msra.mxu0 %v493
      %514 = vmatprep.subr.bf16.mxu0 0
      %515 = vmatpush1.bf16.msra.mxu0 %v494
      %516 = vmatprep.subr.bf16.mxu0 0
      %517 = vmatpush1.bf16.msra.mxu0 %v495
      %518 = vmatprep.subr.bf16.mxu0 0
      %519 = vmatpush1.bf16.msra.mxu0 %v496
      %520 = vmatprep.subr.bf16.mxu0 0
      %521 = vmatpush1.bf16.msra.mxu0 %v497
      %522 = vmatprep.subr.bf16.mxu0 0
      %523 = vmatpush1.bf16.msra.mxu0 0
      %524 = vmatprep.subr.bf16.mxu0 0
      %525 = vmatpush1.bf16.msra.mxu0 0
      %526 = vmatprep.subr.bf16.mxu0 0
      %527 = vmatpush1.bf16.msra.mxu0 0
      %528 = vmatprep.subr.bf16.mxu0 0
      %529 = vmatpush1.bf16.msra.mxu0 0
      %530 = vmatprep.subr.bf16.mxu0 0
      %531 = vmatpush1.bf16.msra.mxu0 0
      %532 = vmatprep.subr.bf16.mxu0 0
      %533 = vmatpush1.bf16.msra.mxu0 0
      %534 = vmatprep.subr.bf16.mxu0 0
      %535 = vmatpush1.bf16.msra.mxu0 0
      %536 = vmatprep.subr.bf16.mxu0 0
      %537 = vmatpush1.bf16.msra.mxu0 0
      %538 = vmatprep.mubr.bf16.mxu0 0
      %539 = vmatmul.mubr.bf16.gmra.mrb[0].mxu0 %v439
      %v540 = vpop.f32.mrb[0].mxu0
      %v541 = vadd.f32 0.0, %v540
      %v542 = vpop.f32.mrb[0].mxu0
      %v543 = vpop.f32.mrb[0].mxu0
      %v544 = vadd.f32 0.0, %v543
      %v545 = vpop.f32.mrb[0].mxu0
      %546 = vmatprep.mubr.bf16.mxu0 0
      %547 = vmatmul.mubr.bf16.gmra.mrb[0].mxu0 %v440
      %v548 = vpop.f32.mrb[0].mxu0
      %v549 = vadd.f32 0.0, %v548
      %v550 = vpop.f32.mrb[0].mxu0
      %v551 = vpop.f32.mrb[0].mxu0
      %v552 = vpop.f32.mrb[0].mxu0
      %553 = vdwg.mxu0
      %v554 = vadd.f32 %v421, %v541
      %v555 = vadd.f32 %v424, %v544
      %v556 = vadd.f32 %v429, %v549
      %s557 = sadd.s32 %s195, 6
      %s558 = scalar_lea.vmem %s183, %s557
      %v559 = vld [vmem:[%s558] sm:$0xff]
      %v560 = vld [vmem:[%s558 + $0x8] sm:$0xff]
      %v561 = vld [vmem:[%s558 + $0x10] sm:$0xff]
      %v562 = vpack.c.bf16 %v560, %v559
      %v563 = vpack.c.bf16 %v561, %v561
      %s564 = scalar_lea.vmem %s1, 192
      %v565 = vld [vmem:[%s564] sm:$0xf]
      %v566 = vld [vmem:[%s564 + $0x4] sm:$0xf]
      %v567 = vld [vmem:[%s564 + $0x8] sm:$0xf]
      %v568 = vld [vmem:[%s564 + $0xc] sm:$0xf]
      %v569 = vld [vmem:[%s564 + $0x10] sm:$0xf]
      %v570 = vld [vmem:[%s564 + $0x14] sm:$0xf]
      %v571 = vld [vmem:[%s564 + $0x18] sm:$0xf]
      %v572 = vld [vmem:[%s564 + $0x1c] sm:$0xf]
      %v573 = vld [vmem:[%s564 + $0x20] sm:$0xf]
      %v574 = vld [vmem:[%s564 + $0x24] sm:$0xf]
      %v575 = vld [vmem:[%s564 + $0x28] sm:$0xf]
      %v576 = vld [vmem:[%s564 + $0x2c] sm:$0xf]
      %v577 = vld [vmem:[%s564 + $0x30] sm:$0xf]
      %v578 = vld [vmem:[%s564 + $0x34] sm:$0xf]
      %v579 = vld [vmem:[%s564 + $0x38] sm:$0xf]
      %v580 = vld [vmem:[%s564 + $0x3c] sm:$0xf]
      %v597 = vunpack.c.l.b16 %v565
      %v598 = vunpack.c.l.b16 %v566
      %v599 = vunpack.c.l.b16 %v567
      %v600 = vunpack.c.l.b16 %v568
      %v601 = vunpack.c.l.b16 %v569
      %v602 = vunpack.c.l.b16 %v570
      %v603 = vunpack.c.l.b16 %v571
      %v604 = vunpack.c.l.b16 %v572
      %v605 = vunpack.c.l.b16 %v573
      %v606 = vunpack.c.l.b16 %v574
      %v607 = vunpack.c.l.b16 %v575
      %v608 = vunpack.c.l.b16 %v576
      %v609 = vunpack.c.l.b16 %v577
      %v610 = vunpack.c.l.b16 %v578
      %v611 = vunpack.c.l.b16 %v579
      %v612 = vunpack.c.l.b16 %v580
      %v613 = vpack.c.b16 %v598, %v597
      %v614 = vpack.c.b16 %v600, %v599
      %v615 = vpack.c.b16 %v602, %v601
      %v616 = vpack.c.b16 %v604, %v603
      %v617 = vpack.c.b16 %v606, %v605
      %v618 = vpack.c.b16 %v608, %v607
      %v619 = vpack.c.b16 %v610, %v609
      %v620 = vpack.c.b16 %v612, %v611
      %629 = vmatprep.subr.bf16.mxu0 0
      %630 = vmatpush1.bf16.msra.mxu0 %v613
      %631 = vmatprep.subr.bf16.mxu0 0
      %632 = vmatpush1.bf16.msra.mxu0 %v614
      %633 = vmatprep.subr.bf16.mxu0 0
      %634 = vmatpush1.bf16.msra.mxu0 %v615
      %635 = vmatprep.subr.bf16.mxu0 0
      %636 = vmatpush1.bf16.msra.mxu0 %v616
      %637 = vmatprep.subr.bf16.mxu0 0
      %638 = vmatpush1.bf16.msra.mxu0 %v617
      %639 = vmatprep.subr.bf16.mxu0 0
      %640 = vmatpush1.bf16.msra.mxu0 %v618
      %641 = vmatprep.subr.bf16.mxu0 0
      %642 = vmatpush1.bf16.msra.mxu0 %v619
      %643 = vmatprep.subr.bf16.mxu0 0
      %644 = vmatpush1.bf16.msra.mxu0 %v620
      %645 = vmatprep.subr.bf16.mxu0 0
      %646 = vmatpush1.bf16.msra.mxu0 0
      %647 = vmatprep.subr.bf16.mxu0 0
      %648 = vmatpush1.bf16.msra.mxu0 0
      %649 = vmatprep.subr.bf16.mxu0 0
      %650 = vmatpush1.bf16.msra.mxu0 0
      %651 = vmatprep.subr.bf16.mxu0 0
      %652 = vmatpush1.bf16.msra.mxu0 0
      %653 = vmatprep.subr.bf16.mxu0 0
      %654 = vmatpush1.bf16.msra.mxu0 0
      %655 = vmatprep.subr.bf16.mxu0 0
      %656 = vmatpush1.bf16.msra.mxu0 0
      %657 = vmatprep.subr.bf16.mxu0 0
      %658 = vmatpush1.bf16.msra.mxu0 0
      %659 = vmatprep.subr.bf16.mxu0 0
      %660 = vmatpush1.bf16.msra.mxu0 0
      %661 = vmatprep.mubr.bf16.mxu0 0
      %662 = vmatmul.mubr.bf16.gmra.mrb[0].mxu0 %v562
      %v663 = vpop.f32.mrb[0].mxu0
      %v664 = vadd.f32 0.0, %v663
      %v665 = vpop.f32.mrb[0].mxu0
      %v666 = vpop.f32.mrb[0].mxu0
      %v667 = vadd.f32 0.0, %v666
      %v668 = vpop.f32.mrb[0].mxu0
      %669 = vmatprep.mubr.bf16.mxu0 0
      %670 = vmatmul.mubr.bf16.gmra.mrb[0].mxu0 %v563
      %v671 = vpop.f32.mrb[0].mxu0
      %v672 = vadd.f32 0.0, %v671
      %v673 = vpop.f32.mrb[0].mxu0
      %v674 = vpop.f32.mrb[0].mxu0
      %v675 = vpop.f32.mrb[0].mxu0
      %676 = vdwg.mxu0
      %v677 = vadd.f32 %v554, %v664
      %v678 = vadd.f32 %v555, %v667
      %v679 = vadd.f32 %v556, %v672
      %s680 = sadd.s32 %s195, 7
      %s681 = scalar_lea.vmem %s183, %s680
      %v682 = vld [vmem:[%s681] sm:$0xff]
      %v683 = vld [vmem:[%s681 + $0x8] sm:$0xff]
      %v684 = vld [vmem:[%s681 + $0x10] sm:$0xff]
      %v685 = vpack.c.bf16 %v683, %v682
      %v686 = vpack.c.bf16 %v684, %v684
      %s687 = scalar_lea.vmem %s1, 256
      %v688 = vld [vmem:[%s687] sm:$0xf]
      %v689 = vld [vmem:[%s687 + $0x4] sm:$0xf]
      %v690 = vld [vmem:[%s687 + $0x8] sm:$0xf]
      %v691 = vld [vmem:[%s687 + $0xc] sm:$0xf]
      %v692 = vld [vmem:[%s687 + $0x10] sm:$0xf]
      %v693 = vld [vmem:[%s687 + $0x14] sm:$0xf]
      %v694 = vld [vmem:[%s687 + $0x18] sm:$0xf]
      %v695 = vld [vmem:[%s687 + $0x1c] sm:$0xf]
      %v696 = vld [vmem:[%s687 + $0x20] sm:$0xf]
      %v697 = vld [vmem:[%s687 + $0x24] sm:$0xf]
      %v698 = vld [vmem:[%s687 + $0x28] sm:$0xf]
      %v699 = vld [vmem:[%s687 + $0x2c] sm:$0xf]
      %v700 = vld [vmem:[%s687 + $0x30] sm:$0xf]
      %v701 = vld [vmem:[%s687 + $0x34] sm:$0xf]
      %v702 = vld [vmem:[%s687 + $0x38] sm:$0xf]
      %v703 = vld [vmem:[%s687 + $0x3c] sm:$0xf]
      %v720 = vunpack.c.l.b16 %v688
      %v721 = vunpack.c.l.b16 %v689
      %v722 = vunpack.c.l.b16 %v690
      %v723 = vunpack.c.l.b16 %v691
      %v724 = vunpack.c.l.b16 %v692
      %v725 = vunpack.c.l.b16 %v693
      %v726 = vunpack.c.l.b16 %v694
      %v727 = vunpack.c.l.b16 %v695
      %v728 = vunpack.c.l.b16 %v696
      %v729 = vunpack.c.l.b16 %v697
      %v730 = vunpack.c.l.b16 %v698
      %v731 = vunpack.c.l.b16 %v699
      %v732 = vunpack.c.l.b16 %v700
      %v733 = vunpack.c.l.b16 %v701
      %v734 = vunpack.c.l.b16 %v702
      %v735 = vunpack.c.l.b16 %v703
      %v736 = vpack.c.b16 %v721, %v720
      %v737 = vpack.c.b16 %v723, %v722
      %v738 = vpack.c.b16 %v725, %v724
      %v739 = vpack.c.b16 %v727, %v726
      %v740 = vpack.c.b16 %v729, %v728
      %v741 = vpack.c.b16 %v731, %v730
      %v742 = vpack.c.b16 %v733, %v732
      %v743 = vpack.c.b16 %v735, %v734
      %752 = vmatprep.subr.bf16.mxu0 0
      %753 = vmatpush1.bf16.msra.mxu0 %v736
      %754 = vmatprep.subr.bf16.mxu0 0
      %755 = vmatpush1.bf16.msra.mxu0 %v737
      %756 = vmatprep.subr.bf16.mxu0 0
      %757 = vmatpush1.bf16.msra.mxu0 %v738
      %758 = vmatprep.subr.bf16.mxu0 0
      %759 = vmatpush1.bf16.msra.mxu0 %v739
      %760 = vmatprep.subr.bf16.mxu0 0
      %761 = vmatpush1.bf16.msra.mxu0 %v740
      %762 = vmatprep.subr.bf16.mxu0 0
      %763 = vmatpush1.bf16.msra.mxu0 %v741
      %764 = vmatprep.subr.bf16.mxu0 0
      %765 = vmatpush1.bf16.msra.mxu0 %v742
      %766 = vmatprep.subr.bf16.mxu0 0
      %767 = vmatpush1.bf16.msra.mxu0 %v743
      %768 = vmatprep.subr.bf16.mxu0 0
      %769 = vmatpush1.bf16.msra.mxu0 0
      %770 = vmatprep.subr.bf16.mxu0 0
      %771 = vmatpush1.bf16.msra.mxu0 0
      %772 = vmatprep.subr.bf16.mxu0 0
      %773 = vmatpush1.bf16.msra.mxu0 0
      %774 = vmatprep.subr.bf16.mxu0 0
      %775 = vmatpush1.bf16.msra.mxu0 0
      %776 = vmatprep.subr.bf16.mxu0 0
      %777 = vmatpush1.bf16.msra.mxu0 0
      %778 = vmatprep.subr.bf16.mxu0 0
      %779 = vmatpush1.bf16.msra.mxu0 0
      %780 = vmatprep.subr.bf16.mxu0 0
      %781 = vmatpush1.bf16.msra.mxu0 0
      %782 = vmatprep.subr.bf16.mxu0 0
      %783 = vmatpush1.bf16.msra.mxu0 0
      %784 = vmatprep.mubr.bf16.mxu0 0
      %785 = vmatmul.mubr.bf16.gmra.mrb[0].mxu0 %v685
      %v786 = vpop.f32.mrb[0].mxu0
      %v787 = vadd.f32 0.0, %v786
      %v788 = vpop.f32.mrb[0].mxu0
      %v789 = vpop.f32.mrb[0].mxu0
      %v790 = vadd.f32 0.0, %v789
      %v791 = vpop.f32.mrb[0].mxu0
      %792 = vmatprep.mubr.bf16.mxu0 0
      %793 = vmatmul.mubr.bf16.gmra.mrb[0].mxu0 %v686
      %v794 = vpop.f32.mrb[0].mxu0
      %v795 = vadd.f32 0.0, %v794
      %v796 = vpop.f32.mrb[0].mxu0
      %v797 = vpop.f32.mrb[0].mxu0
      %v798 = vpop.f32.mrb[0].mxu0
      %799 = vdwg.mxu0
      %v800 = vadd.f32 %v677, %v787
      %v801 = vadd.f32 %v678, %v790
      %v802 = vadd.f32 %v679, %v795
      %s803 = sadd.s32 %s195, 8
      %s804 = scalar_lea.vmem %s183, %s803
      %v805 = vld [vmem:[%s804] sm:$0xff]
      %v806 = vld [vmem:[%s804 + $0x8] sm:$0xff]
      %v807 = vld [vmem:[%s804 + $0x10] sm:$0xff]
      %v808 = vpack.c.bf16 %v806, %v805
      %v809 = vpack.c.bf16 %v807, %v807
      %s810 = scalar_lea.vmem %s1, 320
      %v811 = vld [vmem:[%s810] sm:$0xf]
      %v812 = vld [vmem:[%s810 + $0x4] sm:$0xf]
      %v813 = vld [vmem:[%s810 + $0x8] sm:$0xf]
      %v814 = vld [vmem:[%s810 + $0xc] sm:$0xf]
      %v815 = vld [vmem:[%s810 + $0x10] sm:$0xf]
      %v816 = vld [vmem:[%s810 + $0x14] sm:$0xf]
      %v817 = vld [vmem:[%s810 + $0x18] sm:$0xf]
      %v818 = vld [vmem:[%s810 + $0x1c] sm:$0xf]
      %v819 = vld [vmem:[%s810 + $0x20] sm:$0xf]
      %v820 = vld [vmem:[%s810 + $0x24] sm:$0xf]
      %v821 = vld [vmem:[%s810 + $0x28] sm:$0xf]
      %v822 = vld [vmem:[%s810 + $0x2c] sm:$0xf]
      %v823 = vld [vmem:[%s810 + $0x30] sm:$0xf]
      %v824 = vld [vmem:[%s810 + $0x34] sm:$0xf]
      %v825 = vld [vmem:[%s810 + $0x38] sm:$0xf]
      %v826 = vld [vmem:[%s810 + $0x3c] sm:$0xf]
      %v843 = vunpack.c.l.b16 %v811
      %v844 = vunpack.c.l.b16 %v812
      %v845 = vunpack.c.l.b16 %v813
      %v846 = vunpack.c.l.b16 %v814
      %v847 = vunpack.c.l.b16 %v815
      %v848 = vunpack.c.l.b16 %v816
      %v849 = vunpack.c.l.b16 %v817
      %v850 = vunpack.c.l.b16 %v818
      %v851 = vunpack.c.l.b16 %v819
      %v852 = vunpack.c.l.b16 %v820
      %v853 = vunpack.c.l.b16 %v821
      %v854 = vunpack.c.l.b16 %v822
      %v855 = vunpack.c.l.b16 %v823
      %v856 = vunpack.c.l.b16 %v824
      %v857 = vunpack.c.l.b16 %v825
      %v858 = vunpack.c.l.b16 %v826
      %v859 = vpack.c.b16 %v844, %v843
      %v860 = vpack.c.b16 %v846, %v845
      %v861 = vpack.c.b16 %v848, %v847
      %v862 = vpack.c.b16 %v850, %v849
      %v863 = vpack.c.b16 %v852, %v851
      %v864 = vpack.c.b16 %v854, %v853
      %v865 = vpack.c.b16 %v856, %v855
      %v866 = vpack.c.b16 %v858, %v857
      %875 = vmatprep.subr.bf16.mxu0 0
      %876 = vmatpush1.bf16.msra.mxu0 %v859
      %877 = vmatprep.subr.bf16.mxu0 0
      %878 = vmatpush1.bf16.msra.mxu0 %v860
      %879 = vmatprep.subr.bf16.mxu0 0
      %880 = vmatpush1.bf16.msra.mxu0 %v861
      %881 = vmatprep.subr.bf16.mxu0 0
      %882 = vmatpush1.bf16.msra.mxu0 %v862
      %883 = vmatprep.subr.bf16.mxu0 0
      %884 = vmatpush1.bf16.msra.mxu0 %v863
      %885 = vmatprep.subr.bf16.mxu0 0
      %886 = vmatpush1.bf16.msra.mxu0 %v864
      %887 = vmatprep.subr.bf16.mxu0 0
      %888 = vmatpush1.bf16.msra.mxu0 %v865
      %889 = vmatprep.subr.bf16.mxu0 0
      %890 = vmatpush1.bf16.msra.mxu0 %v866
      %891 = vmatprep.subr.bf16.mxu0 0
      %892 = vmatpush1.bf16.msra.mxu0 0
      %893 = vmatprep.subr.bf16.mxu0 0
      %894 = vmatpush1.bf16.msra.mxu0 0
      %895 = vmatprep.subr.bf16.mxu0 0
      %896 = vmatpush1.bf16.msra.mxu0 0
      %897 = vmatprep.subr.bf16.mxu0 0
      %898 = vmatpush1.bf16.msra.mxu0 0
      %899 = vmatprep.subr.bf16.mxu0 0
      %900 = vmatpush1.bf16.msra.mxu0 0
      %901 = vmatprep.subr.bf16.mxu0 0
      %902 = vmatpush1.bf16.msra.mxu0 0
      %903 = vmatprep.subr.bf16.mxu0 0
      %904 = vmatpush1.bf16.msra.mxu0 0
      %905 = vmatprep.subr.bf16.mxu0 0
      %906 = vmatpush1.bf16.msra.mxu0 0
      %907 = vmatprep.mubr.bf16.mxu0 0
      %908 = vmatmul.mubr.bf16.gmra.mrb[0].mxu0 %v808
      %v909 = vpop.f32.mrb[0].mxu0
      %v910 = vadd.f32 0.0, %v909
      %v911 = vpop.f32.mrb[0].mxu0
      %v912 = vpop.f32.mrb[0].mxu0
      %v913 = vadd.f32 0.0, %v912
      %v914 = vpop.f32.mrb[0].mxu0
      %915 = vmatprep.mubr.bf16.mxu0 0
      %916 = vmatmul.mubr.bf16.gmra.mrb[0].mxu0 %v809
      %v917 = vpop.f32.mrb[0].mxu0
      %v918 = vadd.f32 0.0, %v917
      %v919 = vpop.f32.mrb[0].mxu0
      %v920 = vpop.f32.mrb[0].mxu0
      %v921 = vpop.f32.mrb[0].mxu0
      %922 = vdwg.mxu0
      %v923 = vadd.f32 %v800, %v910
      %v924 = vadd.f32 %v801, %v913
      %v925 = vadd.f32 %v802, %v918
      %s926 = sadd.s32 %s195, 12
      %s927 = scalar_lea.vmem %s183, %s926
      %v928 = vld [vmem:[%s927] sm:$0xff]
      %v929 = vld [vmem:[%s927 + $0x8] sm:$0xff]
      %v930 = vld [vmem:[%s927 + $0x10] sm:$0xff]
      %v931 = vpack.c.bf16 %v929, %v928
      %v932 = vpack.c.bf16 %v930, %v930
      %s933 = scalar_lea.vmem %s1, 384
      %v934 = vld [vmem:[%s933] sm:$0xf]
      %v935 = vld [vmem:[%s933 + $0x4] sm:$0xf]
      %v936 = vld [vmem:[%s933 + $0x8] sm:$0xf]
      %v937 = vld [vmem:[%s933 + $0xc] sm:$0xf]
      %v938 = vld [vmem:[%s933 + $0x10] sm:$0xf]
      %v939 = vld [vmem:[%s933 + $0x14] sm:$0xf]
      %v940 = vld [vmem:[%s933 + $0x18] sm:$0xf]
      %v941 = vld [vmem:[%s933 + $0x1c] sm:$0xf]
      %v942 = vld [vmem:[%s933 + $0x20] sm:$0xf]
      %v943 = vld [vmem:[%s933 + $0x24] sm:$0xf]
      %v944 = vld [vmem:[%s933 + $0x28] sm:$0xf]
      %v945 = vld [vmem:[%s933 + $0x2c] sm:$0xf]
      %v946 = vld [vmem:[%s933 + $0x30] sm:$0xf]
      %v947 = vld [vmem:[%s933 + $0x34] sm:$0xf]
      %v948 = vld [vmem:[%s933 + $0x38] sm:$0xf]
      %v949 = vld [vmem:[%s933 + $0x3c] sm:$0xf]
      %v966 = vunpack.c.l.b16 %v934
      %v967 = vunpack.c.l.b16 %v935
      %v968 = vunpack.c.l.b16 %v936
      %v969 = vunpack.c.l.b16 %v937
      %v970 = vunpack.c.l.b16 %v938
      %v971 = vunpack.c.l.b16 %v939
      %v972 = vunpack.c.l.b16 %v940
      %v973 = vunpack.c.l.b16 %v941
      %v974 = vunpack.c.l.b16 %v942
      %v975 = vunpack.c.l.b16 %v943
      %v976 = vunpack.c.l.b16 %v944
      %v977 = vunpack.c.l.b16 %v945
      %v978 = vunpack.c.l.b16 %v946
      %v979 = vunpack.c.l.b16 %v947
      %v980 = vunpack.c.l.b16 %v948
      %v981 = vunpack.c.l.b16 %v949
      %v982 = vpack.c.b16 %v967, %v966
      %v983 = vpack.c.b16 %v969, %v968
      %v984 = vpack.c.b16 %v971, %v970
      %v985 = vpack.c.b16 %v973, %v972
      %v986 = vpack.c.b16 %v975, %v974
      %v987 = vpack.c.b16 %v977, %v976
      %v988 = vpack.c.b16 %v979, %v978
      %v989 = vpack.c.b16 %v981, %v980
      %998 = vmatprep.subr.bf16.mxu0 0
      %999 = vmatpush1.bf16.msra.mxu0 %v982
      %1000 = vmatprep.subr.bf16.mxu0 0
      %1001 = vmatpush1.bf16.msra.mxu0 %v983
      %1002 = vmatprep.subr.bf16.mxu0 0
      %1003 = vmatpush1.bf16.msra.mxu0 %v984
      %1004 = vmatprep.subr.bf16.mxu0 0
      %1005 = vmatpush1.bf16.msra.mxu0 %v985
      %1006 = vmatprep.subr.bf16.mxu0 0
      %1007 = vmatpush1.bf16.msra.mxu0 %v986
      %1008 = vmatprep.subr.bf16.mxu0 0
      %1009 = vmatpush1.bf16.msra.mxu0 %v987
      %1010 = vmatprep.subr.bf16.mxu0 0
      %1011 = vmatpush1.bf16.msra.mxu0 %v988
      %1012 = vmatprep.subr.bf16.mxu0 0
      %1013 = vmatpush1.bf16.msra.mxu0 %v989
      %1014 = vmatprep.subr.bf16.mxu0 0
      %1015 = vmatpush1.bf16.msra.mxu0 0
      %1016 = vmatprep.subr.bf16.mxu0 0
      %1017 = vmatpush1.bf16.msra.mxu0 0
      %1018 = vmatprep.subr.bf16.mxu0 0
      %1019 = vmatpush1.bf16.msra.mxu0 0
      %1020 = vmatprep.subr.bf16.mxu0 0
      %1021 = vmatpush1.bf16.msra.mxu0 0
      %1022 = vmatprep.subr.bf16.mxu0 0
      %1023 = vmatpush1.bf16.msra.mxu0 0
      %1024 = vmatprep.subr.bf16.mxu0 0
      %1025 = vmatpush1.bf16.msra.mxu0 0
      %1026 = vmatprep.subr.bf16.mxu0 0
      %1027 = vmatpush1.bf16.msra.mxu0 0
      %1028 = vmatprep.subr.bf16.mxu0 0
      %1029 = vmatpush1.bf16.msra.mxu0 0
      %1030 = vmatprep.mubr.bf16.mxu0 0
      %1031 = vmatmul.mubr.bf16.gmra.mrb[0].mxu0 %v931
      %v1032 = vpop.f32.mrb[0].mxu0
      %v1033 = vadd.f32 0.0, %v1032
      %v1034 = vpop.f32.mrb[0].mxu0
      %v1035 = vpop.f32.mrb[0].mxu0
      %v1036 = vadd.f32 0.0, %v1035
      %v1037 = vpop.f32.mrb[0].mxu0
      %1038 = vmatprep.mubr.bf16.mxu0 0
      %1039 = vmatmul.mubr.bf16.gmra.mrb[0].mxu0 %v932
      %v1040 = vpop.f32.mrb[0].mxu0
      %v1041 = vadd.f32 0.0, %v1040
      %v1042 = vpop.f32.mrb[0].mxu0
      %v1043 = vpop.f32.mrb[0].mxu0
      %v1044 = vpop.f32.mrb[0].mxu0
      %1045 = vdwg.mxu0
      %v1046 = vadd.f32 %v923, %v1033
      %v1047 = vadd.f32 %v924, %v1036
      %v1048 = vadd.f32 %v925, %v1041
      %s1049 = sadd.s32 %s195, 13
      %s1050 = scalar_lea.vmem %s183, %s1049
      %v1051 = vld [vmem:[%s1050] sm:$0xff]
      %v1052 = vld [vmem:[%s1050 + $0x8] sm:$0xff]
      %v1053 = vld [vmem:[%s1050 + $0x10] sm:$0xff]
      %v1054 = vpack.c.bf16 %v1052, %v1051
      %v1055 = vpack.c.bf16 %v1053, %v1053
      %s1056 = scalar_lea.vmem %s1, 448
      %v1057 = vld [vmem:[%s1056] sm:$0xf]
      %v1058 = vld [vmem:[%s1056 + $0x4] sm:$0xf]
      %v1059 = vld [vmem:[%s1056 + $0x8] sm:$0xf]
      %v1060 = vld [vmem:[%s1056 + $0xc] sm:$0xf]
      %v1061 = vld [vmem:[%s1056 + $0x10] sm:$0xf]
      %v1062 = vld [vmem:[%s1056 + $0x14] sm:$0xf]
      %v1063 = vld [vmem:[%s1056 + $0x18] sm:$0xf]
      %v1064 = vld [vmem:[%s1056 + $0x1c] sm:$0xf]
      %v1065 = vld [vmem:[%s1056 + $0x20] sm:$0xf]
      %v1066 = vld [vmem:[%s1056 + $0x24] sm:$0xf]
      %v1067 = vld [vmem:[%s1056 + $0x28] sm:$0xf]
      %v1068 = vld [vmem:[%s1056 + $0x2c] sm:$0xf]
      %v1069 = vld [vmem:[%s1056 + $0x30] sm:$0xf]
      %v1070 = vld [vmem:[%s1056 + $0x34] sm:$0xf]
      %v1071 = vld [vmem:[%s1056 + $0x38] sm:$0xf]
      %v1072 = vld [vmem:[%s1056 + $0x3c] sm:$0xf]
      %v1089 = vunpack.c.l.b16 %v1057
      %v1090 = vunpack.c.l.b16 %v1058
      %v1091 = vunpack.c.l.b16 %v1059
      %v1092 = vunpack.c.l.b16 %v1060
      %v1093 = vunpack.c.l.b16 %v1061
      %v1094 = vunpack.c.l.b16 %v1062
      %v1095 = vunpack.c.l.b16 %v1063
      %v1096 = vunpack.c.l.b16 %v1064
      %v1097 = vunpack.c.l.b16 %v1065
      %v1098 = vunpack.c.l.b16 %v1066
      %v1099 = vunpack.c.l.b16 %v1067
      %v1100 = vunpack.c.l.b16 %v1068
      %v1101 = vunpack.c.l.b16 %v1069
      %v1102 = vunpack.c.l.b16 %v1070
      %v1103 = vunpack.c.l.b16 %v1071
      %v1104 = vunpack.c.l.b16 %v1072
      %v1105 = vpack.c.b16 %v1090, %v1089
      %v1106 = vpack.c.b16 %v1092, %v1091
      %v1107 = vpack.c.b16 %v1094, %v1093
      %v1108 = vpack.c.b16 %v1096, %v1095
      %v1109 = vpack.c.b16 %v1098, %v1097
      %v1110 = vpack.c.b16 %v1100, %v1099
      %v1111 = vpack.c.b16 %v1102, %v1101
      %v1112 = vpack.c.b16 %v1104, %v1103
      %1121 = vmatprep.subr.bf16.mxu0 0
      %1122 = vmatpush1.bf16.msra.mxu0 %v1105
      %1123 = vmatprep.subr.bf16.mxu0 0
      %1124 = vmatpush1.bf16.msra.mxu0 %v1106
      %1125 = vmatprep.subr.bf16.mxu0 0
      %1126 = vmatpush1.bf16.msra.mxu0 %v1107
      %1127 = vmatprep.subr.bf16.mxu0 0
      %1128 = vmatpush1.bf16.msra.mxu0 %v1108
      %1129 = vmatprep.subr.bf16.mxu0 0
      %1130 = vmatpush1.bf16.msra.mxu0 %v1109
      %1131 = vmatprep.subr.bf16.mxu0 0
      %1132 = vmatpush1.bf16.msra.mxu0 %v1110
      %1133 = vmatprep.subr.bf16.mxu0 0
      %1134 = vmatpush1.bf16.msra.mxu0 %v1111
      %1135 = vmatprep.subr.bf16.mxu0 0
      %1136 = vmatpush1.bf16.msra.mxu0 %v1112
      %1137 = vmatprep.subr.bf16.mxu0 0
      %1138 = vmatpush1.bf16.msra.mxu0 0
      %1139 = vmatprep.subr.bf16.mxu0 0
      %1140 = vmatpush1.bf16.msra.mxu0 0
      %1141 = vmatprep.subr.bf16.mxu0 0
      %1142 = vmatpush1.bf16.msra.mxu0 0
      %1143 = vmatprep.subr.bf16.mxu0 0
      %1144 = vmatpush1.bf16.msra.mxu0 0
      %1145 = vmatprep.subr.bf16.mxu0 0
      %1146 = vmatpush1.bf16.msra.mxu0 0
      %1147 = vmatprep.subr.bf16.mxu0 0
      %1148 = vmatpush1.bf16.msra.mxu0 0
      %1149 = vmatprep.subr.bf16.mxu0 0
      %1150 = vmatpush1.bf16.msra.mxu0 0
      %1151 = vmatprep.subr.bf16.mxu0 0
      %1152 = vmatpush1.bf16.msra.mxu0 0
      %1153 = vmatprep.mubr.bf16.mxu0 0
      %1154 = vmatmul.mubr.bf16.gmra.mrb[0].mxu0 %v1054
      %v1155 = vpop.f32.mrb[0].mxu0
      %v1156 = vadd.f32 0.0, %v1155
      %v1157 = vpop.f32.mrb[0].mxu0
      %v1158 = vpop.f32.mrb[0].mxu0
      %v1159 = vadd.f32 0.0, %v1158
      %v1160 = vpop.f32.mrb[0].mxu0
      %1161 = vmatprep.mubr.bf16.mxu0 0
      %1162 = vmatmul.mubr.bf16.gmra.mrb[0].mxu0 %v1055
      %v1163 = vpop.f32.mrb[0].mxu0
      %v1164 = vadd.f32 0.0, %v1163
      %v1165 = vpop.f32.mrb[0].mxu0
      %v1166 = vpop.f32.mrb[0].mxu0
      %v1167 = vpop.f32.mrb[0].mxu0
      %1168 = vdwg.mxu0
      %v1169 = vadd.f32 %v1046, %v1156
      %v1170 = vadd.f32 %v1047, %v1159
      %v1171 = vadd.f32 %v1048, %v1164
      %s1172 = sadd.s32 %s195, 14
      %s1173 = scalar_lea.vmem %s183, %s1172
      %v1174 = vld [vmem:[%s1173] sm:$0xff]
      %v1175 = vld [vmem:[%s1173 + $0x8] sm:$0xff]
      %v1176 = vld [vmem:[%s1173 + $0x10] sm:$0xff]
      %v1177 = vpack.c.bf16 %v1175, %v1174
      %v1178 = vpack.c.bf16 %v1176, %v1176
      %s1179 = scalar_lea.vmem %s1, 512
      %v1180 = vld [vmem:[%s1179] sm:$0xf]
      %v1181 = vld [vmem:[%s1179 + $0x4] sm:$0xf]
      %v1182 = vld [vmem:[%s1179 + $0x8] sm:$0xf]
      %v1183 = vld [vmem:[%s1179 + $0xc] sm:$0xf]
      %v1184 = vld [vmem:[%s1179 + $0x10] sm:$0xf]
      %v1185 = vld [vmem:[%s1179 + $0x14] sm:$0xf]
      %v1186 = vld [vmem:[%s1179 + $0x18] sm:$0xf]
      %v1187 = vld [vmem:[%s1179 + $0x1c] sm:$0xf]
      %v1188 = vld [vmem:[%s1179 + $0x20] sm:$0xf]
      %v1189 = vld [vmem:[%s1179 + $0x24] sm:$0xf]
      %v1190 = vld [vmem:[%s1179 + $0x28] sm:$0xf]
      %v1191 = vld [vmem:[%s1179 + $0x2c] sm:$0xf]
      %v1192 = vld [vmem:[%s1179 + $0x30] sm:$0xf]
      %v1193 = vld [vmem:[%s1179 + $0x34] sm:$0xf]
      %v1194 = vld [vmem:[%s1179 + $0x38] sm:$0xf]
      %v1195 = vld [vmem:[%s1179 + $0x3c] sm:$0xf]
      %v1212 = vunpack.c.l.b16 %v1180
      %v1213 = vunpack.c.l.b16 %v1181
      %v1214 = vunpack.c.l.b16 %v1182
      %v1215 = vunpack.c.l.b16 %v1183
      %v1216 = vunpack.c.l.b16 %v1184
      %v1217 = vunpack.c.l.b16 %v1185
      %v1218 = vunpack.c.l.b16 %v1186
      %v1219 = vunpack.c.l.b16 %v1187
      %v1220 = vunpack.c.l.b16 %v1188
      %v1221 = vunpack.c.l.b16 %v1189
      %v1222 = vunpack.c.l.b16 %v1190
      %v1223 = vunpack.c.l.b16 %v1191
      %v1224 = vunpack.c.l.b16 %v1192
      %v1225 = vunpack.c.l.b16 %v1193
      %v1226 = vunpack.c.l.b16 %v1194
      %v1227 = vunpack.c.l.b16 %v1195
      %v1228 = vpack.c.b16 %v1213, %v1212
      %v1229 = vpack.c.b16 %v1215, %v1214
      %v1230 = vpack.c.b16 %v1217, %v1216
      %v1231 = vpack.c.b16 %v1219, %v1218
      %v1232 = vpack.c.b16 %v1221, %v1220
      %v1233 = vpack.c.b16 %v1223, %v1222
      %v1234 = vpack.c.b16 %v1225, %v1224
      %v1235 = vpack.c.b16 %v1227, %v1226
      %1244 = vmatprep.subr.bf16.mxu0 0
      %1245 = vmatpush1.bf16.msra.mxu0 %v1228
      %1246 = vmatprep.subr.bf16.mxu0 0
      %1247 = vmatpush1.bf16.msra.mxu0 %v1229
      %1248 = vmatprep.subr.bf16.mxu0 0
      %1249 = vmatpush1.bf16.msra.mxu0 %v1230
      %1250 = vmatprep.subr.bf16.mxu0 0
      %1251 = vmatpush1.bf16.msra.mxu0 %v1231
      %1252 = vmatprep.subr.bf16.mxu0 0
      %1253 = vmatpush1.bf16.msra.mxu0 %v1232
      %1254 = vmatprep.subr.bf16.mxu0 0
      %1255 = vmatpush1.bf16.msra.mxu0 %v1233
      %1256 = vmatprep.subr.bf16.mxu0 0
      %1257 = vmatpush1.bf16.msra.mxu0 %v1234
      %1258 = vmatprep.subr.bf16.mxu0 0
      %1259 = vmatpush1.bf16.msra.mxu0 %v1235
      %1260 = vmatprep.subr.bf16.mxu0 0
      %1261 = vmatpush1.bf16.msra.mxu0 0
      %1262 = vmatprep.subr.bf16.mxu0 0
      %1263 = vmatpush1.bf16.msra.mxu0 0
      %1264 = vmatprep.subr.bf16.mxu0 0
      %1265 = vmatpush1.bf16.msra.mxu0 0
      %1266 = vmatprep.subr.bf16.mxu0 0
      %1267 = vmatpush1.bf16.msra.mxu0 0
      %1268 = vmatprep.subr.bf16.mxu0 0
      %1269 = vmatpush1.bf16.msra.mxu0 0
      %1270 = vmatprep.subr.bf16.mxu0 0
      %1271 = vmatpush1.bf16.msra.mxu0 0
      %1272 = vmatprep.subr.bf16.mxu0 0
      %1273 = vmatpush1.bf16.msra.mxu0 0
      %1274 = vmatprep.subr.bf16.mxu0 0
      %1275 = vmatpush1.bf16.msra.mxu0 0
      %1276 = vmatprep.mubr.bf16.mxu0 0
      %1277 = vmatmul.mubr.bf16.gmra.mrb[0].mxu0 %v1177
      %v1278 = vpop.f32.mrb[0].mxu0
      %v1279 = vadd.f32 0.0, %v1278
      %v1280 = vpop.f32.mrb[0].mxu0
      %v1281 = vpop.f32.mrb[0].mxu0
      %v1282 = vadd.f32 0.0, %v1281
      %v1283 = vpop.f32.mrb[0].mxu0
      %1284 = vmatprep.mubr.bf16.mxu0 0
      %1285 = vmatmul.mubr.bf16.gmra.mrb[0].mxu0 %v1178
      %v1286 = vpop.f32.mrb[0].mxu0
      %v1287 = vadd.f32 0.0, %v1286
      %v1288 = vpop.f32.mrb[0].mxu0
      %v1289 = vpop.f32.mrb[0].mxu0
      %v1290 = vpop.f32.mrb[0].mxu0
      %1291 = vdwg.mxu0
      %v1292 = vadd.f32 %v1169, %v1279
      %v1293 = vadd.f32 %v1170, %v1282
      %v1294 = vadd.f32 %v1171, %v1287
      %v1295 = vld [vmem:[%s2] sm:$0x1]
      %v1297 = vlaneseq
      %v1298 = vshrl.u32 %v1297, 7
      %v1299 = vsub.s32 0, %v1298
      %v1300 = vrot.slane %v1295, %v1299
      %v1302 = vadd.f32 %v1292, %v1300
      %v1303 = vadd.f32 %v1293, %v1300
      %v1304 = vadd.f32 %v1294, %v1300
      %1305 = vst [vmem:[%s192] sm:$0xff] %v1302
      %1306 = vst [vmem:[%s192 + $0x8] sm:$0xff] %v1303
      %1307 = vst [vmem:[%s192 + $0x10] sm:$0xff] %v1304
      %s1308 = smul.u32 3, %s19
      %p1309 = scmp.lt.s32.totalorder %s18, 1
      %s1310 = scalar_select %p1309, %s18, 1
      %p1311 = scmp.lt.s32.totalorder %s1308, 2
      %s1312 = scalar_select %p1311, %s1308, 2
      %s1313 = smul.addr %s1310, 3
      %s1314 = sadd.s32 %s1312, %s1313
      %s1315 = smul.addr %s1314, 8
      %s1316 = scalar_lea.vmem %s3, %s1315
      // Predicated region
      $region33: #{fpn_forward.13} parent=31 // pred_check
        %p1317 = pneg %p114
      $region34: #{fpn_forward.13} parent=31 // pred_check_branch
        %1319 = sbr.rel (%p1317) target = $region36
      $region35: #{fpn_forward.13} parent=31 // pred_region
        %s1320 = smul.u32 3, %s19
      $region36: #{fpn_forward.13} parent=31 // pred_fallthru
        _
    $region32: #{fpn_forward.13} parent=5 // pred_fallthru
      _
    %p1321 = scmp.le.s32.totalorder 2, %s9
    // Predicated region
    $region37: #{fpn_forward.13} parent=5 // pred_check
      %p1322 = pneg %p1321
    $region38: #{fpn_forward.13} parent=5 // pred_check_branch
      %1324 = sbr.rel (%p1322) target = $region40
    $region39: #{fpn_forward.13} parent=5 // pred_region
      %s1325 = ssub.s32 %s9, 2
      // Predicated region
      $region41: #{fpn_forward.13} parent=39 // pred_check
        %p1326 = pneg %p120
      $region42: #{fpn_forward.13} parent=39 // pred_check_branch
        %1328 = sbr.rel (%p1326) target = $region44
      $region43: #{fpn_forward.13} parent=39 // pred_region
        %s1329 = smul.u32 3, %s21
        %p1330 = scmp.lt.s32.totalorder %s20, 1
        %s1331 = scalar_select %p1330, %s20, 1
        %p1332 = scmp.lt.s32.totalorder %s1329, 2
        %s1333 = scalar_select %p1332, %s1329, 2
        %s1334 = smul.addr %s1331, 3
        %s1335 = sadd.s32 %s1333, %s1334
        %s1336 = smul.addr %s1335, 8
        %s1337 = scalar_lea.vmem %s3, %s1336
      $region44: #{fpn_forward.13} parent=39 // pred_fallthru
        _
    $region40: #{fpn_forward.13} parent=5 // pred_fallthru
      _
  $region6: #{fpn_forward.13} parent=0 // loop_footer
    %s13 = sadd.s32 1, %s9
  $region7: #{fpn_forward.13} parent=0 // loop_footer_branch
    %8 = sbr.rel target = $region3
  $region8: #{fpn_forward.13} parent=0 // loop_exit
    _

// kernel: fpn_forward.12
$region0: #{fpn_forward.12}
  #allocation0 [shape = 'u32[]', space=smem, size = 0x4, offset = 0x4, fixed_abs, tag = 'smem constant byte address 0x4 - core index']
  #allocation1 [shape = 'u32[144,128]{1,0:T(1,128)}', space=vmem, size = 0x12000, scoped, tag = 'internal scratch']
  %s0 = inlined_call_operand.vmem [shape: f32[2,24,128], index: 0, kind: input, shape index: {}]
  %s1 = inlined_call_operand.vmem [shape: bf16[9,128,128], index: 1, kind: input, shape index: {}]
  %s2 = inlined_call_operand.vmem [shape: f32[1,128], index: 2, kind: input, shape index: {}]
  %s3 = inlined_call_operand.vmem [shape: f32[2,8,128], index: 3, kind: output, shape index: {}]
  %s4 = sld [smem:[#allocation0]]
  $region45: #{fpn_forward.12} parent=0
    _
  %s6 = ssub.s32 1, %s4
  %s7 = scalar_select 0, %s6, %s4
  loop: start=0, step=1, limit=4
  $region2: #{fpn_forward.12} parent=0 // loop_pre_header
    _
  $region3: #{fpn_forward.12} parent=0 // loop_header
    %s9 = sphi 0, %s13
    %p10 = scmp.ge.s32.totalorder %s9, 4
    %s16 = sphi 0, %s28
    %s17 = sphi 0, %s24
    %s18 = sphi 0, %s16
    %s19 = sphi 0, %s17
    %s20 = sphi 0, %s18
    %s21 = sphi 0, %s19
    %s31 = sphi 0, %s33
    %s34 = sphi 0, %s31
    %s35 = sphi 0, %s34
    %s51 = sphi 0, %s35
    %s55 = sphi 0, %s55
    %s57 = sphi 0, %s55
    %s58 = sphi 0, %s57
    %s72 = sphi 0, %s58
    %s76 = sphi 0, %s76
    %s78 = sphi 0, %s76
    %s79 = sphi 0, %s78
    %s93 = sphi 0, %s79
    %s101 = sphi 0, %s103
    %s104 = sphi 0, %s101
    %s105 = sphi 0, %s104
    %s121 = sphi 0, %s105
  $region4: #{fpn_forward.12} parent=0 // loop_header_branch
    %12 = sbr.rel (%p10) target = $region8
  $region5: #{fpn_forward.12} parent=0 // loop_body
    %s14 = ssub.s32 %s9, 1
    %s15 = ssub.s32 %s9, 2
    %s22 = sadd.s32 1, %s17
    %p23 = scmp.ge.s32.totalorder %s22, 1
    %s24 = scalar_select %p23, 0, %s22
    %s25 = sadd.s32 1, %s16
    %s26 = scalar_select %p23, %s25, %s16
    %p27 = scmp.ge.s32.totalorder %s26, 2
    %s28 = scalar_select %p27, 0, %s26
    %s29 = ssub.s32 %s16, %s28
    %p30 = scmp.eq.s32.totalorder %s29, 0
    %s32 = sadd.s32 %s31, 1
    %s33 = scalar_select %p30, %s31, %s32
    %p36 = pneg %p30
    %p37 = scmp.eq.s32.totalorder %s9, 1
    %p38 = por %p36, %p37
    %p39 = scmp.ne.s32.totalorder %s31, %s34
    %p40 = scmp.eq.s32.totalorder %s9, 0
    %p41 = por %p39, %p40
    %p42 = scmp.ne.s32.totalorder %s31, %s34
    %p43 = scmp.eq.s32.totalorder %s14, 1
    %p44 = por %p42, %p43
    %p45 = scmp.ne.s32.totalorder %s34, %s35
    %p46 = scmp.eq.s32.totalorder %s14, 0
    %p47 = por %p45, %p46
    %p48 = scmp.ne.s32.totalorder %s34, %s35
    %p49 = scmp.eq.s32.totalorder %s15, 1
    %p50 = por %p48, %p49
    %p52 = scmp.ne.s32.totalorder %s35, %s51
    %p53 = scmp.eq.s32.totalorder %s15, 0
    %p54 = por %p52, %p53
    %s56 = sadd.s32 %s55, 1
    %p59 = scmp.eq.s32.totalorder %s9, 1
    %p60 = scmp.ne.s32.totalorder %s55, %s57
    %p61 = scmp.eq.s32.totalorder %s9, 0
    %p62 = por %p60, %p61
    %p63 = scmp.ne.s32.totalorder %s55, %s57
    %p64 = scmp.eq.s32.totalorder %s14, 1
    %p65 = por %p63, %p64
    %p66 = scmp.ne.s32.totalorder %s57, %s58
    %p67 = scmp.eq.s32.totalorder %s14, 0
    %p68 = por %p66, %p67
    %p69 = scmp.ne.s32.totalorder %s57, %s58
    %p70 = scmp.eq.s32.totalorder %s15, 1
    %p71 = por %p69, %p70
    %p73 = scmp.ne.s32.totalorder %s58, %s72
    %p74 = scmp.eq.s32.totalorder %s15, 0
    %p75 = por %p73, %p74
    %s77 = sadd.s32 %s76, 1
    %p80 = scmp.eq.s32.totalorder %s9, 1
    %p81 = scmp.ne.s32.totalorder %s76, %s78
    %p82 = scmp.eq.s32.totalorder %s9, 0
    %p83 = por %p81, %p82
    %p84 = scmp.ne.s32.totalorder %s76, %s78
    %p85 = scmp.eq.s32.totalorder %s14, 1
    %p86 = por %p84, %p85
    %p87 = scmp.ne.s32.totalorder %s78, %s79
    %p88 = scmp.eq.s32.totalorder %s14, 0
    %p89 = por %p87, %p88
    %p90 = scmp.ne.s32.totalorder %s78, %s79
    %p91 = scmp.eq.s32.totalorder %s15, 1
    %p92 = por %p90, %p91
    %p94 = scmp.ne.s32.totalorder %s79, %s93
    %p95 = scmp.eq.s32.totalorder %s15, 0
    %p96 = por %p94, %p95
    %s97 = ssub.s32 %s16, %s28
    %s98 = ssub.s32 %s17, %s24
    %s99 = sor.u32 %s97, %s98
    %p100 = scmp.eq.s32.totalorder %s99, 0
    %s102 = sadd.s32 %s101, 1
    %s103 = scalar_select %p100, %s101, %s102
    %p106 = pneg %p100
    %p107 = scmp.eq.s32.totalorder %s9, 1
    %p108 = por %p106, %p107
    %p109 = scmp.ne.s32.totalorder %s101, %s104
    %p110 = scmp.eq.s32.totalorder %s9, 0
    %p111 = por %p109, %p110
    %p112 = scmp.ne.s32.totalorder %s101, %s104
    %p113 = scmp.eq.s32.totalorder %s14, 1
    %p114 = por %p112, %p113
    %p115 = scmp.ne.s32.totalorder %s104, %s105
    %p116 = scmp.eq.s32.totalorder %s14, 0
    %p117 = por %p115, %p116
    %p118 = scmp.ne.s32.totalorder %s104, %s105
    %p119 = scmp.eq.s32.totalorder %s15, 1
    %p120 = por %p118, %p119
    %p122 = scmp.ne.s32.totalorder %s105, %s121
    %p123 = scmp.eq.s32.totalorder %s15, 0
    %p124 = por %p122, %p123
    %p125 = scmp.le.s32.totalorder 1, %s9
    %p126 = scmp.lt.s32.totalorder %s9, 3
    %p127 = pnand %p125, %p126
    %p128 = pneg %p127
    // Predicated region
    $region9: #{fpn_forward.12} parent=5 // pred_check
      _
    $region10: #{fpn_forward.12} parent=5 // pred_check_branch
      %130 = sbr.rel (%p127) target = $region12
    $region11: #{fpn_forward.12} parent=5 // pred_region
      %s131 = ssub.s32 %s9, 1
      // Predicated region
      $region13: #{fpn_forward.12} parent=11 // pred_check
        %p132 = pneg %p68
      $region14: #{fpn_forward.12} parent=11 // pred_check_branch
        %134 = sbr.rel (%p132) target = $region16
      $region15: #{fpn_forward.12} parent=11 // pred_region
        _
      $region16: #{fpn_forward.12} parent=11 // pred_fallthru
        _
      // Predicated region
      $region17: #{fpn_forward.12} parent=11 // pred_check
        %p135 = pneg %p89
      $region18: #{fpn_forward.12} parent=11 // pred_check_branch
        %137 = sbr.rel (%p135) target = $region20
      $region19: #{fpn_forward.12} parent=11 // pred_region
        _
      $region20: #{fpn_forward.12} parent=11 // pred_fallthru
        _
    $region12: #{fpn_forward.12} parent=5 // pred_fallthru
      _
    %p138 = scmp.lt.s32.totalorder %s9, 2
    // Predicated region
    $region21: #{fpn_forward.12} parent=5 // pred_check
      %p139 = pneg %p138
    $region22: #{fpn_forward.12} parent=5 // pred_check_branch
      %141 = sbr.rel (%p139) target = $region24
    $region23: #{fpn_forward.12} parent=5 // pred_region
      // Predicated region
      $region25: #{fpn_forward.12} parent=23 // pred_check
        %p142 = pneg %p41
      $region26: #{fpn_forward.12} parent=23 // pred_check_branch
        %144 = sbr.rel (%p142) target = $region28
      $region27: #{fpn_forward.12} parent=23 // pred_region
        %p145 = scmp.lt.s32.totalorder %s16, 1
        %s146 = scalar_select %p145, %s16, 1
        %s147 = smul.addr %s146, 3
        %s148 = smul.addr %s147, 8
        %s149 = scalar_lea.vmem %s0, %s148
      $region28: #{fpn_forward.12} parent=23 // pred_fallthru
        _
    $region24: #{fpn_forward.12} parent=5 // pred_fallthru
      _
    %p150 = scmp.le.s32.totalorder 1, %s9
    %p151 = scmp.lt.s32.totalorder %s9, 3
    %p152 = pnand %p150, %p151
    %p153 = pneg %p152
    // Predicated region
    $region29: #{fpn_forward.12} parent=5 // pred_check
      _
    $region30: #{fpn_forward.12} parent=5 // pred_check_branch
      %155 = sbr.rel (%p152) target = $region32
    $region31: #{fpn_forward.12} parent=5 // pred_region
      %s156 = ssub.s32 %s9, 1
      %p157 = scmp.lt.s32.totalorder %s18, 1
      %s158 = scalar_select %p157, %s18, 1
      %s159 = smul.addr %s158, 3
      %s160 = smul.addr %s159, 8
      %s161 = scalar_lea.vmem %s0, %s160
      %p162 = pneg %p47
      %p163 = pneg %p44
      %p164 = pneg %p68
      %p165 = pneg %p65
      %p166 = pneg %p89
      %p167 = pneg %p86
      %p168 = pneg %p117
      %p169 = pneg %p114
      %p170 = scmp.lt.s32.totalorder %s18, 1
      %s171 = scalar_select %p170, %s18, 1
      %p172 = scmp.lt.s32.totalorder %s19, 0
      %s173 = scalar_select %p172, %s19, 0
      %s174 = sadd.s32 %s173, %s171
      %s175 = smul.addr %s174, 8
      %s176 = scalar_lea.vmem %s3, %s175
      %p177 = scmp.lt.s32.totalorder %s18, 1
      %s178 = scalar_select %p177, %s18, 1
      %s179 = smul.addr %s178, 3
      %s180 = smul.addr %s179, 8
      %s181 = scalar_lea.vmem %s0, %s180
      %p182 = scmp.lt.s32.totalorder %s18, 1
      %s183 = scalar_select %p182, %s18, 1
      %p184 = scmp.lt.s32.totalorder %s19, 0
      %s185 = scalar_select %p184, %s19, 0
      %s186 = sadd.s32 %s185, %s183
      %s187 = smul.addr %s186, 8
      %s188 = scalar_lea.vmem %s3, %s187
      %s190 = smul.u32 %s19, 8
      %s191 = scalar_lea.vmem %s181, %s190
      %v192 = vld [vmem:[%s191] sm:$0xff]
      %v193 = vmax.f32 %v192, 0.0
      %v194 = vpack.c.bf16 %v193, %v193
      %v195 = vld [vmem:[%s1] sm:$0xf]
      %v196 = vld [vmem:[%s1 + $0x4] sm:$0xf]
      %v197 = vld [vmem:[%s1 + $0x8] sm:$0xf]
      %v198 = vld [vmem:[%s1 + $0xc] sm:$0xf]
      %v199 = vld [vmem:[%s1 + $0x10] sm:$0xf]
      %v200 = vld [vmem:[%s1 + $0x14] sm:$0xf]
      %v201 = vld [vmem:[%s1 + $0x18] sm:$0xf]
      %v202 = vld [vmem:[%s1 + $0x1c] sm:$0xf]
      %v203 = vld [vmem:[%s1 + $0x20] sm:$0xf]
      %v204 = vld [vmem:[%s1 + $0x24] sm:$0xf]
      %v205 = vld [vmem:[%s1 + $0x28] sm:$0xf]
      %v206 = vld [vmem:[%s1 + $0x2c] sm:$0xf]
      %v207 = vld [vmem:[%s1 + $0x30] sm:$0xf]
      %v208 = vld [vmem:[%s1 + $0x34] sm:$0xf]
      %v209 = vld [vmem:[%s1 + $0x38] sm:$0xf]
      %v210 = vld [vmem:[%s1 + $0x3c] sm:$0xf]
      %s211 = sadd.s32 %s190, 1
      %s212 = scalar_lea.vmem %s181, %s211
      %v213 = vld [vmem:[%s212] sm:$0xff]
      %v214 = vmax.f32 %v213, 0.0
      %v215 = vpack.c.bf16 %v214, %v214
      %s216 = scalar_lea.vmem %s1, 64
      %v217 = vld [vmem:[%s216] sm:$0xf]
      %v218 = vld [vmem:[%s216 + $0x4] sm:$0xf]
      %v219 = vld [vmem:[%s216 + $0x8] sm:$0xf]
      %v220 = vld [vmem:[%s216 + $0xc] sm:$0xf]
      %v221 = vld [vmem:[%s216 + $0x10] sm:$0xf]
      %v222 = vld [vmem:[%s216 + $0x14] sm:$0xf]
      %v223 = vld [vmem:[%s216 + $0x18] sm:$0xf]
      %v224 = vld [vmem:[%s216 + $0x1c] sm:$0xf]
      %v225 = vld [vmem:[%s216 + $0x20] sm:$0xf]
      %v226 = vld [vmem:[%s216 + $0x24] sm:$0xf]
      %v227 = vld [vmem:[%s216 + $0x28] sm:$0xf]
      %v228 = vld [vmem:[%s216 + $0x2c] sm:$0xf]
      %v229 = vld [vmem:[%s216 + $0x30] sm:$0xf]
      %v230 = vld [vmem:[%s216 + $0x34] sm:$0xf]
      %v231 = vld [vmem:[%s216 + $0x38] sm:$0xf]
      %v232 = vld [vmem:[%s216 + $0x3c] sm:$0xf]
      %v249 = vunpack.c.l.b16 %v217
      %v250 = vunpack.c.l.b16 %v218
      %v251 = vunpack.c.l.b16 %v219
      %v252 = vunpack.c.l.b16 %v220
      %v253 = vunpack.c.l.b16 %v221
      %v254 = vunpack.c.l.b16 %v222
      %v255 = vunpack.c.l.b16 %v223
      %v256 = vunpack.c.l.b16 %v224
      %v257 = vunpack.c.l.b16 %v225
      %v258 = vunpack.c.l.b16 %v226
      %v259 = vunpack.c.l.b16 %v227
      %v260 = vunpack.c.l.b16 %v228
      %v261 = vunpack.c.l.b16 %v229
      %v262 = vunpack.c.l.b16 %v230
      %v263 = vunpack.c.l.b16 %v231
      %v264 = vunpack.c.l.b16 %v232
      %v265 = vpack.c.b16 %v250, %v249
      %v266 = vpack.c.b16 %v252, %v251
      %v267 = vpack.c.b16 %v254, %v253
      %v268 = vpack.c.b16 %v256, %v255
      %v269 = vpack.c.b16 %v258, %v257
      %v270 = vpack.c.b16 %v260, %v259
      %v271 = vpack.c.b16 %v262, %v261
      %v272 = vpack.c.b16 %v264, %v263
      %281 = vmatprep.subr.bf16.mxu0 0
      %282 = vmatpush1.bf16.msra.mxu0 %v265
      %283 = vmatprep.subr.bf16.mxu0 0
      %284 = vmatpush1.bf16.msra.mxu0 %v266
      %285 = vmatprep.subr.bf16.mxu0 0
      %286 = vmatpush1.bf16.msra.mxu0 %v267
      %287 = vmatprep.subr.bf16.mxu0 0
      %288 = vmatpush1.bf16.msra.mxu0 %v268
      %289 = vmatprep.subr.bf16.mxu0 0
      %290 = vmatpush1.bf16.msra.mxu0 %v269
      %291 = vmatprep.subr.bf16.mxu0 0
      %292 = vmatpush1.bf16.msra.mxu0 %v270
      %293 = vmatprep.subr.bf16.mxu0 0
      %294 = vmatpush1.bf16.msra.mxu0 %v271
      %295 = vmatprep.subr.bf16.mxu0 0
      %296 = vmatpush1.bf16.msra.mxu0 %v272
      %297 = vmatprep.subr.bf16.mxu0 0
      %298 = vmatpush1.bf16.msra.mxu0 0
      %299 = vmatprep.subr.bf16.mxu0 0
      %300 = vmatpush1.bf16.msra.mxu0 0
      %301 = vmatprep.subr.bf16.mxu0 0
      %302 = vmatpush1.bf16.msra.mxu0 0
      %303 = vmatprep.subr.bf16.mxu0 0
      %304 = vmatpush1.bf16.msra.mxu0 0
      %305 = vmatprep.subr.bf16.mxu0 0
      %306 = vmatpush1.bf16.msra.mxu0 0
      %307 = vmatprep.subr.bf16.mxu0 0
      %308 = vmatpush1.bf16.msra.mxu0 0
      %309 = vmatprep.subr.bf16.mxu0 0
      %310 = vmatpush1.bf16.msra.mxu0 0
      %311 = vmatprep.subr.bf16.mxu0 0
      %312 = vmatpush1.bf16.msra.mxu0 0
      %313 = vmatprep.mubr.bf16.mxu0 0
      %314 = vmatmul.mubr.bf16.gmra.mrb[0].mxu0 %v215
      %v315 = vpop.f32.mrb[0].mxu0
      %v316 = vadd.f32 0.0, %v315
      %v317 = vpop.f32.mrb[0].mxu0
      %v318 = vpop.f32.mrb[0].mxu0
      %v319 = vpop.f32.mrb[0].mxu0
      %320 = vdwg.mxu0
      %v337 = vunpack.c.l.b16 %v195
      %v338 = vunpack.c.l.b16 %v196
      %v339 = vunpack.c.l.b16 %v197
      %v340 = vunpack.c.l.b16 %v198
      %v341 = vunpack.c.l.b16 %v199
      %v342 = vunpack.c.l.b16 %v200
      %v343 = vunpack.c.l.b16 %v201
      %v344 = vunpack.c.l.b16 %v202
      %v345 = vunpack.c.l.b16 %v203
      %v346 = vunpack.c.l.b16 %v204
      %v347 = vunpack.c.l.b16 %v205
      %v348 = vunpack.c.l.b16 %v206
      %v349 = vunpack.c.l.b16 %v207
      %v350 = vunpack.c.l.b16 %v208
      %v351 = vunpack.c.l.b16 %v209
      %v352 = vunpack.c.l.b16 %v210
      %v353 = vpack.c.b16 %v338, %v337
      %v354 = vpack.c.b16 %v340, %v339
      %v355 = vpack.c.b16 %v342, %v341
      %v356 = vpack.c.b16 %v344, %v343
      %v357 = vpack.c.b16 %v346, %v345
      %v358 = vpack.c.b16 %v348, %v347
      %v359 = vpack.c.b16 %v350, %v349
      %v360 = vpack.c.b16 %v352, %v351
      %369 = vmatprep.subr.bf16.mxu0 0
      %370 = vmatpush1.bf16.msra.mxu0 %v353
      %371 = vmatprep.subr.bf16.mxu0 0
      %372 = vmatpush1.bf16.msra.mxu0 %v354
      %373 = vmatprep.subr.bf16.mxu0 0
      %374 = vmatpush1.bf16.msra.mxu0 %v355
      %375 = vmatprep.subr.bf16.mxu0 0
      %376 = vmatpush1.bf16.msra.mxu0 %v356
      %377 = vmatprep.subr.bf16.mxu0 0
      %378 = vmatpush1.bf16.msra.mxu0 %v357
      %379 = vmatprep.subr.bf16.mxu0 0
      %380 = vmatpush1.bf16.msra.mxu0 %v358
      %381 = vmatprep.subr.bf16.mxu0 0
      %382 = vmatpush1.bf16.msra.mxu0 %v359
      %383 = vmatprep.subr.bf16.mxu0 0
      %384 = vmatpush1.bf16.msra.mxu0 %v360
      %385 = vmatprep.subr.bf16.mxu0 0
      %386 = vmatpush1.bf16.msra.mxu0 0
      %387 = vmatprep.subr.bf16.mxu0 0
      %388 = vmatpush1.bf16.msra.mxu0 0
      %389 = vmatprep.subr.bf16.mxu0 0
      %390 = vmatpush1.bf16.msra.mxu0 0
      %391 = vmatprep.subr.bf16.mxu0 0
      %392 = vmatpush1.bf16.msra.mxu0 0
      %393 = vmatprep.subr.bf16.mxu0 0
      %394 = vmatpush1.bf16.msra.mxu0 0
      %395 = vmatprep.subr.bf16.mxu0 0
      %396 = vmatpush1.bf16.msra.mxu0 0
      %397 = vmatprep.subr.bf16.mxu0 0
      %398 = vmatpush1.bf16.msra.mxu0 0
      %399 = vmatprep.subr.bf16.mxu0 0
      %400 = vmatpush1.bf16.msra.mxu0 0
      %401 = vmatprep.mubr.bf16.mxu0 0
      %402 = vmatmul.mubr.bf16.gmra.mrb[0].mxu0 %v194
      %v403 = vpop.f32.mrb[0].mxu0
      %v404 = vadd.f32 %v316, %v403
      %v405 = vpop.f32.mrb[0].mxu0
      %v406 = vpop.f32.mrb[0].mxu0
      %v407 = vpop.f32.mrb[0].mxu0
      %408 = vdwg.mxu0
      %s409 = sadd.s32 %s190, 2
      %s410 = scalar_lea.vmem %s181, %s409
      %v411 = vld [vmem:[%s410] sm:$0xff]
      %v412 = vmax.f32 %v411, 0.0
      %v413 = vpack.c.bf16 %v412, %v412
      %s414 = scalar_lea.vmem %s1, 128
      %v415 = vld [vmem:[%s414] sm:$0xf]
      %v416 = vld [vmem:[%s414 + $0x4] sm:$0xf]
      %v417 = vld [vmem:[%s414 + $0x8] sm:$0xf]
      %v418 = vld [vmem:[%s414 + $0xc] sm:$0xf]
      %v419 = vld [vmem:[%s414 + $0x10] sm:$0xf]
      %v420 = vld [vmem:[%s414 + $0x14] sm:$0xf]
      %v421 = vld [vmem:[%s414 + $0x18] sm:$0xf]
      %v422 = vld [vmem:[%s414 + $0x1c] sm:$0xf]
      %v423 = vld [vmem:[%s414 + $0x20] sm:$0xf]
      %v424 = vld [vmem:[%s414 + $0x24] sm:$0xf]
      %v425 = vld [vmem:[%s414 + $0x28] sm:$0xf]
      %v426 = vld [vmem:[%s414 + $0x2c] sm:$0xf]
      %v427 = vld [vmem:[%s414 + $0x30] sm:$0xf]
      %v428 = vld [vmem:[%s414 + $0x34] sm:$0xf]
      %v429 = vld [vmem:[%s414 + $0x38] sm:$0xf]
      %v430 = vld [vmem:[%s414 + $0x3c] sm:$0xf]
      %v447 = vunpack.c.l.b16 %v415
      %v448 = vunpack.c.l.b16 %v416
      %v449 = vunpack.c.l.b16 %v417
      %v450 = vunpack.c.l.b16 %v418
      %v451 = vunpack.c.l.b16 %v419
      %v452 = vunpack.c.l.b16 %v420
      %v453 = vunpack.c.l.b16 %v421
      %v454 = vunpack.c.l.b16 %v422
      %v455 = vunpack.c.l.b16 %v423
      %v456 = vunpack.c.l.b16 %v424
      %v457 = vunpack.c.l.b16 %v425
      %v458 = vunpack.c.l.b16 %v426
      %v459 = vunpack.c.l.b16 %v427
      %v460 = vunpack.c.l.b16 %v428
      %v461 = vunpack.c.l.b16 %v429
      %v462 = vunpack.c.l.b16 %v430
      %v463 = vpack.c.b16 %v448, %v447
      %v464 = vpack.c.b16 %v450, %v449
      %v465 = vpack.c.b16 %v452, %v451
      %v466 = vpack.c.b16 %v454, %v453
      %v467 = vpack.c.b16 %v456, %v455
      %v468 = vpack.c.b16 %v458, %v457
      %v469 = vpack.c.b16 %v460, %v459
      %v470 = vpack.c.b16 %v462, %v461
      %479 = vmatprep.subr.bf16.mxu0 0
      %480 = vmatpush1.bf16.msra.mxu0 %v463
      %481 = vmatprep.subr.bf16.mxu0 0
      %482 = vmatpush1.bf16.msra.mxu0 %v464
      %483 = vmatprep.subr.bf16.mxu0 0
      %484 = vmatpush1.bf16.msra.mxu0 %v465
      %485 = vmatprep.subr.bf16.mxu0 0
      %486 = vmatpush1.bf16.msra.mxu0 %v466
      %487 = vmatprep.subr.bf16.mxu0 0
      %488 = vmatpush1.bf16.msra.mxu0 %v467
      %489 = vmatprep.subr.bf16.mxu0 0
      %490 = vmatpush1.bf16.msra.mxu0 %v468
      %491 = vmatprep.subr.bf16.mxu0 0
      %492 = vmatpush1.bf16.msra.mxu0 %v469
      %493 = vmatprep.subr.bf16.mxu0 0
      %494 = vmatpush1.bf16.msra.mxu0 %v470
      %495 = vmatprep.subr.bf16.mxu0 0
      %496 = vmatpush1.bf16.msra.mxu0 0
      %497 = vmatprep.subr.bf16.mxu0 0
      %498 = vmatpush1.bf16.msra.mxu0 0
      %499 = vmatprep.subr.bf16.mxu0 0
      %500 = vmatpush1.bf16.msra.mxu0 0
      %501 = vmatprep.subr.bf16.mxu0 0
      %502 = vmatpush1.bf16.msra.mxu0 0
      %503 = vmatprep.subr.bf16.mxu0 0
      %504 = vmatpush1.bf16.msra.mxu0 0
      %505 = vmatprep.subr.bf16.mxu0 0
      %506 = vmatpush1.bf16.msra.mxu0 0
      %507 = vmatprep.subr.bf16.mxu0 0
      %508 = vmatpush1.bf16.msra.mxu0 0
      %509 = vmatprep.subr.bf16.mxu0 0
      %510 = vmatpush1.bf16.msra.mxu0 0
      %511 = vmatprep.mubr.bf16.mxu0 0
      %512 = vmatmul.mubr.bf16.gmra.mrb[0].mxu0 %v413
      %v513 = vpop.f32.mrb[0].mxu0
      %v514 = vadd.f32 0.0, %v513
      %v515 = vpop.f32.mrb[0].mxu0
      %v516 = vpop.f32.mrb[0].mxu0
      %v517 = vpop.f32.mrb[0].mxu0
      %518 = vdwg.mxu0
      %v519 = vadd.f32 %v404, %v514
      %s520 = sadd.s32 %s190, 4
      %s521 = scalar_lea.vmem %s181, %s520
      %v522 = vld [vmem:[%s521] sm:$0xff]
      %v523 = vmax.f32 %v522, 0.0
      %v524 = vpack.c.bf16 %v523, %v523
      %s525 = scalar_lea.vmem %s1, 192
      %v526 = vld [vmem:[%s525] sm:$0xf]
      %v527 = vld [vmem:[%s525 + $0x4] sm:$0xf]
      %v528 = vld [vmem:[%s525 + $0x8] sm:$0xf]
      %v529 = vld [vmem:[%s525 + $0xc] sm:$0xf]
      %v530 = vld [vmem:[%s525 + $0x10] sm:$0xf]
      %v531 = vld [vmem:[%s525 + $0x14] sm:$0xf]
      %v532 = vld [vmem:[%s525 + $0x18] sm:$0xf]
      %v533 = vld [vmem:[%s525 + $0x1c] sm:$0xf]
      %v534 = vld [vmem:[%s525 + $0x20] sm:$0xf]
      %v535 = vld [vmem:[%s525 + $0x24] sm:$0xf]
      %v536 = vld [vmem:[%s525 + $0x28] sm:$0xf]
      %v537 = vld [vmem:[%s525 + $0x2c] sm:$0xf]
      %v538 = vld [vmem:[%s525 + $0x30] sm:$0xf]
      %v539 = vld [vmem:[%s525 + $0x34] sm:$0xf]
      %v540 = vld [vmem:[%s525 + $0x38] sm:$0xf]
      %v541 = vld [vmem:[%s525 + $0x3c] sm:$0xf]
      %v558 = vunpack.c.l.b16 %v526
      %v559 = vunpack.c.l.b16 %v527
      %v560 = vunpack.c.l.b16 %v528
      %v561 = vunpack.c.l.b16 %v529
      %v562 = vunpack.c.l.b16 %v530
      %v563 = vunpack.c.l.b16 %v531
      %v564 = vunpack.c.l.b16 %v532
      %v565 = vunpack.c.l.b16 %v533
      %v566 = vunpack.c.l.b16 %v534
      %v567 = vunpack.c.l.b16 %v535
      %v568 = vunpack.c.l.b16 %v536
      %v569 = vunpack.c.l.b16 %v537
      %v570 = vunpack.c.l.b16 %v538
      %v571 = vunpack.c.l.b16 %v539
      %v572 = vunpack.c.l.b16 %v540
      %v573 = vunpack.c.l.b16 %v541
      %v574 = vpack.c.b16 %v559, %v558
      %v575 = vpack.c.b16 %v561, %v560
      %v576 = vpack.c.b16 %v563, %v562
      %v577 = vpack.c.b16 %v565, %v564
      %v578 = vpack.c.b16 %v567, %v566
      %v579 = vpack.c.b16 %v569, %v568
      %v580 = vpack.c.b16 %v571, %v570
      %v581 = vpack.c.b16 %v573, %v572
      %590 = vmatprep.subr.bf16.mxu0 0
      %591 = vmatpush1.bf16.msra.mxu0 %v574
      %592 = vmatprep.subr.bf16.mxu0 0
      %593 = vmatpush1.bf16.msra.mxu0 %v575
      %594 = vmatprep.subr.bf16.mxu0 0
      %595 = vmatpush1.bf16.msra.mxu0 %v576
      %596 = vmatprep.subr.bf16.mxu0 0
      %597 = vmatpush1.bf16.msra.mxu0 %v577
      %598 = vmatprep.subr.bf16.mxu0 0
      %599 = vmatpush1.bf16.msra.mxu0 %v578
      %600 = vmatprep.subr.bf16.mxu0 0
      %601 = vmatpush1.bf16.msra.mxu0 %v579
      %602 = vmatprep.subr.bf16.mxu0 0
      %603 = vmatpush1.bf16.msra.mxu0 %v580
      %604 = vmatprep.subr.bf16.mxu0 0
      %605 = vmatpush1.bf16.msra.mxu0 %v581
      %606 = vmatprep.subr.bf16.mxu0 0
      %607 = vmatpush1.bf16.msra.mxu0 0
      %608 = vmatprep.subr.bf16.mxu0 0
      %609 = vmatpush1.bf16.msra.mxu0 0
      %610 = vmatprep.subr.bf16.mxu0 0
      %611 = vmatpush1.bf16.msra.mxu0 0
      %612 = vmatprep.subr.bf16.mxu0 0
      %613 = vmatpush1.bf16.msra.mxu0 0
      %614 = vmatprep.subr.bf16.mxu0 0
      %615 = vmatpush1.bf16.msra.mxu0 0
      %616 = vmatprep.subr.bf16.mxu0 0
      %617 = vmatpush1.bf16.msra.mxu0 0
      %618 = vmatprep.subr.bf16.mxu0 0
      %619 = vmatpush1.bf16.msra.mxu0 0
      %620 = vmatprep.subr.bf16.mxu0 0
      %621 = vmatpush1.bf16.msra.mxu0 0
      %622 = vmatprep.mubr.bf16.mxu0 0
      %623 = vmatmul.mubr.bf16.gmra.mrb[0].mxu0 %v524
      %v624 = vpop.f32.mrb[0].mxu0
      %v625 = vadd.f32 0.0, %v624
      %v626 = vpop.f32.mrb[0].mxu0
      %v627 = vpop.f32.mrb[0].mxu0
      %v628 = vpop.f32.mrb[0].mxu0
      %629 = vdwg.mxu0
      %v630 = vadd.f32 %v519, %v625
      %s631 = sadd.s32 %s190, 5
      %s632 = scalar_lea.vmem %s181, %s631
      %v633 = vld [vmem:[%s632] sm:$0xff]
      %v634 = vmax.f32 %v633, 0.0
      %v635 = vpack.c.bf16 %v634, %v634
      %s636 = scalar_lea.vmem %s1, 256
      %v637 = vld [vmem:[%s636] sm:$0xf]
      %v638 = vld [vmem:[%s636 + $0x4] sm:$0xf]
      %v639 = vld [vmem:[%s636 + $0x8] sm:$0xf]
      %v640 = vld [vmem:[%s636 + $0xc] sm:$0xf]
      %v641 = vld [vmem:[%s636 + $0x10] sm:$0xf]
      %v642 = vld [vmem:[%s636 + $0x14] sm:$0xf]
      %v643 = vld [vmem:[%s636 + $0x18] sm:$0xf]
      %v644 = vld [vmem:[%s636 + $0x1c] sm:$0xf]
      %v645 = vld [vmem:[%s636 + $0x20] sm:$0xf]
      %v646 = vld [vmem:[%s636 + $0x24] sm:$0xf]
      %v647 = vld [vmem:[%s636 + $0x28] sm:$0xf]
      %v648 = vld [vmem:[%s636 + $0x2c] sm:$0xf]
      %v649 = vld [vmem:[%s636 + $0x30] sm:$0xf]
      %v650 = vld [vmem:[%s636 + $0x34] sm:$0xf]
      %v651 = vld [vmem:[%s636 + $0x38] sm:$0xf]
      %v652 = vld [vmem:[%s636 + $0x3c] sm:$0xf]
      %v669 = vunpack.c.l.b16 %v637
      %v670 = vunpack.c.l.b16 %v638
      %v671 = vunpack.c.l.b16 %v639
      %v672 = vunpack.c.l.b16 %v640
      %v673 = vunpack.c.l.b16 %v641
      %v674 = vunpack.c.l.b16 %v642
      %v675 = vunpack.c.l.b16 %v643
      %v676 = vunpack.c.l.b16 %v644
      %v677 = vunpack.c.l.b16 %v645
      %v678 = vunpack.c.l.b16 %v646
      %v679 = vunpack.c.l.b16 %v647
      %v680 = vunpack.c.l.b16 %v648
      %v681 = vunpack.c.l.b16 %v649
      %v682 = vunpack.c.l.b16 %v650
      %v683 = vunpack.c.l.b16 %v651
      %v684 = vunpack.c.l.b16 %v652
      %v685 = vpack.c.b16 %v670, %v669
      %v686 = vpack.c.b16 %v672, %v671
      %v687 = vpack.c.b16 %v674, %v673
      %v688 = vpack.c.b16 %v676, %v675
      %v689 = vpack.c.b16 %v678, %v677
      %v690 = vpack.c.b16 %v680, %v679
      %v691 = vpack.c.b16 %v682, %v681
      %v692 = vpack.c.b16 %v684, %v683
      %701 = vmatprep.subr.bf16.mxu0 0
      %702 = vmatpush1.bf16.msra.mxu0 %v685
      %703 = vmatprep.subr.bf16.mxu0 0
      %704 = vmatpush1.bf16.msra.mxu0 %v686
      %705 = vmatprep.subr.bf16.mxu0 0
      %706 = vmatpush1.bf16.msra.mxu0 %v687
      %707 = vmatprep.subr.bf16.mxu0 0
      %708 = vmatpush1.bf16.msra.mxu0 %v688
      %709 = vmatprep.subr.bf16.mxu0 0
      %710 = vmatpush1.bf16.msra.mxu0 %v689
      %711 = vmatprep.subr.bf16.mxu0 0
      %712 = vmatpush1.bf16.msra.mxu0 %v690
      %713 = vmatprep.subr.bf16.mxu0 0
      %714 = vmatpush1.bf16.msra.mxu0 %v691
      %715 = vmatprep.subr.bf16.mxu0 0
      %716 = vmatpush1.bf16.msra.mxu0 %v692
      %717 = vmatprep.subr.bf16.mxu0 0
      %718 = vmatpush1.bf16.msra.mxu0 0
      %719 = vmatprep.subr.bf16.mxu0 0
      %720 = vmatpush1.bf16.msra.mxu0 0
      %721 = vmatprep.subr.bf16.mxu0 0
      %722 = vmatpush1.bf16.msra.mxu0 0
      %723 = vmatprep.subr.bf16.mxu0 0
      %724 = vmatpush1.bf16.msra.mxu0 0
      %725 = vmatprep.subr.bf16.mxu0 0
      %726 = vmatpush1.bf16.msra.mxu0 0
      %727 = vmatprep.subr.bf16.mxu0 0
      %728 = vmatpush1.bf16.msra.mxu0 0
      %729 = vmatprep.subr.bf16.mxu0 0
      %730 = vmatpush1.bf16.msra.mxu0 0
      %731 = vmatprep.subr.bf16.mxu0 0
      %732 = vmatpush1.bf16.msra.mxu0 0
      %733 = vmatprep.mubr.bf16.mxu0 0
      %734 = vmatmul.mubr.bf16.gmra.mrb[0].mxu0 %v635
      %v735 = vpop.f32.mrb[0].mxu0
      %v736 = vadd.f32 0.0, %v735
      %v737 = vpop.f32.mrb[0].mxu0
      %v738 = vpop.f32.mrb[0].mxu0
      %v739 = vpop.f32.mrb[0].mxu0
      %740 = vdwg.mxu0
      %v741 = vadd.f32 %v630, %v736
      %s742 = sadd.s32 %s190, 6
      %s743 = scalar_lea.vmem %s181, %s742
      %v744 = vld [vmem:[%s743] sm:$0xff]
      %v745 = vmax.f32 %v744, 0.0
      %v746 = vpack.c.bf16 %v745, %v745
      %s747 = scalar_lea.vmem %s1, 320
      %v748 = vld [vmem:[%s747] sm:$0xf]
      %v749 = vld [vmem:[%s747 + $0x4] sm:$0xf]
      %v750 = vld [vmem:[%s747 + $0x8] sm:$0xf]
      %v751 = vld [vmem:[%s747 + $0xc] sm:$0xf]
      %v752 = vld [vmem:[%s747 + $0x10] sm:$0xf]
      %v753 = vld [vmem:[%s747 + $0x14] sm:$0xf]
      %v754 = vld [vmem:[%s747 + $0x18] sm:$0xf]
      %v755 = vld [vmem:[%s747 + $0x1c] sm:$0xf]
      %v756 = vld [vmem:[%s747 + $0x20] sm:$0xf]
      %v757 = vld [vmem:[%s747 + $0x24] sm:$0xf]
      %v758 = vld [vmem:[%s747 + $0x28] sm:$0xf]
      %v759 = vld [vmem:[%s747 + $0x2c] sm:$0xf]
      %v760 = vld [vmem:[%s747 + $0x30] sm:$0xf]
      %v761 = vld [vmem:[%s747 + $0x34] sm:$0xf]
      %v762 = vld [vmem:[%s747 + $0x38] sm:$0xf]
      %v763 = vld [vmem:[%s747 + $0x3c] sm:$0xf]
      %v780 = vunpack.c.l.b16 %v748
      %v781 = vunpack.c.l.b16 %v749
      %v782 = vunpack.c.l.b16 %v750
      %v783 = vunpack.c.l.b16 %v751
      %v784 = vunpack.c.l.b16 %v752
      %v785 = vunpack.c.l.b16 %v753
      %v786 = vunpack.c.l.b16 %v754
      %v787 = vunpack.c.l.b16 %v755
      %v788 = vunpack.c.l.b16 %v756
      %v789 = vunpack.c.l.b16 %v757
      %v790 = vunpack.c.l.b16 %v758
      %v791 = vunpack.c.l.b16 %v759
      %v792 = vunpack.c.l.b16 %v760
      %v793 = vunpack.c.l.b16 %v761
      %v794 = vunpack.c.l.b16 %v762
      %v795 = vunpack.c.l.b16 %v763
      %v796 = vpack.c.b16 %v781, %v780
      %v797 = vpack.c.b16 %v783, %v782
      %v798 = vpack.c.b16 %v785, %v784
      %v799 = vpack.c.b16 %v787, %v786
      %v800 = vpack.c.b16 %v789, %v788
      %v801 = vpack.c.b16 %v791, %v790
      %v802 = vpack.c.b16 %v793, %v792
      %v803 = vpack.c.b16 %v795, %v794
      %812 = vmatprep.subr.bf16.mxu0 0
      %813 = vmatpush1.bf16.msra.mxu0 %v796
      %814 = vmatprep.subr.bf16.mxu0 0
      %815 = vmatpush1.bf16.msra.mxu0 %v797
      %816 = vmatprep.subr.bf16.mxu0 0
      %817 = vmatpush1.bf16.msra.mxu0 %v798
      %818 = vmatprep.subr.bf16.mxu0 0
      %819 = vmatpush1.bf16.msra.mxu0 %v799
      %820 = vmatprep.subr.bf16.mxu0 0
      %821 = vmatpush1.bf16.msra.mxu0 %v800
      %822 = vmatprep.subr.bf16.mxu0 0
      %823 = vmatpush1.bf16.msra.mxu0 %v801
      %824 = vmatprep.subr.bf16.mxu0 0
      %825 = vmatpush1.bf16.msra.mxu0 %v802
      %826 = vmatprep.subr.bf16.mxu0 0
      %827 = vmatpush1.bf16.msra.mxu0 %v803
      %828 = vmatprep.subr.bf16.mxu0 0
      %829 = vmatpush1.bf16.msra.mxu0 0
      %830 = vmatprep.subr.bf16.mxu0 0
      %831 = vmatpush1.bf16.msra.mxu0 0
      %832 = vmatprep.subr.bf16.mxu0 0
      %833 = vmatpush1.bf16.msra.mxu0 0
      %834 = vmatprep.subr.bf16.mxu0 0
      %835 = vmatpush1.bf16.msra.mxu0 0
      %836 = vmatprep.subr.bf16.mxu0 0
      %837 = vmatpush1.bf16.msra.mxu0 0
      %838 = vmatprep.subr.bf16.mxu0 0
      %839 = vmatpush1.bf16.msra.mxu0 0
      %840 = vmatprep.subr.bf16.mxu0 0
      %841 = vmatpush1.bf16.msra.mxu0 0
      %842 = vmatprep.subr.bf16.mxu0 0
      %843 = vmatpush1.bf16.msra.mxu0 0
      %844 = vmatprep.mubr.bf16.mxu0 0
      %845 = vmatmul.mubr.bf16.gmra.mrb[0].mxu0 %v746
      %v846 = vpop.f32.mrb[0].mxu0
      %v847 = vadd.f32 0.0, %v846
      %v848 = vpop.f32.mrb[0].mxu0
      %v849 = vpop.f32.mrb[0].mxu0
      %v850 = vpop.f32.mrb[0].mxu0
      %851 = vdwg.mxu0
      %v852 = vadd.f32 %v741, %v847
      %s853 = sadd.s32 %s190, 8
      %s854 = scalar_lea.vmem %s181, %s853
      %v855 = vld [vmem:[%s854] sm:$0xff]
      %v856 = vmax.f32 %v855, 0.0
      %v857 = vpack.c.bf16 %v856, %v856
      %s858 = scalar_lea.vmem %s1, 384
      %v859 = vld [vmem:[%s858] sm:$0xf]
      %v860 = vld [vmem:[%s858 + $0x4] sm:$0xf]
      %v861 = vld [vmem:[%s858 + $0x8] sm:$0xf]
      %v862 = vld [vmem:[%s858 + $0xc] sm:$0xf]
      %v863 = vld [vmem:[%s858 + $0x10] sm:$0xf]
      %v864 = vld [vmem:[%s858 + $0x14] sm:$0xf]
      %v865 = vld [vmem:[%s858 + $0x18] sm:$0xf]
      %v866 = vld [vmem:[%s858 + $0x1c] sm:$0xf]
      %v867 = vld [vmem:[%s858 + $0x20] sm:$0xf]
      %v868 = vld [vmem:[%s858 + $0x24] sm:$0xf]
      %v869 = vld [vmem:[%s858 + $0x28] sm:$0xf]
      %v870 = vld [vmem:[%s858 + $0x2c] sm:$0xf]
      %v871 = vld [vmem:[%s858 + $0x30] sm:$0xf]
      %v872 = vld [vmem:[%s858 + $0x34] sm:$0xf]
      %v873 = vld [vmem:[%s858 + $0x38] sm:$0xf]
      %v874 = vld [vmem:[%s858 + $0x3c] sm:$0xf]
      %v891 = vunpack.c.l.b16 %v859
      %v892 = vunpack.c.l.b16 %v860
      %v893 = vunpack.c.l.b16 %v861
      %v894 = vunpack.c.l.b16 %v862
      %v895 = vunpack.c.l.b16 %v863
      %v896 = vunpack.c.l.b16 %v864
      %v897 = vunpack.c.l.b16 %v865
      %v898 = vunpack.c.l.b16 %v866
      %v899 = vunpack.c.l.b16 %v867
      %v900 = vunpack.c.l.b16 %v868
      %v901 = vunpack.c.l.b16 %v869
      %v902 = vunpack.c.l.b16 %v870
      %v903 = vunpack.c.l.b16 %v871
      %v904 = vunpack.c.l.b16 %v872
      %v905 = vunpack.c.l.b16 %v873
      %v906 = vunpack.c.l.b16 %v874
      %v907 = vpack.c.b16 %v892, %v891
      %v908 = vpack.c.b16 %v894, %v893
      %v909 = vpack.c.b16 %v896, %v895
      %v910 = vpack.c.b16 %v898, %v897
      %v911 = vpack.c.b16 %v900, %v899
      %v912 = vpack.c.b16 %v902, %v901
      %v913 = vpack.c.b16 %v904, %v903
      %v914 = vpack.c.b16 %v906, %v905
      %923 = vmatprep.subr.bf16.mxu0 0
      %924 = vmatpush1.bf16.msra.mxu0 %v907
      %925 = vmatprep.subr.bf16.mxu0 0
      %926 = vmatpush1.bf16.msra.mxu0 %v908
      %927 = vmatprep.subr.bf16.mxu0 0
      %928 = vmatpush1.bf16.msra.mxu0 %v909
      %929 = vmatprep.subr.bf16.mxu0 0
      %930 = vmatpush1.bf16.msra.mxu0 %v910
      %931 = vmatprep.subr.bf16.mxu0 0
      %932 = vmatpush1.bf16.msra.mxu0 %v911
      %933 = vmatprep.subr.bf16.mxu0 0
      %934 = vmatpush1.bf16.msra.mxu0 %v912
      %935 = vmatprep.subr.bf16.mxu0 0
      %936 = vmatpush1.bf16.msra.mxu0 %v913
      %937 = vmatprep.subr.bf16.mxu0 0
      %938 = vmatpush1.bf16.msra.mxu0 %v914
      %939 = vmatprep.subr.bf16.mxu0 0
      %940 = vmatpush1.bf16.msra.mxu0 0
      %941 = vmatprep.subr.bf16.mxu0 0
      %942 = vmatpush1.bf16.msra.mxu0 0
      %943 = vmatprep.subr.bf16.mxu0 0
      %944 = vmatpush1.bf16.msra.mxu0 0
      %945 = vmatprep.subr.bf16.mxu0 0
      %946 = vmatpush1.bf16.msra.mxu0 0
      %947 = vmatprep.subr.bf16.mxu0 0
      %948 = vmatpush1.bf16.msra.mxu0 0
      %949 = vmatprep.subr.bf16.mxu0 0
      %950 = vmatpush1.bf16.msra.mxu0 0
      %951 = vmatprep.subr.bf16.mxu0 0
      %952 = vmatpush1.bf16.msra.mxu0 0
      %953 = vmatprep.subr.bf16.mxu0 0
      %954 = vmatpush1.bf16.msra.mxu0 0
      %955 = vmatprep.mubr.bf16.mxu0 0
      %956 = vmatmul.mubr.bf16.gmra.mrb[0].mxu0 %v857
      %v957 = vpop.f32.mrb[0].mxu0
      %v958 = vadd.f32 0.0, %v957
      %v959 = vpop.f32.mrb[0].mxu0
      %v960 = vpop.f32.mrb[0].mxu0
      %v961 = vpop.f32.mrb[0].mxu0
      %962 = vdwg.mxu0
      %v963 = vadd.f32 %v852, %v958
      %s964 = sadd.s32 %s190, 9
      %s965 = scalar_lea.vmem %s181, %s964
      %v966 = vld [vmem:[%s965] sm:$0xff]
      %v967 = vmax.f32 %v966, 0.0
      %v968 = vpack.c.bf16 %v967, %v967
      %s969 = scalar_lea.vmem %s1, 448
      %v970 = vld [vmem:[%s969] sm:$0xf]
      %v971 = vld [vmem:[%s969 + $0x4] sm:$0xf]
      %v972 = vld [vmem:[%s969 + $0x8] sm:$0xf]
      %v973 = vld [vmem:[%s969 + $0xc] sm:$0xf]
      %v974 = vld [vmem:[%s969 + $0x10] sm:$0xf]
      %v975 = vld [vmem:[%s969 + $0x14] sm:$0xf]
      %v976 = vld [vmem:[%s969 + $0x18] sm:$0xf]
      %v977 = vld [vmem:[%s969 + $0x1c] sm:$0xf]
      %v978 = vld [vmem:[%s969 + $0x20] sm:$0xf]
      %v979 = vld [vmem:[%s969 + $0x24] sm:$0xf]
      %v980 = vld [vmem:[%s969 + $0x28] sm:$0xf]
      %v981 = vld [vmem:[%s969 + $0x2c] sm:$0xf]
      %v982 = vld [vmem:[%s969 + $0x30] sm:$0xf]
      %v983 = vld [vmem:[%s969 + $0x34] sm:$0xf]
      %v984 = vld [vmem:[%s969 + $0x38] sm:$0xf]
      %v985 = vld [vmem:[%s969 + $0x3c] sm:$0xf]
      %v1002 = vunpack.c.l.b16 %v970
      %v1003 = vunpack.c.l.b16 %v971
      %v1004 = vunpack.c.l.b16 %v972
      %v1005 = vunpack.c.l.b16 %v973
      %v1006 = vunpack.c.l.b16 %v974
      %v1007 = vunpack.c.l.b16 %v975
      %v1008 = vunpack.c.l.b16 %v976
      %v1009 = vunpack.c.l.b16 %v977
      %v1010 = vunpack.c.l.b16 %v978
      %v1011 = vunpack.c.l.b16 %v979
      %v1012 = vunpack.c.l.b16 %v980
      %v1013 = vunpack.c.l.b16 %v981
      %v1014 = vunpack.c.l.b16 %v982
      %v1015 = vunpack.c.l.b16 %v983
      %v1016 = vunpack.c.l.b16 %v984
      %v1017 = vunpack.c.l.b16 %v985
      %v1018 = vpack.c.b16 %v1003, %v1002
      %v1019 = vpack.c.b16 %v1005, %v1004
      %v1020 = vpack.c.b16 %v1007, %v1006
      %v1021 = vpack.c.b16 %v1009, %v1008
      %v1022 = vpack.c.b16 %v1011, %v1010
      %v1023 = vpack.c.b16 %v1013, %v1012
      %v1024 = vpack.c.b16 %v1015, %v1014
      %v1025 = vpack.c.b16 %v1017, %v1016
      %1034 = vmatprep.subr.bf16.mxu0 0
      %1035 = vmatpush1.bf16.msra.mxu0 %v1018
      %1036 = vmatprep.subr.bf16.mxu0 0
      %1037 = vmatpush1.bf16.msra.mxu0 %v1019
      %1038 = vmatprep.subr.bf16.mxu0 0
      %1039 = vmatpush1.bf16.msra.mxu0 %v1020
      %1040 = vmatprep.subr.bf16.mxu0 0
      %1041 = vmatpush1.bf16.msra.mxu0 %v1021
      %1042 = vmatprep.subr.bf16.mxu0 0
      %1043 = vmatpush1.bf16.msra.mxu0 %v1022
      %1044 = vmatprep.subr.bf16.mxu0 0
      %1045 = vmatpush1.bf16.msra.mxu0 %v1023
      %1046 = vmatprep.subr.bf16.mxu0 0
      %1047 = vmatpush1.bf16.msra.mxu0 %v1024
      %1048 = vmatprep.subr.bf16.mxu0 0
      %1049 = vmatpush1.bf16.msra.mxu0 %v1025
      %1050 = vmatprep.subr.bf16.mxu0 0
      %1051 = vmatpush1.bf16.msra.mxu0 0
      %1052 = vmatprep.subr.bf16.mxu0 0
      %1053 = vmatpush1.bf16.msra.mxu0 0
      %1054 = vmatprep.subr.bf16.mxu0 0
      %1055 = vmatpush1.bf16.msra.mxu0 0
      %1056 = vmatprep.subr.bf16.mxu0 0
      %1057 = vmatpush1.bf16.msra.mxu0 0
      %1058 = vmatprep.subr.bf16.mxu0 0
      %1059 = vmatpush1.bf16.msra.mxu0 0
      %1060 = vmatprep.subr.bf16.mxu0 0
      %1061 = vmatpush1.bf16.msra.mxu0 0
      %1062 = vmatprep.subr.bf16.mxu0 0
      %1063 = vmatpush1.bf16.msra.mxu0 0
      %1064 = vmatprep.subr.bf16.mxu0 0
      %1065 = vmatpush1.bf16.msra.mxu0 0
      %1066 = vmatprep.mubr.bf16.mxu0 0
      %1067 = vmatmul.mubr.bf16.gmra.mrb[0].mxu0 %v968
      %v1068 = vpop.f32.mrb[0].mxu0
      %v1069 = vadd.f32 0.0, %v1068
      %v1070 = vpop.f32.mrb[0].mxu0
      %v1071 = vpop.f32.mrb[0].mxu0
      %v1072 = vpop.f32.mrb[0].mxu0
      %1073 = vdwg.mxu0
      %v1074 = vadd.f32 %v963, %v1069
      %s1075 = sadd.s32 %s190, 10
      %s1076 = scalar_lea.vmem %s181, %s1075
      %v1077 = vld [vmem:[%s1076] sm:$0xff]
      %v1078 = vmax.f32 %v1077, 0.0
      %v1079 = vpack.c.bf16 %v1078, %v1078
      %s1080 = scalar_lea.vmem %s1, 512
      %v1081 = vld [vmem:[%s1080] sm:$0xf]
      %v1082 = vld [vmem:[%s1080 + $0x4] sm:$0xf]
      %v1083 = vld [vmem:[%s1080 + $0x8] sm:$0xf]
      %v1084 = vld [vmem:[%s1080 + $0xc] sm:$0xf]
      %v1085 = vld [vmem:[%s1080 + $0x10] sm:$0xf]
      %v1086 = vld [vmem:[%s1080 + $0x14] sm:$0xf]
      %v1087 = vld [vmem:[%s1080 + $0x18] sm:$0xf]
      %v1088 = vld [vmem:[%s1080 + $0x1c] sm:$0xf]
      %v1089 = vld [vmem:[%s1080 + $0x20] sm:$0xf]
      %v1090 = vld [vmem:[%s1080 + $0x24] sm:$0xf]
      %v1091 = vld [vmem:[%s1080 + $0x28] sm:$0xf]
      %v1092 = vld [vmem:[%s1080 + $0x2c] sm:$0xf]
      %v1093 = vld [vmem:[%s1080 + $0x30] sm:$0xf]
      %v1094 = vld [vmem:[%s1080 + $0x34] sm:$0xf]
      %v1095 = vld [vmem:[%s1080 + $0x38] sm:$0xf]
      %v1096 = vld [vmem:[%s1080 + $0x3c] sm:$0xf]
      %v1113 = vunpack.c.l.b16 %v1081
      %v1114 = vunpack.c.l.b16 %v1082
      %v1115 = vunpack.c.l.b16 %v1083
      %v1116 = vunpack.c.l.b16 %v1084
      %v1117 = vunpack.c.l.b16 %v1085
      %v1118 = vunpack.c.l.b16 %v1086
      %v1119 = vunpack.c.l.b16 %v1087
      %v1120 = vunpack.c.l.b16 %v1088
      %v1121 = vunpack.c.l.b16 %v1089
      %v1122 = vunpack.c.l.b16 %v1090
      %v1123 = vunpack.c.l.b16 %v1091
      %v1124 = vunpack.c.l.b16 %v1092
      %v1125 = vunpack.c.l.b16 %v1093
      %v1126 = vunpack.c.l.b16 %v1094
      %v1127 = vunpack.c.l.b16 %v1095
      %v1128 = vunpack.c.l.b16 %v1096
      %v1129 = vpack.c.b16 %v1114, %v1113
      %v1130 = vpack.c.b16 %v1116, %v1115
      %v1131 = vpack.c.b16 %v1118, %v1117
      %v1132 = vpack.c.b16 %v1120, %v1119
      %v1133 = vpack.c.b16 %v1122, %v1121
      %v1134 = vpack.c.b16 %v1124, %v1123
      %v1135 = vpack.c.b16 %v1126, %v1125
      %v1136 = vpack.c.b16 %v1128, %v1127
      %1145 = vmatprep.subr.bf16.mxu0 0
      %1146 = vmatpush1.bf16.msra.mxu0 %v1129
      %1147 = vmatprep.subr.bf16.mxu0 0
      %1148 = vmatpush1.bf16.msra.mxu0 %v1130
      %1149 = vmatprep.subr.bf16.mxu0 0
      %1150 = vmatpush1.bf16.msra.mxu0 %v1131
      %1151 = vmatprep.subr.bf16.mxu0 0
      %1152 = vmatpush1.bf16.msra.mxu0 %v1132
      %1153 = vmatprep.subr.bf16.mxu0 0
      %1154 = vmatpush1.bf16.msra.mxu0 %v1133
      %1155 = vmatprep.subr.bf16.mxu0 0
      %1156 = vmatpush1.bf16.msra.mxu0 %v1134
      %1157 = vmatprep.subr.bf16.mxu0 0
      %1158 = vmatpush1.bf16.msra.mxu0 %v1135
      %1159 = vmatprep.subr.bf16.mxu0 0
      %1160 = vmatpush1.bf16.msra.mxu0 %v1136
      %1161 = vmatprep.subr.bf16.mxu0 0
      %1162 = vmatpush1.bf16.msra.mxu0 0
      %1163 = vmatprep.subr.bf16.mxu0 0
      %1164 = vmatpush1.bf16.msra.mxu0 0
      %1165 = vmatprep.subr.bf16.mxu0 0
      %1166 = vmatpush1.bf16.msra.mxu0 0
      %1167 = vmatprep.subr.bf16.mxu0 0
      %1168 = vmatpush1.bf16.msra.mxu0 0
      %1169 = vmatprep.subr.bf16.mxu0 0
      %1170 = vmatpush1.bf16.msra.mxu0 0
      %1171 = vmatprep.subr.bf16.mxu0 0
      %1172 = vmatpush1.bf16.msra.mxu0 0
      %1173 = vmatprep.subr.bf16.mxu0 0
      %1174 = vmatpush1.bf16.msra.mxu0 0
      %1175 = vmatprep.subr.bf16.mxu0 0
      %1176 = vmatpush1.bf16.msra.mxu0 0
      %1177 = vmatprep.mubr.bf16.mxu0 0
      %1178 = vmatmul.mubr.bf16.gmra.mrb[0].mxu0 %v1079
      %v1179 = vpop.f32.mrb[0].mxu0
      %v1180 = vadd.f32 0.0, %v1179
      %v1181 = vpop.f32.mrb[0].mxu0
      %v1182 = vpop.f32.mrb[0].mxu0
      %v1183 = vpop.f32.mrb[0].mxu0
      %1184 = vdwg.mxu0
      %v1185 = vadd.f32 %v1074, %v1180
      %v1186 = vld [vmem:[%s2] sm:$0x1]
      %v1188 = vlaneseq
      %v1189 = vshrl.u32 %v1188, 7
      %v1190 = vsub.s32 0, %v1189
      %v1191 = vrot.slane %v1186, %v1190
      %v1193 = vadd.f32 %v1185, %v1191
      %1194 = vst [vmem:[%s188] sm:$0xff] %v1193
      %p1195 = scmp.lt.s32.totalorder %s18, 1
      %s1196 = scalar_select %p1195, %s18, 1
      %p1197 = scmp.lt.s32.totalorder %s19, 0
      %s1198 = scalar_select %p1197, %s19, 0
      %s1199 = sadd.s32 %s1198, %s1196
      %s1200 = smul.addr %s1199, 8
      %s1201 = scalar_lea.vmem %s3, %s1200
      // Predicated region
      $region33: #{fpn_forward.12} parent=31 // pred_check
        %p1202 = pneg %p114
      $region34: #{fpn_forward.12} parent=31 // pred_check_branch
        %1204 = sbr.rel (%p1202) target = $region36
      $region35: #{fpn_forward.12} parent=31 // pred_region
        _
      $region36: #{fpn_forward.12} parent=31 // pred_fallthru
        _
    $region32: #{fpn_forward.12} parent=5 // pred_fallthru
      _
    %p1205 = scmp.le.s32.totalorder 2, %s9
    // Predicated region
    $region37: #{fpn_forward.12} parent=5 // pred_check
      %p1206 = pneg %p1205
    $region38: #{fpn_forward.12} parent=5 // pred_check_branch
      %1208 = sbr.rel (%p1206) target = $region40
    $region39: #{fpn_forward.12} parent=5 // pred_region
      %s1209 = ssub.s32 %s9, 2
      // Predicated region
      $region41: #{fpn_forward.12} parent=39 // pred_check
        %p1210 = pneg %p120
      $region42: #{fpn_forward.12} parent=39 // pred_check_branch
        %1212 = sbr.rel (%p1210) target = $region44
      $region43: #{fpn_forward.12} parent=39 // pred_region
        %p1213 = scmp.lt.s32.totalorder %s20, 1
        %s1214 = scalar_select %p1213, %s20, 1
        %p1215 = scmp.lt.s32.totalorder %s21, 0
        %s1216 = scalar_select %p1215, %s21, 0
        %s1217 = sadd.s32 %s1216, %s1214
        %s1218 = smul.addr %s1217, 8
        %s1219 = scalar_lea.vmem %s3, %s1218
      $region44: #{fpn_forward.12} parent=39 // pred_fallthru
        _
    $region40: #{fpn_forward.12} parent=5 // pred_fallthru
      _
  $region6: #{fpn_forward.12} parent=0 // loop_footer
    %s13 = sadd.s32 1, %s9
  $region7: #{fpn_forward.12} parent=0 // loop_footer_branch
    %8 = sbr.rel target = $region3
  $region8: #{fpn_forward.12} parent=0 // loop_exit
    _

</llo_original>
